<compile_context>
chip_gen: v5e
topology: v5e:2x2
jax: 0.10.0
libtpu: 0.0.40
codegen_flags: <defaults>
</compile_context>

<pallas_src>
import functools

import jax
import jax.numpy as jnp
from jax.experimental import pallas as pl
from jax.experimental.pallas import tpu as pltpu

LN_EPS = 1e-6
GRN_EPS = 1e-6
MARGIN = 8   # zero-halo rows on each side of the staged input (8-row aligned, >= conv pad)


def _sigmoid(x):
    # Explicit formulation keeps the Mosaic and XLA lowerings numerically aligned.
    return 1.0 / (1.0 + jnp.exp(-x))


def _conv_ln_glu(xp_ref, start, tT, cw_ref, cb_ref, lnw_ref, lnb_ref,
                 w13_ref, b13_ref, *, K, dilation, H):
    """Depthwise conv + LayerNorm + fused GLU (W1 || W3) for one tile -> h (tT, H) f32."""
    pad = (K - 1) * dilation // 2
    Nw = tT + 2 * MARGIN
    w = xp_ref[pl.ds(start, Nw), :]              # aligned (tT + 2*MARGIN, C) window
    cw = cw_ref[...]                             # (K, C)
    y = None
    for k in range(K):                           # K is a small static constant
        s = k * dilation - pad                   # tap offset in [-pad, pad]
        shift = (Nw - (MARGIN + s)) % Nw         # roll so tap rows land at [0, tT)
        tap = pltpu.roll(w, shift=shift, axis=0)[0:tT, :]     # XLU slot, no unaligned loads
        contrib = tap * cw[k:k + 1, :]
        y = contrib + cb_ref[...] if y is None else y + contrib  # bias folded into tap 0

    # LayerNorm over channels (f32); sqrt + exact divide.
    mu = jnp.mean(y, axis=-1, keepdims=True)
    var = jnp.mean(jnp.square(y - mu), axis=-1, keepdims=True)
    yn = (y - mu) * (1.0 / jnp.sqrt(var + LN_EPS)) * lnw_ref[...] + lnb_ref[...]

    # Fused GLU matmul: one (C, 2H) bf16 MXU push instead of two half-width ones.
    av = jnp.dot(yn.astype(jnp.bfloat16), w13_ref[...],
                 preferred_element_type=jnp.float32) + b13_ref[...]
    a = av[:, :H]
    v = av[:, H:]
    return (a * _sigmoid(a)) * v                 # SiLU(a) * v, f32


def _grn_project(hq, nx, gam_ref, bet_ref, w2_ref, b2_ref):
    """GRN apply + 4C -> C projection (bf16 MXU, f32 accumulation)."""
    hg = gam_ref[...] * (hq * nx) + bet_ref[...] + hq
    return jnp.dot(hg.astype(jnp.bfloat16), w2_ref[...],
                   preferred_element_type=jnp.float32) + b2_ref[...]


def _block_kernel_2pass(x_hbm, cw_ref, cb_ref, lnw_ref, lnb_ref, w13_ref, b13_ref,
                        gam_ref, bet_ref, w2_ref, b2_ref, o_ref,
                        xp_ref, h_ref, gx2_ref, nx_ref, dma_sem,
                        *, K, dilation, T, tT, H):
    """grid = (batch, pass, t_tile).  pass 0: h + GRN stats (h cached); pass 1: apply."""
    b = pl.program_id(0)
    p = pl.program_id(1)
    ti = pl.program_id(2)
    C = o_ref.shape[-1]

    @pl.when(jnp.logical_and(p == 0, ti == 0))
    def _stage():
        # Halos are re-zeroed per batch element (2*MARGIN rows, negligible): a `b == 0`-only
        # guard would break if the batch axis is ever megacore-sharded across cores.
        zeros = jnp.zeros((MARGIN, C), jnp.float32)
        xp_ref[pl.ds(0, MARGIN), :] = zeros
        xp_ref[pl.ds(MARGIN + T, MARGIN), :] = zeros
        cp = pltpu.make_async_copy(x_hbm.at[b], xp_ref.at[pl.ds(MARGIN, T), :], dma_sem)
        cp.start()
        cp.wait()
        # TODO(synk): double-buffer xp_ref and prefetch batch b+1's x during pass 1.
        gx2_ref[...] = jnp.zeros_like(gx2_ref)

    start = pl.multiple_of(ti * tT, 16)          # tT % 16 == 0 on this path (bf16 cache)

    @pl.when(p == 0)
    def _stats():
        h = _conv_ln_glu(xp_ref, start, tT, cw_ref, cb_ref, lnw_ref, lnb_ref,
                         w13_ref, b13_ref, K=K, dilation=dilation, H=H)
        gx2_ref[...] += jnp.sum(h * h, axis=0, keepdims=True)   # exact f32 accumulation
        h_ref[pl.ds(start, tT), :] = h.astype(jnp.bfloat16)     # pass 1 skips the recompute

    @pl.when(p == 1)
    def _apply():
        @pl.when(ti == 0)
        def _finalize():
            gx = jnp.sqrt(gx2_ref[...])                          # (1, 4C)
            nx_ref[...] = gx / (jnp.mean(gx, axis=-1, keepdims=True) + GRN_EPS)  # exact div
        hq = h_ref[pl.ds(start, tT), :].astype(jnp.float32)
        out = _grn_project(hq, nx_ref[...], gam_ref, bet_ref, w2_ref, b2_ref)
        res_start = pl.multiple_of(start + MARGIN, 8)
        o_ref[0] = xp_ref[pl.ds(res_start, tT), :] + out         # residual


def _block_kernel_1pass(x_hbm, cw_ref, cb_ref, lnw_ref, lnb_ref, w13_ref, b13_ref,
                        gam_ref, bet_ref, w2_ref, b2_ref, o_ref,
                        xp_ref, dma_sem, *, K, dilation, T, H):
    """Fast path when the whole sequence fits one tile: grid = (batch,)."""
    b = pl.program_id(0)
    C = o_ref.shape[-1]
    zeros = jnp.zeros((MARGIN, C), jnp.float32)
    xp_ref[pl.ds(0, MARGIN), :] = zeros
    xp_ref[pl.ds(MARGIN + T, MARGIN), :] = zeros
    cp = pltpu.make_async_copy(x_hbm.at[b], xp_ref.at[pl.ds(MARGIN, T), :], dma_sem)
    cp.start()
    cp.wait()
    h = _conv_ln_glu(xp_ref, 0, T, cw_ref, cb_ref, lnw_ref, lnb_ref,
                     w13_ref, b13_ref, K=K, dilation=dilation, H=H)
    gx = jnp.sqrt(jnp.sum(h * h, axis=0, keepdims=True))
    nx = gx / (jnp.mean(gx, axis=-1, keepdims=True) + GRN_EPS)
    hq = h.astype(jnp.bfloat16).astype(jnp.float32)   # match the two-pass bf16 h cache
    out = _grn_project(hq, nx, gam_ref, bet_ref, w2_ref, b2_ref)
    o_ref[0] = xp_ref[pl.ds(MARGIN, T), :] + out


def convnext_v2_glu_block(x_btc, params, *, kernel_size=5, dilation=1, tile_t=None,
                          vmem_limit_bytes=None):
    """One ConvNeXtV2GLULike block.  x_btc: (B, T, C) float32, channels-last."""
    (cw, cb, lnw, lnb, w1, b1, w3, b3, gamma, beta, w2, b2) = params
    B, T, C = x_btc.shape
    H = w1.shape[1]
    pad = (kernel_size - 1) * dilation // 2
    if pad > MARGIN:
        raise ValueError("kernel_size/dilation exceed the supported halo (pad <= 8)")

    if tile_t is None:
        tile_t = T if T <= 256 else 256            # 256-row M tiles fill the v6e/v7x MXU
        while T % tile_t != 0 and tile_t > 16:
            tile_t //= 2
    if T % tile_t != 0:
        raise ValueError("T must be divisible by tile_t")
    n_t = T // tile_t
    if n_t > 1 and tile_t % 16 != 0:
        raise ValueError("multi-tile path caches h in bf16; tile_t must be a multiple of 16")
    if tile_t % 8 != 0:
        raise ValueError("tile_t must be a multiple of 8")

    x_btc = x_btc.astype(jnp.float32)
    # GLU branches fused into one wide MXU push (W1 || W3), bf16 operands.
    w13 = jnp.concatenate([w1, w3], axis=1).astype(jnp.bfloat16)
    b13 = jnp.concatenate([b1, b3], axis=1).astype(jnp.float32)
    w2b = w2.astype(jnp.bfloat16)
    weights = (cw.astype(jnp.float32), cb, lnw, lnb, w13, b13, gamma, beta, w2b, b2)

    # VMEM budget: haloed x + (multi-tile) bf16 h cache + GRN stats + double-buffered
    # weights/output blocks.  Demo sizes land on the 32 MiB floor.
    halo_b = (T + 2 * MARGIN) * C * 4
    cache_b = (T * H * 2 + 2 * H * 4) if n_t > 1 else 0
    w_b = (kernel_size + 3) * C * 4 + C * 2 * H * 2 + 4 * H * 4 + H * C * 2 + C * 4
    est = halo_b + cache_b + 2 * (w_b + tile_t * C * 4)
    if vmem_limit_bytes is None:
        vmem_limit_bytes = min(max(2 * est + (16 << 20), 32 << 20), 100 << 20)
        # TODO(synk): clamp to <= 48 MiB and shrink tile_t / h-cache on v7x (64 MiB/TC).

    if n_t == 1:
        kern = functools.partial(_block_kernel_1pass, K=kernel_size, dilation=dilation,
                                 T=T, H=H)
        grid = (B,)
        const = lambda arr: pl.BlockSpec(arr.shape, lambda b: (0, 0))
        out_specs = pl.BlockSpec((1, T, C), lambda b: (b, 0, 0))
        scratch = [pltpu.VMEM((T + 2 * MARGIN, C), jnp.float32),   # zero-haloed x copy
                   pltpu.SemaphoreType.DMA]
        dims = ("parallel",)
    else:
        kern = functools.partial(_block_kernel_2pass, K=kernel_size, dilation=dilation,
                                 T=T, tT=tile_t, H=H)
        grid = (B, 2, n_t)                         # (batch, GRN pass, sequence tile)
        const = lambda arr: pl.BlockSpec(arr.shape, lambda b, p, t: (0, 0))
        # During the stats pass (p == 0) the output index stays pinned at tile 0 and
        # o_ref is never written, so no block is flushed to HBM before pass 1 fills it.
        out_specs = pl.BlockSpec((1, tile_t, C), lambda b, p, t: (b, p * t, 0))
        scratch = [pltpu.VMEM((T + 2 * MARGIN, C), jnp.float32),   # zero-haloed x copy
                   pltpu.VMEM((T, H), jnp.bfloat16),               # cached GLU output h
                   pltpu.VMEM((1, H), jnp.float32),                # GRN: sum_t h^2 (f32)
                   pltpu.VMEM((1, H), jnp.float32),                # GRN: Nx scale
                   pltpu.SemaphoreType.DMA]
        dims = ("parallel", "arbitrary", "arbitrary")

    # TODO(synk): pipeline_mode=pl.Buffered(1) on the constant weight specs to drop their
    # second pipeline buffer (only matters for large C on v7x's 64 MiB VMEM).
    # TODO(synk): with B == 1 on v7x, split the t axis across the two TensorCores
    # (cross-core gx2 reduction) instead of the batch-parallel sharding used here.
    in_specs = [pl.BlockSpec(memory_space=pl.ANY)] + [const(a) for a in weights]

    return pl.pallas_call(
        kern,
        out_shape=jax.ShapeDtypeStruct((B, T, C), jnp.float32),
        grid_spec=pltpu.PrefetchScalarGridSpec(
            num_scalar_prefetch=0,
            grid=grid,
            in_specs=in_specs,
            out_specs=out_specs,
            scratch_shapes=scratch),
        compiler_params=pltpu.CompilerParams(
            dimension_semantics=dims,
            vmem_limit_bytes=vmem_limit_bytes),
    )(x_btc, *weights)


def convnext_v2_glu_like_encoder(x_btc, layers_params, *, kernel_size=5, dilation=1,
                                 tile_t=None):
    """Encoder forward.  x_btc: (B, T, C) channels-last (what the PyTorch encoder takes).

    The PyTorch encoder's Transpose((2,1)) pair and the per-block transposes all vanish
    because the block kernel is channels-last natively.
    """
    # TODO(synk): fuse all layers into one pallas_call (layer grid axis, stacked weights,
    # VMEM ping-pong of the activation) to drop the per-layer activation HBM round trip.
    y = x_btc
    for params in layers_params:
        y = convnext_v2_glu_block(y, params, kernel_size=kernel_size,
                                  dilation=dilation, tile_t=tile_t)
    return y


# ----------------------------- pure-JAX reference -----------------------------
def _ref_block(x_btc, params, *, kernel_size=5, dilation=1):
    """Mirrors the PyTorch block with the kernel's bf16 matmul-operand / h-cache casts."""
    (cw, cb, lnw, lnb, w1, b1, w3, b3, gamma, beta, w2, b2) = params
    B, T, C = x_btc.shape
    pad = (kernel_size - 1) * dilation // 2
    xp = jnp.pad(x_btc, ((0, 0), (pad, pad), (0, 0)))
    y = cb + sum(xp[:, k * dilation:k * dilation + T, :] * cw[k]
                 for k in range(kernel_size))
    mu = y.mean(-1, keepdims=True)
    var = ((y - mu) ** 2).mean(-1, keepdims=True)
    yn = (y - mu) * (1.0 / jnp.sqrt(var + LN_EPS)) * lnw + lnb
    mm = lambda a, w: jnp.dot(a.astype(jnp.bfloat16), w.astype(jnp.bfloat16),
                              preferred_element_type=jnp.float32)
    a = mm(yn, w1) + b1
    v = mm(yn, w3) + b3
    h = (a * _sigmoid(a)) * v
    gx = jnp.sqrt(jnp.sum(h * h, axis=1, keepdims=True))         # L2 over sequence
    nx = gx / (gx.mean(-1, keepdims=True) + GRN_EPS)
    hq = h.astype(jnp.bfloat16).astype(jnp.float32)               # mirrors the bf16 h cache
    hg = gamma * (hq * nx) + beta + hq
    return x_btc + (mm(hg, w2) + b2)


def make_params(key, dim, kernel_size=5, bottleneck_dilation=4):
    H = dim * bottleneck_dilation
    ks = jax.random.split(key, 12)
    f = lambda k, shape, s=0.1: (s * jax.random.normal(k, shape)).astype(jnp.float32)
    cw = f(ks[0], (kernel_size, dim))      # depthwise Conv1d weight: torch (C,1,K) -> (K,C)
    cb = f(ks[1], (1, dim))                # conv bias
    lnw = (1.0 + f(ks[2], (1, dim))).astype(jnp.float32)
    lnb = f(ks[3], (1, dim))
    w1 = f(ks[4], (dim, H)); b1 = f(ks[5], (1, H))     # Linear C -> 4C (SiLU branch)
    w3 = f(ks[6], (dim, H)); b3 = f(ks[7], (1, H))     # Linear C -> 4C (gate branch)
    gamma = f(ks[8], (1, H))               # GRN gamma (zeros in torch init; random here)
    beta = f(ks[9], (1, H))                # GRN beta
    w2 = f(ks[10], (H, dim)); b2 = f(ks[11], (1, dim))  # Linear 4C -> C
    return (cw, cb, lnw, lnb, w1, b1, w3, b3, gamma, beta, w2, b2)


if __name__ == "__main__":
    # Encoder input is channels-last (B, T, C), exactly what the PyTorch encoder takes.
    B, T, C = 2, 128, 128          # lane-dense C; 4C = 512
    NUM_LAYERS = 2
    key = jax.random.PRNGKey(0)
    kx, kp = jax.random.split(key)
    x = jax.random.normal(kx, (B, T, C), dtype=jnp.float32)
    layers = [make_params(k, C) for k in jax.random.split(kp, NUM_LAYERS)]

    ref = x
    for p in layers:
        ref = _ref_block(ref, p)

    # Two-pass path: tile_t=64 -> 2 sequence tiles, exercising the cross-tile GRN + h cache.
    run_two_pass = jax.jit(functools.partial(convnext_v2_glu_like_encoder, tile_t=64))
    out2 = jax.block_until_ready(run_two_pass(x, layers))
    # Single-pass fast path: default tile_t covers T in one tile.
    run_fast = jax.jit(convnext_v2_glu_like_encoder)
    out1 = jax.block_until_ready(run_fast(x, layers))

    assert out1.shape == (B, T, C) and out2.shape == (B, T, C)
    err2 = float(jnp.max(jnp.abs(out2 - ref)))
    err1 = float(jnp.max(jnp.abs(out1 - ref)))
    assert err2 < 2e-2, f"two-pass path max abs err {err2}"
    assert err1 < 2e-2, f"single-pass path max abs err {err1}"
    print("KERNEL_OK")
</pallas_src>

<mosaic_0001>
module attributes {stable_mosaic.version = 11 : i64} {
  func.func @_block_kernel_2pass(%arg0: i32, %arg1: i32, %arg2: i32, %arg3: memref<2x128x128xf32, #tpu.memory_space<any>>, %arg4: memref<5x128xf32, #tpu.memory_space<vmem>>, %arg5: memref<1x128xf32, #tpu.memory_space<vmem>>, %arg6: memref<1x128xf32, #tpu.memory_space<vmem>>, %arg7: memref<1x128xf32, #tpu.memory_space<vmem>>, %arg8: memref<128x1024xbf16, #tpu.memory_space<vmem>>, %arg9: memref<1x1024xf32, #tpu.memory_space<vmem>>, %arg10: memref<1x512xf32, #tpu.memory_space<vmem>>, %arg11: memref<1x512xf32, #tpu.memory_space<vmem>>, %arg12: memref<512x128xbf16, #tpu.memory_space<vmem>>, %arg13: memref<1x128xf32, #tpu.memory_space<vmem>>, %arg14: memref<1x64x128xf32, #tpu.memory_space<vmem>>, %arg15: memref<144x128xf32, #tpu.memory_space<vmem>>, %arg16: memref<128x512xbf16, #tpu.memory_space<vmem>>, %arg17: memref<1x512xf32, #tpu.memory_space<vmem>>, %arg18: memref<1x512xf32, #tpu.memory_space<vmem>>, %arg19: memref<!tpu.dma_semaphore, #tpu.memory_space<semaphore_mem>>) attributes {dimension_semantics = [#tpu.dimension_semantics<parallel>, #tpu.dimension_semantics<arbitrary>, #tpu.dimension_semantics<arbitrary>], iteration_bounds = array<i64: 2, 2, 2>, scalar_prefetch = 0 : i64, scratch_operands = 5 : i64, tpu.core_type = #tpu.core_type<tc>, window_params = [{}, {pipeline_mode = #tpu.pipeline_mode<synchronous>, transform_indices = @transform_1, window_bounds = array<i64: 5, 128>}, {pipeline_mode = #tpu.pipeline_mode<synchronous>, transform_indices = @transform_2, window_bounds = array<i64: 1, 128>}, {pipeline_mode = #tpu.pipeline_mode<synchronous>, transform_indices = @transform_3, window_bounds = array<i64: 1, 128>}, {pipeline_mode = #tpu.pipeline_mode<synchronous>, transform_indices = @transform_4, window_bounds = array<i64: 1, 128>}, {pipeline_mode = #tpu.pipeline_mode<synchronous>, transform_indices = @transform_5, window_bounds = array<i64: 128, 1024>}, {pipeline_mode = #tpu.pipeline_mode<synchronous>, transform_indices = @transform_6, window_bounds = array<i64: 1, 1024>}, {pipeline_mode = #tpu.pipeline_mode<synchronous>, transform_indices = @transform_7, window_bounds = array<i64: 1, 512>}, {pipeline_mode = #tpu.pipeline_mode<synchronous>, transform_indices = @transform_8, window_bounds = array<i64: 1, 512>}, {pipeline_mode = #tpu.pipeline_mode<synchronous>, transform_indices = @transform_9, window_bounds = array<i64: 512, 128>}, {pipeline_mode = #tpu.pipeline_mode<synchronous>, transform_indices = @transform_10, window_bounds = array<i64: 1, 128>}, {transform_indices = @transform_11, window_bounds = array<i64: 1, 64, 128>}]} {
    %c0_i32 = arith.constant 0 : i32
    %0 = arith.cmpi eq, %arg1, %c0_i32 : i32
    %c0_i32_0 = arith.constant 0 : i32
    %1 = arith.cmpi eq, %arg2, %c0_i32_0 : i32
    %2 = arith.andi %0, %1 : i1
    %3 = arith.extui %2 : i1 to i32
    %c0_i32_1 = arith.constant 0 : i32
    %4 = arith.cmpi ne, %3, %c0_i32_1 : i32
    scf.if %4 {
      %cst = arith.constant 0.000000e+00 : f32
      %13 = vector.broadcast %cst : f32 to vector<8x128xf32>
      %c0 = arith.constant 0 : index
      %c0_5 = arith.constant 0 : index
      %14 = vector.load %arg15[%c0, %c0_5] : memref<144x128xf32, #tpu.memory_space<vmem>>, vector<8x128xf32>
      tpu.vector_store %arg15[%c0, %c0_5], %13 {strides = array<i32>} : memref<144x128xf32, #tpu.memory_space<vmem>>, vector<8x128xf32>,
      %c136 = arith.constant 136 : index
      %c0_6 = arith.constant 0 : index
      %15 = vector.load %arg15[%c136, %c0_6] : memref<144x128xf32, #tpu.memory_space<vmem>>, vector<8x128xf32>
      tpu.vector_store %arg15[%c136, %c0_6], %13 {strides = array<i32>} : memref<144x128xf32, #tpu.memory_space<vmem>>, vector<8x128xf32>,
      %c0_i32_7 = arith.constant 0 : i32
      %c0_i32_8 = arith.constant 0 : i32
      %16 = tpu.memref_slice %arg3[%arg0, %c0_i32_7, %c0_i32_8] : memref<2x128x128xf32, #tpu.memory_space<any>> -> memref<1x128x128xf32, #tpu.memory_space<any>>
      %17 = tpu.memref_squeeze %16 : memref<1x128x128xf32, #tpu.memory_space<any>> -> memref<128x128xf32, #tpu.memory_space<any>>
      %c8_i32 = arith.constant 8 : i32
      %c0_i32_9 = arith.constant 0 : i32
      %18 = tpu.memref_slice %arg15[%c8_i32, %c0_i32_9] : memref<144x128xf32, #tpu.memory_space<vmem>> -> memref<128x128xf32, #tpu.memory_space<vmem>>
      tpu.enqueue_dma source(%17 : memref<128x128xf32, #tpu.memory_space<any>>) target(%18 : memref<128x128xf32, #tpu.memory_space<vmem>>) target_semaphore(%arg19 : memref<!tpu.dma_semaphore, #tpu.memory_space<semaphore_mem>>)
      %c0_i32_10 = arith.constant 0 : i32
      %c0_i32_11 = arith.constant 0 : i32
      %19 = tpu.memref_slice %arg3[%arg0, %c0_i32_10, %c0_i32_11] : memref<2x128x128xf32, #tpu.memory_space<any>> -> memref<1x128x128xf32, #tpu.memory_space<any>>
      %20 = tpu.memref_squeeze %19 : memref<1x128x128xf32, #tpu.memory_space<any>> -> memref<128x128xf32, #tpu.memory_space<any>>
      %c8_i32_12 = arith.constant 8 : i32
      %c0_i32_13 = arith.constant 0 : i32
      %21 = tpu.memref_slice %arg15[%c8_i32_12, %c0_i32_13] : memref<144x128xf32, #tpu.memory_space<vmem>> -> memref<128x128xf32, #tpu.memory_space<vmem>>
      tpu.wait_dma2 semaphore(%arg19 : memref<!tpu.dma_semaphore, #tpu.memory_space<semaphore_mem>>) src(%20 : memref<128x128xf32, #tpu.memory_space<any>>) dst(%21 : memref<128x128xf32, #tpu.memory_space<vmem>>)
      %cst_14 = arith.constant 0.000000e+00 : f32
      %22 = vector.broadcast %cst_14 : f32 to vector<1x512xf32>
      %c0_15 = arith.constant 0 : index
      %c0_16 = arith.constant 0 : index
      %23 = vector.load %arg17[%c0_15, %c0_16] : memref<1x512xf32, #tpu.memory_space<vmem>>, vector<1x512xf32>
      tpu.vector_store %arg17[%c0_15, %c0_16], %22 {strides = array<i32>} : memref<1x512xf32, #tpu.memory_space<vmem>>, vector<1x512xf32>,
    } else {
    }
    %c64_i32 = arith.constant 64 : i32
    %5 = arith.muli %arg2, %c64_i32 : i32
    %6 = tpu.assume_multiple %5, 16 : i32
    %c0_i32_2 = arith.constant 0 : i32
    %7 = arith.cmpi eq, %arg1, %c0_i32_2 : i32
    %8 = arith.extui %7 : i1 to i32
    %c0_i32_3 = arith.constant 0 : i32
    %9 = arith.cmpi ne, %8, %c0_i32_3 : i32
    scf.if %9 {
      %13 = arith.index_cast %6 : i32 to index
      %c0 = arith.constant 0 : index
      %14 = vector.load %arg15[%13, %c0] : memref<144x128xf32, #tpu.memory_space<vmem>>, vector<80x128xf32>
      %c0_5 = arith.constant 0 : index
      %c0_6 = arith.constant 0 : index
      %15 = vector.load %arg4[%c0_5, %c0_6] : memref<5x128xf32, #tpu.memory_space<vmem>>, vector<5x128xf32>
      %c74_i32 = arith.constant 74 : i32
      %16 = tpu.dynamic_rotate %14 by %c74_i32 dim 0 : vector<80x128xf32>, i32 -> vector<80x128xf32>
      %17 = vector.extract_strided_slice %16 {offsets = [0, 0], sizes = [64, 128], strides = [1, 1]} : vector<80x128xf32> to vector<64x128xf32>
      %18 = vector.extract_strided_slice %15 {offsets = [0, 0], sizes = [1, 128], strides = [1, 1]} : vector<5x128xf32> to vector<1x128xf32>
      %19 = vector.broadcast %18 : vector<1x128xf32> to vector<64x128xf32>
      %20 = arith.mulf %17, %19 : vector<64x128xf32>
      %c0_7 = arith.constant 0 : index
      %c0_8 = arith.constant 0 : index
      %21 = vector.load %arg5[%c0_7, %c0_8] : memref<1x128xf32, #tpu.memory_space<vmem>>, vector<1x128xf32>
      %22 = vector.broadcast %21 : vector<1x128xf32> to vector<64x128xf32>
      %23 = arith.addf %20, %22 : vector<64x128xf32>
      %c73_i32 = arith.constant 73 : i32
      %24 = tpu.dynamic_rotate %14 by %c73_i32 dim 0 : vector<80x128xf32>, i32 -> vector<80x128xf32>
      %25 = vector.extract_strided_slice %24 {offsets = [0, 0], sizes = [64, 128], strides = [1, 1]} : vector<80x128xf32> to vector<64x128xf32>
      %26 = vector.extract_strided_slice %15 {offsets = [1, 0], sizes = [1, 128], strides = [1, 1]} : vector<5x128xf32> to vector<1x128xf32>
      %27 = vector.broadcast %26 : vector<1x128xf32> to vector<64x128xf32>
      %28 = arith.mulf %25, %27 : vector<64x128xf32>
      %29 = arith.addf %23, %28 : vector<64x128xf32>
      %c72_i32 = arith.constant 72 : i32
      %30 = tpu.dynamic_rotate %14 by %c72_i32 dim 0 : vector<80x128xf32>, i32 -> vector<80x128xf32>
      %31 = vector.extract_strided_slice %30 {offsets = [0, 0], sizes = [64, 128], strides = [1, 1]} : vector<80x128xf32> to vector<64x128xf32>
      %32 = vector.extract_strided_slice %15 {offsets = [2, 0], sizes = [1, 128], strides = [1, 1]} : vector<5x128xf32> to vector<1x128xf32>
      %33 = vector.broadcast %32 : vector<1x128xf32> to vector<64x128xf32>
      %34 = arith.mulf %31, %33 : vector<64x128xf32>
      %35 = arith.addf %29, %34 : vector<64x128xf32>
      %c71_i32 = arith.constant 71 : i32
      %36 = tpu.dynamic_rotate %14 by %c71_i32 dim 0 : vector<80x128xf32>, i32 -> vector<80x128xf32>
      %37 = vector.extract_strided_slice %36 {offsets = [0, 0], sizes = [64, 128], strides = [1, 1]} : vector<80x128xf32> to vector<64x128xf32>
      %38 = vector.extract_strided_slice %15 {offsets = [3, 0], sizes = [1, 128], strides = [1, 1]} : vector<5x128xf32> to vector<1x128xf32>
      %39 = vector.broadcast %38 : vector<1x128xf32> to vector<64x128xf32>
      %40 = arith.mulf %37, %39 : vector<64x128xf32>
      %41 = arith.addf %35, %40 : vector<64x128xf32>
      %c70_i32 = arith.constant 70 : i32
      %42 = tpu.dynamic_rotate %14 by %c70_i32 dim 0 : vector<80x128xf32>, i32 -> vector<80x128xf32>
      %43 = vector.extract_strided_slice %42 {offsets = [0, 0], sizes = [64, 128], strides = [1, 1]} : vector<80x128xf32> to vector<64x128xf32>
      %44 = vector.extract_strided_slice %15 {offsets = [4, 0], sizes = [1, 128], strides = [1, 1]} : vector<5x128xf32> to vector<1x128xf32>
      %45 = vector.broadcast %44 : vector<1x128xf32> to vector<64x128xf32>
      %46 = arith.mulf %43, %45 : vector<64x128xf32>
      %47 = arith.addf %41, %46 : vector<64x128xf32>
      %cst = arith.constant dense<0.000000e+00> : vector<64xf32>
      %48 = vector.multi_reduction <add>, %47, %cst [1] : vector<64x128xf32> to vector<64xf32>
      %49 = vector.shape_cast %48 : vector<64xf32> to vector<64x1xf32>
      %cst_9 = arith.constant 1.280000e+02 : f32
      %50 = vector.broadcast %cst_9 : f32 to vector<64x1xf32>
      %51 = arith.divf %49, %50 : vector<64x1xf32>
      %52 = vector.broadcast %51 : vector<64x1xf32> to vector<64x128xf32>
      %53 = arith.subf %47, %52 : vector<64x128xf32>
      %54 = arith.mulf %53, %53 : vector<64x128xf32>
      %cst_10 = arith.constant dense<0.000000e+00> : vector<64xf32>
      %55 = vector.multi_reduction <add>, %54, %cst_10 [1] : vector<64x128xf32> to vector<64xf32>
      %56 = vector.shape_cast %55 : vector<64xf32> to vector<64x1xf32>
      %cst_11 = arith.constant 1.280000e+02 : f32
      %57 = vector.broadcast %cst_11 : f32 to vector<64x1xf32>
      %58 = arith.divf %56, %57 : vector<64x1xf32>
      %59 = vector.broadcast %51 : vector<64x1xf32> to vector<64x128xf32>
      %60 = arith.subf %47, %59 : vector<64x128xf32>
      %cst_12 = arith.constant 9.99999997E-7 : f32
      %61 = vector.broadcast %cst_12 : f32 to vector<64x1xf32>
      %62 = arith.addf %58, %61 : vector<64x1xf32>
      %63 = math.sqrt %62 : vector<64x1xf32>
      %cst_13 = arith.constant 1.000000e+00 : f32
      %64 = vector.broadcast %cst_13 : f32 to vector<64x1xf32>
      %65 = arith.divf %64, %63 : vector<64x1xf32>
      %66 = vector.broadcast %65 : vector<64x1xf32> to vector<64x128xf32>
      %67 = arith.mulf %60, %66 : vector<64x128xf32>
      %c0_14 = arith.constant 0 : index
      %c0_15 = arith.constant 0 : index
      %68 = vector.load %arg6[%c0_14, %c0_15] : memref<1x128xf32, #tpu.memory_space<vmem>>, vector<1x128xf32>
      %69 = vector.broadcast %68 : vector<1x128xf32> to vector<64x128xf32>
      %70 = arith.mulf %67, %69 : vector<64x128xf32>
      %c0_16 = arith.constant 0 : index
      %c0_17 = arith.constant 0 : index
      %71 = vector.load %arg7[%c0_16, %c0_17] : memref<1x128xf32, #tpu.memory_space<vmem>>, vector<1x128xf32>
      %72 = vector.broadcast %71 : vector<1x128xf32> to vector<64x128xf32>
      %73 = arith.addf %70, %72 : vector<64x128xf32>
      %74 = arith.truncf %73 : vector<64x128xf32> to vector<64x128xbf16>
      %c0_18 = arith.constant 0 : index
      %c0_19 = arith.constant 0 : index
      %75 = vector.load %arg8[%c0_18, %c0_19] : memref<128x1024xbf16, #tpu.memory_space<vmem>>, vector<128x1024xbf16>
      %cst_20 = arith.constant dense<0.000000e+00> : vector<64x1024xf32>
      %76 = tpu.matmul %74, %75, %cst_20 {dimension_numbers = #tpu.dot_dimension_numbers<[1], [0], [0], [1], [0, 0, 1, 1], [], []>} : vector<64x128xbf16>, vector<128x1024xbf16>, vector<64x1024xf32> -> vector<64x1024xf32>
      %c0_21 = arith.constant 0 : index
      %c0_22 = arith.constant 0 : index
      %77 = vector.load %arg9[%c0_21, %c0_22] : memref<1x1024xf32, #tpu.memory_space<vmem>>, vector<1x1024xf32>
      %78 = vector.broadcast %77 : vector<1x1024xf32> to vector<64x1024xf32>
      %79 = arith.addf %76, %78 : vector<64x1024xf32>
      %80 = vector.extract_strided_slice %79 {offsets = [0, 0], sizes = [64, 512], strides = [1, 1]} : vector<64x1024xf32> to vector<64x512xf32>
      %81 = vector.extract_strided_slice %79 {offsets = [0, 512], sizes = [64, 512], strides = [1, 1]} : vector<64x1024xf32> to vector<64x512xf32>
      %cst_23 = arith.constant 0.000000e+00 : f32
      %82 = vector.broadcast %cst_23 : f32 to vector<64x512xf32>
      %83 = arith.subf %82, %80 : vector<64x512xf32>
      %84 = math.exp %83 : vector<64x512xf32>
      %cst_24 = arith.constant 1.000000e+00 : f32
      %85 = vector.broadcast %cst_24 : f32 to vector<64x512xf32>
      %86 = arith.addf %85, %84 : vector<64x512xf32>
      %cst_25 = arith.constant 1.000000e+00 : f32
      %87 = vector.broadcast %cst_25 : f32 to vector<64x512xf32>
      %88 = arith.divf %87, %86 : vector<64x512xf32>
      %89 = arith.mulf %80, %88 : vector<64x512xf32>
      %90 = arith.mulf %89, %81 : vector<64x512xf32>
      %c0_26 = arith.constant 0 : index
      %c0_27 = arith.constant 0 : index
      %91 = vector.load %arg17[%c0_26, %c0_27] : memref<1x512xf32, #tpu.memory_space<vmem>>, vector<1x512xf32>
      %92 = arith.mulf %90, %90 : vector<64x512xf32>
      %cst_28 = arith.constant dense<0.000000e+00> : vector<512xf32>
      %93 = vector.multi_reduction <add>, %92, %cst_28 [0] : vector<64x512xf32> to vector<512xf32>
      %94 = vector.shape_cast %93 : vector<512xf32> to vector<1x512xf32>
      %95 = arith.addf %91, %94 : vector<1x512xf32>
      %c0_29 = arith.constant 0 : index
      %c0_30 = arith.constant 0 : index
      %96 = vector.load %arg17[%c0_29, %c0_30] : memref<1x512xf32, #tpu.memory_space<vmem>>, vector<1x512xf32>
      tpu.vector_store %arg17[%c0_29, %c0_30], %95 {strides = array<i32>} : memref<1x512xf32, #tpu.memory_space<vmem>>, vector<1x512xf32>,
      %97 = arith.truncf %90 : vector<64x512xf32> to vector<64x512xbf16>
      %98 = arith.index_cast %6 : i32 to index
      %c0_31 = arith.constant 0 : index
      %99 = vector.load %arg16[%98, %c0_31] : memref<128x512xbf16, #tpu.memory_space<vmem>>, vector<64x512xbf16>
      tpu.vector_store %arg16[%98, %c0_31], %97 {strides = array<i32>} : memref<128x512xbf16, #tpu.memory_space<vmem>>, vector<64x512xbf16>,
    } else {
    }
    %c1_i32 = arith.constant 1 : i32
    %10 = arith.cmpi eq, %arg1, %c1_i32 : i32
    %11 = arith.extui %10 : i1 to i32
    %c0_i32_4 = arith.constant 0 : i32
    %12 = arith.cmpi ne, %11, %c0_i32_4 : i32
    scf.if %12 {
      %c0_i32_5 = arith.constant 0 : i32
      %13 = arith.cmpi eq, %arg2, %c0_i32_5 : i32
      %14 = arith.extui %13 : i1 to i32
      %c0_i32_6 = arith.constant 0 : i32
      %15 = arith.cmpi ne, %14, %c0_i32_6 : i32
      scf.if %15 {
        %c0_21 = arith.constant 0 : index
        %c0_22 = arith.constant 0 : index
        %43 = vector.load %arg17[%c0_21, %c0_22] : memref<1x512xf32, #tpu.memory_space<vmem>>, vector<1x512xf32>
        %44 = math.sqrt %43 : vector<1x512xf32>
        %cst_23 = arith.constant dense<0.000000e+00> : vector<1xf32>
        %45 = vector.multi_reduction <add>, %44, %cst_23 [1] : vector<1x512xf32> to vector<1xf32>
        %46 = vector.shape_cast %45 : vector<1xf32> to vector<1x1xf32>
        %cst_24 = arith.constant 5.120000e+02 : f32
        %47 = vector.broadcast %cst_24 : f32 to vector<1x1xf32>
        %48 = arith.divf %46, %47 : vector<1x1xf32>
        %cst_25 = arith.constant 9.99999997E-7 : f32
        %49 = vector.broadcast %cst_25 : f32 to vector<1x1xf32>
        %50 = arith.addf %48, %49 : vector<1x1xf32>
        %51 = vector.broadcast %50 : vector<1x1xf32> to vector<1x512xf32>
        %52 = arith.divf %44, %51 : vector<1x512xf32>
        %c0_26 = arith.constant 0 : index
        %c0_27 = arith.constant 0 : index
        %53 = vector.load %arg18[%c0_26, %c0_27] : memref<1x512xf32, #tpu.memory_space<vmem>>, vector<1x512xf32>
        tpu.vector_store %arg18[%c0_26, %c0_27], %52 {strides = array<i32>} : memref<1x512xf32, #tpu.memory_space<vmem>>, vector<1x512xf32>,
      } else {
      }
      %16 = arith.index_cast %6 : i32 to index
      %c0 = arith.constant 0 : index
      %17 = vector.load %arg16[%16, %c0] : memref<128x512xbf16, #tpu.memory_space<vmem>>, vector<64x512xbf16>
      %18 = arith.extf %17 : vector<64x512xbf16> to vector<64x512xf32>
      %c0_7 = arith.constant 0 : index
      %c0_8 = arith.constant 0 : index
      %19 = vector.load %arg18[%c0_7, %c0_8] : memref<1x512xf32, #tpu.memory_space<vmem>>, vector<1x512xf32>
      %c0_9 = arith.constant 0 : index
      %c0_10 = arith.constant 0 : index
      %20 = vector.load %arg10[%c0_9, %c0_10] : memref<1x512xf32, #tpu.memory_space<vmem>>, vector<1x512xf32>
      %21 = vector.broadcast %19 : vector<1x512xf32> to vector<64x512xf32>
      %22 = arith.mulf %18, %21 : vector<64x512xf32>
      %23 = vector.broadcast %20 : vector<1x512xf32> to vector<64x512xf32>
      %24 = arith.mulf %23, %22 : vector<64x512xf32>
      %c0_11 = arith.constant 0 : index
      %c0_12 = arith.constant 0 : index
      %25 = vector.load %arg11[%c0_11, %c0_12] : memref<1x512xf32, #tpu.memory_space<vmem>>, vector<1x512xf32>
      %26 = vector.broadcast %25 : vector<1x512xf32> to vector<64x512xf32>
      %27 = arith.addf %24, %26 : vector<64x512xf32>
      %28 = arith.addf %27, %18 : vector<64x512xf32>
      %29 = arith.truncf %28 : vector<64x512xf32> to vector<64x512xbf16>
      %c0_13 = arith.constant 0 : index
      %c0_14 = arith.constant 0 : index
      %30 = vector.load %arg12[%c0_13, %c0_14] : memref<512x128xbf16, #tpu.memory_space<vmem>>, vector<512x128xbf16>
      %cst = arith.constant dense<0.000000e+00> : vector<64x128xf32>
      %31 = tpu.matmul %29, %30, %cst {dimension_numbers = #tpu.dot_dimension_numbers<[1], [0], [0], [1], [0, 0, 1, 1], [], []>} : vector<64x512xbf16>, vector<512x128xbf16>, vector<64x128xf32> -> vector<64x128xf32>
      %c0_15 = arith.constant 0 : index
      %c0_16 = arith.constant 0 : index
      %32 = vector.load %arg13[%c0_15, %c0_16] : memref<1x128xf32, #tpu.memory_space<vmem>>, vector<1x128xf32>
      %33 = vector.broadcast %32 : vector<1x128xf32> to vector<64x128xf32>
      %34 = arith.addf %31, %33 : vector<64x128xf32>
      %c8_i32 = arith.constant 8 : i32
      %35 = arith.addi %6, %c8_i32 : i32
      %36 = tpu.assume_multiple %35, 8 : i32
      %37 = arith.index_cast %36 : i32 to index
      %c0_17 = arith.constant 0 : index
      %38 = vector.load %arg15[%37, %c0_17] : memref<144x128xf32, #tpu.memory_space<vmem>>, vector<64x128xf32>
      %39 = arith.addf %38, %34 : vector<64x128xf32>
      %c0_18 = arith.constant 0 : index
      %c0_19 = arith.constant 0 : index
      %c0_20 = arith.constant 0 : index
      %40 = vector.load %arg14[%c0_18, %c0_19, %c0_20] : memref<1x64x128xf32, #tpu.memory_space<vmem>>, vector<1x64x128xf32>
      %41 = vector.shape_cast %40 : vector<1x64x128xf32> to vector<64x128xf32>
      %42 = vector.shape_cast %39 : vector<64x128xf32> to vector<1x64x128xf32>
      tpu.vector_store %arg14[%c0_18, %c0_19, %c0_20], %42 {strides = array<i32>} : memref<1x64x128xf32, #tpu.memory_space<vmem>>, vector<1x64x128xf32>,
    } else {
    }
    return
  }
  func.func @transform_1(%arg0: i32, %arg1: i32, %arg2: i32) -> (i32, i32) {
    %c0_i32 = arith.constant 0 : i32
    %c0_i32_0 = arith.constant 0 : i32
    %c0_i32_1 = arith.constant 0 : i32
    return %c0_i32, %c0_i32_0 : i32, i32
  }
  func.func @transform_2(%arg0: i32, %arg1: i32, %arg2: i32) -> (i32, i32) {
    %c0_i32 = arith.constant 0 : i32
    %c0_i32_0 = arith.constant 0 : i32
    %c0_i32_1 = arith.constant 0 : i32
    return %c0_i32, %c0_i32_0 : i32, i32
  }
  func.func @transform_3(%arg0: i32, %arg1: i32, %arg2: i32) -> (i32, i32) {
    %c0_i32 = arith.constant 0 : i32
    %c0_i32_0 = arith.constant 0 : i32
    %c0_i32_1 = arith.constant 0 : i32
    return %c0_i32, %c0_i32_0 : i32, i32
  }
  func.func @transform_4(%arg0: i32, %arg1: i32, %arg2: i32) -> (i32, i32) {
    %c0_i32 = arith.constant 0 : i32
    %c0_i32_0 = arith.constant 0 : i32
    %c0_i32_1 = arith.constant 0 : i32
    return %c0_i32, %c0_i32_0 : i32, i32
  }
  func.func @transform_5(%arg0: i32, %arg1: i32, %arg2: i32) -> (i32, i32) {
    %c0_i32 = arith.constant 0 : i32
    %c0_i32_0 = arith.constant 0 : i32
    %c0_i32_1 = arith.constant 0 : i32
    return %c0_i32, %c0_i32_0 : i32, i32
  }
  func.func @transform_6(%arg0: i32, %arg1: i32, %arg2: i32) -> (i32, i32) {
    %c0_i32 = arith.constant 0 : i32
    %c0_i32_0 = arith.constant 0 : i32
    %c0_i32_1 = arith.constant 0 : i32
    return %c0_i32, %c0_i32_0 : i32, i32
  }
  func.func @transform_7(%arg0: i32, %arg1: i32, %arg2: i32) -> (i32, i32) {
    %c0_i32 = arith.constant 0 : i32
    %c0_i32_0 = arith.constant 0 : i32
    %c0_i32_1 = arith.constant 0 : i32
    return %c0_i32, %c0_i32_0 : i32, i32
  }
  func.func @transform_8(%arg0: i32, %arg1: i32, %arg2: i32) -> (i32, i32) {
    %c0_i32 = arith.constant 0 : i32
    %c0_i32_0 = arith.constant 0 : i32
    %c0_i32_1 = arith.constant 0 : i32
    return %c0_i32, %c0_i32_0 : i32, i32
  }
  func.func @transform_9(%arg0: i32, %arg1: i32, %arg2: i32) -> (i32, i32) {
    %c0_i32 = arith.constant 0 : i32
    %c0_i32_0 = arith.constant 0 : i32
    %c0_i32_1 = arith.constant 0 : i32
    return %c0_i32, %c0_i32_0 : i32, i32
  }
  func.func @transform_10(%arg0: i32, %arg1: i32, %arg2: i32) -> (i32, i32) {
    %c0_i32 = arith.constant 0 : i32
    %c0_i32_0 = arith.constant 0 : i32
    %c0_i32_1 = arith.constant 0 : i32
    return %c0_i32, %c0_i32_0 : i32, i32
  }
  func.func @transform_11(%arg0: i32, %arg1: i32, %arg2: i32) -> (i32, i32, i32) {
    %0 = arith.muli %arg1, %arg2 : i32
    %c0_i32 = arith.constant 0 : i32
    %c0_i32_0 = arith.constant 0 : i32
    return %arg0, %0, %c0_i32 : i32, i32, i32
  }
}

module attributes {stable_mosaic.version = 11 : i64} {
  func.func @_block_kernel_2pass(%arg0: i32, %arg1: i32, %arg2: i32, %arg3: memref<2x128x128xf32, #tpu.memory_space<any>>, %arg4: memref<5x128xf32, #tpu.memory_space<vmem>>, %arg5: memref<1x128xf32, #tpu.memory_space<vmem>>, %arg6: memref<1x128xf32, #tpu.memory_space<vmem>>, %arg7: memref<1x128xf32, #tpu.memory_space<vmem>>, %arg8: memref<128x1024xbf16, #tpu.memory_space<vmem>>, %arg9: memref<1x1024xf32, #tpu.memory_space<vmem>>, %arg10: memref<1x512xf32, #tpu.memory_space<vmem>>, %arg11: memref<1x512xf32, #tpu.memory_space<vmem>>, %arg12: memref<512x128xbf16, #tpu.memory_space<vmem>>, %arg13: memref<1x128xf32, #tpu.memory_space<vmem>>, %arg14: memref<1x64x128xf32, #tpu.memory_space<vmem>>, %arg15: memref<144x128xf32, #tpu.memory_space<vmem>>, %arg16: memref<128x512xbf16, #tpu.memory_space<vmem>>, %arg17: memref<1x512xf32, #tpu.memory_space<vmem>>, %arg18: memref<1x512xf32, #tpu.memory_space<vmem>>, %arg19: memref<!tpu.dma_semaphore, #tpu.memory_space<semaphore_mem>>) attributes {dimension_semantics = [#tpu.dimension_semantics<parallel>, #tpu.dimension_semantics<arbitrary>, #tpu.dimension_semantics<arbitrary>], iteration_bounds = array<i64: 2, 2, 2>, scalar_prefetch = 0 : i64, scratch_operands = 5 : i64, tpu.core_type = #tpu.core_type<tc>, window_params = [{}, {pipeline_mode = #tpu.pipeline_mode<synchronous>, transform_indices = @transform_1, window_bounds = array<i64: 5, 128>}, {pipeline_mode = #tpu.pipeline_mode<synchronous>, transform_indices = @transform_2, window_bounds = array<i64: 1, 128>}, {pipeline_mode = #tpu.pipeline_mode<synchronous>, transform_indices = @transform_3, window_bounds = array<i64: 1, 128>}, {pipeline_mode = #tpu.pipeline_mode<synchronous>, transform_indices = @transform_4, window_bounds = array<i64: 1, 128>}, {pipeline_mode = #tpu.pipeline_mode<synchronous>, transform_indices = @transform_5, window_bounds = array<i64: 128, 1024>}, {pipeline_mode = #tpu.pipeline_mode<synchronous>, transform_indices = @transform_6, window_bounds = array<i64: 1, 1024>}, {pipeline_mode = #tpu.pipeline_mode<synchronous>, transform_indices = @transform_7, window_bounds = array<i64: 1, 512>}, {pipeline_mode = #tpu.pipeline_mode<synchronous>, transform_indices = @transform_8, window_bounds = array<i64: 1, 512>}, {pipeline_mode = #tpu.pipeline_mode<synchronous>, transform_indices = @transform_9, window_bounds = array<i64: 512, 128>}, {pipeline_mode = #tpu.pipeline_mode<synchronous>, transform_indices = @transform_10, window_bounds = array<i64: 1, 128>}, {transform_indices = @transform_11, window_bounds = array<i64: 1, 64, 128>}]} {
    %c0_i32 = arith.constant 0 : i32
    %0 = arith.cmpi eq, %arg1, %c0_i32 : i32
    %c0_i32_0 = arith.constant 0 : i32
    %1 = arith.cmpi eq, %arg2, %c0_i32_0 : i32
    %2 = arith.andi %0, %1 : i1
    %3 = arith.extui %2 : i1 to i32
    %c0_i32_1 = arith.constant 0 : i32
    %4 = arith.cmpi ne, %3, %c0_i32_1 : i32
    scf.if %4 {
      %cst = arith.constant 0.000000e+00 : f32
      %13 = vector.broadcast %cst : f32 to vector<8x128xf32>
      %c0 = arith.constant 0 : index
      %c0_5 = arith.constant 0 : index
      %14 = vector.load %arg15[%c0, %c0_5] : memref<144x128xf32, #tpu.memory_space<vmem>>, vector<8x128xf32>
      tpu.vector_store %arg15[%c0, %c0_5], %13 {strides = array<i32>} : memref<144x128xf32, #tpu.memory_space<vmem>>, vector<8x128xf32>,
      %c136 = arith.constant 136 : index
      %c0_6 = arith.constant 0 : index
      %15 = vector.load %arg15[%c136, %c0_6] : memref<144x128xf32, #tpu.memory_space<vmem>>, vector<8x128xf32>
      tpu.vector_store %arg15[%c136, %c0_6], %13 {strides = array<i32>} : memref<144x128xf32, #tpu.memory_space<vmem>>, vector<8x128xf32>,
      %c0_i32_7 = arith.constant 0 : i32
      %c0_i32_8 = arith.constant 0 : i32
      %16 = tpu.memref_slice %arg3[%arg0, %c0_i32_7, %c0_i32_8] : memref<2x128x128xf32, #tpu.memory_space<any>> -> memref<1x128x128xf32, #tpu.memory_space<any>>
      %17 = tpu.memref_squeeze %16 : memref<1x128x128xf32, #tpu.memory_space<any>> -> memref<128x128xf32, #tpu.memory_space<any>>
      %c8_i32 = arith.constant 8 : i32
      %c0_i32_9 = arith.constant 0 : i32
      %18 = tpu.memref_slice %arg15[%c8_i32, %c0_i32_9] : memref<144x128xf32, #tpu.memory_space<vmem>> -> memref<128x128xf32, #tpu.memory_space<vmem>>
      tpu.enqueue_dma source(%17 : memref<128x128xf32, #tpu.memory_space<any>>) target(%18 : memref<128x128xf32, #tpu.memory_space<vmem>>) target_semaphore(%arg19 : memref<!tpu.dma_semaphore, #tpu.memory_space<semaphore_mem>>)
      %c0_i32_10 = arith.constant 0 : i32
      %c0_i32_11 = arith.constant 0 : i32
      %19 = tpu.memref_slice %arg3[%arg0, %c0_i32_10, %c0_i32_11] : memref<2x128x128xf32, #tpu.memory_space<any>> -> memref<1x128x128xf32, #tpu.memory_space<any>>
      %20 = tpu.memref_squeeze %19 : memref<1x128x128xf32, #tpu.memory_space<any>> -> memref<128x128xf32, #tpu.memory_space<any>>
      %c8_i32_12 = arith.constant 8 : i32
      %c0_i32_13 = arith.constant 0 : i32
      %21 = tpu.memref_slice %arg15[%c8_i32_12, %c0_i32_13] : memref<144x128xf32, #tpu.memory_space<vmem>> -> memref<128x128xf32, #tpu.memory_space<vmem>>
      tpu.wait_dma2 semaphore(%arg19 : memref<!tpu.dma_semaphore, #tpu.memory_space<semaphore_mem>>) src(%20 : memref<128x128xf32, #tpu.memory_space<any>>) dst(%21 : memref<128x128xf32, #tpu.memory_space<vmem>>)
      %cst_14 = arith.constant 0.000000e+00 : f32
      %22 = vector.broadcast %cst_14 : f32 to vector<1x512xf32>
      %c0_15 = arith.constant 0 : index
      %c0_16 = arith.constant 0 : index
      %23 = vector.load %arg17[%c0_15, %c0_16] : memref<1x512xf32, #tpu.memory_space<vmem>>, vector<1x512xf32>
      tpu.vector_store %arg17[%c0_15, %c0_16], %22 {strides = array<i32>} : memref<1x512xf32, #tpu.memory_space<vmem>>, vector<1x512xf32>,
    } else {
    }
    %c64_i32 = arith.constant 64 : i32
    %5 = arith.muli %arg2, %c64_i32 : i32
    %6 = tpu.assume_multiple %5, 16 : i32
    %c0_i32_2 = arith.constant 0 : i32
    %7 = arith.cmpi eq, %arg1, %c0_i32_2 : i32
    %8 = arith.extui %7 : i1 to i32
    %c0_i32_3 = arith.constant 0 : i32
    %9 = arith.cmpi ne, %8, %c0_i32_3 : i32
    scf.if %9 {
      %13 = arith.index_cast %6 : i32 to index
      %c0 = arith.constant 0 : index
      %14 = vector.load %arg15[%13, %c0] : memref<144x128xf32, #tpu.memory_space<vmem>>, vector<80x128xf32>
      %c0_5 = arith.constant 0 : index
      %c0_6 = arith.constant 0 : index
      %15 = vector.load %arg4[%c0_5, %c0_6] : memref<5x128xf32, #tpu.memory_space<vmem>>, vector<5x128xf32>
      %c74_i32 = arith.constant 74 : i32
      %16 = tpu.dynamic_rotate %14 by %c74_i32 dim 0 : vector<80x128xf32>, i32 -> vector<80x128xf32>
      %17 = vector.extract_strided_slice %16 {offsets = [0, 0], sizes = [64, 128], strides = [1, 1]} : vector<80x128xf32> to vector<64x128xf32>
      %18 = vector.extract_strided_slice %15 {offsets = [0, 0], sizes = [1, 128], strides = [1, 1]} : vector<5x128xf32> to vector<1x128xf32>
      %19 = vector.broadcast %18 : vector<1x128xf32> to vector<64x128xf32>
      %20 = arith.mulf %17, %19 : vector<64x128xf32>
      %c0_7 = arith.constant 0 : index
      %c0_8 = arith.constant 0 : index
      %21 = vector.load %arg5[%c0_7, %c0_8] : memref<1x128xf32, #tpu.memory_space<vmem>>, vector<1x128xf32>
      %22 = vector.broadcast %21 : vector<1x128xf32> to vector<64x128xf32>
      %23 = arith.addf %20, %22 : vector<64x128xf32>
      %c73_i32 = arith.constant 73 : i32
      %24 = tpu.dynamic_rotate %14 by %c73_i32 dim 0 : vector<80x128xf32>, i32 -> vector<80x128xf32>
      %25 = vector.extract_strided_slice %24 {offsets = [0, 0], sizes = [64, 128], strides = [1, 1]} : vector<80x128xf32> to vector<64x128xf32>
      %26 = vector.extract_strided_slice %15 {offsets = [1, 0], sizes = [1, 128], strides = [1, 1]} : vector<5x128xf32> to vector<1x128xf32>
      %27 = vector.broadcast %26 : vector<1x128xf32> to vector<64x128xf32>
      %28 = arith.mulf %25, %27 : vector<64x128xf32>
      %29 = arith.addf %23, %28 : vector<64x128xf32>
      %c72_i32 = arith.constant 72 : i32
      %30 = tpu.dynamic_rotate %14 by %c72_i32 dim 0 : vector<80x128xf32>, i32 -> vector<80x128xf32>
      %31 = vector.extract_strided_slice %30 {offsets = [0, 0], sizes = [64, 128], strides = [1, 1]} : vector<80x128xf32> to vector<64x128xf32>
      %32 = vector.extract_strided_slice %15 {offsets = [2, 0], sizes = [1, 128], strides = [1, 1]} : vector<5x128xf32> to vector<1x128xf32>
      %33 = vector.broadcast %32 : vector<1x128xf32> to vector<64x128xf32>
      %34 = arith.mulf %31, %33 : vector<64x128xf32>
      %35 = arith.addf %29, %34 : vector<64x128xf32>
      %c71_i32 = arith.constant 71 : i32
      %36 = tpu.dynamic_rotate %14 by %c71_i32 dim 0 : vector<80x128xf32>, i32 -> vector<80x128xf32>
      %37 = vector.extract_strided_slice %36 {offsets = [0, 0], sizes = [64, 128], strides = [1, 1]} : vector<80x128xf32> to vector<64x128xf32>
      %38 = vector.extract_strided_slice %15 {offsets = [3, 0], sizes = [1, 128], strides = [1, 1]} : vector<5x128xf32> to vector<1x128xf32>
      %39 = vector.broadcast %38 : vector<1x128xf32> to vector<64x128xf32>
      %40 = arith.mulf %37, %39 : vector<64x128xf32>
      %41 = arith.addf %35, %40 : vector<64x128xf32>
      %c70_i32 = arith.constant 70 : i32
      %42 = tpu.dynamic_rotate %14 by %c70_i32 dim 0 : vector<80x128xf32>, i32 -> vector<80x128xf32>
      %43 = vector.extract_strided_slice %42 {offsets = [0, 0], sizes = [64, 128], strides = [1, 1]} : vector<80x128xf32> to vector<64x128xf32>
      %44 = vector.extract_strided_slice %15 {offsets = [4, 0], sizes = [1, 128], strides = [1, 1]} : vector<5x128xf32> to vector<1x128xf32>
      %45 = vector.broadcast %44 : vector<1x128xf32> to vector<64x128xf32>
      %46 = arith.mulf %43, %45 : vector<64x128xf32>
      %47 = arith.addf %41, %46 : vector<64x128xf32>
      %cst = arith.constant dense<0.000000e+00> : vector<64xf32>
      %48 = vector.multi_reduction <add>, %47, %cst [1] : vector<64x128xf32> to vector<64xf32>
      %49 = vector.shape_cast %48 : vector<64xf32> to vector<64x1xf32>
      %cst_9 = arith.constant 1.280000e+02 : f32
      %50 = vector.broadcast %cst_9 : f32 to vector<64x1xf32>
      %51 = arith.divf %49, %50 : vector<64x1xf32>
      %52 = vector.broadcast %51 : vector<64x1xf32> to vector<64x128xf32>
      %53 = arith.subf %47, %52 : vector<64x128xf32>
      %54 = arith.mulf %53, %53 : vector<64x128xf32>
      %cst_10 = arith.constant dense<0.000000e+00> : vector<64xf32>
      %55 = vector.multi_reduction <add>, %54, %cst_10 [1] : vector<64x128xf32> to vector<64xf32>
      %56 = vector.shape_cast %55 : vector<64xf32> to vector<64x1xf32>
      %cst_11 = arith.constant 1.280000e+02 : f32
      %57 = vector.broadcast %cst_11 : f32 to vector<64x1xf32>
      %58 = arith.divf %56, %57 : vector<64x1xf32>
      %59 = vector.broadcast %51 : vector<64x1xf32> to vector<64x128xf32>
      %60 = arith.subf %47, %59 : vector<64x128xf32>
      %cst_12 = arith.constant 9.99999997E-7 : f32
      %61 = vector.broadcast %cst_12 : f32 to vector<64x1xf32>
      %62 = arith.addf %58, %61 : vector<64x1xf32>
      %63 = math.sqrt %62 : vector<64x1xf32>
      %cst_13 = arith.constant 1.000000e+00 : f32
      %64 = vector.broadcast %cst_13 : f32 to vector<64x1xf32>
      %65 = arith.divf %64, %63 : vector<64x1xf32>
      %66 = vector.broadcast %65 : vector<64x1xf32> to vector<64x128xf32>
      %67 = arith.mulf %60, %66 : vector<64x128xf32>
      %c0_14 = arith.constant 0 : index
      %c0_15 = arith.constant 0 : index
      %68 = vector.load %arg6[%c0_14, %c0_15] : memref<1x128xf32, #tpu.memory_space<vmem>>, vector<1x128xf32>
      %69 = vector.broadcast %68 : vector<1x128xf32> to vector<64x128xf32>
      %70 = arith.mulf %67, %69 : vector<64x128xf32>
      %c0_16 = arith.constant 0 : index
      %c0_17 = arith.constant 0 : index
      %71 = vector.load %arg7[%c0_16, %c0_17] : memref<1x128xf32, #tpu.memory_space<vmem>>, vector<1x128xf32>
      %72 = vector.broadcast %71 : vector<1x128xf32> to vector<64x128xf32>
      %73 = arith.addf %70, %72 : vector<64x128xf32>
      %74 = arith.truncf %73 : vector<64x128xf32> to vector<64x128xbf16>
      %c0_18 = arith.constant 0 : index
      %c0_19 = arith.constant 0 : index
      %75 = vector.load %arg8[%c0_18, %c0_19] : memref<128x1024xbf16, #tpu.memory_space<vmem>>, vector<128x1024xbf16>
      %cst_20 = arith.constant dense<0.000000e+00> : vector<64x1024xf32>
      %76 = tpu.matmul %74, %75, %cst_20 {dimension_numbers = #tpu.dot_dimension_numbers<[1], [0], [0], [1], [0, 0, 1, 1], [], []>} : vector<64x128xbf16>, vector<128x1024xbf16>, vector<64x1024xf32> -> vector<64x1024xf32>
      %c0_21 = arith.constant 0 : index
      %c0_22 = arith.constant 0 : index
      %77 = vector.load %arg9[%c0_21, %c0_22] : memref<1x1024xf32, #tpu.memory_space<vmem>>, vector<1x1024xf32>
      %78 = vector.broadcast %77 : vector<1x1024xf32> to vector<64x1024xf32>
      %79 = arith.addf %76, %78 : vector<64x1024xf32>
      %80 = vector.extract_strided_slice %79 {offsets = [0, 0], sizes = [64, 512], strides = [1, 1]} : vector<64x1024xf32> to vector<64x512xf32>
      %81 = vector.extract_strided_slice %79 {offsets = [0, 512], sizes = [64, 512], strides = [1, 1]} : vector<64x1024xf32> to vector<64x512xf32>
      %cst_23 = arith.constant 0.000000e+00 : f32
      %82 = vector.broadcast %cst_23 : f32 to vector<64x512xf32>
      %83 = arith.subf %82, %80 : vector<64x512xf32>
      %84 = math.exp %83 : vector<64x512xf32>
      %cst_24 = arith.constant 1.000000e+00 : f32
      %85 = vector.broadcast %cst_24 : f32 to vector<64x512xf32>
      %86 = arith.addf %85, %84 : vector<64x512xf32>
      %cst_25 = arith.constant 1.000000e+00 : f32
      %87 = vector.broadcast %cst_25 : f32 to vector<64x512xf32>
      %88 = arith.divf %87, %86 : vector<64x512xf32>
      %89 = arith.mulf %80, %88 : vector<64x512xf32>
      %90 = arith.mulf %89, %81 : vector<64x512xf32>
      %c0_26 = arith.constant 0 : index
      %c0_27 = arith.constant 0 : index
      %91 = vector.load %arg17[%c0_26, %c0_27] : memref<1x512xf32, #tpu.memory_space<vmem>>, vector<1x512xf32>
      %92 = arith.mulf %90, %90 : vector<64x512xf32>
      %cst_28 = arith.constant dense<0.000000e+00> : vector<512xf32>
      %93 = vector.multi_reduction <add>, %92, %cst_28 [0] : vector<64x512xf32> to vector<512xf32>
      %94 = vector.shape_cast %93 : vector<512xf32> to vector<1x512xf32>
      %95 = arith.addf %91, %94 : vector<1x512xf32>
      %c0_29 = arith.constant 0 : index
      %c0_30 = arith.constant 0 : index
      %96 = vector.load %arg17[%c0_29, %c0_30] : memref<1x512xf32, #tpu.memory_space<vmem>>, vector<1x512xf32>
      tpu.vector_store %arg17[%c0_29, %c0_30], %95 {strides = array<i32>} : memref<1x512xf32, #tpu.memory_space<vmem>>, vector<1x512xf32>,
      %97 = arith.truncf %90 : vector<64x512xf32> to vector<64x512xbf16>
      %98 = arith.index_cast %6 : i32 to index
      %c0_31 = arith.constant 0 : index
      %99 = vector.load %arg16[%98, %c0_31] : memref<128x512xbf16, #tpu.memory_space<vmem>>, vector<64x512xbf16>
      tpu.vector_store %arg16[%98, %c0_31], %97 {strides = array<i32>} : memref<128x512xbf16, #tpu.memory_space<vmem>>, vector<64x512xbf16>,
    } else {
    }
    %c1_i32 = arith.constant 1 : i32
    %10 = arith.cmpi eq, %arg1, %c1_i32 : i32
    %11 = arith.extui %10 : i1 to i32
    %c0_i32_4 = arith.constant 0 : i32
    %12 = arith.cmpi ne, %11, %c0_i32_4 : i32
    scf.if %12 {
      %c0_i32_5 = arith.constant 0 : i32
      %13 = arith.cmpi eq, %arg2, %c0_i32_5 : i32
      %14 = arith.extui %13 : i1 to i32
      %c0_i32_6 = arith.constant 0 : i32
      %15 = arith.cmpi ne, %14, %c0_i32_6 : i32
      scf.if %15 {
        %c0_21 = arith.constant 0 : index
        %c0_22 = arith.constant 0 : index
        %43 = vector.load %arg17[%c0_21, %c0_22] : memref<1x512xf32, #tpu.memory_space<vmem>>, vector<1x512xf32>
        %44 = math.sqrt %43 : vector<1x512xf32>
        %cst_23 = arith.constant dense<0.000000e+00> : vector<1xf32>
        %45 = vector.multi_reduction <add>, %44, %cst_23 [1] : vector<1x512xf32> to vector<1xf32>
        %46 = vector.shape_cast %45 : vector<1xf32> to vector<1x1xf32>
        %cst_24 = arith.constant 5.120000e+02 : f32
        %47 = vector.broadcast %cst_24 : f32 to vector<1x1xf32>
        %48 = arith.divf %46, %47 : vector<1x1xf32>
        %cst_25 = arith.constant 9.99999997E-7 : f32
        %49 = vector.broadcast %cst_25 : f32 to vector<1x1xf32>
        %50 = arith.addf %48, %49 : vector<1x1xf32>
        %51 = vector.broadcast %50 : vector<1x1xf32> to vector<1x512xf32>
        %52 = arith.divf %44, %51 : vector<1x512xf32>
        %c0_26 = arith.constant 0 : index
        %c0_27 = arith.constant 0 : index
        %53 = vector.load %arg18[%c0_26, %c0_27] : memref<1x512xf32, #tpu.memory_space<vmem>>, vector<1x512xf32>
        tpu.vector_store %arg18[%c0_26, %c0_27], %52 {strides = array<i32>} : memref<1x512xf32, #tpu.memory_space<vmem>>, vector<1x512xf32>,
      } else {
      }
      %16 = arith.index_cast %6 : i32 to index
      %c0 = arith.constant 0 : index
      %17 = vector.load %arg16[%16, %c0] : memref<128x512xbf16, #tpu.memory_space<vmem>>, vector<64x512xbf16>
      %18 = arith.extf %17 : vector<64x512xbf16> to vector<64x512xf32>
      %c0_7 = arith.constant 0 : index
      %c0_8 = arith.constant 0 : index
      %19 = vector.load %arg18[%c0_7, %c0_8] : memref<1x512xf32, #tpu.memory_space<vmem>>, vector<1x512xf32>
      %c0_9 = arith.constant 0 : index
      %c0_10 = arith.constant 0 : index
      %20 = vector.load %arg10[%c0_9, %c0_10] : memref<1x512xf32, #tpu.memory_space<vmem>>, vector<1x512xf32>
      %21 = vector.broadcast %19 : vector<1x512xf32> to vector<64x512xf32>
      %22 = arith.mulf %18, %21 : vector<64x512xf32>
      %23 = vector.broadcast %20 : vector<1x512xf32> to vector<64x512xf32>
      %24 = arith.mulf %23, %22 : vector<64x512xf32>
      %c0_11 = arith.constant 0 : index
      %c0_12 = arith.constant 0 : index
      %25 = vector.load %arg11[%c0_11, %c0_12] : memref<1x512xf32, #tpu.memory_space<vmem>>, vector<1x512xf32>
      %26 = vector.broadcast %25 : vector<1x512xf32> to vector<64x512xf32>
      %27 = arith.addf %24, %26 : vector<64x512xf32>
      %28 = arith.addf %27, %18 : vector<64x512xf32>
      %29 = arith.truncf %28 : vector<64x512xf32> to vector<64x512xbf16>
      %c0_13 = arith.constant 0 : index
      %c0_14 = arith.constant 0 : index
      %30 = vector.load %arg12[%c0_13, %c0_14] : memref<512x128xbf16, #tpu.memory_space<vmem>>, vector<512x128xbf16>
      %cst = arith.constant dense<0.000000e+00> : vector<64x128xf32>
      %31 = tpu.matmul %29, %30, %cst {dimension_numbers = #tpu.dot_dimension_numbers<[1], [0], [0], [1], [0, 0, 1, 1], [], []>} : vector<64x512xbf16>, vector<512x128xbf16>, vector<64x128xf32> -> vector<64x128xf32>
      %c0_15 = arith.constant 0 : index
      %c0_16 = arith.constant 0 : index
      %32 = vector.load %arg13[%c0_15, %c0_16] : memref<1x128xf32, #tpu.memory_space<vmem>>, vector<1x128xf32>
      %33 = vector.broadcast %32 : vector<1x128xf32> to vector<64x128xf32>
      %34 = arith.addf %31, %33 : vector<64x128xf32>
      %c8_i32 = arith.constant 8 : i32
      %35 = arith.addi %6, %c8_i32 : i32
      %36 = tpu.assume_multiple %35, 8 : i32
      %37 = arith.index_cast %36 : i32 to index
      %c0_17 = arith.constant 0 : index
      %38 = vector.load %arg15[%37, %c0_17] : memref<144x128xf32, #tpu.memory_space<vmem>>, vector<64x128xf32>
      %39 = arith.addf %38, %34 : vector<64x128xf32>
      %c0_18 = arith.constant 0 : index
      %c0_19 = arith.constant 0 : index
      %c0_20 = arith.constant 0 : index
      %40 = vector.load %arg14[%c0_18, %c0_19, %c0_20] : memref<1x64x128xf32, #tpu.memory_space<vmem>>, vector<1x64x128xf32>
      %41 = vector.shape_cast %40 : vector<1x64x128xf32> to vector<64x128xf32>
      %42 = vector.shape_cast %39 : vector<64x128xf32> to vector<1x64x128xf32>
      tpu.vector_store %arg14[%c0_18, %c0_19, %c0_20], %42 {strides = array<i32>} : memref<1x64x128xf32, #tpu.memory_space<vmem>>, vector<1x64x128xf32>,
    } else {
    }
    return
  }
  func.func @transform_1(%arg0: i32, %arg1: i32, %arg2: i32) -> (i32, i32) {
    %c0_i32 = arith.constant 0 : i32
    %c0_i32_0 = arith.constant 0 : i32
    %c0_i32_1 = arith.constant 0 : i32
    return %c0_i32, %c0_i32_0 : i32, i32
  }
  func.func @transform_2(%arg0: i32, %arg1: i32, %arg2: i32) -> (i32, i32) {
    %c0_i32 = arith.constant 0 : i32
    %c0_i32_0 = arith.constant 0 : i32
    %c0_i32_1 = arith.constant 0 : i32
    return %c0_i32, %c0_i32_0 : i32, i32
  }
  func.func @transform_3(%arg0: i32, %arg1: i32, %arg2: i32) -> (i32, i32) {
    %c0_i32 = arith.constant 0 : i32
    %c0_i32_0 = arith.constant 0 : i32
    %c0_i32_1 = arith.constant 0 : i32
    return %c0_i32, %c0_i32_0 : i32, i32
  }
  func.func @transform_4(%arg0: i32, %arg1: i32, %arg2: i32) -> (i32, i32) {
    %c0_i32 = arith.constant 0 : i32
    %c0_i32_0 = arith.constant 0 : i32
    %c0_i32_1 = arith.constant 0 : i32
    return %c0_i32, %c0_i32_0 : i32, i32
  }
  func.func @transform_5(%arg0: i32, %arg1: i32, %arg2: i32) -> (i32, i32) {
    %c0_i32 = arith.constant 0 : i32
    %c0_i32_0 = arith.constant 0 : i32
    %c0_i32_1 = arith.constant 0 : i32
    return %c0_i32, %c0_i32_0 : i32, i32
  }
  func.func @transform_6(%arg0: i32, %arg1: i32, %arg2: i32) -> (i32, i32) {
    %c0_i32 = arith.constant 0 : i32
    %c0_i32_0 = arith.constant 0 : i32
    %c0_i32_1 = arith.constant 0 : i32
    return %c0_i32, %c0_i32_0 : i32, i32
  }
  func.func @transform_7(%arg0: i32, %arg1: i32, %arg2: i32) -> (i32, i32) {
    %c0_i32 = arith.constant 0 : i32
    %c0_i32_0 = arith.constant 0 : i32
    %c0_i32_1 = arith.constant 0 : i32
    return %c0_i32, %c0_i32_0 : i32, i32
  }
  func.func @transform_8(%arg0: i32, %arg1: i32, %arg2: i32) -> (i32, i32) {
    %c0_i32 = arith.constant 0 : i32
    %c0_i32_0 = arith.constant 0 : i32
    %c0_i32_1 = arith.constant 0 : i32
    return %c0_i32, %c0_i32_0 : i32, i32
  }
  func.func @transform_9(%arg0: i32, %arg1: i32, %arg2: i32) -> (i32, i32) {
    %c0_i32 = arith.constant 0 : i32
    %c0_i32_0 = arith.constant 0 : i32
    %c0_i32_1 = arith.constant 0 : i32
    return %c0_i32, %c0_i32_0 : i32, i32
  }
  func.func @transform_10(%arg0: i32, %arg1: i32, %arg2: i32) -> (i32, i32) {
    %c0_i32 = arith.constant 0 : i32
    %c0_i32_0 = arith.constant 0 : i32
    %c0_i32_1 = arith.constant 0 : i32
    return %c0_i32, %c0_i32_0 : i32, i32
  }
  func.func @transform_11(%arg0: i32, %arg1: i32, %arg2: i32) -> (i32, i32, i32) {
    %0 = arith.muli %arg1, %arg2 : i32
    %c0_i32 = arith.constant 0 : i32
    %c0_i32_0 = arith.constant 0 : i32
    return %arg0, %0, %c0_i32 : i32, i32, i32
  }
}

</mosaic_0001>

<llo_original>
// kernel: convnext_v2_glu_like_encoder.3
$region0: #{convnext_v2_glu_like_encoder.3}
  #allocation0 [shape = 'u32[]', space=smem, size = 0x4, offset = 0x4, fixed_abs, tag = 'smem constant byte address 0x4 - core index']
  #allocation1 [shape = 'u32[72,128]{1,0:T(1,128)}', space=vmem, size = 0x9000, scoped, tag = 'internal scratch']
  #allocation2 [shape = 'f32[144,128]{1,0:T(8,128)}', space=vmem, size = 0x12000, scoped, tag = 'scratch operand']
  #allocation3 [shape = 'bf16[128,512]{1,0:T(8,128)(2,1)}', space=vmem, size = 0x20000, scoped, tag = 'scratch operand']
  #allocation4 [shape = 'f32[1,512]{1,0:T(1,128)}', space=vmem, size = 0x800, scoped, tag = 'scratch operand']
  #allocation5 [shape = 'f32[1,512]{1,0:T(1,128)}', space=vmem, size = 0x800, scoped, tag = 'scratch operand']
  #allocation6 [shape = 's32[1]{0}', space=sflag, size = 0x4, scoped, tag = 'scratch operand']
  #allocation9 [shape = 's32[]', space=sflag, size = 0x4, offset = 0, fixed_abs, tag = 'sflag constant byte address 0x0 - dummy sync flag']
  %s0 = inlined_call_operand.vmem [shape: f32[2,128,128], index: 0, kind: input, shape index: {}]
  %s1 = inlined_call_operand.vmem [shape: f32[5,128], index: 1, kind: input, shape index: {}]
  %s2 = inlined_call_operand.vmem [shape: f32[1,128], index: 2, kind: input, shape index: {}]
  %s3 = inlined_call_operand.vmem [shape: f32[1,128], index: 3, kind: input, shape index: {}]
  %s4 = inlined_call_operand.vmem [shape: f32[1,128], index: 4, kind: input, shape index: {}]
  %s5 = inlined_call_operand.vmem [shape: bf16[128,1024], index: 5, kind: input, shape index: {}]
  %s6 = inlined_call_operand.vmem [shape: f32[1,1024], index: 6, kind: input, shape index: {}]
  %s7 = inlined_call_operand.vmem [shape: f32[1,512], index: 7, kind: input, shape index: {}]
  %s8 = inlined_call_operand.vmem [shape: f32[1,512], index: 8, kind: input, shape index: {}]
  %s9 = inlined_call_operand.vmem [shape: bf16[512,128], index: 9, kind: input, shape index: {}]
  %s10 = inlined_call_operand.vmem [shape: f32[1,128], index: 10, kind: input, shape index: {}]
  %s11 = inlined_call_operand.hbm [shape: f32[2,128,128], index: 11, kind: output, shape index: {}]
  %s12 = sld [smem:[#allocation0]]
  $region108: #{convnext_v2_glu_like_encoder.3} parent=0
    _
  %s14 = ssub.s32 1, %s12
  %s15 = scalar_select 0, %s14, %s12
  $region1: #{convnext_v2_glu_like_encoder.3} parent=0
    #allocation7 [shape = 'u8[65536]{0}', space=vmem, size = 0x10000, scoped, tag = 'output window, operand 0']
    #allocation8 [shape = 's32[2]{0}', space=sflag, size = 0x8, scoped, tag = 'scoped memory for convnext_v2_glu_like_encoder.3']
    %16 = vsyncpa [#allocation8], 0
    %s17 = scalar_lea.sflag [#allocation8], 1
    %18 = vsyncpa %s17, 0
    loop: start=0, step=1, limit=10
    $region2: #{convnext_v2_glu_like_encoder.3} parent=1 // loop_pre_header
      _
    $region3: #{convnext_v2_glu_like_encoder.3} parent=1 // loop_header
      %s20 = sphi 0, %s24
      %p21 = scmp.ge.s32.totalorder %s20, 10
      %s27 = sphi 0, %s46
      %s28 = sphi 0, %s42
      %s29 = sphi 0, %s38
      %s30 = sphi 0, %s27
      %s31 = sphi 0, %s28
      %s32 = sphi 0, %s29
      %s33 = sphi 0, %s30
      %s34 = sphi 0, %s31
      %s35 = sphi 0, %s32
      %s47 = sphi 0, %s47
      %s49 = sphi 0, %s47
      %s50 = sphi 0, %s49
      %s64 = sphi 0, %s50
      %s68 = sphi 0, %s68
      %s70 = sphi 0, %s68
      %s71 = sphi 0, %s70
      %s85 = sphi 0, %s71
      %s89 = sphi 0, %s89
      %s91 = sphi 0, %s89
      %s92 = sphi 0, %s91
      %s106 = sphi 0, %s92
      %s110 = sphi 0, %s110
      %s112 = sphi 0, %s110
      %s113 = sphi 0, %s112
      %s127 = sphi 0, %s113
      %s131 = sphi 0, %s131
      %s133 = sphi 0, %s131
      %s134 = sphi 0, %s133
      %s148 = sphi 0, %s134
      %s152 = sphi 0, %s152
      %s154 = sphi 0, %s152
      %s155 = sphi 0, %s154
      %s169 = sphi 0, %s155
      %s173 = sphi 0, %s173
      %s175 = sphi 0, %s173
      %s176 = sphi 0, %s175
      %s190 = sphi 0, %s176
      %s194 = sphi 0, %s194
      %s196 = sphi 0, %s194
      %s197 = sphi 0, %s196
      %s211 = sphi 0, %s197
      %s215 = sphi 0, %s215
      %s217 = sphi 0, %s215
      %s218 = sphi 0, %s217
      %s232 = sphi 0, %s218
      %s236 = sphi 0, %s236
      %s238 = sphi 0, %s236
      %s239 = sphi 0, %s238
      %s253 = sphi 0, %s239
      %s263 = sphi 0, %s265
      %s266 = sphi 0, %s263
      %s267 = sphi 0, %s266
      %s283 = sphi 0, %s267
    $region4: #{convnext_v2_glu_like_encoder.3} parent=1 // loop_header_branch
      %23 = sbr.rel (%p21) target = $region8
    $region5: #{convnext_v2_glu_like_encoder.3} parent=1 // loop_body
      %s25 = ssub.s32 %s20, 1
      %s26 = ssub.s32 %s20, 2
      %s36 = sadd.s32 1, %s29
      %p37 = scmp.ge.s32.totalorder %s36, 2
      %s38 = scalar_select %p37, 0, %s36
      %s39 = sadd.s32 1, %s28
      %s40 = scalar_select %p37, %s39, %s28
      %p41 = scmp.ge.s32.totalorder %s40, 2
      %s42 = scalar_select %p41, 0, %s40
      %s43 = sadd.s32 1, %s27
      %s44 = scalar_select %p41, %s43, %s27
      %p45 = scmp.ge.s32.totalorder %s44, 2
      %s46 = scalar_select %p45, 0, %s44
      %s48 = sadd.s32 %s47, 1
      %p51 = scmp.eq.s32.totalorder %s20, 7
      %p52 = scmp.ne.s32.totalorder %s47, %s49
      %p53 = scmp.eq.s32.totalorder %s20, 0
      %p54 = por %p52, %p53
      %p55 = scmp.ne.s32.totalorder %s47, %s49
      %p56 = scmp.eq.s32.totalorder %s25, 7
      %p57 = por %p55, %p56
      %p58 = scmp.ne.s32.totalorder %s49, %s50
      %p59 = scmp.eq.s32.totalorder %s25, 0
      %p60 = por %p58, %p59
      %p61 = scmp.ne.s32.totalorder %s49, %s50
      %p62 = scmp.eq.s32.totalorder %s26, 7
      %p63 = por %p61, %p62
      %p65 = scmp.ne.s32.totalorder %s50, %s64
      %p66 = scmp.eq.s32.totalorder %s26, 0
      %p67 = por %p65, %p66
      %s69 = sadd.s32 %s68, 1
      %p72 = scmp.eq.s32.totalorder %s20, 7
      %p73 = scmp.ne.s32.totalorder %s68, %s70
      %p74 = scmp.eq.s32.totalorder %s20, 0
      %p75 = por %p73, %p74
      %p76 = scmp.ne.s32.totalorder %s68, %s70
      %p77 = scmp.eq.s32.totalorder %s25, 7
      %p78 = por %p76, %p77
      %p79 = scmp.ne.s32.totalorder %s70, %s71
      %p80 = scmp.eq.s32.totalorder %s25, 0
      %p81 = por %p79, %p80
      %p82 = scmp.ne.s32.totalorder %s70, %s71
      %p83 = scmp.eq.s32.totalorder %s26, 7
      %p84 = por %p82, %p83
      %p86 = scmp.ne.s32.totalorder %s71, %s85
      %p87 = scmp.eq.s32.totalorder %s26, 0
      %p88 = por %p86, %p87
      %s90 = sadd.s32 %s89, 1
      %p93 = scmp.eq.s32.totalorder %s20, 7
      %p94 = scmp.ne.s32.totalorder %s89, %s91
      %p95 = scmp.eq.s32.totalorder %s20, 0
      %p96 = por %p94, %p95
      %p97 = scmp.ne.s32.totalorder %s89, %s91
      %p98 = scmp.eq.s32.totalorder %s25, 7
      %p99 = por %p97, %p98
      %p100 = scmp.ne.s32.totalorder %s91, %s92
      %p101 = scmp.eq.s32.totalorder %s25, 0
      %p102 = por %p100, %p101
      %p103 = scmp.ne.s32.totalorder %s91, %s92
      %p104 = scmp.eq.s32.totalorder %s26, 7
      %p105 = por %p103, %p104
      %p107 = scmp.ne.s32.totalorder %s92, %s106
      %p108 = scmp.eq.s32.totalorder %s26, 0
      %p109 = por %p107, %p108
      %s111 = sadd.s32 %s110, 1
      %p114 = scmp.eq.s32.totalorder %s20, 7
      %p115 = scmp.ne.s32.totalorder %s110, %s112
      %p116 = scmp.eq.s32.totalorder %s20, 0
      %p117 = por %p115, %p116
      %p118 = scmp.ne.s32.totalorder %s110, %s112
      %p119 = scmp.eq.s32.totalorder %s25, 7
      %p120 = por %p118, %p119
      %p121 = scmp.ne.s32.totalorder %s112, %s113
      %p122 = scmp.eq.s32.totalorder %s25, 0
      %p123 = por %p121, %p122
      %p124 = scmp.ne.s32.totalorder %s112, %s113
      %p125 = scmp.eq.s32.totalorder %s26, 7
      %p126 = por %p124, %p125
      %p128 = scmp.ne.s32.totalorder %s113, %s127
      %p129 = scmp.eq.s32.totalorder %s26, 0
      %p130 = por %p128, %p129
      %s132 = sadd.s32 %s131, 1
      %p135 = scmp.eq.s32.totalorder %s20, 7
      %p136 = scmp.ne.s32.totalorder %s131, %s133
      %p137 = scmp.eq.s32.totalorder %s20, 0
      %p138 = por %p136, %p137
      %p139 = scmp.ne.s32.totalorder %s131, %s133
      %p140 = scmp.eq.s32.totalorder %s25, 7
      %p141 = por %p139, %p140
      %p142 = scmp.ne.s32.totalorder %s133, %s134
      %p143 = scmp.eq.s32.totalorder %s25, 0
      %p144 = por %p142, %p143
      %p145 = scmp.ne.s32.totalorder %s133, %s134
      %p146 = scmp.eq.s32.totalorder %s26, 7
      %p147 = por %p145, %p146
      %p149 = scmp.ne.s32.totalorder %s134, %s148
      %p150 = scmp.eq.s32.totalorder %s26, 0
      %p151 = por %p149, %p150
      %s153 = sadd.s32 %s152, 1
      %p156 = scmp.eq.s32.totalorder %s20, 7
      %p157 = scmp.ne.s32.totalorder %s152, %s154
      %p158 = scmp.eq.s32.totalorder %s20, 0
      %p159 = por %p157, %p158
      %p160 = scmp.ne.s32.totalorder %s152, %s154
      %p161 = scmp.eq.s32.totalorder %s25, 7
      %p162 = por %p160, %p161
      %p163 = scmp.ne.s32.totalorder %s154, %s155
      %p164 = scmp.eq.s32.totalorder %s25, 0
      %p165 = por %p163, %p164
      %p166 = scmp.ne.s32.totalorder %s154, %s155
      %p167 = scmp.eq.s32.totalorder %s26, 7
      %p168 = por %p166, %p167
      %p170 = scmp.ne.s32.totalorder %s155, %s169
      %p171 = scmp.eq.s32.totalorder %s26, 0
      %p172 = por %p170, %p171
      %s174 = sadd.s32 %s173, 1
      %p177 = scmp.eq.s32.totalorder %s20, 7
      %p178 = scmp.ne.s32.totalorder %s173, %s175
      %p179 = scmp.eq.s32.totalorder %s20, 0
      %p180 = por %p178, %p179
      %p181 = scmp.ne.s32.totalorder %s173, %s175
      %p182 = scmp.eq.s32.totalorder %s25, 7
      %p183 = por %p181, %p182
      %p184 = scmp.ne.s32.totalorder %s175, %s176
      %p185 = scmp.eq.s32.totalorder %s25, 0
      %p186 = por %p184, %p185
      %p187 = scmp.ne.s32.totalorder %s175, %s176
      %p188 = scmp.eq.s32.totalorder %s26, 7
      %p189 = por %p187, %p188
      %p191 = scmp.ne.s32.totalorder %s176, %s190
      %p192 = scmp.eq.s32.totalorder %s26, 0
      %p193 = por %p191, %p192
      %s195 = sadd.s32 %s194, 1
      %p198 = scmp.eq.s32.totalorder %s20, 7
      %p199 = scmp.ne.s32.totalorder %s194, %s196
      %p200 = scmp.eq.s32.totalorder %s20, 0
      %p201 = por %p199, %p200
      %p202 = scmp.ne.s32.totalorder %s194, %s196
      %p203 = scmp.eq.s32.totalorder %s25, 7
      %p204 = por %p202, %p203
      %p205 = scmp.ne.s32.totalorder %s196, %s197
      %p206 = scmp.eq.s32.totalorder %s25, 0
      %p207 = por %p205, %p206
      %p208 = scmp.ne.s32.totalorder %s196, %s197
      %p209 = scmp.eq.s32.totalorder %s26, 7
      %p210 = por %p208, %p209
      %p212 = scmp.ne.s32.totalorder %s197, %s211
      %p213 = scmp.eq.s32.totalorder %s26, 0
      %p214 = por %p212, %p213
      %s216 = sadd.s32 %s215, 1
      %p219 = scmp.eq.s32.totalorder %s20, 7
      %p220 = scmp.ne.s32.totalorder %s215, %s217
      %p221 = scmp.eq.s32.totalorder %s20, 0
      %p222 = por %p220, %p221
      %p223 = scmp.ne.s32.totalorder %s215, %s217
      %p224 = scmp.eq.s32.totalorder %s25, 7
      %p225 = por %p223, %p224
      %p226 = scmp.ne.s32.totalorder %s217, %s218
      %p227 = scmp.eq.s32.totalorder %s25, 0
      %p228 = por %p226, %p227
      %p229 = scmp.ne.s32.totalorder %s217, %s218
      %p230 = scmp.eq.s32.totalorder %s26, 7
      %p231 = por %p229, %p230
      %p233 = scmp.ne.s32.totalorder %s218, %s232
      %p234 = scmp.eq.s32.totalorder %s26, 0
      %p235 = por %p233, %p234
      %s237 = sadd.s32 %s236, 1
      %p240 = scmp.eq.s32.totalorder %s20, 7
      %p241 = scmp.ne.s32.totalorder %s236, %s238
      %p242 = scmp.eq.s32.totalorder %s20, 0
      %p243 = por %p241, %p242
      %p244 = scmp.ne.s32.totalorder %s236, %s238
      %p245 = scmp.eq.s32.totalorder %s25, 7
      %p246 = por %p244, %p245
      %p247 = scmp.ne.s32.totalorder %s238, %s239
      %p248 = scmp.eq.s32.totalorder %s25, 0
      %p249 = por %p247, %p248
      %p250 = scmp.ne.s32.totalorder %s238, %s239
      %p251 = scmp.eq.s32.totalorder %s26, 7
      %p252 = por %p250, %p251
      %p254 = scmp.ne.s32.totalorder %s239, %s253
      %p255 = scmp.eq.s32.totalorder %s26, 0
      %p256 = por %p254, %p255
      %s257 = smul.u32 %s28, %s29
      %s258 = smul.u32 %s42, %s38
      %s259 = ssub.s32 %s27, %s46
      %s260 = ssub.s32 %s257, %s258
      %s261 = sor.u32 %s259, %s260
      %p262 = scmp.eq.s32.totalorder %s261, 0
      %s264 = sadd.s32 %s263, 1
      %s265 = scalar_select %p262, %s263, %s264
      %p268 = pneg %p262
      %p269 = scmp.eq.s32.totalorder %s20, 7
      %p270 = por %p268, %p269
      %p271 = scmp.ne.s32.totalorder %s263, %s266
      %p272 = scmp.eq.s32.totalorder %s20, 0
      %p273 = por %p271, %p272
      %p274 = scmp.ne.s32.totalorder %s263, %s266
      %p275 = scmp.eq.s32.totalorder %s25, 7
      %p276 = por %p274, %p275
      %p277 = scmp.ne.s32.totalorder %s266, %s267
      %p278 = scmp.eq.s32.totalorder %s25, 0
      %p279 = por %p277, %p278
      %p280 = scmp.ne.s32.totalorder %s266, %s267
      %p281 = scmp.eq.s32.totalorder %s26, 7
      %p282 = por %p280, %p281
      %p284 = scmp.ne.s32.totalorder %s267, %s283
      %p285 = scmp.eq.s32.totalorder %s26, 0
      %p286 = por %p284, %p285
      %p287 = scmp.le.s32.totalorder 1, %s20
      %p288 = scmp.lt.s32.totalorder %s20, 9
      %p289 = pnand %p287, %p288
      %p290 = pneg %p289
      // Predicated region
      $region9: #{convnext_v2_glu_like_encoder.3} parent=5 // pred_check
        _
      $region10: #{convnext_v2_glu_like_encoder.3} parent=5 // pred_check_branch
        %292 = sbr.rel (%p289) target = $region12
      $region11: #{convnext_v2_glu_like_encoder.3} parent=5 // pred_region
        %s293 = ssub.s32 %s20, 1
        // Predicated region
        $region13: #{convnext_v2_glu_like_encoder.3} parent=11 // pred_check
          %p294 = pneg %p60
        $region14: #{convnext_v2_glu_like_encoder.3} parent=11 // pred_check_branch
          %296 = sbr.rel (%p294) target = $region16
        $region15: #{convnext_v2_glu_like_encoder.3} parent=11 // pred_region
          _
        $region16: #{convnext_v2_glu_like_encoder.3} parent=11 // pred_fallthru
          _
        // Predicated region
        $region17: #{convnext_v2_glu_like_encoder.3} parent=11 // pred_check
          %p297 = pneg %p81
        $region18: #{convnext_v2_glu_like_encoder.3} parent=11 // pred_check_branch
          %299 = sbr.rel (%p297) target = $region20
        $region19: #{convnext_v2_glu_like_encoder.3} parent=11 // pred_region
          _
        $region20: #{convnext_v2_glu_like_encoder.3} parent=11 // pred_fallthru
          _
        // Predicated region
        $region21: #{convnext_v2_glu_like_encoder.3} parent=11 // pred_check
          %p300 = pneg %p102
        $region22: #{convnext_v2_glu_like_encoder.3} parent=11 // pred_check_branch
          %302 = sbr.rel (%p300) target = $region24
        $region23: #{convnext_v2_glu_like_encoder.3} parent=11 // pred_region
          _
        $region24: #{convnext_v2_glu_like_encoder.3} parent=11 // pred_fallthru
          _
        // Predicated region
        $region25: #{convnext_v2_glu_like_encoder.3} parent=11 // pred_check
          %p303 = pneg %p123
        $region26: #{convnext_v2_glu_like_encoder.3} parent=11 // pred_check_branch
          %305 = sbr.rel (%p303) target = $region28
        $region27: #{convnext_v2_glu_like_encoder.3} parent=11 // pred_region
          _
        $region28: #{convnext_v2_glu_like_encoder.3} parent=11 // pred_fallthru
          _
        // Predicated region
        $region29: #{convnext_v2_glu_like_encoder.3} parent=11 // pred_check
          %p306 = pneg %p144
        $region30: #{convnext_v2_glu_like_encoder.3} parent=11 // pred_check_branch
          %308 = sbr.rel (%p306) target = $region32
        $region31: #{convnext_v2_glu_like_encoder.3} parent=11 // pred_region
          _
        $region32: #{convnext_v2_glu_like_encoder.3} parent=11 // pred_fallthru
          _
        // Predicated region
        $region33: #{convnext_v2_glu_like_encoder.3} parent=11 // pred_check
          %p309 = pneg %p165
        $region34: #{convnext_v2_glu_like_encoder.3} parent=11 // pred_check_branch
          %311 = sbr.rel (%p309) target = $region36
        $region35: #{convnext_v2_glu_like_encoder.3} parent=11 // pred_region
          _
        $region36: #{convnext_v2_glu_like_encoder.3} parent=11 // pred_fallthru
          _
        // Predicated region
        $region37: #{convnext_v2_glu_like_encoder.3} parent=11 // pred_check
          %p312 = pneg %p186
        $region38: #{convnext_v2_glu_like_encoder.3} parent=11 // pred_check_branch
          %314 = sbr.rel (%p312) target = $region40
        $region39: #{convnext_v2_glu_like_encoder.3} parent=11 // pred_region
          _
        $region40: #{convnext_v2_glu_like_encoder.3} parent=11 // pred_fallthru
          _
        // Predicated region
        $region41: #{convnext_v2_glu_like_encoder.3} parent=11 // pred_check
          %p315 = pneg %p207
        $region42: #{convnext_v2_glu_like_encoder.3} parent=11 // pred_check_branch
          %317 = sbr.rel (%p315) target = $region44
        $region43: #{convnext_v2_glu_like_encoder.3} parent=11 // pred_region
          _
        $region44: #{convnext_v2_glu_like_encoder.3} parent=11 // pred_fallthru
          _
        // Predicated region
        $region45: #{convnext_v2_glu_like_encoder.3} parent=11 // pred_check
          %p318 = pneg %p228
        $region46: #{convnext_v2_glu_like_encoder.3} parent=11 // pred_check_branch
          %320 = sbr.rel (%p318) target = $region48
        $region47: #{convnext_v2_glu_like_encoder.3} parent=11 // pred_region
          _
        $region48: #{convnext_v2_glu_like_encoder.3} parent=11 // pred_fallthru
          _
        // Predicated region
        $region49: #{convnext_v2_glu_like_encoder.3} parent=11 // pred_check
          %p321 = pneg %p249
        $region50: #{convnext_v2_glu_like_encoder.3} parent=11 // pred_check_branch
          %323 = sbr.rel (%p321) target = $region52
        $region51: #{convnext_v2_glu_like_encoder.3} parent=11 // pred_region
          _
        $region52: #{convnext_v2_glu_like_encoder.3} parent=11 // pred_fallthru
          _
      $region12: #{convnext_v2_glu_like_encoder.3} parent=5 // pred_fallthru
        _
      %p324 = scmp.lt.s32.totalorder %s20, 8
      // Predicated region
      $region53: #{convnext_v2_glu_like_encoder.3} parent=5 // pred_check
        %p325 = pneg %p324
      $region54: #{convnext_v2_glu_like_encoder.3} parent=5 // pred_check_branch
        %327 = sbr.rel (%p325) target = $region56
      $region55: #{convnext_v2_glu_like_encoder.3} parent=5 // pred_region
        _
      $region56: #{convnext_v2_glu_like_encoder.3} parent=5 // pred_fallthru
        _
      %p328 = scmp.le.s32.totalorder 1, %s20
      %p329 = scmp.lt.s32.totalorder %s20, 9
      %p330 = pnand %p328, %p329
      %p331 = pneg %p330
      // Predicated region
      $region57: #{convnext_v2_glu_like_encoder.3} parent=5 // pred_check
        _
      $region58: #{convnext_v2_glu_like_encoder.3} parent=5 // pred_check_branch
        %333 = sbr.rel (%p330) target = $region60
      $region59: #{convnext_v2_glu_like_encoder.3} parent=5 // pred_region
        %s334 = ssub.s32 %s20, 1
        %p335 = pneg %p60
        %p336 = pneg %p57
        %p337 = pneg %p81
        %p338 = pneg %p78
        %p339 = pneg %p102
        %p340 = pneg %p99
        %p341 = pneg %p123
        %p342 = pneg %p120
        %p343 = pneg %p144
        %p344 = pneg %p141
        %p345 = pneg %p165
        %p346 = pneg %p162
        %p347 = pneg %p186
        %p348 = pneg %p183
        %p349 = pneg %p207
        %p350 = pneg %p204
        %p351 = pneg %p228
        %p352 = pneg %p225
        %p353 = pneg %p249
        %p354 = pneg %p246
        %p355 = pneg %p279
        %p356 = pneg %p276
        %s357 = sand.u32 %s266, 1
        %s358 = scalar_lea.sflag [#allocation8], %s357
        %s359 = sand.u32 %s266, 1
        %s360 = smul.addr %s359, 64
        %s361 = scalar_lea.vmem [#allocation7], %s360
        %s362 = smul.u32 %s31, %s32
        %s363 = smul.u32 8, %s362
        %p364 = scmp.eq.s32.totalorder %s31, 0
        %p365 = scmp.eq.s32.totalorder %s32, 0
        %p366 = pnand %p364, %p365
        %p367 = pneg %p366
        // Predicated region
        $region61: #{convnext_v2_glu_like_encoder.3} parent=59 // pred_check
          _
        $region62: #{convnext_v2_glu_like_encoder.3} parent=59 // pred_check_branch
          %369 = sbr.rel (%p366) target = $region64
        $region63: #{convnext_v2_glu_like_encoder.3} parent=59 // pred_region
          %370 = vst [vmem:[#allocation2] sm:$0xff] 0.0
          %371 = vst [vmem:[#allocation2 + $0x88] sm:$0xff] 0.0
          %s372 = smul.u32 %s30, 128
          %s373 = scalar_lea.vmem %s0, %s372
          %s374 = scalar_lea.vmem [#allocation2], 8
          // Predicated region
          $region65: #{convnext_v2_glu_like_encoder.3} parent=63 // pred_check
            _
          $region66: #{convnext_v2_glu_like_encoder.3} parent=63 // pred_check_branch
            %376 = sbr.rel (0) target = $region68
          $region67: #{convnext_v2_glu_like_encoder.3} parent=63 // pred_region
            loop: start=0, step=1, limit=1
            $region69: #{convnext_v2_glu_like_encoder.3} parent=67 // loop_pre_header
              _
            $region70: #{convnext_v2_glu_like_encoder.3} parent=67 // loop_header
              %s378 = sphi 0, %s382
              %p379 = scmp.ge.s32.totalorder %s378, 1
              %s383 = sphi %s373, %s373
              %s384 = sphi %s374, %s374
            $region71: #{convnext_v2_glu_like_encoder.3} parent=67 // loop_header_branch
              %381 = sbr.rel (%p379) target = $region75
            $region72: #{convnext_v2_glu_like_encoder.3} parent=67 // loop_body
              %v385 = vld [vmem:[%s383] sm:$0xff]
              %386 = vst [vmem:[%s384] sm:$0xff] %v385
              %v387 = vld [vmem:[%s383 + $0x8] sm:$0xff]
              %388 = vst [vmem:[%s384 + $0x8] sm:$0xff] %v387
              %v389 = vld [vmem:[%s383 + $0x10] sm:$0xff]
              %390 = vst [vmem:[%s384 + $0x10] sm:$0xff] %v389
              %v391 = vld [vmem:[%s383 + $0x18] sm:$0xff]
              %392 = vst [vmem:[%s384 + $0x18] sm:$0xff] %v391
              %v393 = vld [vmem:[%s383 + $0x20] sm:$0xff]
              %394 = vst [vmem:[%s384 + $0x20] sm:$0xff] %v393
              %v395 = vld [vmem:[%s383 + $0x28] sm:$0xff]
              %396 = vst [vmem:[%s384 + $0x28] sm:$0xff] %v395
              %v397 = vld [vmem:[%s383 + $0x30] sm:$0xff]
              %398 = vst [vmem:[%s384 + $0x30] sm:$0xff] %v397
              %v399 = vld [vmem:[%s383 + $0x38] sm:$0xff]
              %400 = vst [vmem:[%s384 + $0x38] sm:$0xff] %v399
              %v401 = vld [vmem:[%s383 + $0x40] sm:$0xff]
              %402 = vst [vmem:[%s384 + $0x40] sm:$0xff] %v401
              %v403 = vld [vmem:[%s383 + $0x48] sm:$0xff]
              %404 = vst [vmem:[%s384 + $0x48] sm:$0xff] %v403
              %v405 = vld [vmem:[%s383 + $0x50] sm:$0xff]
              %406 = vst [vmem:[%s384 + $0x50] sm:$0xff] %v405
              %v407 = vld [vmem:[%s383 + $0x58] sm:$0xff]
              %408 = vst [vmem:[%s384 + $0x58] sm:$0xff] %v407
              %v409 = vld [vmem:[%s383 + $0x60] sm:$0xff]
              %410 = vst [vmem:[%s384 + $0x60] sm:$0xff] %v409
              %v411 = vld [vmem:[%s383 + $0x68] sm:$0xff]
              %412 = vst [vmem:[%s384 + $0x68] sm:$0xff] %v411
              %v413 = vld [vmem:[%s383 + $0x70] sm:$0xff]
              %414 = vst [vmem:[%s384 + $0x70] sm:$0xff] %v413
              %v415 = vld [vmem:[%s383 + $0x78] sm:$0xff]
              %416 = vst [vmem:[%s384 + $0x78] sm:$0xff] %v415
            $region73: #{convnext_v2_glu_like_encoder.3} parent=67 // loop_footer
              %s382 = sadd.s32 1, %s378
            $region74: #{convnext_v2_glu_like_encoder.3} parent=67 // loop_footer_branch
              %377 = sbr.rel target = $region70
            $region75: #{convnext_v2_glu_like_encoder.3} parent=67 // loop_exit
              _
          $region68: #{convnext_v2_glu_like_encoder.3} parent=63 // pred_fallthru
            _
          // Predicated region
          $region76: #{convnext_v2_glu_like_encoder.3} parent=63 // pred_check
            _
          $region77: #{convnext_v2_glu_like_encoder.3} parent=63 // pred_check_branch
            %418 = sbr.rel target = $region79
          $region78: #{convnext_v2_glu_like_encoder.3} parent=63 // pred_region
            _
          $region79: #{convnext_v2_glu_like_encoder.3} parent=63 // pred_fallthru
            _
          // Predicated region
          $region80: #{convnext_v2_glu_like_encoder.3} parent=63 // pred_check
            _
          $region81: #{convnext_v2_glu_like_encoder.3} parent=63 // pred_check_branch
            %421 = sbr.rel (0) target = $region83
          $region82: #{convnext_v2_glu_like_encoder.3} parent=63 // pred_region
            %422 = vsyncadd [#allocation6], 2048
          $region83: #{convnext_v2_glu_like_encoder.3} parent=63 // pred_fallthru
            _
          %s423 = smul.u32 128, 1
          %s424 = sshll.u32 %s423, 4
          %425 = dma.done [#allocation6], %s424
          %v426 = vlaneseq
          %vm427 = vcmp.ge.s32.totalorder %v426, 0
          %vm428 = vcmp.lt.s32.totalorder %v426, 512
          %vm429 = vmand %vm427, %vm428
          %430 = vst.msk [vmem:[#allocation4] sm:$0xf] %vm429, 0.0
        $region64: #{convnext_v2_glu_like_encoder.3} parent=59 // pred_fallthru
          _
        %s431 = smul.u32 %s32, 64
        // Predicated region
        $region84: #{convnext_v2_glu_like_encoder.3} parent=59 // pred_check
          %p432 = pneg %p364
        $region85: #{convnext_v2_glu_like_encoder.3} parent=59 // pred_check_branch
          %434 = sbr.rel (%p432) target = $region87
        $region86: #{convnext_v2_glu_like_encoder.3} parent=59 // pred_region
          %s435 = scalar_lea.vmem [#allocation2], %s431
          %v436 = vld [vmem:[%s435] sm:$0xff]
          %v437 = vld [vmem:[%s435 + $0x8] sm:$0xff]
          %v438 = vld [vmem:[%s435 + $0x10] sm:$0xff]
          %v439 = vld [vmem:[%s435 + $0x18] sm:$0xff]
          %v440 = vld [vmem:[%s435 + $0x20] sm:$0xff]
          %v441 = vld [vmem:[%s435 + $0x28] sm:$0xff]
          %v442 = vld [vmem:[%s435 + $0x30] sm:$0xff]
          %v443 = vld [vmem:[%s435 + $0x38] sm:$0xff]
          %v444 = vld [vmem:[%s435 + $0x40] sm:$0xff]
          %v445 = vld [vmem:[%s435 + $0x48] sm:$0xff]
          %v446 = vld [vmem:[%s1] sm:$0x1f]
          %v447 = vrot.slane %v436, 6
          %v448 = vrot.slane %v437, 6
          %v449 = vrot.slane %v438, 6
          %v450 = vrot.slane %v439, 6
          %v451 = vrot.slane %v440, 6
          %v452 = vrot.slane %v441, 6
          %v453 = vrot.slane %v442, 6
          %v454 = vrot.slane %v443, 6
          %v455 = vrot.slane %v444, 6
          %v456 = vlaneseq
          %v457 = vshrl.u32 %v456, 7
          %vm458 = vcmp.lt.s32.totalorder %v457, 2
          %v459 = vsel %vm458, %v454, %v455
          %v460 = vsel %vm458, %v453, %v454
          %v461 = vsel %vm458, %v452, %v453
          %v462 = vsel %vm458, %v451, %v452
          %v463 = vsel %vm458, %v450, %v451
          %v464 = vsel %vm458, %v449, %v450
          %v465 = vsel %vm458, %v448, %v449
          %v466 = vsel %vm458, %v447, %v448
          %v467 = vperm.slane %v446, 0
          %v468 = vmul.f32 %v466, %v467
          %v469 = vmul.f32 %v465, %v467
          %v470 = vmul.f32 %v464, %v467
          %v471 = vmul.f32 %v463, %v467
          %v472 = vmul.f32 %v462, %v467
          %v473 = vmul.f32 %v461, %v467
          %v474 = vmul.f32 %v460, %v467
          %v475 = vmul.f32 %v459, %v467
          %v476 = vld [vmem:[%s2] sm:$0x1]
          %v478 = vperm.slane %v476, 0
          %v480 = vadd.f32 %v468, %v478
          %v481 = vadd.f32 %v469, %v478
          %v482 = vadd.f32 %v470, %v478
          %v483 = vadd.f32 %v471, %v478
          %v484 = vadd.f32 %v472, %v478
          %v485 = vadd.f32 %v473, %v478
          %v486 = vadd.f32 %v474, %v478
          %v487 = vadd.f32 %v475, %v478
          %v488 = vrot.slane %v436, 7
          %v489 = vrot.slane %v437, 7
          %v490 = vrot.slane %v438, 7
          %v491 = vrot.slane %v439, 7
          %v492 = vrot.slane %v440, 7
          %v493 = vrot.slane %v441, 7
          %v494 = vrot.slane %v442, 7
          %v495 = vrot.slane %v443, 7
          %v496 = vrot.slane %v444, 7
          %vm497 = vcmp.lt.s32.totalorder %v457, 1
          %v498 = vsel %vm497, %v495, %v496
          %v499 = vsel %vm497, %v494, %v495
          %v500 = vsel %vm497, %v493, %v494
          %v501 = vsel %vm497, %v492, %v493
          %v502 = vsel %vm497, %v491, %v492
          %v503 = vsel %vm497, %v490, %v491
          %v504 = vsel %vm497, %v489, %v490
          %v505 = vsel %vm497, %v488, %v489
          %v506 = vperm.slane %v446, 1
          %v507 = vmul.f32 %v505, %v506
          %v508 = vmul.f32 %v504, %v506
          %v509 = vmul.f32 %v503, %v506
          %v510 = vmul.f32 %v502, %v506
          %v511 = vmul.f32 %v501, %v506
          %v512 = vmul.f32 %v500, %v506
          %v513 = vmul.f32 %v499, %v506
          %v514 = vmul.f32 %v498, %v506
          %v515 = vadd.f32 %v480, %v507
          %v516 = vadd.f32 %v481, %v508
          %v517 = vadd.f32 %v482, %v509
          %v518 = vadd.f32 %v483, %v510
          %v519 = vadd.f32 %v484, %v511
          %v520 = vadd.f32 %v485, %v512
          %v521 = vadd.f32 %v486, %v513
          %v522 = vadd.f32 %v487, %v514
          %v523 = vperm.slane %v446, 2
          %v524 = vmul.f32 %v437, %v523
          %v525 = vmul.f32 %v438, %v523
          %v526 = vmul.f32 %v439, %v523
          %v527 = vmul.f32 %v440, %v523
          %v528 = vmul.f32 %v441, %v523
          %v529 = vmul.f32 %v442, %v523
          %v530 = vmul.f32 %v443, %v523
          %v531 = vmul.f32 %v444, %v523
          %v532 = vadd.f32 %v515, %v524
          %v533 = vadd.f32 %v516, %v525
          %v534 = vadd.f32 %v517, %v526
          %v535 = vadd.f32 %v518, %v527
          %v536 = vadd.f32 %v519, %v528
          %v537 = vadd.f32 %v520, %v529
          %v538 = vadd.f32 %v521, %v530
          %v539 = vadd.f32 %v522, %v531
          %v540 = vrot.slane %v437, 1
          %v541 = vrot.slane %v438, 1
          %v542 = vrot.slane %v439, 1
          %v543 = vrot.slane %v440, 1
          %v544 = vrot.slane %v441, 1
          %v545 = vrot.slane %v442, 1
          %v546 = vrot.slane %v443, 1
          %v547 = vrot.slane %v444, 1
          %v548 = vrot.slane %v445, 1
          %vm549 = vcmp.lt.s32.totalorder %v457, 7
          %v550 = vsel %vm549, %v547, %v548
          %v551 = vsel %vm549, %v546, %v547
          %v552 = vsel %vm549, %v545, %v546
          %v553 = vsel %vm549, %v544, %v545
          %v554 = vsel %vm549, %v543, %v544
          %v555 = vsel %vm549, %v542, %v543
          %v556 = vsel %vm549, %v541, %v542
          %v557 = vsel %vm549, %v540, %v541
          %v558 = vperm.slane %v446, 3
          %v559 = vmul.f32 %v557, %v558
          %v560 = vmul.f32 %v556, %v558
          %v561 = vmul.f32 %v555, %v558
          %v562 = vmul.f32 %v554, %v558
          %v563 = vmul.f32 %v553, %v558
          %v564 = vmul.f32 %v552, %v558
          %v565 = vmul.f32 %v551, %v558
          %v566 = vmul.f32 %v550, %v558
          %v567 = vadd.f32 %v532, %v559
          %v568 = vadd.f32 %v533, %v560
          %v569 = vadd.f32 %v534, %v561
          %v570 = vadd.f32 %v535, %v562
          %v571 = vadd.f32 %v536, %v563
          %v572 = vadd.f32 %v537, %v564
          %v573 = vadd.f32 %v538, %v565
          %v574 = vadd.f32 %v539, %v566
          %v575 = vrot.slane %v437, 2
          %v576 = vrot.slane %v438, 2
          %v577 = vrot.slane %v439, 2
          %v578 = vrot.slane %v440, 2
          %v579 = vrot.slane %v441, 2
          %v580 = vrot.slane %v442, 2
          %v581 = vrot.slane %v443, 2
          %v582 = vrot.slane %v444, 2
          %v583 = vrot.slane %v445, 2
          %vm584 = vcmp.lt.s32.totalorder %v457, 6
          %v585 = vsel %vm584, %v582, %v583
          %v586 = vsel %vm584, %v581, %v582
          %v587 = vsel %vm584, %v580, %v581
          %v588 = vsel %vm584, %v579, %v580
          %v589 = vsel %vm584, %v578, %v579
          %v590 = vsel %vm584, %v577, %v578
          %v591 = vsel %vm584, %v576, %v577
          %v592 = vsel %vm584, %v575, %v576
          %v593 = vperm.slane %v446, 4
          %v594 = vmul.f32 %v592, %v593
          %v595 = vmul.f32 %v591, %v593
          %v596 = vmul.f32 %v590, %v593
          %v597 = vmul.f32 %v589, %v593
          %v598 = vmul.f32 %v588, %v593
          %v599 = vmul.f32 %v587, %v593
          %v600 = vmul.f32 %v586, %v593
          %v601 = vmul.f32 %v585, %v593
          %v602 = vadd.f32 %v567, %v594
          %v603 = vadd.f32 %v568, %v595
          %v604 = vadd.f32 %v569, %v596
          %v605 = vadd.f32 %v570, %v597
          %v606 = vadd.f32 %v571, %v598
          %v607 = vadd.f32 %v572, %v599
          %v608 = vadd.f32 %v573, %v600
          %v609 = vadd.f32 %v574, %v601
          %610 = vadd.xlane.f32.xlu0 %v602
          %v611 = vpop.xlane.xlu0 %610
          %612 = vadd.xlane.f32.xlu0 %v603
          %v613 = vpop.xlane.xlu0 %612
          %614 = vadd.xlane.f32.xlu0 %v604
          %v615 = vpop.xlane.xlu0 %614
          %616 = vadd.xlane.f32.xlu0 %v605
          %v617 = vpop.xlane.xlu0 %616
          %618 = vadd.xlane.f32.xlu0 %v606
          %v619 = vpop.xlane.xlu0 %618
          %620 = vadd.xlane.f32.xlu0 %v607
          %v621 = vpop.xlane.xlu0 %620
          %622 = vadd.xlane.f32.xlu0 %v608
          %v623 = vpop.xlane.xlu0 %622
          %624 = vadd.xlane.f32.xlu0 %v609
          %v625 = vpop.xlane.xlu0 %624
          %v626 = vrcp.pop 128.0
          %v627 = vmul.f32 128.0, %v626
          %v628 = vsub.f32 1.0, %v627
          %v629 = vmul.f32 %v626, %v628
          %v630 = vadd.f32 %v626, %v629
          %vm631 = vweird.f32 %v626
          %v632 = vsel %vm631, %v626, %v630
          %v633 = vmul.f32 %v611, %v632
          %v634 = vmul.f32 %v613, %v632
          %v635 = vmul.f32 %v615, %v632
          %v636 = vmul.f32 %v617, %v632
          %v637 = vmul.f32 %v619, %v632
          %v638 = vmul.f32 %v621, %v632
          %v639 = vmul.f32 %v623, %v632
          %v640 = vmul.f32 %v625, %v632
          %v641 = vsub.f32 %v602, %v633
          %v642 = vsub.f32 %v603, %v634
          %v643 = vsub.f32 %v604, %v635
          %v644 = vsub.f32 %v605, %v636
          %v645 = vsub.f32 %v606, %v637
          %v646 = vsub.f32 %v607, %v638
          %v647 = vsub.f32 %v608, %v639
          %v648 = vsub.f32 %v609, %v640
          %v649 = vmul.f32 %v641, %v641
          %v650 = vmul.f32 %v642, %v642
          %v651 = vmul.f32 %v643, %v643
          %v652 = vmul.f32 %v644, %v644
          %v653 = vmul.f32 %v645, %v645
          %v654 = vmul.f32 %v646, %v646
          %v655 = vmul.f32 %v647, %v647
          %v656 = vmul.f32 %v648, %v648
          %657 = vadd.xlane.f32.xlu0 %v649
          %v658 = vpop.xlane.xlu0 %657
          %659 = vadd.xlane.f32.xlu0 %v650
          %v660 = vpop.xlane.xlu0 %659
          %661 = vadd.xlane.f32.xlu0 %v651
          %v662 = vpop.xlane.xlu0 %661
          %663 = vadd.xlane.f32.xlu0 %v652
          %v664 = vpop.xlane.xlu0 %663
          %665 = vadd.xlane.f32.xlu0 %v653
          %v666 = vpop.xlane.xlu0 %665
          %667 = vadd.xlane.f32.xlu0 %v654
          %v668 = vpop.xlane.xlu0 %667
          %669 = vadd.xlane.f32.xlu0 %v655
          %v670 = vpop.xlane.xlu0 %669
          %671 = vadd.xlane.f32.xlu0 %v656
          %v672 = vpop.xlane.xlu0 %671
          %v673 = vmul.f32 %v658, %v632
          %v674 = vmul.f32 %v660, %v632
          %v675 = vmul.f32 %v662, %v632
          %v676 = vmul.f32 %v664, %v632
          %v677 = vmul.f32 %v666, %v632
          %v678 = vmul.f32 %v668, %v632
          %v679 = vmul.f32 %v670, %v632
          %v680 = vmul.f32 %v672, %v632
          %v681 = vadd.f32 %v673, 1e-06
          %v682 = vadd.f32 %v674, 1e-06
          %v683 = vadd.f32 %v675, 1e-06
          %v684 = vadd.f32 %v676, 1e-06
          %v685 = vadd.f32 %v677, 1e-06
          %v686 = vadd.f32 %v678, 1e-06
          %v687 = vadd.f32 %v679, 1e-06
          %v688 = vadd.f32 %v680, 1e-06
          %v689 = vrsqrt.pop %v681
          %v690 = vmul.f32 %v689, %v681
          %v691 = vmul.f32 %v690, %v689
          %v692 = vmul.f32 0.5, %v691
          %v693 = vsub.f32 1.5, %v692
          %v694 = vmul.f32 %v689, %v693
          %v695 = vmul.f32 %v681, %v694
          %vm696 = vcmp.eq.f32.partialorder %v681, inf
          %v697 = vsel %vm696, %v681, %v695
          %vm698 = vcmp.eq.f32.partialorder %v681, 0.0
          %v699 = vand.u32 %v681, 2147483648
          %v700 = vsel %vm698, %v699, %v697
          %v701 = vrsqrt.pop %v682
          %v702 = vmul.f32 %v701, %v682
          %v703 = vmul.f32 %v702, %v701
          %v704 = vmul.f32 0.5, %v703
          %v705 = vsub.f32 1.5, %v704
          %v706 = vmul.f32 %v701, %v705
          %v707 = vmul.f32 %v682, %v706
          %vm708 = vcmp.eq.f32.partialorder %v682, inf
          %v709 = vsel %vm708, %v682, %v707
          %vm710 = vcmp.eq.f32.partialorder %v682, 0.0
          %v711 = vand.u32 %v682, 2147483648
          %v712 = vsel %vm710, %v711, %v709
          %v713 = vrsqrt.pop %v683
          %v714 = vmul.f32 %v713, %v683
          %v715 = vmul.f32 %v714, %v713
          %v716 = vmul.f32 0.5, %v715
          %v717 = vsub.f32 1.5, %v716
          %v718 = vmul.f32 %v713, %v717
          %v719 = vmul.f32 %v683, %v718
          %vm720 = vcmp.eq.f32.partialorder %v683, inf
          %v721 = vsel %vm720, %v683, %v719
          %vm722 = vcmp.eq.f32.partialorder %v683, 0.0
          %v723 = vand.u32 %v683, 2147483648
          %v724 = vsel %vm722, %v723, %v721
          %v725 = vrsqrt.pop %v684
          %v726 = vmul.f32 %v725, %v684
          %v727 = vmul.f32 %v726, %v725
          %v728 = vmul.f32 0.5, %v727
          %v729 = vsub.f32 1.5, %v728
          %v730 = vmul.f32 %v725, %v729
          %v731 = vmul.f32 %v684, %v730
          %vm732 = vcmp.eq.f32.partialorder %v684, inf
          %v733 = vsel %vm732, %v684, %v731
          %vm734 = vcmp.eq.f32.partialorder %v684, 0.0
          %v735 = vand.u32 %v684, 2147483648
          %v736 = vsel %vm734, %v735, %v733
          %v737 = vrsqrt.pop %v685
          %v738 = vmul.f32 %v737, %v685
          %v739 = vmul.f32 %v738, %v737
          %v740 = vmul.f32 0.5, %v739
          %v741 = vsub.f32 1.5, %v740
          %v742 = vmul.f32 %v737, %v741
          %v743 = vmul.f32 %v685, %v742
          %vm744 = vcmp.eq.f32.partialorder %v685, inf
          %v745 = vsel %vm744, %v685, %v743
          %vm746 = vcmp.eq.f32.partialorder %v685, 0.0
          %v747 = vand.u32 %v685, 2147483648
          %v748 = vsel %vm746, %v747, %v745
          %v749 = vrsqrt.pop %v686
          %v750 = vmul.f32 %v749, %v686
          %v751 = vmul.f32 %v750, %v749
          %v752 = vmul.f32 0.5, %v751
          %v753 = vsub.f32 1.5, %v752
          %v754 = vmul.f32 %v749, %v753
          %v755 = vmul.f32 %v686, %v754
          %vm756 = vcmp.eq.f32.partialorder %v686, inf
          %v757 = vsel %vm756, %v686, %v755
          %vm758 = vcmp.eq.f32.partialorder %v686, 0.0
          %v759 = vand.u32 %v686, 2147483648
          %v760 = vsel %vm758, %v759, %v757
          %v761 = vrsqrt.pop %v687
          %v762 = vmul.f32 %v761, %v687
          %v763 = vmul.f32 %v762, %v761
          %v764 = vmul.f32 0.5, %v763
          %v765 = vsub.f32 1.5, %v764
          %v766 = vmul.f32 %v761, %v765
          %v767 = vmul.f32 %v687, %v766
          %vm768 = vcmp.eq.f32.partialorder %v687, inf
          %v769 = vsel %vm768, %v687, %v767
          %vm770 = vcmp.eq.f32.partialorder %v687, 0.0
          %v771 = vand.u32 %v687, 2147483648
          %v772 = vsel %vm770, %v771, %v769
          %v773 = vrsqrt.pop %v688
          %v774 = vmul.f32 %v773, %v688
          %v775 = vmul.f32 %v774, %v773
          %v776 = vmul.f32 0.5, %v775
          %v777 = vsub.f32 1.5, %v776
          %v778 = vmul.f32 %v773, %v777
          %v779 = vmul.f32 %v688, %v778
          %vm780 = vcmp.eq.f32.partialorder %v688, inf
          %v781 = vsel %vm780, %v688, %v779
          %vm782 = vcmp.eq.f32.partialorder %v688, 0.0
          %v783 = vand.u32 %v688, 2147483648
          %v784 = vsel %vm782, %v783, %v781
          %v785 = vrcp.pop %v700
          %v786 = vmul.f32 %v700, %v785
          %v787 = vsub.f32 1.0, %v786
          %v788 = vmul.f32 %v785, %v787
          %v789 = vadd.f32 %v785, %v788
          %vm790 = vweird.f32 %v700
          %vm791 = vweird.f32 %v785
          %vm792 = vmor %vm790, %vm791
          %v793 = vsel %vm792, %v785, %v789
          %v794 = vand.u32 2147483647, %v700
          %vm795 = vcmp.eq.f32.partialorder %v794, 8.507059e+37
          %v796 = vand.u32 %v700, 2147483648
          %v797 = vor.u32 1.1754944e-38, %v796
          %v798 = vsel %vm795, %v797, %v793
          %v799 = vmul.f32 1.0, %v798
          %v800 = vrcp.pop %v712
          %v801 = vmul.f32 %v712, %v800
          %v802 = vsub.f32 1.0, %v801
          %v803 = vmul.f32 %v800, %v802
          %v804 = vadd.f32 %v800, %v803
          %vm805 = vweird.f32 %v712
          %vm806 = vweird.f32 %v800
          %vm807 = vmor %vm805, %vm806
          %v808 = vsel %vm807, %v800, %v804
          %v809 = vand.u32 2147483647, %v712
          %vm810 = vcmp.eq.f32.partialorder %v809, 8.507059e+37
          %v811 = vand.u32 %v712, 2147483648
          %v812 = vor.u32 1.1754944e-38, %v811
          %v813 = vsel %vm810, %v812, %v808
          %v814 = vmul.f32 1.0, %v813
          %v815 = vrcp.pop %v724
          %v816 = vmul.f32 %v724, %v815
          %v817 = vsub.f32 1.0, %v816
          %v818 = vmul.f32 %v815, %v817
          %v819 = vadd.f32 %v815, %v818
          %vm820 = vweird.f32 %v724
          %vm821 = vweird.f32 %v815
          %vm822 = vmor %vm820, %vm821
          %v823 = vsel %vm822, %v815, %v819
          %v824 = vand.u32 2147483647, %v724
          %vm825 = vcmp.eq.f32.partialorder %v824, 8.507059e+37
          %v826 = vand.u32 %v724, 2147483648
          %v827 = vor.u32 1.1754944e-38, %v826
          %v828 = vsel %vm825, %v827, %v823
          %v829 = vmul.f32 1.0, %v828
          %v830 = vrcp.pop %v736
          %v831 = vmul.f32 %v736, %v830
          %v832 = vsub.f32 1.0, %v831
          %v833 = vmul.f32 %v830, %v832
          %v834 = vadd.f32 %v830, %v833
          %vm835 = vweird.f32 %v736
          %vm836 = vweird.f32 %v830
          %vm837 = vmor %vm835, %vm836
          %v838 = vsel %vm837, %v830, %v834
          %v839 = vand.u32 2147483647, %v736
          %vm840 = vcmp.eq.f32.partialorder %v839, 8.507059e+37
          %v841 = vand.u32 %v736, 2147483648
          %v842 = vor.u32 1.1754944e-38, %v841
          %v843 = vsel %vm840, %v842, %v838
          %v844 = vmul.f32 1.0, %v843
          %v845 = vrcp.pop %v748
          %v846 = vmul.f32 %v748, %v845
          %v847 = vsub.f32 1.0, %v846
          %v848 = vmul.f32 %v845, %v847
          %v849 = vadd.f32 %v845, %v848
          %vm850 = vweird.f32 %v748
          %vm851 = vweird.f32 %v845
          %vm852 = vmor %vm850, %vm851
          %v853 = vsel %vm852, %v845, %v849
          %v854 = vand.u32 2147483647, %v748
          %vm855 = vcmp.eq.f32.partialorder %v854, 8.507059e+37
          %v856 = vand.u32 %v748, 2147483648
          %v857 = vor.u32 1.1754944e-38, %v856
          %v858 = vsel %vm855, %v857, %v853
          %v859 = vmul.f32 1.0, %v858
          %v860 = vrcp.pop %v760
          %v861 = vmul.f32 %v760, %v860
          %v862 = vsub.f32 1.0, %v861
          %v863 = vmul.f32 %v860, %v862
          %v864 = vadd.f32 %v860, %v863
          %vm865 = vweird.f32 %v760
          %vm866 = vweird.f32 %v860
          %vm867 = vmor %vm865, %vm866
          %v868 = vsel %vm867, %v860, %v864
          %v869 = vand.u32 2147483647, %v760
          %vm870 = vcmp.eq.f32.partialorder %v869, 8.507059e+37
          %v871 = vand.u32 %v760, 2147483648
          %v872 = vor.u32 1.1754944e-38, %v871
          %v873 = vsel %vm870, %v872, %v868
          %v874 = vmul.f32 1.0, %v873
          %v875 = vrcp.pop %v772
          %v876 = vmul.f32 %v772, %v875
          %v877 = vsub.f32 1.0, %v876
          %v878 = vmul.f32 %v875, %v877
          %v879 = vadd.f32 %v875, %v878
          %vm880 = vweird.f32 %v772
          %vm881 = vweird.f32 %v875
          %vm882 = vmor %vm880, %vm881
          %v883 = vsel %vm882, %v875, %v879
          %v884 = vand.u32 2147483647, %v772
          %vm885 = vcmp.eq.f32.partialorder %v884, 8.507059e+37
          %v886 = vand.u32 %v772, 2147483648
          %v887 = vor.u32 1.1754944e-38, %v886
          %v888 = vsel %vm885, %v887, %v883
          %v889 = vmul.f32 1.0, %v888
          %v890 = vrcp.pop %v784
          %v891 = vmul.f32 %v784, %v890
          %v892 = vsub.f32 1.0, %v891
          %v893 = vmul.f32 %v890, %v892
          %v894 = vadd.f32 %v890, %v893
          %vm895 = vweird.f32 %v784
          %vm896 = vweird.f32 %v890
          %vm897 = vmor %vm895, %vm896
          %v898 = vsel %vm897, %v890, %v894
          %v899 = vand.u32 2147483647, %v784
          %vm900 = vcmp.eq.f32.partialorder %v899, 8.507059e+37
          %v901 = vand.u32 %v784, 2147483648
          %v902 = vor.u32 1.1754944e-38, %v901
          %v903 = vsel %vm900, %v902, %v898
          %v904 = vmul.f32 1.0, %v903
          %v905 = vmul.f32 %v641, %v799
          %v906 = vmul.f32 %v642, %v814
          %v907 = vmul.f32 %v643, %v829
          %v908 = vmul.f32 %v644, %v844
          %v909 = vmul.f32 %v645, %v859
          %v910 = vmul.f32 %v646, %v874
          %v911 = vmul.f32 %v647, %v889
          %v912 = vmul.f32 %v648, %v904
          %v913 = vld [vmem:[%s3] sm:$0x1]
          %v915 = vperm.slane %v913, 0
          %v917 = vmul.f32 %v905, %v915
          %v918 = vmul.f32 %v906, %v915
          %v919 = vmul.f32 %v907, %v915
          %v920 = vmul.f32 %v908, %v915
          %v921 = vmul.f32 %v909, %v915
          %v922 = vmul.f32 %v910, %v915
          %v923 = vmul.f32 %v911, %v915
          %v924 = vmul.f32 %v912, %v915
          %v925 = vld [vmem:[%s4] sm:$0x1]
          %v927 = vperm.slane %v925, 0
          %v929 = vadd.f32 %v917, %v927
          %v930 = vadd.f32 %v918, %v927
          %v931 = vadd.f32 %v919, %v927
          %v932 = vadd.f32 %v920, %v927
          %v933 = vadd.f32 %v921, %v927
          %v934 = vadd.f32 %v922, %v927
          %v935 = vadd.f32 %v923, %v927
          %v936 = vadd.f32 %v924, %v927
          %v937 = vpack.c.bf16 %v930, %v929
          %v938 = vpack.c.bf16 %v932, %v931
          %v939 = vpack.c.bf16 %v934, %v933
          %v940 = vpack.c.bf16 %v936, %v935
          %v941 = vld [vmem:[%s5] sm:$0xff]
          %v942 = vld [vmem:[%s5 + $0x8] sm:$0xff]
          %v943 = vld [vmem:[%s5 + $0x10] sm:$0xff]
          %v944 = vld [vmem:[%s5 + $0x18] sm:$0xff]
          %v945 = vld [vmem:[%s5 + $0x20] sm:$0xff]
          %v946 = vld [vmem:[%s5 + $0x28] sm:$0xff]
          %v947 = vld [vmem:[%s5 + $0x30] sm:$0xff]
          %v948 = vld [vmem:[%s5 + $0x38] sm:$0xff]
          %v949 = vld [vmem:[%s5 + $0x40] sm:$0xff]
          %v950 = vld [vmem:[%s5 + $0x48] sm:$0xff]
          %v951 = vld [vmem:[%s5 + $0x50] sm:$0xff]
          %v952 = vld [vmem:[%s5 + $0x58] sm:$0xff]
          %v953 = vld [vmem:[%s5 + $0x60] sm:$0xff]
          %v954 = vld [vmem:[%s5 + $0x68] sm:$0xff]
          %v955 = vld [vmem:[%s5 + $0x70] sm:$0xff]
          %v956 = vld [vmem:[%s5 + $0x78] sm:$0xff]
          %v957 = vld [vmem:[%s5 + $0x80] sm:$0xff]
          %v958 = vld [vmem:[%s5 + $0x88] sm:$0xff]
          %v959 = vld [vmem:[%s5 + $0x90] sm:$0xff]
          %v960 = vld [vmem:[%s5 + $0x98] sm:$0xff]
          %v961 = vld [vmem:[%s5 + $0xa0] sm:$0xff]
          %v962 = vld [vmem:[%s5 + $0xa8] sm:$0xff]
          %v963 = vld [vmem:[%s5 + $0xb0] sm:$0xff]
          %v964 = vld [vmem:[%s5 + $0xb8] sm:$0xff]
          %v965 = vld [vmem:[%s5 + $0xc0] sm:$0xff]
          %v966 = vld [vmem:[%s5 + $0xc8] sm:$0xff]
          %v967 = vld [vmem:[%s5 + $0xd0] sm:$0xff]
          %v968 = vld [vmem:[%s5 + $0xd8] sm:$0xff]
          %v969 = vld [vmem:[%s5 + $0xe0] sm:$0xff]
          %v970 = vld [vmem:[%s5 + $0xe8] sm:$0xff]
          %v971 = vld [vmem:[%s5 + $0xf0] sm:$0xff]
          %v972 = vld [vmem:[%s5 + $0xf8] sm:$0xff]
          %v973 = vld [vmem:[%s5 + $0x100] sm:$0xff]
          %v974 = vld [vmem:[%s5 + $0x108] sm:$0xff]
          %v975 = vld [vmem:[%s5 + $0x110] sm:$0xff]
          %v976 = vld [vmem:[%s5 + $0x118] sm:$0xff]
          %v977 = vld [vmem:[%s5 + $0x120] sm:$0xff]
          %v978 = vld [vmem:[%s5 + $0x128] sm:$0xff]
          %v979 = vld [vmem:[%s5 + $0x130] sm:$0xff]
          %v980 = vld [vmem:[%s5 + $0x138] sm:$0xff]
          %v981 = vld [vmem:[%s5 + $0x140] sm:$0xff]
          %v982 = vld [vmem:[%s5 + $0x148] sm:$0xff]
          %v983 = vld [vmem:[%s5 + $0x150] sm:$0xff]
          %v984 = vld [vmem:[%s5 + $0x158] sm:$0xff]
          %v985 = vld [vmem:[%s5 + $0x160] sm:$0xff]
          %v986 = vld [vmem:[%s5 + $0x168] sm:$0xff]
          %v987 = vld [vmem:[%s5 + $0x170] sm:$0xff]
          %v988 = vld [vmem:[%s5 + $0x178] sm:$0xff]
          %v989 = vld [vmem:[%s5 + $0x180] sm:$0xff]
          %v990 = vld [vmem:[%s5 + $0x188] sm:$0xff]
          %v991 = vld [vmem:[%s5 + $0x190] sm:$0xff]
          %v992 = vld [vmem:[%s5 + $0x198] sm:$0xff]
          %v993 = vld [vmem:[%s5 + $0x1a0] sm:$0xff]
          %v994 = vld [vmem:[%s5 + $0x1a8] sm:$0xff]
          %v995 = vld [vmem:[%s5 + $0x1b0] sm:$0xff]
          %v996 = vld [vmem:[%s5 + $0x1b8] sm:$0xff]
          %v997 = vld [vmem:[%s5 + $0x1c0] sm:$0xff]
          %v998 = vld [vmem:[%s5 + $0x1c8] sm:$0xff]
          %v999 = vld [vmem:[%s5 + $0x1d0] sm:$0xff]
          %v1000 = vld [vmem:[%s5 + $0x1d8] sm:$0xff]
          %v1001 = vld [vmem:[%s5 + $0x1e0] sm:$0xff]
          %v1002 = vld [vmem:[%s5 + $0x1e8] sm:$0xff]
          %v1003 = vld [vmem:[%s5 + $0x1f0] sm:$0xff]
          %v1004 = vld [vmem:[%s5 + $0x1f8] sm:$0xff]
          %v1005 = vld [vmem:[%s6] sm:$0xff]
          %v1007 = vperm.slane %v1005, 0
          %v1008 = vperm.slane %v1005, 1
          %v1009 = vperm.slane %v1005, 2
          %v1010 = vperm.slane %v1005, 3
          %v1011 = vperm.slane %v1005, 4
          %v1012 = vperm.slane %v1005, 5
          %v1013 = vperm.slane %v1005, 6
          %v1014 = vperm.slane %v1005, 7
          %v1087 = vunpack.c.l.b16 %v941
          %v1088 = vunpack.c.h.b16 %v941
          %v1089 = vunpack.c.l.b16 %v942
          %v1090 = vunpack.c.h.b16 %v942
          %v1091 = vunpack.c.l.b16 %v943
          %v1092 = vunpack.c.h.b16 %v943
          %v1093 = vunpack.c.l.b16 %v944
          %v1094 = vunpack.c.h.b16 %v944
          %v1095 = vunpack.c.l.b16 %v945
          %v1096 = vunpack.c.h.b16 %v945
          %v1097 = vunpack.c.l.b16 %v946
          %v1098 = vunpack.c.h.b16 %v946
          %v1099 = vunpack.c.l.b16 %v947
          %v1100 = vunpack.c.h.b16 %v947
          %v1101 = vunpack.c.l.b16 %v948
          %v1102 = vunpack.c.h.b16 %v948
          %v1103 = vunpack.c.l.b16 %v949
          %v1104 = vunpack.c.h.b16 %v949
          %v1105 = vunpack.c.l.b16 %v950
          %v1106 = vunpack.c.h.b16 %v950
          %v1107 = vunpack.c.l.b16 %v951
          %v1108 = vunpack.c.h.b16 %v951
          %v1109 = vunpack.c.l.b16 %v952
          %v1110 = vunpack.c.h.b16 %v952
          %v1111 = vunpack.c.l.b16 %v953
          %v1112 = vunpack.c.h.b16 %v953
          %v1113 = vunpack.c.l.b16 %v954
          %v1114 = vunpack.c.h.b16 %v954
          %v1115 = vunpack.c.l.b16 %v955
          %v1116 = vunpack.c.h.b16 %v955
          %v1117 = vunpack.c.l.b16 %v956
          %v1118 = vunpack.c.h.b16 %v956
          %v1119 = vunpack.c.l.b16 %v957
          %v1120 = vunpack.c.h.b16 %v957
          %v1121 = vunpack.c.l.b16 %v958
          %v1122 = vunpack.c.h.b16 %v958
          %v1123 = vunpack.c.l.b16 %v959
          %v1124 = vunpack.c.h.b16 %v959
          %v1125 = vunpack.c.l.b16 %v960
          %v1126 = vunpack.c.h.b16 %v960
          %v1127 = vunpack.c.l.b16 %v961
          %v1128 = vunpack.c.h.b16 %v961
          %v1129 = vunpack.c.l.b16 %v962
          %v1130 = vunpack.c.h.b16 %v962
          %v1131 = vunpack.c.l.b16 %v963
          %v1132 = vunpack.c.h.b16 %v963
          %v1133 = vunpack.c.l.b16 %v964
          %v1134 = vunpack.c.h.b16 %v964
          %v1135 = vunpack.c.l.b16 %v965
          %v1136 = vunpack.c.h.b16 %v965
          %v1137 = vunpack.c.l.b16 %v966
          %v1138 = vunpack.c.h.b16 %v966
          %v1139 = vunpack.c.l.b16 %v967
          %v1140 = vunpack.c.h.b16 %v967
          %v1141 = vunpack.c.l.b16 %v968
          %v1142 = vunpack.c.h.b16 %v968
          %v1143 = vunpack.c.l.b16 %v969
          %v1144 = vunpack.c.h.b16 %v969
          %v1145 = vunpack.c.l.b16 %v970
          %v1146 = vunpack.c.h.b16 %v970
          %v1147 = vunpack.c.l.b16 %v971
          %v1148 = vunpack.c.h.b16 %v971
          %v1149 = vunpack.c.l.b16 %v972
          %v1150 = vunpack.c.h.b16 %v972
          %v1151 = vunpack.c.l.b16 %v973
          %v1152 = vunpack.c.h.b16 %v973
          %v1153 = vunpack.c.l.b16 %v974
          %v1154 = vunpack.c.h.b16 %v974
          %v1155 = vunpack.c.l.b16 %v975
          %v1156 = vunpack.c.h.b16 %v975
          %v1157 = vunpack.c.l.b16 %v976
          %v1158 = vunpack.c.h.b16 %v976
          %v1159 = vunpack.c.l.b16 %v977
          %v1160 = vunpack.c.h.b16 %v977
          %v1161 = vunpack.c.l.b16 %v978
          %v1162 = vunpack.c.h.b16 %v978
          %v1163 = vunpack.c.l.b16 %v979
          %v1164 = vunpack.c.h.b16 %v979
          %v1165 = vunpack.c.l.b16 %v980
          %v1166 = vunpack.c.h.b16 %v980
          %v1167 = vunpack.c.l.b16 %v981
          %v1168 = vunpack.c.h.b16 %v981
          %v1169 = vunpack.c.l.b16 %v982
          %v1170 = vunpack.c.h.b16 %v982
          %v1171 = vunpack.c.l.b16 %v983
          %v1172 = vunpack.c.h.b16 %v983
          %v1173 = vunpack.c.l.b16 %v984
          %v1174 = vunpack.c.h.b16 %v984
          %v1175 = vunpack.c.l.b16 %v985
          %v1176 = vunpack.c.h.b16 %v985
          %v1177 = vunpack.c.l.b16 %v986
          %v1178 = vunpack.c.h.b16 %v986
          %v1179 = vunpack.c.l.b16 %v987
          %v1180 = vunpack.c.h.b16 %v987
          %v1181 = vunpack.c.l.b16 %v988
          %v1182 = vunpack.c.h.b16 %v988
          %v1183 = vunpack.c.l.b16 %v989
          %v1184 = vunpack.c.h.b16 %v989
          %v1185 = vunpack.c.l.b16 %v990
          %v1186 = vunpack.c.h.b16 %v990
          %v1187 = vunpack.c.l.b16 %v991
          %v1188 = vunpack.c.h.b16 %v991
          %v1189 = vunpack.c.l.b16 %v992
          %v1190 = vunpack.c.h.b16 %v992
          %v1191 = vunpack.c.l.b16 %v993
          %v1192 = vunpack.c.h.b16 %v993
          %v1193 = vunpack.c.l.b16 %v994
          %v1194 = vunpack.c.h.b16 %v994
          %v1195 = vunpack.c.l.b16 %v995
          %v1196 = vunpack.c.h.b16 %v995
          %v1197 = vunpack.c.l.b16 %v996
          %v1198 = vunpack.c.h.b16 %v996
          %v1199 = vunpack.c.l.b16 %v997
          %v1200 = vunpack.c.h.b16 %v997
          %v1201 = vunpack.c.l.b16 %v998
          %v1202 = vunpack.c.h.b16 %v998
          %v1203 = vunpack.c.l.b16 %v999
          %v1204 = vunpack.c.h.b16 %v999
          %v1205 = vunpack.c.l.b16 %v1000
          %v1206 = vunpack.c.h.b16 %v1000
          %v1207 = vunpack.c.l.b16 %v1001
          %v1208 = vunpack.c.h.b16 %v1001
          %v1209 = vunpack.c.l.b16 %v1002
          %v1210 = vunpack.c.h.b16 %v1002
          %v1211 = vunpack.c.l.b16 %v1003
          %v1212 = vunpack.c.h.b16 %v1003
          %v1213 = vunpack.c.l.b16 %v1004
          %v1214 = vunpack.c.h.b16 %v1004
          %v1215 = vpack.c.b16 %v1095, %v1087
          %v1216 = vpack.c.b16 %v1096, %v1088
          %v1217 = vpack.c.b16 %v1097, %v1089
          %v1218 = vpack.c.b16 %v1098, %v1090
          %v1219 = vpack.c.b16 %v1099, %v1091
          %v1220 = vpack.c.b16 %v1100, %v1092
          %v1221 = vpack.c.b16 %v1101, %v1093
          %v1222 = vpack.c.b16 %v1102, %v1094
          %v1223 = vpack.c.b16 %v1111, %v1103
          %v1224 = vpack.c.b16 %v1112, %v1104
          %v1225 = vpack.c.b16 %v1113, %v1105
          %v1226 = vpack.c.b16 %v1114, %v1106
          %v1227 = vpack.c.b16 %v1115, %v1107
          %v1228 = vpack.c.b16 %v1116, %v1108
          %v1229 = vpack.c.b16 %v1117, %v1109
          %v1230 = vpack.c.b16 %v1118, %v1110
          %v1231 = vpack.c.b16 %v1127, %v1119
          %v1232 = vpack.c.b16 %v1128, %v1120
          %v1233 = vpack.c.b16 %v1129, %v1121
          %v1234 = vpack.c.b16 %v1130, %v1122
          %v1235 = vpack.c.b16 %v1131, %v1123
          %v1236 = vpack.c.b16 %v1132, %v1124
          %v1237 = vpack.c.b16 %v1133, %v1125
          %v1238 = vpack.c.b16 %v1134, %v1126
          %v1239 = vpack.c.b16 %v1143, %v1135
          %v1240 = vpack.c.b16 %v1144, %v1136
          %v1241 = vpack.c.b16 %v1145, %v1137
          %v1242 = vpack.c.b16 %v1146, %v1138
          %v1243 = vpack.c.b16 %v1147, %v1139
          %v1244 = vpack.c.b16 %v1148, %v1140
          %v1245 = vpack.c.b16 %v1149, %v1141
          %v1246 = vpack.c.b16 %v1150, %v1142
          %v1247 = vpack.c.b16 %v1159, %v1151
          %v1248 = vpack.c.b16 %v1160, %v1152
          %v1249 = vpack.c.b16 %v1161, %v1153
          %v1250 = vpack.c.b16 %v1162, %v1154
          %v1251 = vpack.c.b16 %v1163, %v1155
          %v1252 = vpack.c.b16 %v1164, %v1156
          %v1253 = vpack.c.b16 %v1165, %v1157
          %v1254 = vpack.c.b16 %v1166, %v1158
          %v1255 = vpack.c.b16 %v1175, %v1167
          %v1256 = vpack.c.b16 %v1176, %v1168
          %v1257 = vpack.c.b16 %v1177, %v1169
          %v1258 = vpack.c.b16 %v1178, %v1170
          %v1259 = vpack.c.b16 %v1179, %v1171
          %v1260 = vpack.c.b16 %v1180, %v1172
          %v1261 = vpack.c.b16 %v1181, %v1173
          %v1262 = vpack.c.b16 %v1182, %v1174
          %v1263 = vpack.c.b16 %v1191, %v1183
          %v1264 = vpack.c.b16 %v1192, %v1184
          %v1265 = vpack.c.b16 %v1193, %v1185
          %v1266 = vpack.c.b16 %v1194, %v1186
          %v1267 = vpack.c.b16 %v1195, %v1187
          %v1268 = vpack.c.b16 %v1196, %v1188
          %v1269 = vpack.c.b16 %v1197, %v1189
          %v1270 = vpack.c.b16 %v1198, %v1190
          %v1271 = vpack.c.b16 %v1207, %v1199
          %v1272 = vpack.c.b16 %v1208, %v1200
          %v1273 = vpack.c.b16 %v1209, %v1201
          %v1274 = vpack.c.b16 %v1210, %v1202
          %v1275 = vpack.c.b16 %v1211, %v1203
          %v1276 = vpack.c.b16 %v1212, %v1204
          %v1277 = vpack.c.b16 %v1213, %v1205
          %v1278 = vpack.c.b16 %v1214, %v1206
          %1343 = vmatpush.bf16.msra.mxu0 %v1271
          %1344 = vmatpush.bf16.msra.mxu0 %v1263
          %1345 = vmatpush.bf16.msra.mxu0 %v1255
          %1346 = vmatpush.bf16.msra.mxu0 %v1247
          %1347 = vmatpush.bf16.msra.mxu0 %v1239
          %1348 = vmatpush.bf16.msra.mxu0 %v1231
          %1349 = vmatpush.bf16.msra.mxu0 %v1223
          %1350 = vmatpush.bf16.msra.mxu0 %v1215
          %1351 = vmatmul.bf16.gmra.mxu0 %v937
          %v1352 = vpop.f32.mrf.mxu0
          %v1353 = vadd.f32 %v1007, %v1352
          %v1354 = vpop.f32.mrf.mxu0
          %v1355 = vadd.f32 %v1007, %v1354
          %1356 = vmatmul.bf16.gmra.mxu0 %v938
          %v1357 = vpop.f32.mrf.mxu0
          %v1358 = vadd.f32 %v1007, %v1357
          %v1359 = vpop.f32.mrf.mxu0
          %v1360 = vadd.f32 %v1007, %v1359
          %1361 = vmatmul.bf16.gmra.mxu0 %v939
          %v1362 = vpop.f32.mrf.mxu0
          %v1363 = vadd.f32 %v1007, %v1362
          %v1364 = vpop.f32.mrf.mxu0
          %v1365 = vadd.f32 %v1007, %v1364
          %1366 = vmatmul.bf16.gmra.mxu0 %v940
          %v1367 = vpop.f32.mrf.mxu0
          %v1368 = vadd.f32 %v1007, %v1367
          %v1369 = vpop.f32.mrf.mxu0
          %v1370 = vadd.f32 %v1007, %v1369
          %1371 = vdwg.mxu0
          %1372 = vmatpush.bf16.msra.mxu0 %v1272
          %1373 = vmatpush.bf16.msra.mxu0 %v1264
          %1374 = vmatpush.bf16.msra.mxu0 %v1256
          %1375 = vmatpush.bf16.msra.mxu0 %v1248
          %1376 = vmatpush.bf16.msra.mxu0 %v1240
          %1377 = vmatpush.bf16.msra.mxu0 %v1232
          %1378 = vmatpush.bf16.msra.mxu0 %v1224
          %1379 = vmatpush.bf16.msra.mxu0 %v1216
          %1380 = vmatmul.bf16.gmra.mxu0 %v937
          %v1381 = vpop.f32.mrf.mxu0
          %v1382 = vadd.f32 %v1008, %v1381
          %v1383 = vpop.f32.mrf.mxu0
          %v1384 = vadd.f32 %v1008, %v1383
          %1385 = vmatmul.bf16.gmra.mxu0 %v938
          %v1386 = vpop.f32.mrf.mxu0
          %v1387 = vadd.f32 %v1008, %v1386
          %v1388 = vpop.f32.mrf.mxu0
          %v1389 = vadd.f32 %v1008, %v1388
          %1390 = vmatmul.bf16.gmra.mxu0 %v939
          %v1391 = vpop.f32.mrf.mxu0
          %v1392 = vadd.f32 %v1008, %v1391
          %v1393 = vpop.f32.mrf.mxu0
          %v1394 = vadd.f32 %v1008, %v1393
          %1395 = vmatmul.bf16.gmra.mxu0 %v940
          %v1396 = vpop.f32.mrf.mxu0
          %v1397 = vadd.f32 %v1008, %v1396
          %v1398 = vpop.f32.mrf.mxu0
          %v1399 = vadd.f32 %v1008, %v1398
          %1400 = vdwg.mxu0
          %1401 = vmatpush.bf16.msra.mxu0 %v1273
          %1402 = vmatpush.bf16.msra.mxu0 %v1265
          %1403 = vmatpush.bf16.msra.mxu0 %v1257
          %1404 = vmatpush.bf16.msra.mxu0 %v1249
          %1405 = vmatpush.bf16.msra.mxu0 %v1241
          %1406 = vmatpush.bf16.msra.mxu0 %v1233
          %1407 = vmatpush.bf16.msra.mxu0 %v1225
          %1408 = vmatpush.bf16.msra.mxu0 %v1217
          %1409 = vmatmul.bf16.gmra.mxu0 %v937
          %v1410 = vpop.f32.mrf.mxu0
          %v1411 = vadd.f32 %v1009, %v1410
          %v1412 = vpop.f32.mrf.mxu0
          %v1413 = vadd.f32 %v1009, %v1412
          %1414 = vmatmul.bf16.gmra.mxu0 %v938
          %v1415 = vpop.f32.mrf.mxu0
          %v1416 = vadd.f32 %v1009, %v1415
          %v1417 = vpop.f32.mrf.mxu0
          %v1418 = vadd.f32 %v1009, %v1417
          %1419 = vmatmul.bf16.gmra.mxu0 %v939
          %v1420 = vpop.f32.mrf.mxu0
          %v1421 = vadd.f32 %v1009, %v1420
          %v1422 = vpop.f32.mrf.mxu0
          %v1423 = vadd.f32 %v1009, %v1422
          %1424 = vmatmul.bf16.gmra.mxu0 %v940
          %v1425 = vpop.f32.mrf.mxu0
          %v1426 = vadd.f32 %v1009, %v1425
          %v1427 = vpop.f32.mrf.mxu0
          %v1428 = vadd.f32 %v1009, %v1427
          %1429 = vdwg.mxu0
          %1430 = vmatpush.bf16.msra.mxu0 %v1274
          %1431 = vmatpush.bf16.msra.mxu0 %v1266
          %1432 = vmatpush.bf16.msra.mxu0 %v1258
          %1433 = vmatpush.bf16.msra.mxu0 %v1250
          %1434 = vmatpush.bf16.msra.mxu0 %v1242
          %1435 = vmatpush.bf16.msra.mxu0 %v1234
          %1436 = vmatpush.bf16.msra.mxu0 %v1226
          %1437 = vmatpush.bf16.msra.mxu0 %v1218
          %1438 = vmatmul.bf16.gmra.mxu0 %v937
          %v1439 = vpop.f32.mrf.mxu0
          %v1440 = vadd.f32 %v1010, %v1439
          %v1441 = vpop.f32.mrf.mxu0
          %v1442 = vadd.f32 %v1010, %v1441
          %1443 = vmatmul.bf16.gmra.mxu0 %v938
          %v1444 = vpop.f32.mrf.mxu0
          %v1445 = vadd.f32 %v1010, %v1444
          %v1446 = vpop.f32.mrf.mxu0
          %v1447 = vadd.f32 %v1010, %v1446
          %1448 = vmatmul.bf16.gmra.mxu0 %v939
          %v1449 = vpop.f32.mrf.mxu0
          %v1450 = vadd.f32 %v1010, %v1449
          %v1451 = vpop.f32.mrf.mxu0
          %v1452 = vadd.f32 %v1010, %v1451
          %1453 = vmatmul.bf16.gmra.mxu0 %v940
          %v1454 = vpop.f32.mrf.mxu0
          %v1455 = vadd.f32 %v1010, %v1454
          %v1456 = vpop.f32.mrf.mxu0
          %v1457 = vadd.f32 %v1010, %v1456
          %1458 = vdwg.mxu0
          %1459 = vmatpush.bf16.msra.mxu0 %v1275
          %1460 = vmatpush.bf16.msra.mxu0 %v1267
          %1461 = vmatpush.bf16.msra.mxu0 %v1259
          %1462 = vmatpush.bf16.msra.mxu0 %v1251
          %1463 = vmatpush.bf16.msra.mxu0 %v1243
          %1464 = vmatpush.bf16.msra.mxu0 %v1235
          %1465 = vmatpush.bf16.msra.mxu0 %v1227
          %1466 = vmatpush.bf16.msra.mxu0 %v1219
          %1467 = vmatmul.bf16.gmra.mxu0 %v937
          %v1468 = vpop.f32.mrf.mxu0
          %v1469 = vadd.f32 %v1011, %v1468
          %v1470 = vpop.f32.mrf.mxu0
          %v1471 = vadd.f32 %v1011, %v1470
          %1472 = vmatmul.bf16.gmra.mxu0 %v938
          %v1473 = vpop.f32.mrf.mxu0
          %v1474 = vadd.f32 %v1011, %v1473
          %v1475 = vpop.f32.mrf.mxu0
          %v1476 = vadd.f32 %v1011, %v1475
          %1477 = vmatmul.bf16.gmra.mxu0 %v939
          %v1478 = vpop.f32.mrf.mxu0
          %v1479 = vadd.f32 %v1011, %v1478
          %v1480 = vpop.f32.mrf.mxu0
          %v1481 = vadd.f32 %v1011, %v1480
          %1482 = vmatmul.bf16.gmra.mxu0 %v940
          %v1483 = vpop.f32.mrf.mxu0
          %v1484 = vadd.f32 %v1011, %v1483
          %v1485 = vpop.f32.mrf.mxu0
          %v1486 = vadd.f32 %v1011, %v1485
          %1487 = vdwg.mxu0
          %1488 = vmatpush.bf16.msra.mxu0 %v1276
          %1489 = vmatpush.bf16.msra.mxu0 %v1268
          %1490 = vmatpush.bf16.msra.mxu0 %v1260
          %1491 = vmatpush.bf16.msra.mxu0 %v1252
          %1492 = vmatpush.bf16.msra.mxu0 %v1244
          %1493 = vmatpush.bf16.msra.mxu0 %v1236
          %1494 = vmatpush.bf16.msra.mxu0 %v1228
          %1495 = vmatpush.bf16.msra.mxu0 %v1220
          %1496 = vmatmul.bf16.gmra.mxu0 %v937
          %v1497 = vpop.f32.mrf.mxu0
          %v1498 = vadd.f32 %v1012, %v1497
          %v1499 = vpop.f32.mrf.mxu0
          %v1500 = vadd.f32 %v1012, %v1499
          %1501 = vmatmul.bf16.gmra.mxu0 %v938
          %v1502 = vpop.f32.mrf.mxu0
          %v1503 = vadd.f32 %v1012, %v1502
          %v1504 = vpop.f32.mrf.mxu0
          %v1505 = vadd.f32 %v1012, %v1504
          %1506 = vmatmul.bf16.gmra.mxu0 %v939
          %v1507 = vpop.f32.mrf.mxu0
          %v1508 = vadd.f32 %v1012, %v1507
          %v1509 = vpop.f32.mrf.mxu0
          %v1510 = vadd.f32 %v1012, %v1509
          %1511 = vmatmul.bf16.gmra.mxu0 %v940
          %v1512 = vpop.f32.mrf.mxu0
          %v1513 = vadd.f32 %v1012, %v1512
          %v1514 = vpop.f32.mrf.mxu0
          %v1515 = vadd.f32 %v1012, %v1514
          %1516 = vdwg.mxu0
          %1517 = vmatpush.bf16.msra.mxu0 %v1277
          %1518 = vmatpush.bf16.msra.mxu0 %v1269
          %1519 = vmatpush.bf16.msra.mxu0 %v1261
          %1520 = vmatpush.bf16.msra.mxu0 %v1253
          %1521 = vmatpush.bf16.msra.mxu0 %v1245
          %1522 = vmatpush.bf16.msra.mxu0 %v1237
          %1523 = vmatpush.bf16.msra.mxu0 %v1229
          %1524 = vmatpush.bf16.msra.mxu0 %v1221
          %1525 = vmatmul.bf16.gmra.mxu0 %v937
          %v1526 = vpop.f32.mrf.mxu0
          %v1527 = vadd.f32 %v1013, %v1526
          %v1528 = vpop.f32.mrf.mxu0
          %v1529 = vadd.f32 %v1013, %v1528
          %1530 = vmatmul.bf16.gmra.mxu0 %v938
          %v1531 = vpop.f32.mrf.mxu0
          %v1532 = vadd.f32 %v1013, %v1531
          %v1533 = vpop.f32.mrf.mxu0
          %v1534 = vadd.f32 %v1013, %v1533
          %1535 = vmatmul.bf16.gmra.mxu0 %v939
          %v1536 = vpop.f32.mrf.mxu0
          %v1537 = vadd.f32 %v1013, %v1536
          %v1538 = vpop.f32.mrf.mxu0
          %v1539 = vadd.f32 %v1013, %v1538
          %1540 = vmatmul.bf16.gmra.mxu0 %v940
          %v1541 = vpop.f32.mrf.mxu0
          %v1542 = vadd.f32 %v1013, %v1541
          %v1543 = vpop.f32.mrf.mxu0
          %v1544 = vadd.f32 %v1013, %v1543
          %1545 = vdwg.mxu0
          %1546 = vmatpush.bf16.msra.mxu0 %v1278
          %1547 = vmatpush.bf16.msra.mxu0 %v1270
          %1548 = vmatpush.bf16.msra.mxu0 %v1262
          %1549 = vmatpush.bf16.msra.mxu0 %v1254
          %1550 = vmatpush.bf16.msra.mxu0 %v1246
          %1551 = vmatpush.bf16.msra.mxu0 %v1238
          %1552 = vmatpush.bf16.msra.mxu0 %v1230
          %1553 = vmatpush.bf16.msra.mxu0 %v1222
          %1554 = vmatmul.bf16.gmra.mxu0 %v937
          %v1555 = vpop.f32.mrf.mxu0
          %v1556 = vadd.f32 %v1014, %v1555
          %v1557 = vpop.f32.mrf.mxu0
          %v1558 = vadd.f32 %v1014, %v1557
          %1559 = vmatmul.bf16.gmra.mxu0 %v938
          %v1560 = vpop.f32.mrf.mxu0
          %v1561 = vadd.f32 %v1014, %v1560
          %v1562 = vpop.f32.mrf.mxu0
          %v1563 = vadd.f32 %v1014, %v1562
          %1564 = vmatmul.bf16.gmra.mxu0 %v939
          %v1565 = vpop.f32.mrf.mxu0
          %v1566 = vadd.f32 %v1014, %v1565
          %v1567 = vpop.f32.mrf.mxu0
          %v1568 = vadd.f32 %v1014, %v1567
          %1569 = vmatmul.bf16.gmra.mxu0 %v940
          %v1570 = vpop.f32.mrf.mxu0
          %v1571 = vadd.f32 %v1014, %v1570
          %v1572 = vpop.f32.mrf.mxu0
          %v1573 = vadd.f32 %v1014, %v1572
          %1574 = vdwg.mxu0
          %v1575 = vsub.f32 0.0, %v1353
          %v1576 = vsub.f32 0.0, %v1382
          %v1577 = vsub.f32 0.0, %v1411
          %v1578 = vsub.f32 0.0, %v1440
          %v1579 = vsub.f32 0.0, %v1355
          %v1580 = vsub.f32 0.0, %v1384
          %v1581 = vsub.f32 0.0, %v1413
          %v1582 = vsub.f32 0.0, %v1442
          %v1583 = vsub.f32 0.0, %v1358
          %v1584 = vsub.f32 0.0, %v1387
          %v1585 = vsub.f32 0.0, %v1416
          %v1586 = vsub.f32 0.0, %v1445
          %v1587 = vsub.f32 0.0, %v1360
          %v1588 = vsub.f32 0.0, %v1389
          %v1589 = vsub.f32 0.0, %v1418
          %v1590 = vsub.f32 0.0, %v1447
          %v1591 = vsub.f32 0.0, %v1363
          %v1592 = vsub.f32 0.0, %v1392
          %v1593 = vsub.f32 0.0, %v1421
          %v1594 = vsub.f32 0.0, %v1450
          %v1595 = vsub.f32 0.0, %v1365
          %v1596 = vsub.f32 0.0, %v1394
          %v1597 = vsub.f32 0.0, %v1423
          %v1598 = vsub.f32 0.0, %v1452
          %v1599 = vsub.f32 0.0, %v1368
          %v1600 = vsub.f32 0.0, %v1397
          %v1601 = vsub.f32 0.0, %v1426
          %v1602 = vsub.f32 0.0, %v1455
          %v1603 = vsub.f32 0.0, %v1370
          %v1604 = vsub.f32 0.0, %v1399
          %v1605 = vsub.f32 0.0, %v1428
          %v1606 = vsub.f32 0.0, %v1457
          %v1607 = vmul.f32 %v1575, 1.442695
          %v1608 = vpow.pop %v1607
          %v1609 = vmul.f32 %v1576, 1.442695
          %v1610 = vpow.pop %v1609
          %v1611 = vmul.f32 %v1577, 1.442695
          %v1612 = vpow.pop %v1611
          %v1613 = vmul.f32 %v1578, 1.442695
          %v1614 = vpow.pop %v1613
          %v1615 = vmul.f32 %v1579, 1.442695
          %v1616 = vpow.pop %v1615
          %v1617 = vmul.f32 %v1580, 1.442695
          %v1618 = vpow.pop %v1617
          %v1619 = vmul.f32 %v1581, 1.442695
          %v1620 = vpow.pop %v1619
          %v1621 = vmul.f32 %v1582, 1.442695
          %v1622 = vpow.pop %v1621
          %v1623 = vmul.f32 %v1583, 1.442695
          %v1624 = vpow.pop %v1623
          %v1625 = vmul.f32 %v1584, 1.442695
          %v1626 = vpow.pop %v1625
          %v1627 = vmul.f32 %v1585, 1.442695
          %v1628 = vpow.pop %v1627
          %v1629 = vmul.f32 %v1586, 1.442695
          %v1630 = vpow.pop %v1629
          %v1631 = vmul.f32 %v1587, 1.442695
          %v1632 = vpow.pop %v1631
          %v1633 = vmul.f32 %v1588, 1.442695
          %v1634 = vpow.pop %v1633
          %v1635 = vmul.f32 %v1589, 1.442695
          %v1636 = vpow.pop %v1635
          %v1637 = vmul.f32 %v1590, 1.442695
          %v1638 = vpow.pop %v1637
          %v1639 = vmul.f32 %v1591, 1.442695
          %v1640 = vpow.pop %v1639
          %v1641 = vmul.f32 %v1592, 1.442695
          %v1642 = vpow.pop %v1641
          %v1643 = vmul.f32 %v1593, 1.442695
          %v1644 = vpow.pop %v1643
          %v1645 = vmul.f32 %v1594, 1.442695
          %v1646 = vpow.pop %v1645
          %v1647 = vmul.f32 %v1595, 1.442695
          %v1648 = vpow.pop %v1647
          %v1649 = vmul.f32 %v1596, 1.442695
          %v1650 = vpow.pop %v1649
          %v1651 = vmul.f32 %v1597, 1.442695
          %v1652 = vpow.pop %v1651
          %v1653 = vmul.f32 %v1598, 1.442695
          %v1654 = vpow.pop %v1653
          %v1655 = vmul.f32 %v1599, 1.442695
          %v1656 = vpow.pop %v1655
          %v1657 = vmul.f32 %v1600, 1.442695
          %v1658 = vpow.pop %v1657
          %v1659 = vmul.f32 %v1601, 1.442695
          %v1660 = vpow.pop %v1659
          %v1661 = vmul.f32 %v1602, 1.442695
          %v1662 = vpow.pop %v1661
          %v1663 = vmul.f32 %v1603, 1.442695
          %v1664 = vpow.pop %v1663
          %v1665 = vmul.f32 %v1604, 1.442695
          %v1666 = vpow.pop %v1665
          %v1667 = vmul.f32 %v1605, 1.442695
          %v1668 = vpow.pop %v1667
          %v1669 = vmul.f32 %v1606, 1.442695
          %v1670 = vpow.pop %v1669
          %v1671 = vadd.f32 %v1608, 1.0
          %v1672 = vadd.f32 %v1610, 1.0
          %v1673 = vadd.f32 %v1612, 1.0
          %v1674 = vadd.f32 %v1614, 1.0
          %v1675 = vadd.f32 %v1616, 1.0
          %v1676 = vadd.f32 %v1618, 1.0
          %v1677 = vadd.f32 %v1620, 1.0
          %v1678 = vadd.f32 %v1622, 1.0
          %v1679 = vadd.f32 %v1624, 1.0
          %v1680 = vadd.f32 %v1626, 1.0
          %v1681 = vadd.f32 %v1628, 1.0
          %v1682 = vadd.f32 %v1630, 1.0
          %v1683 = vadd.f32 %v1632, 1.0
          %v1684 = vadd.f32 %v1634, 1.0
          %v1685 = vadd.f32 %v1636, 1.0
          %v1686 = vadd.f32 %v1638, 1.0
          %v1687 = vadd.f32 %v1640, 1.0
          %v1688 = vadd.f32 %v1642, 1.0
          %v1689 = vadd.f32 %v1644, 1.0
          %v1690 = vadd.f32 %v1646, 1.0
          %v1691 = vadd.f32 %v1648, 1.0
          %v1692 = vadd.f32 %v1650, 1.0
          %v1693 = vadd.f32 %v1652, 1.0
          %v1694 = vadd.f32 %v1654, 1.0
          %v1695 = vadd.f32 %v1656, 1.0
          %v1696 = vadd.f32 %v1658, 1.0
          %v1697 = vadd.f32 %v1660, 1.0
          %v1698 = vadd.f32 %v1662, 1.0
          %v1699 = vadd.f32 %v1664, 1.0
          %v1700 = vadd.f32 %v1666, 1.0
          %v1701 = vadd.f32 %v1668, 1.0
          %v1702 = vadd.f32 %v1670, 1.0
          %v1703 = vrcp.pop %v1671
          %v1704 = vmul.f32 %v1671, %v1703
          %v1705 = vsub.f32 1.0, %v1704
          %v1706 = vmul.f32 %v1703, %v1705
          %v1707 = vadd.f32 %v1703, %v1706
          %vm1708 = vweird.f32 %v1671
          %vm1709 = vweird.f32 %v1703
          %vm1710 = vmor %vm1708, %vm1709
          %v1711 = vsel %vm1710, %v1703, %v1707
          %v1712 = vand.u32 2147483647, %v1671
          %vm1713 = vcmp.eq.f32.partialorder %v1712, 8.507059e+37
          %v1714 = vand.u32 %v1671, 2147483648
          %v1715 = vor.u32 1.1754944e-38, %v1714
          %v1716 = vsel %vm1713, %v1715, %v1711
          %v1717 = vmul.f32 1.0, %v1716
          %v1718 = vrcp.pop %v1672
          %v1719 = vmul.f32 %v1672, %v1718
          %v1720 = vsub.f32 1.0, %v1719
          %v1721 = vmul.f32 %v1718, %v1720
          %v1722 = vadd.f32 %v1718, %v1721
          %vm1723 = vweird.f32 %v1672
          %vm1724 = vweird.f32 %v1718
          %vm1725 = vmor %vm1723, %vm1724
          %v1726 = vsel %vm1725, %v1718, %v1722
          %v1727 = vand.u32 2147483647, %v1672
          %vm1728 = vcmp.eq.f32.partialorder %v1727, 8.507059e+37
          %v1729 = vand.u32 %v1672, 2147483648
          %v1730 = vor.u32 1.1754944e-38, %v1729
          %v1731 = vsel %vm1728, %v1730, %v1726
          %v1732 = vmul.f32 1.0, %v1731
          %v1733 = vrcp.pop %v1673
          %v1734 = vmul.f32 %v1673, %v1733
          %v1735 = vsub.f32 1.0, %v1734
          %v1736 = vmul.f32 %v1733, %v1735
          %v1737 = vadd.f32 %v1733, %v1736
          %vm1738 = vweird.f32 %v1673
          %vm1739 = vweird.f32 %v1733
          %vm1740 = vmor %vm1738, %vm1739
          %v1741 = vsel %vm1740, %v1733, %v1737
          %v1742 = vand.u32 2147483647, %v1673
          %vm1743 = vcmp.eq.f32.partialorder %v1742, 8.507059e+37
          %v1744 = vand.u32 %v1673, 2147483648
          %v1745 = vor.u32 1.1754944e-38, %v1744
          %v1746 = vsel %vm1743, %v1745, %v1741
          %v1747 = vmul.f32 1.0, %v1746
          %v1748 = vrcp.pop %v1674
          %v1749 = vmul.f32 %v1674, %v1748
          %v1750 = vsub.f32 1.0, %v1749
          %v1751 = vmul.f32 %v1748, %v1750
          %v1752 = vadd.f32 %v1748, %v1751
          %vm1753 = vweird.f32 %v1674
          %vm1754 = vweird.f32 %v1748
          %vm1755 = vmor %vm1753, %vm1754
          %v1756 = vsel %vm1755, %v1748, %v1752
          %v1757 = vand.u32 2147483647, %v1674
          %vm1758 = vcmp.eq.f32.partialorder %v1757, 8.507059e+37
          %v1759 = vand.u32 %v1674, 2147483648
          %v1760 = vor.u32 1.1754944e-38, %v1759
          %v1761 = vsel %vm1758, %v1760, %v1756
          %v1762 = vmul.f32 1.0, %v1761
          %v1763 = vrcp.pop %v1675
          %v1764 = vmul.f32 %v1675, %v1763
          %v1765 = vsub.f32 1.0, %v1764
          %v1766 = vmul.f32 %v1763, %v1765
          %v1767 = vadd.f32 %v1763, %v1766
          %vm1768 = vweird.f32 %v1675
          %vm1769 = vweird.f32 %v1763
          %vm1770 = vmor %vm1768, %vm1769
          %v1771 = vsel %vm1770, %v1763, %v1767
          %v1772 = vand.u32 2147483647, %v1675
          %vm1773 = vcmp.eq.f32.partialorder %v1772, 8.507059e+37
          %v1774 = vand.u32 %v1675, 2147483648
          %v1775 = vor.u32 1.1754944e-38, %v1774
          %v1776 = vsel %vm1773, %v1775, %v1771
          %v1777 = vmul.f32 1.0, %v1776
          %v1778 = vrcp.pop %v1676
          %v1779 = vmul.f32 %v1676, %v1778
          %v1780 = vsub.f32 1.0, %v1779
          %v1781 = vmul.f32 %v1778, %v1780
          %v1782 = vadd.f32 %v1778, %v1781
          %vm1783 = vweird.f32 %v1676
          %vm1784 = vweird.f32 %v1778
          %vm1785 = vmor %vm1783, %vm1784
          %v1786 = vsel %vm1785, %v1778, %v1782
          %v1787 = vand.u32 2147483647, %v1676
          %vm1788 = vcmp.eq.f32.partialorder %v1787, 8.507059e+37
          %v1789 = vand.u32 %v1676, 2147483648
          %v1790 = vor.u32 1.1754944e-38, %v1789
          %v1791 = vsel %vm1788, %v1790, %v1786
          %v1792 = vmul.f32 1.0, %v1791
          %v1793 = vrcp.pop %v1677
          %v1794 = vmul.f32 %v1677, %v1793
          %v1795 = vsub.f32 1.0, %v1794
          %v1796 = vmul.f32 %v1793, %v1795
          %v1797 = vadd.f32 %v1793, %v1796
          %vm1798 = vweird.f32 %v1677
          %vm1799 = vweird.f32 %v1793
          %vm1800 = vmor %vm1798, %vm1799
          %v1801 = vsel %vm1800, %v1793, %v1797
          %v1802 = vand.u32 2147483647, %v1677
          %vm1803 = vcmp.eq.f32.partialorder %v1802, 8.507059e+37
          %v1804 = vand.u32 %v1677, 2147483648
          %v1805 = vor.u32 1.1754944e-38, %v1804
          %v1806 = vsel %vm1803, %v1805, %v1801
          %v1807 = vmul.f32 1.0, %v1806
          %v1808 = vrcp.pop %v1678
          %v1809 = vmul.f32 %v1678, %v1808
          %v1810 = vsub.f32 1.0, %v1809
          %v1811 = vmul.f32 %v1808, %v1810
          %v1812 = vadd.f32 %v1808, %v1811
          %vm1813 = vweird.f32 %v1678
          %vm1814 = vweird.f32 %v1808
          %vm1815 = vmor %vm1813, %vm1814
          %v1816 = vsel %vm1815, %v1808, %v1812
          %v1817 = vand.u32 2147483647, %v1678
          %vm1818 = vcmp.eq.f32.partialorder %v1817, 8.507059e+37
          %v1819 = vand.u32 %v1678, 2147483648
          %v1820 = vor.u32 1.1754944e-38, %v1819
          %v1821 = vsel %vm1818, %v1820, %v1816
          %v1822 = vmul.f32 1.0, %v1821
          %v1823 = vrcp.pop %v1679
          %v1824 = vmul.f32 %v1679, %v1823
          %v1825 = vsub.f32 1.0, %v1824
          %v1826 = vmul.f32 %v1823, %v1825
          %v1827 = vadd.f32 %v1823, %v1826
          %vm1828 = vweird.f32 %v1679
          %vm1829 = vweird.f32 %v1823
          %vm1830 = vmor %vm1828, %vm1829
          %v1831 = vsel %vm1830, %v1823, %v1827
          %v1832 = vand.u32 2147483647, %v1679
          %vm1833 = vcmp.eq.f32.partialorder %v1832, 8.507059e+37
          %v1834 = vand.u32 %v1679, 2147483648
          %v1835 = vor.u32 1.1754944e-38, %v1834
          %v1836 = vsel %vm1833, %v1835, %v1831
          %v1837 = vmul.f32 1.0, %v1836
          %v1838 = vrcp.pop %v1680
          %v1839 = vmul.f32 %v1680, %v1838
          %v1840 = vsub.f32 1.0, %v1839
          %v1841 = vmul.f32 %v1838, %v1840
          %v1842 = vadd.f32 %v1838, %v1841
          %vm1843 = vweird.f32 %v1680
          %vm1844 = vweird.f32 %v1838
          %vm1845 = vmor %vm1843, %vm1844
          %v1846 = vsel %vm1845, %v1838, %v1842
          %v1847 = vand.u32 2147483647, %v1680
          %vm1848 = vcmp.eq.f32.partialorder %v1847, 8.507059e+37
          %v1849 = vand.u32 %v1680, 2147483648
          %v1850 = vor.u32 1.1754944e-38, %v1849
          %v1851 = vsel %vm1848, %v1850, %v1846
          %v1852 = vmul.f32 1.0, %v1851
          %v1853 = vrcp.pop %v1681
          %v1854 = vmul.f32 %v1681, %v1853
          %v1855 = vsub.f32 1.0, %v1854
          %v1856 = vmul.f32 %v1853, %v1855
          %v1857 = vadd.f32 %v1853, %v1856
          %vm1858 = vweird.f32 %v1681
          %vm1859 = vweird.f32 %v1853
          %vm1860 = vmor %vm1858, %vm1859
          %v1861 = vsel %vm1860, %v1853, %v1857
          %v1862 = vand.u32 2147483647, %v1681
          %vm1863 = vcmp.eq.f32.partialorder %v1862, 8.507059e+37
          %v1864 = vand.u32 %v1681, 2147483648
          %v1865 = vor.u32 1.1754944e-38, %v1864
          %v1866 = vsel %vm1863, %v1865, %v1861
          %v1867 = vmul.f32 1.0, %v1866
          %v1868 = vrcp.pop %v1682
          %v1869 = vmul.f32 %v1682, %v1868
          %v1870 = vsub.f32 1.0, %v1869
          %v1871 = vmul.f32 %v1868, %v1870
          %v1872 = vadd.f32 %v1868, %v1871
          %vm1873 = vweird.f32 %v1682
          %vm1874 = vweird.f32 %v1868
          %vm1875 = vmor %vm1873, %vm1874
          %v1876 = vsel %vm1875, %v1868, %v1872
          %v1877 = vand.u32 2147483647, %v1682
          %vm1878 = vcmp.eq.f32.partialorder %v1877, 8.507059e+37
          %v1879 = vand.u32 %v1682, 2147483648
          %v1880 = vor.u32 1.1754944e-38, %v1879
          %v1881 = vsel %vm1878, %v1880, %v1876
          %v1882 = vmul.f32 1.0, %v1881
          %v1883 = vrcp.pop %v1683
          %v1884 = vmul.f32 %v1683, %v1883
          %v1885 = vsub.f32 1.0, %v1884
          %v1886 = vmul.f32 %v1883, %v1885
          %v1887 = vadd.f32 %v1883, %v1886
          %vm1888 = vweird.f32 %v1683
          %vm1889 = vweird.f32 %v1883
          %vm1890 = vmor %vm1888, %vm1889
          %v1891 = vsel %vm1890, %v1883, %v1887
          %v1892 = vand.u32 2147483647, %v1683
          %vm1893 = vcmp.eq.f32.partialorder %v1892, 8.507059e+37
          %v1894 = vand.u32 %v1683, 2147483648
          %v1895 = vor.u32 1.1754944e-38, %v1894
          %v1896 = vsel %vm1893, %v1895, %v1891
          %v1897 = vmul.f32 1.0, %v1896
          %v1898 = vrcp.pop %v1684
          %v1899 = vmul.f32 %v1684, %v1898
          %v1900 = vsub.f32 1.0, %v1899
          %v1901 = vmul.f32 %v1898, %v1900
          %v1902 = vadd.f32 %v1898, %v1901
          %vm1903 = vweird.f32 %v1684
          %vm1904 = vweird.f32 %v1898
          %vm1905 = vmor %vm1903, %vm1904
          %v1906 = vsel %vm1905, %v1898, %v1902
          %v1907 = vand.u32 2147483647, %v1684
          %vm1908 = vcmp.eq.f32.partialorder %v1907, 8.507059e+37
          %v1909 = vand.u32 %v1684, 2147483648
          %v1910 = vor.u32 1.1754944e-38, %v1909
          %v1911 = vsel %vm1908, %v1910, %v1906
          %v1912 = vmul.f32 1.0, %v1911
          %v1913 = vrcp.pop %v1685
          %v1914 = vmul.f32 %v1685, %v1913
          %v1915 = vsub.f32 1.0, %v1914
          %v1916 = vmul.f32 %v1913, %v1915
          %v1917 = vadd.f32 %v1913, %v1916
          %vm1918 = vweird.f32 %v1685
          %vm1919 = vweird.f32 %v1913
          %vm1920 = vmor %vm1918, %vm1919
          %v1921 = vsel %vm1920, %v1913, %v1917
          %v1922 = vand.u32 2147483647, %v1685
          %vm1923 = vcmp.eq.f32.partialorder %v1922, 8.507059e+37
          %v1924 = vand.u32 %v1685, 2147483648
          %v1925 = vor.u32 1.1754944e-38, %v1924
          %v1926 = vsel %vm1923, %v1925, %v1921
          %v1927 = vmul.f32 1.0, %v1926
          %v1928 = vrcp.pop %v1686
          %v1929 = vmul.f32 %v1686, %v1928
          %v1930 = vsub.f32 1.0, %v1929
          %v1931 = vmul.f32 %v1928, %v1930
          %v1932 = vadd.f32 %v1928, %v1931
          %vm1933 = vweird.f32 %v1686
          %vm1934 = vweird.f32 %v1928
          %vm1935 = vmor %vm1933, %vm1934
          %v1936 = vsel %vm1935, %v1928, %v1932
          %v1937 = vand.u32 2147483647, %v1686
          %vm1938 = vcmp.eq.f32.partialorder %v1937, 8.507059e+37
          %v1939 = vand.u32 %v1686, 2147483648
          %v1940 = vor.u32 1.1754944e-38, %v1939
          %v1941 = vsel %vm1938, %v1940, %v1936
          %v1942 = vmul.f32 1.0, %v1941
          %v1943 = vrcp.pop %v1687
          %v1944 = vmul.f32 %v1687, %v1943
          %v1945 = vsub.f32 1.0, %v1944
          %v1946 = vmul.f32 %v1943, %v1945
          %v1947 = vadd.f32 %v1943, %v1946
          %vm1948 = vweird.f32 %v1687
          %vm1949 = vweird.f32 %v1943
          %vm1950 = vmor %vm1948, %vm1949
          %v1951 = vsel %vm1950, %v1943, %v1947
          %v1952 = vand.u32 2147483647, %v1687
          %vm1953 = vcmp.eq.f32.partialorder %v1952, 8.507059e+37
          %v1954 = vand.u32 %v1687, 2147483648
          %v1955 = vor.u32 1.1754944e-38, %v1954
          %v1956 = vsel %vm1953, %v1955, %v1951
          %v1957 = vmul.f32 1.0, %v1956
          %v1958 = vrcp.pop %v1688
          %v1959 = vmul.f32 %v1688, %v1958
          %v1960 = vsub.f32 1.0, %v1959
          %v1961 = vmul.f32 %v1958, %v1960
          %v1962 = vadd.f32 %v1958, %v1961
          %vm1963 = vweird.f32 %v1688
          %vm1964 = vweird.f32 %v1958
          %vm1965 = vmor %vm1963, %vm1964
          %v1966 = vsel %vm1965, %v1958, %v1962
          %v1967 = vand.u32 2147483647, %v1688
          %vm1968 = vcmp.eq.f32.partialorder %v1967, 8.507059e+37
          %v1969 = vand.u32 %v1688, 2147483648
          %v1970 = vor.u32 1.1754944e-38, %v1969
          %v1971 = vsel %vm1968, %v1970, %v1966
          %v1972 = vmul.f32 1.0, %v1971
          %v1973 = vrcp.pop %v1689
          %v1974 = vmul.f32 %v1689, %v1973
          %v1975 = vsub.f32 1.0, %v1974
          %v1976 = vmul.f32 %v1973, %v1975
          %v1977 = vadd.f32 %v1973, %v1976
          %vm1978 = vweird.f32 %v1689
          %vm1979 = vweird.f32 %v1973
          %vm1980 = vmor %vm1978, %vm1979
          %v1981 = vsel %vm1980, %v1973, %v1977
          %v1982 = vand.u32 2147483647, %v1689
          %vm1983 = vcmp.eq.f32.partialorder %v1982, 8.507059e+37
          %v1984 = vand.u32 %v1689, 2147483648
          %v1985 = vor.u32 1.1754944e-38, %v1984
          %v1986 = vsel %vm1983, %v1985, %v1981
          %v1987 = vmul.f32 1.0, %v1986
          %v1988 = vrcp.pop %v1690
          %v1989 = vmul.f32 %v1690, %v1988
          %v1990 = vsub.f32 1.0, %v1989
          %v1991 = vmul.f32 %v1988, %v1990
          %v1992 = vadd.f32 %v1988, %v1991
          %vm1993 = vweird.f32 %v1690
          %vm1994 = vweird.f32 %v1988
          %vm1995 = vmor %vm1993, %vm1994
          %v1996 = vsel %vm1995, %v1988, %v1992
          %v1997 = vand.u32 2147483647, %v1690
          %vm1998 = vcmp.eq.f32.partialorder %v1997, 8.507059e+37
          %v1999 = vand.u32 %v1690, 2147483648
          %v2000 = vor.u32 1.1754944e-38, %v1999
          %v2001 = vsel %vm1998, %v2000, %v1996
          %v2002 = vmul.f32 1.0, %v2001
          %v2003 = vrcp.pop %v1691
          %v2004 = vmul.f32 %v1691, %v2003
          %v2005 = vsub.f32 1.0, %v2004
          %v2006 = vmul.f32 %v2003, %v2005
          %v2007 = vadd.f32 %v2003, %v2006
          %vm2008 = vweird.f32 %v1691
          %vm2009 = vweird.f32 %v2003
          %vm2010 = vmor %vm2008, %vm2009
          %v2011 = vsel %vm2010, %v2003, %v2007
          %v2012 = vand.u32 2147483647, %v1691
          %vm2013 = vcmp.eq.f32.partialorder %v2012, 8.507059e+37
          %v2014 = vand.u32 %v1691, 2147483648
          %v2015 = vor.u32 1.1754944e-38, %v2014
          %v2016 = vsel %vm2013, %v2015, %v2011
          %v2017 = vmul.f32 1.0, %v2016
          %v2018 = vrcp.pop %v1692
          %v2019 = vmul.f32 %v1692, %v2018
          %v2020 = vsub.f32 1.0, %v2019
          %v2021 = vmul.f32 %v2018, %v2020
          %v2022 = vadd.f32 %v2018, %v2021
          %vm2023 = vweird.f32 %v1692
          %vm2024 = vweird.f32 %v2018
          %vm2025 = vmor %vm2023, %vm2024
          %v2026 = vsel %vm2025, %v2018, %v2022
          %v2027 = vand.u32 2147483647, %v1692
          %vm2028 = vcmp.eq.f32.partialorder %v2027, 8.507059e+37
          %v2029 = vand.u32 %v1692, 2147483648
          %v2030 = vor.u32 1.1754944e-38, %v2029
          %v2031 = vsel %vm2028, %v2030, %v2026
          %v2032 = vmul.f32 1.0, %v2031
          %v2033 = vrcp.pop %v1693
          %v2034 = vmul.f32 %v1693, %v2033
          %v2035 = vsub.f32 1.0, %v2034
          %v2036 = vmul.f32 %v2033, %v2035
          %v2037 = vadd.f32 %v2033, %v2036
          %vm2038 = vweird.f32 %v1693
          %vm2039 = vweird.f32 %v2033
          %vm2040 = vmor %vm2038, %vm2039
          %v2041 = vsel %vm2040, %v2033, %v2037
          %v2042 = vand.u32 2147483647, %v1693
          %vm2043 = vcmp.eq.f32.partialorder %v2042, 8.507059e+37
          %v2044 = vand.u32 %v1693, 2147483648
          %v2045 = vor.u32 1.1754944e-38, %v2044
          %v2046 = vsel %vm2043, %v2045, %v2041
          %v2047 = vmul.f32 1.0, %v2046
          %v2048 = vrcp.pop %v1694
          %v2049 = vmul.f32 %v1694, %v2048
          %v2050 = vsub.f32 1.0, %v2049
          %v2051 = vmul.f32 %v2048, %v2050
          %v2052 = vadd.f32 %v2048, %v2051
          %vm2053 = vweird.f32 %v1694
          %vm2054 = vweird.f32 %v2048
          %vm2055 = vmor %vm2053, %vm2054
          %v2056 = vsel %vm2055, %v2048, %v2052
          %v2057 = vand.u32 2147483647, %v1694
          %vm2058 = vcmp.eq.f32.partialorder %v2057, 8.507059e+37
          %v2059 = vand.u32 %v1694, 2147483648
          %v2060 = vor.u32 1.1754944e-38, %v2059
          %v2061 = vsel %vm2058, %v2060, %v2056
          %v2062 = vmul.f32 1.0, %v2061
          %v2063 = vrcp.pop %v1695
          %v2064 = vmul.f32 %v1695, %v2063
          %v2065 = vsub.f32 1.0, %v2064
          %v2066 = vmul.f32 %v2063, %v2065
          %v2067 = vadd.f32 %v2063, %v2066
          %vm2068 = vweird.f32 %v1695
          %vm2069 = vweird.f32 %v2063
          %vm2070 = vmor %vm2068, %vm2069
          %v2071 = vsel %vm2070, %v2063, %v2067
          %v2072 = vand.u32 2147483647, %v1695
          %vm2073 = vcmp.eq.f32.partialorder %v2072, 8.507059e+37
          %v2074 = vand.u32 %v1695, 2147483648
          %v2075 = vor.u32 1.1754944e-38, %v2074
          %v2076 = vsel %vm2073, %v2075, %v2071
          %v2077 = vmul.f32 1.0, %v2076
          %v2078 = vrcp.pop %v1696
          %v2079 = vmul.f32 %v1696, %v2078
          %v2080 = vsub.f32 1.0, %v2079
          %v2081 = vmul.f32 %v2078, %v2080
          %v2082 = vadd.f32 %v2078, %v2081
          %vm2083 = vweird.f32 %v1696
          %vm2084 = vweird.f32 %v2078
          %vm2085 = vmor %vm2083, %vm2084
          %v2086 = vsel %vm2085, %v2078, %v2082
          %v2087 = vand.u32 2147483647, %v1696
          %vm2088 = vcmp.eq.f32.partialorder %v2087, 8.507059e+37
          %v2089 = vand.u32 %v1696, 2147483648
          %v2090 = vor.u32 1.1754944e-38, %v2089
          %v2091 = vsel %vm2088, %v2090, %v2086
          %v2092 = vmul.f32 1.0, %v2091
          %v2093 = vrcp.pop %v1697
          %v2094 = vmul.f32 %v1697, %v2093
          %v2095 = vsub.f32 1.0, %v2094
          %v2096 = vmul.f32 %v2093, %v2095
          %v2097 = vadd.f32 %v2093, %v2096
          %vm2098 = vweird.f32 %v1697
          %vm2099 = vweird.f32 %v2093
          %vm2100 = vmor %vm2098, %vm2099
          %v2101 = vsel %vm2100, %v2093, %v2097
          %v2102 = vand.u32 2147483647, %v1697
          %vm2103 = vcmp.eq.f32.partialorder %v2102, 8.507059e+37
          %v2104 = vand.u32 %v1697, 2147483648
          %v2105 = vor.u32 1.1754944e-38, %v2104
          %v2106 = vsel %vm2103, %v2105, %v2101
          %v2107 = vmul.f32 1.0, %v2106
          %v2108 = vrcp.pop %v1698
          %v2109 = vmul.f32 %v1698, %v2108
          %v2110 = vsub.f32 1.0, %v2109
          %v2111 = vmul.f32 %v2108, %v2110
          %v2112 = vadd.f32 %v2108, %v2111
          %vm2113 = vweird.f32 %v1698
          %vm2114 = vweird.f32 %v2108
          %vm2115 = vmor %vm2113, %vm2114
          %v2116 = vsel %vm2115, %v2108, %v2112
          %v2117 = vand.u32 2147483647, %v1698
          %vm2118 = vcmp.eq.f32.partialorder %v2117, 8.507059e+37
          %v2119 = vand.u32 %v1698, 2147483648
          %v2120 = vor.u32 1.1754944e-38, %v2119
          %v2121 = vsel %vm2118, %v2120, %v2116
          %v2122 = vmul.f32 1.0, %v2121
          %v2123 = vrcp.pop %v1699
          %v2124 = vmul.f32 %v1699, %v2123
          %v2125 = vsub.f32 1.0, %v2124
          %v2126 = vmul.f32 %v2123, %v2125
          %v2127 = vadd.f32 %v2123, %v2126
          %vm2128 = vweird.f32 %v1699
          %vm2129 = vweird.f32 %v2123
          %vm2130 = vmor %vm2128, %vm2129
          %v2131 = vsel %vm2130, %v2123, %v2127
          %v2132 = vand.u32 2147483647, %v1699
          %vm2133 = vcmp.eq.f32.partialorder %v2132, 8.507059e+37
          %v2134 = vand.u32 %v1699, 2147483648
          %v2135 = vor.u32 1.1754944e-38, %v2134
          %v2136 = vsel %vm2133, %v2135, %v2131
          %v2137 = vmul.f32 1.0, %v2136
          %v2138 = vrcp.pop %v1700
          %v2139 = vmul.f32 %v1700, %v2138
          %v2140 = vsub.f32 1.0, %v2139
          %v2141 = vmul.f32 %v2138, %v2140
          %v2142 = vadd.f32 %v2138, %v2141
          %vm2143 = vweird.f32 %v1700
          %vm2144 = vweird.f32 %v2138
          %vm2145 = vmor %vm2143, %vm2144
          %v2146 = vsel %vm2145, %v2138, %v2142
          %v2147 = vand.u32 2147483647, %v1700
          %vm2148 = vcmp.eq.f32.partialorder %v2147, 8.507059e+37
          %v2149 = vand.u32 %v1700, 2147483648
          %v2150 = vor.u32 1.1754944e-38, %v2149
          %v2151 = vsel %vm2148, %v2150, %v2146
          %v2152 = vmul.f32 1.0, %v2151
          %v2153 = vrcp.pop %v1701
          %v2154 = vmul.f32 %v1701, %v2153
          %v2155 = vsub.f32 1.0, %v2154
          %v2156 = vmul.f32 %v2153, %v2155
          %v2157 = vadd.f32 %v2153, %v2156
          %vm2158 = vweird.f32 %v1701
          %vm2159 = vweird.f32 %v2153
          %vm2160 = vmor %vm2158, %vm2159
          %v2161 = vsel %vm2160, %v2153, %v2157
          %v2162 = vand.u32 2147483647, %v1701
          %vm2163 = vcmp.eq.f32.partialorder %v2162, 8.507059e+37
          %v2164 = vand.u32 %v1701, 2147483648
          %v2165 = vor.u32 1.1754944e-38, %v2164
          %v2166 = vsel %vm2163, %v2165, %v2161
          %v2167 = vmul.f32 1.0, %v2166
          %v2168 = vrcp.pop %v1702
          %v2169 = vmul.f32 %v1702, %v2168
          %v2170 = vsub.f32 1.0, %v2169
          %v2171 = vmul.f32 %v2168, %v2170
          %v2172 = vadd.f32 %v2168, %v2171
          %vm2173 = vweird.f32 %v1702
          %vm2174 = vweird.f32 %v2168
          %vm2175 = vmor %vm2173, %vm2174
          %v2176 = vsel %vm2175, %v2168, %v2172
          %v2177 = vand.u32 2147483647, %v1702
          %vm2178 = vcmp.eq.f32.partialorder %v2177, 8.507059e+37
          %v2179 = vand.u32 %v1702, 2147483648
          %v2180 = vor.u32 1.1754944e-38, %v2179
          %v2181 = vsel %vm2178, %v2180, %v2176
          %v2182 = vmul.f32 1.0, %v2181
          %v2183 = vmul.f32 %v1353, %v1717
          %v2184 = vmul.f32 %v1382, %v1732
          %v2185 = vmul.f32 %v1411, %v1747
          %v2186 = vmul.f32 %v1440, %v1762
          %v2187 = vmul.f32 %v1355, %v1777
          %v2188 = vmul.f32 %v1384, %v1792
          %v2189 = vmul.f32 %v1413, %v1807
          %v2190 = vmul.f32 %v1442, %v1822
          %v2191 = vmul.f32 %v1358, %v1837
          %v2192 = vmul.f32 %v1387, %v1852
          %v2193 = vmul.f32 %v1416, %v1867
          %v2194 = vmul.f32 %v1445, %v1882
          %v2195 = vmul.f32 %v1360, %v1897
          %v2196 = vmul.f32 %v1389, %v1912
          %v2197 = vmul.f32 %v1418, %v1927
          %v2198 = vmul.f32 %v1447, %v1942
          %v2199 = vmul.f32 %v1363, %v1957
          %v2200 = vmul.f32 %v1392, %v1972
          %v2201 = vmul.f32 %v1421, %v1987
          %v2202 = vmul.f32 %v1450, %v2002
          %v2203 = vmul.f32 %v1365, %v2017
          %v2204 = vmul.f32 %v1394, %v2032
          %v2205 = vmul.f32 %v1423, %v2047
          %v2206 = vmul.f32 %v1452, %v2062
          %v2207 = vmul.f32 %v1368, %v2077
          %v2208 = vmul.f32 %v1397, %v2092
          %v2209 = vmul.f32 %v1426, %v2107
          %v2210 = vmul.f32 %v1455, %v2122
          %v2211 = vmul.f32 %v1370, %v2137
          %v2212 = vmul.f32 %v1399, %v2152
          %v2213 = vmul.f32 %v1428, %v2167
          %v2214 = vmul.f32 %v1457, %v2182
          %v2215 = vmul.f32 %v2183, %v1469
          %v2216 = vmul.f32 %v2184, %v1498
          %v2217 = vmul.f32 %v2185, %v1527
          %v2218 = vmul.f32 %v2186, %v1556
          %v2219 = vmul.f32 %v2187, %v1471
          %v2220 = vmul.f32 %v2188, %v1500
          %v2221 = vmul.f32 %v2189, %v1529
          %v2222 = vmul.f32 %v2190, %v1558
          %v2223 = vmul.f32 %v2191, %v1474
          %v2224 = vmul.f32 %v2192, %v1503
          %v2225 = vmul.f32 %v2193, %v1532
          %v2226 = vmul.f32 %v2194, %v1561
          %v2227 = vmul.f32 %v2195, %v1476
          %v2228 = vmul.f32 %v2196, %v1505
          %v2229 = vmul.f32 %v2197, %v1534
          %v2230 = vmul.f32 %v2198, %v1563
          %v2231 = vmul.f32 %v2199, %v1479
          %v2232 = vmul.f32 %v2200, %v1508
          %v2233 = vmul.f32 %v2201, %v1537
          %v2234 = vmul.f32 %v2202, %v1566
          %v2235 = vmul.f32 %v2203, %v1481
          %v2236 = vmul.f32 %v2204, %v1510
          %v2237 = vmul.f32 %v2205, %v1539
          %v2238 = vmul.f32 %v2206, %v1568
          %v2239 = vmul.f32 %v2207, %v1484
          %v2240 = vmul.f32 %v2208, %v1513
          %v2241 = vmul.f32 %v2209, %v1542
          %v2242 = vmul.f32 %v2210, %v1571
          %v2243 = vmul.f32 %v2211, %v1486
          %v2244 = vmul.f32 %v2212, %v1515
          %v2245 = vmul.f32 %v2213, %v1544
          %v2246 = vmul.f32 %v2214, %v1573
          %v2247 = vld [vmem:[#allocation4] sm:$0xf]
          %v2248 = vmul.f32 %v2215, %v2215
          %v2249 = vmul.f32 %v2216, %v2216
          %v2250 = vmul.f32 %v2217, %v2217
          %v2251 = vmul.f32 %v2218, %v2218
          %v2252 = vmul.f32 %v2219, %v2219
          %v2253 = vmul.f32 %v2220, %v2220
          %v2254 = vmul.f32 %v2221, %v2221
          %v2255 = vmul.f32 %v2222, %v2222
          %v2256 = vmul.f32 %v2223, %v2223
          %v2257 = vmul.f32 %v2224, %v2224
          %v2258 = vmul.f32 %v2225, %v2225
          %v2259 = vmul.f32 %v2226, %v2226
          %v2260 = vmul.f32 %v2227, %v2227
          %v2261 = vmul.f32 %v2228, %v2228
          %v2262 = vmul.f32 %v2229, %v2229
          %v2263 = vmul.f32 %v2230, %v2230
          %v2264 = vmul.f32 %v2231, %v2231
          %v2265 = vmul.f32 %v2232, %v2232
          %v2266 = vmul.f32 %v2233, %v2233
          %v2267 = vmul.f32 %v2234, %v2234
          %v2268 = vmul.f32 %v2235, %v2235
          %v2269 = vmul.f32 %v2236, %v2236
          %v2270 = vmul.f32 %v2237, %v2237
          %v2271 = vmul.f32 %v2238, %v2238
          %v2272 = vmul.f32 %v2239, %v2239
          %v2273 = vmul.f32 %v2240, %v2240
          %v2274 = vmul.f32 %v2241, %v2241
          %v2275 = vmul.f32 %v2242, %v2242
          %v2276 = vmul.f32 %v2243, %v2243
          %v2277 = vmul.f32 %v2244, %v2244
          %v2278 = vmul.f32 %v2245, %v2245
          %v2279 = vmul.f32 %v2246, %v2246
          %v2280 = vadd.f32 %v2248, %v2252
          %v2281 = vadd.f32 %v2280, %v2256
          %v2282 = vadd.f32 %v2281, %v2260
          %v2283 = vadd.f32 %v2282, %v2264
          %v2284 = vadd.f32 %v2283, %v2268
          %v2285 = vadd.f32 %v2284, %v2272
          %v2286 = vadd.f32 %v2285, %v2276
          %v2287 = vrot.slane %v2286, 4
          %v2288 = vadd.f32 %v2286, %v2287
          %v2289 = vrot.slane %v2288, 2
          %v2290 = vadd.f32 %v2288, %v2289
          %v2291 = vrot.slane %v2290, 1
          %v2292 = vadd.f32 %v2290, %v2291
          %v2293 = vadd.f32 %v2249, %v2253
          %v2294 = vadd.f32 %v2293, %v2257
          %v2295 = vadd.f32 %v2294, %v2261
          %v2296 = vadd.f32 %v2295, %v2265
          %v2297 = vadd.f32 %v2296, %v2269
          %v2298 = vadd.f32 %v2297, %v2273
          %v2299 = vadd.f32 %v2298, %v2277
          %v2300 = vrot.slane %v2299, 4
          %v2301 = vadd.f32 %v2299, %v2300
          %v2302 = vrot.slane %v2301, 2
          %v2303 = vadd.f32 %v2301, %v2302
          %v2304 = vrot.slane %v2303, 1
          %v2305 = vadd.f32 %v2303, %v2304
          %v2306 = vadd.f32 %v2250, %v2254
          %v2307 = vadd.f32 %v2306, %v2258
          %v2308 = vadd.f32 %v2307, %v2262
          %v2309 = vadd.f32 %v2308, %v2266
          %v2310 = vadd.f32 %v2309, %v2270
          %v2311 = vadd.f32 %v2310, %v2274
          %v2312 = vadd.f32 %v2311, %v2278
          %v2313 = vrot.slane %v2312, 4
          %v2314 = vadd.f32 %v2312, %v2313
          %v2315 = vrot.slane %v2314, 2
          %v2316 = vadd.f32 %v2314, %v2315
          %v2317 = vrot.slane %v2316, 1
          %v2318 = vadd.f32 %v2316, %v2317
          %v2319 = vadd.f32 %v2251, %v2255
          %v2320 = vadd.f32 %v2319, %v2259
          %v2321 = vadd.f32 %v2320, %v2263
          %v2322 = vadd.f32 %v2321, %v2267
          %v2323 = vadd.f32 %v2322, %v2271
          %v2324 = vadd.f32 %v2323, %v2275
          %v2325 = vadd.f32 %v2324, %v2279
          %v2326 = vrot.slane %v2325, 4
          %v2327 = vadd.f32 %v2325, %v2326
          %v2328 = vrot.slane %v2327, 2
          %v2329 = vadd.f32 %v2327, %v2328
          %v2330 = vrot.slane %v2329, 1
          %v2331 = vadd.f32 %v2329, %v2330
          %v2336 = vrot.slane %v2305, 7
          %v2337 = vrot.slane %v2318, 6
          %v2338 = vrot.slane %v2331, 5
          %vm2339 = vcmask 1040384
          %v2340 = vsel %vm2339, %v2292, %v2336
          %vm2341 = vcmask 1042434
          %v2342 = vsel %vm2341, %v2337, %v2338
          %vm2343 = vcmask 1041408
          %v2344 = vsel %vm2343, %v2340, %v2342
          %v2346 = vadd.f32 %v2247, %v2344
          %v2347 = vlaneseq
          %vm2348 = vcmp.ge.s32.totalorder %v2347, 0
          %vm2349 = vcmp.lt.s32.totalorder %v2347, 512
          %vm2350 = vmand %vm2348, %vm2349
          %2351 = vst.msk [vmem:[#allocation4] sm:$0xf] %vm2350, %v2346
          %v2352 = vpack.c.bf16 %v2216, %v2215
          %v2353 = vpack.c.bf16 %v2218, %v2217
          %v2354 = vpack.c.bf16 %v2220, %v2219
          %v2355 = vpack.c.bf16 %v2222, %v2221
          %v2356 = vpack.c.bf16 %v2224, %v2223
          %v2357 = vpack.c.bf16 %v2226, %v2225
          %v2358 = vpack.c.bf16 %v2228, %v2227
          %v2359 = vpack.c.bf16 %v2230, %v2229
          %v2360 = vpack.c.bf16 %v2232, %v2231
          %v2361 = vpack.c.bf16 %v2234, %v2233
          %v2362 = vpack.c.bf16 %v2236, %v2235
          %v2363 = vpack.c.bf16 %v2238, %v2237
          %v2364 = vpack.c.bf16 %v2240, %v2239
          %v2365 = vpack.c.bf16 %v2242, %v2241
          %v2366 = vpack.c.bf16 %v2244, %v2243
          %v2367 = vpack.c.bf16 %v2246, %v2245
          %s2368 = sshra.s32 %s431, 3
          %s2369 = sand.u32 %s431, 7
          %s2370 = smul.u32 %s2368, 4
          %s2371 = smul.addr %s2370, 4
          %s2372 = scalar_lea.vmem [#allocation3], %s2371
          %2373 = vst [vmem:[%s2372] sm:$0xff] %v2352
          %2374 = vst [vmem:[%s2372 + $0x8] sm:$0xff] %v2353
          %2375 = vst [vmem:[%s2372 + $0x10] sm:$0xff] %v2354
          %2376 = vst [vmem:[%s2372 + $0x18] sm:$0xff] %v2355
          %2377 = vst [vmem:[%s2372 + $0x20] sm:$0xff] %v2356
          %2378 = vst [vmem:[%s2372 + $0x28] sm:$0xff] %v2357
          %2379 = vst [vmem:[%s2372 + $0x30] sm:$0xff] %v2358
          %2380 = vst [vmem:[%s2372 + $0x38] sm:$0xff] %v2359
          %2381 = vst [vmem:[%s2372 + $0x40] sm:$0xff] %v2360
          %2382 = vst [vmem:[%s2372 + $0x48] sm:$0xff] %v2361
          %2383 = vst [vmem:[%s2372 + $0x50] sm:$0xff] %v2362
          %2384 = vst [vmem:[%s2372 + $0x58] sm:$0xff] %v2363
          %2385 = vst [vmem:[%s2372 + $0x60] sm:$0xff] %v2364
          %2386 = vst [vmem:[%s2372 + $0x68] sm:$0xff] %v2365
          %2387 = vst [vmem:[%s2372 + $0x70] sm:$0xff] %v2366
          %2388 = vst [vmem:[%s2372 + $0x78] sm:$0xff] %v2367
        $region87: #{convnext_v2_glu_like_encoder.3} parent=59 // pred_fallthru
          _
        %p2389 = scmp.eq.s32.totalorder %s31, 1
        // Predicated region
        $region88: #{convnext_v2_glu_like_encoder.3} parent=59 // pred_check
          %p2390 = pneg %p2389
        $region89: #{convnext_v2_glu_like_encoder.3} parent=59 // pred_check_branch
          %2392 = sbr.rel (%p2390) target = $region91
        $region90: #{convnext_v2_glu_like_encoder.3} parent=59 // pred_region
          // Predicated region
          $region92: #{convnext_v2_glu_like_encoder.3} parent=90 // pred_check
            %p2393 = pneg %p365
          $region93: #{convnext_v2_glu_like_encoder.3} parent=90 // pred_check_branch
            %2395 = sbr.rel (%p2393) target = $region95
          $region94: #{convnext_v2_glu_like_encoder.3} parent=90 // pred_region
            %v2396 = vld [vmem:[#allocation4] sm:$0xf]
            %v2397 = vrsqrt.pop %v2396
            %v2398 = vmul.f32 %v2397, %v2396
            %v2399 = vmul.f32 %v2398, %v2397
            %v2400 = vmul.f32 0.5, %v2399
            %v2401 = vsub.f32 1.5, %v2400
            %v2402 = vmul.f32 %v2397, %v2401
            %v2403 = vmul.f32 %v2396, %v2402
            %vm2404 = vcmp.eq.f32.partialorder %v2396, inf
            %v2405 = vsel %vm2404, %v2396, %v2403
            %vm2406 = vcmp.eq.f32.partialorder %v2396, 0.0
            %v2407 = vand.u32 %v2396, 2147483648
            %v2408 = vsel %vm2406, %v2407, %v2405
            %v2410 = vperm.slane %v2408, 0
            %v2411 = vperm.slane %v2408, 1
            %v2412 = vperm.slane %v2408, 2
            %v2413 = vperm.slane %v2408, 3
            %vm2418 = vcmask 1040384
            %v2419 = vsel %vm2418, %v2410, 0.0
            %v2420 = vsel %vm2418, %v2411, 0.0
            %v2421 = vadd.f32 %v2419, %v2420
            %v2422 = vsel %vm2418, %v2412, 0.0
            %v2423 = vadd.f32 %v2421, %v2422
            %v2424 = vsel %vm2418, %v2413, 0.0
            %v2425 = vadd.f32 %v2423, %v2424
            %2426 = vadd.xlane.f32.xlu0 %v2425
            %v2427 = vpop.xlane.xlu0 %2426
            %v2428 = vrcp.pop 512.0
            %v2429 = vmul.f32 512.0, %v2428
            %v2430 = vsub.f32 1.0, %v2429
            %v2431 = vmul.f32 %v2428, %v2430
            %v2432 = vadd.f32 %v2428, %v2431
            %vm2433 = vweird.f32 %v2428
            %v2434 = vsel %vm2433, %v2428, %v2432
            %v2435 = vmul.f32 %v2427, %v2434
            %v2436 = vadd.f32 %v2435, 1e-06
            %v2438 = vperm.slane %v2436, 0
            %v2440 = vrcp.pop %v2438
            %v2441 = vmul.f32 %v2438, %v2440
            %v2442 = vsub.f32 1.0, %v2441
            %v2443 = vmul.f32 %v2440, %v2442
            %v2444 = vadd.f32 %v2440, %v2443
            %vm2445 = vweird.f32 %v2438
            %vm2446 = vweird.f32 %v2440
            %vm2447 = vmor %vm2445, %vm2446
            %v2448 = vsel %vm2447, %v2440, %v2444
            %v2449 = vand.u32 2147483647, %v2438
            %vm2450 = vcmp.eq.f32.partialorder %v2449, 8.507059e+37
            %v2451 = vand.u32 %v2438, 2147483648
            %v2452 = vor.u32 1.1754944e-38, %v2451
            %v2453 = vsel %vm2450, %v2452, %v2448
            %v2454 = vmul.f32 %v2408, %v2453
            %v2455 = vlaneseq
            %vm2456 = vcmp.ge.s32.totalorder %v2455, 0
            %vm2457 = vcmp.lt.s32.totalorder %v2455, 512
            %vm2458 = vmand %vm2456, %vm2457
            %2459 = vst.msk [vmem:[#allocation5] sm:$0xf] %vm2458, %v2454
          $region95: #{convnext_v2_glu_like_encoder.3} parent=90 // pred_fallthru
            _
          %s2460 = sshra.s32 %s431, 3
          %s2461 = sand.u32 %s431, 7
          %s2462 = smul.u32 %s2460, 4
          %s2463 = smul.addr %s2462, 4
          %s2464 = scalar_lea.vmem [#allocation3], %s2463
          %v2465 = vld [vmem:[%s2464] sm:$0xff]
          %v2466 = vld [vmem:[%s2464 + $0x8] sm:$0xff]
          %v2467 = vld [vmem:[%s2464 + $0x10] sm:$0xff]
          %v2468 = vld [vmem:[%s2464 + $0x18] sm:$0xff]
          %v2469 = vld [vmem:[%s2464 + $0x20] sm:$0xff]
          %v2470 = vld [vmem:[%s2464 + $0x28] sm:$0xff]
          %v2471 = vld [vmem:[%s2464 + $0x30] sm:$0xff]
          %v2472 = vld [vmem:[%s2464 + $0x38] sm:$0xff]
          %v2473 = vld [vmem:[%s2464 + $0x40] sm:$0xff]
          %v2474 = vld [vmem:[%s2464 + $0x48] sm:$0xff]
          %v2475 = vld [vmem:[%s2464 + $0x50] sm:$0xff]
          %v2476 = vld [vmem:[%s2464 + $0x58] sm:$0xff]
          %v2477 = vld [vmem:[%s2464 + $0x60] sm:$0xff]
          %v2478 = vld [vmem:[%s2464 + $0x68] sm:$0xff]
          %v2479 = vld [vmem:[%s2464 + $0x70] sm:$0xff]
          %v2480 = vld [vmem:[%s2464 + $0x78] sm:$0xff]
          %v2481 = vunpack.c.l.bf16 %v2465
          %v2482 = vunpack.c.h.bf16 %v2465
          %v2483 = vunpack.c.l.bf16 %v2466
          %v2484 = vunpack.c.h.bf16 %v2466
          %v2485 = vunpack.c.l.bf16 %v2467
          %v2486 = vunpack.c.h.bf16 %v2467
          %v2487 = vunpack.c.l.bf16 %v2468
          %v2488 = vunpack.c.h.bf16 %v2468
          %v2489 = vunpack.c.l.bf16 %v2469
          %v2490 = vunpack.c.h.bf16 %v2469
          %v2491 = vunpack.c.l.bf16 %v2470
          %v2492 = vunpack.c.h.bf16 %v2470
          %v2493 = vunpack.c.l.bf16 %v2471
          %v2494 = vunpack.c.h.bf16 %v2471
          %v2495 = vunpack.c.l.bf16 %v2472
          %v2496 = vunpack.c.h.bf16 %v2472
          %v2497 = vunpack.c.l.bf16 %v2473
          %v2498 = vunpack.c.h.bf16 %v2473
          %v2499 = vunpack.c.l.bf16 %v2474
          %v2500 = vunpack.c.h.bf16 %v2474
          %v2501 = vunpack.c.l.bf16 %v2475
          %v2502 = vunpack.c.h.bf16 %v2475
          %v2503 = vunpack.c.l.bf16 %v2476
          %v2504 = vunpack.c.h.bf16 %v2476
          %v2505 = vunpack.c.l.bf16 %v2477
          %v2506 = vunpack.c.h.bf16 %v2477
          %v2507 = vunpack.c.l.bf16 %v2478
          %v2508 = vunpack.c.h.bf16 %v2478
          %v2509 = vunpack.c.l.bf16 %v2479
          %v2510 = vunpack.c.h.bf16 %v2479
          %v2511 = vunpack.c.l.bf16 %v2480
          %v2512 = vunpack.c.h.bf16 %v2480
          %v2513 = vld [vmem:[#allocation5] sm:$0xf]
          %v2514 = vld [vmem:[%s7] sm:$0xf]
          %v2516 = vperm.slane %v2513, 0
          %v2517 = vperm.slane %v2513, 1
          %v2518 = vperm.slane %v2513, 2
          %v2519 = vperm.slane %v2513, 3
          %v2524 = vmul.f32 %v2481, %v2516
          %v2525 = vmul.f32 %v2482, %v2517
          %v2526 = vmul.f32 %v2483, %v2518
          %v2527 = vmul.f32 %v2484, %v2519
          %v2528 = vmul.f32 %v2485, %v2516
          %v2529 = vmul.f32 %v2486, %v2517
          %v2530 = vmul.f32 %v2487, %v2518
          %v2531 = vmul.f32 %v2488, %v2519
          %v2532 = vmul.f32 %v2489, %v2516
          %v2533 = vmul.f32 %v2490, %v2517
          %v2534 = vmul.f32 %v2491, %v2518
          %v2535 = vmul.f32 %v2492, %v2519
          %v2536 = vmul.f32 %v2493, %v2516
          %v2537 = vmul.f32 %v2494, %v2517
          %v2538 = vmul.f32 %v2495, %v2518
          %v2539 = vmul.f32 %v2496, %v2519
          %v2540 = vmul.f32 %v2497, %v2516
          %v2541 = vmul.f32 %v2498, %v2517
          %v2542 = vmul.f32 %v2499, %v2518
          %v2543 = vmul.f32 %v2500, %v2519
          %v2544 = vmul.f32 %v2501, %v2516
          %v2545 = vmul.f32 %v2502, %v2517
          %v2546 = vmul.f32 %v2503, %v2518
          %v2547 = vmul.f32 %v2504, %v2519
          %v2548 = vmul.f32 %v2505, %v2516
          %v2549 = vmul.f32 %v2506, %v2517
          %v2550 = vmul.f32 %v2507, %v2518
          %v2551 = vmul.f32 %v2508, %v2519
          %v2552 = vmul.f32 %v2509, %v2516
          %v2553 = vmul.f32 %v2510, %v2517
          %v2554 = vmul.f32 %v2511, %v2518
          %v2555 = vmul.f32 %v2512, %v2519
          %v2557 = vperm.slane %v2514, 0
          %v2558 = vperm.slane %v2514, 1
          %v2559 = vperm.slane %v2514, 2
          %v2560 = vperm.slane %v2514, 3
          %v2565 = vmul.f32 %v2557, %v2524
          %v2566 = vmul.f32 %v2558, %v2525
          %v2567 = vmul.f32 %v2559, %v2526
          %v2568 = vmul.f32 %v2560, %v2527
          %v2569 = vmul.f32 %v2557, %v2528
          %v2570 = vmul.f32 %v2558, %v2529
          %v2571 = vmul.f32 %v2559, %v2530
          %v2572 = vmul.f32 %v2560, %v2531
          %v2573 = vmul.f32 %v2557, %v2532
          %v2574 = vmul.f32 %v2558, %v2533
          %v2575 = vmul.f32 %v2559, %v2534
          %v2576 = vmul.f32 %v2560, %v2535
          %v2577 = vmul.f32 %v2557, %v2536
          %v2578 = vmul.f32 %v2558, %v2537
          %v2579 = vmul.f32 %v2559, %v2538
          %v2580 = vmul.f32 %v2560, %v2539
          %v2581 = vmul.f32 %v2557, %v2540
          %v2582 = vmul.f32 %v2558, %v2541
          %v2583 = vmul.f32 %v2559, %v2542
          %v2584 = vmul.f32 %v2560, %v2543
          %v2585 = vmul.f32 %v2557, %v2544
          %v2586 = vmul.f32 %v2558, %v2545
          %v2587 = vmul.f32 %v2559, %v2546
          %v2588 = vmul.f32 %v2560, %v2547
          %v2589 = vmul.f32 %v2557, %v2548
          %v2590 = vmul.f32 %v2558, %v2549
          %v2591 = vmul.f32 %v2559, %v2550
          %v2592 = vmul.f32 %v2560, %v2551
          %v2593 = vmul.f32 %v2557, %v2552
          %v2594 = vmul.f32 %v2558, %v2553
          %v2595 = vmul.f32 %v2559, %v2554
          %v2596 = vmul.f32 %v2560, %v2555
          %v2597 = vld [vmem:[%s8] sm:$0xf]
          %v2599 = vperm.slane %v2597, 0
          %v2600 = vperm.slane %v2597, 1
          %v2601 = vperm.slane %v2597, 2
          %v2602 = vperm.slane %v2597, 3
          %v2607 = vadd.f32 %v2565, %v2599
          %v2608 = vadd.f32 %v2566, %v2600
          %v2609 = vadd.f32 %v2567, %v2601
          %v2610 = vadd.f32 %v2568, %v2602
          %v2611 = vadd.f32 %v2569, %v2599
          %v2612 = vadd.f32 %v2570, %v2600
          %v2613 = vadd.f32 %v2571, %v2601
          %v2614 = vadd.f32 %v2572, %v2602
          %v2615 = vadd.f32 %v2573, %v2599
          %v2616 = vadd.f32 %v2574, %v2600
          %v2617 = vadd.f32 %v2575, %v2601
          %v2618 = vadd.f32 %v2576, %v2602
          %v2619 = vadd.f32 %v2577, %v2599
          %v2620 = vadd.f32 %v2578, %v2600
          %v2621 = vadd.f32 %v2579, %v2601
          %v2622 = vadd.f32 %v2580, %v2602
          %v2623 = vadd.f32 %v2581, %v2599
          %v2624 = vadd.f32 %v2582, %v2600
          %v2625 = vadd.f32 %v2583, %v2601
          %v2626 = vadd.f32 %v2584, %v2602
          %v2627 = vadd.f32 %v2585, %v2599
          %v2628 = vadd.f32 %v2586, %v2600
          %v2629 = vadd.f32 %v2587, %v2601
          %v2630 = vadd.f32 %v2588, %v2602
          %v2631 = vadd.f32 %v2589, %v2599
          %v2632 = vadd.f32 %v2590, %v2600
          %v2633 = vadd.f32 %v2591, %v2601
          %v2634 = vadd.f32 %v2592, %v2602
          %v2635 = vadd.f32 %v2593, %v2599
          %v2636 = vadd.f32 %v2594, %v2600
          %v2637 = vadd.f32 %v2595, %v2601
          %v2638 = vadd.f32 %v2596, %v2602
          %v2639 = vadd.f32 %v2607, %v2481
          %v2640 = vadd.f32 %v2608, %v2482
          %v2641 = vadd.f32 %v2609, %v2483
          %v2642 = vadd.f32 %v2610, %v2484
          %v2643 = vadd.f32 %v2611, %v2485
          %v2644 = vadd.f32 %v2612, %v2486
          %v2645 = vadd.f32 %v2613, %v2487
          %v2646 = vadd.f32 %v2614, %v2488
          %v2647 = vadd.f32 %v2615, %v2489
          %v2648 = vadd.f32 %v2616, %v2490
          %v2649 = vadd.f32 %v2617, %v2491
          %v2650 = vadd.f32 %v2618, %v2492
          %v2651 = vadd.f32 %v2619, %v2493
          %v2652 = vadd.f32 %v2620, %v2494
          %v2653 = vadd.f32 %v2621, %v2495
          %v2654 = vadd.f32 %v2622, %v2496
          %v2655 = vadd.f32 %v2623, %v2497
          %v2656 = vadd.f32 %v2624, %v2498
          %v2657 = vadd.f32 %v2625, %v2499
          %v2658 = vadd.f32 %v2626, %v2500
          %v2659 = vadd.f32 %v2627, %v2501
          %v2660 = vadd.f32 %v2628, %v2502
          %v2661 = vadd.f32 %v2629, %v2503
          %v2662 = vadd.f32 %v2630, %v2504
          %v2663 = vadd.f32 %v2631, %v2505
          %v2664 = vadd.f32 %v2632, %v2506
          %v2665 = vadd.f32 %v2633, %v2507
          %v2666 = vadd.f32 %v2634, %v2508
          %v2667 = vadd.f32 %v2635, %v2509
          %v2668 = vadd.f32 %v2636, %v2510
          %v2669 = vadd.f32 %v2637, %v2511
          %v2670 = vadd.f32 %v2638, %v2512
          %v2671 = vpack.c.bf16 %v2643, %v2639
          %v2672 = vpack.c.bf16 %v2644, %v2640
          %v2673 = vpack.c.bf16 %v2645, %v2641
          %v2674 = vpack.c.bf16 %v2646, %v2642
          %v2675 = vpack.c.bf16 %v2651, %v2647
          %v2676 = vpack.c.bf16 %v2652, %v2648
          %v2677 = vpack.c.bf16 %v2653, %v2649
          %v2678 = vpack.c.bf16 %v2654, %v2650
          %v2679 = vpack.c.bf16 %v2659, %v2655
          %v2680 = vpack.c.bf16 %v2660, %v2656
          %v2681 = vpack.c.bf16 %v2661, %v2657
          %v2682 = vpack.c.bf16 %v2662, %v2658
          %v2683 = vpack.c.bf16 %v2667, %v2663
          %v2684 = vpack.c.bf16 %v2668, %v2664
          %v2685 = vpack.c.bf16 %v2669, %v2665
          %v2686 = vpack.c.bf16 %v2670, %v2666
          %v2687 = vld [vmem:[%s9] sm:$0xf]
          %v2688 = vld [vmem:[%s9 + $0x4] sm:$0xf]
          %v2689 = vld [vmem:[%s9 + $0x8] sm:$0xf]
          %v2690 = vld [vmem:[%s9 + $0xc] sm:$0xf]
          %v2691 = vld [vmem:[%s9 + $0x10] sm:$0xf]
          %v2692 = vld [vmem:[%s9 + $0x14] sm:$0xf]
          %v2693 = vld [vmem:[%s9 + $0x18] sm:$0xf]
          %v2694 = vld [vmem:[%s9 + $0x1c] sm:$0xf]
          %v2695 = vld [vmem:[%s9 + $0x20] sm:$0xf]
          %v2696 = vld [vmem:[%s9 + $0x24] sm:$0xf]
          %v2697 = vld [vmem:[%s9 + $0x28] sm:$0xf]
          %v2698 = vld [vmem:[%s9 + $0x2c] sm:$0xf]
          %v2699 = vld [vmem:[%s9 + $0x30] sm:$0xf]
          %v2700 = vld [vmem:[%s9 + $0x34] sm:$0xf]
          %v2701 = vld [vmem:[%s9 + $0x38] sm:$0xf]
          %v2702 = vld [vmem:[%s9 + $0x3c] sm:$0xf]
          %v2703 = vld [vmem:[%s9 + $0x40] sm:$0xf]
          %v2704 = vld [vmem:[%s9 + $0x44] sm:$0xf]
          %v2705 = vld [vmem:[%s9 + $0x48] sm:$0xf]
          %v2706 = vld [vmem:[%s9 + $0x4c] sm:$0xf]
          %v2707 = vld [vmem:[%s9 + $0x50] sm:$0xf]
          %v2708 = vld [vmem:[%s9 + $0x54] sm:$0xf]
          %v2709 = vld [vmem:[%s9 + $0x58] sm:$0xf]
          %v2710 = vld [vmem:[%s9 + $0x5c] sm:$0xf]
          %v2711 = vld [vmem:[%s9 + $0x60] sm:$0xf]
          %v2712 = vld [vmem:[%s9 + $0x64] sm:$0xf]
          %v2713 = vld [vmem:[%s9 + $0x68] sm:$0xf]
          %v2714 = vld [vmem:[%s9 + $0x6c] sm:$0xf]
          %v2715 = vld [vmem:[%s9 + $0x70] sm:$0xf]
          %v2716 = vld [vmem:[%s9 + $0x74] sm:$0xf]
          %v2717 = vld [vmem:[%s9 + $0x78] sm:$0xf]
          %v2718 = vld [vmem:[%s9 + $0x7c] sm:$0xf]
          %v2719 = vld [vmem:[%s9 + $0x80] sm:$0xf]
          %v2720 = vld [vmem:[%s9 + $0x84] sm:$0xf]
          %v2721 = vld [vmem:[%s9 + $0x88] sm:$0xf]
          %v2722 = vld [vmem:[%s9 + $0x8c] sm:$0xf]
          %v2723 = vld [vmem:[%s9 + $0x90] sm:$0xf]
          %v2724 = vld [vmem:[%s9 + $0x94] sm:$0xf]
          %v2725 = vld [vmem:[%s9 + $0x98] sm:$0xf]
          %v2726 = vld [vmem:[%s9 + $0x9c] sm:$0xf]
          %v2727 = vld [vmem:[%s9 + $0xa0] sm:$0xf]
          %v2728 = vld [vmem:[%s9 + $0xa4] sm:$0xf]
          %v2729 = vld [vmem:[%s9 + $0xa8] sm:$0xf]
          %v2730 = vld [vmem:[%s9 + $0xac] sm:$0xf]
          %v2731 = vld [vmem:[%s9 + $0xb0] sm:$0xf]
          %v2732 = vld [vmem:[%s9 + $0xb4] sm:$0xf]
          %v2733 = vld [vmem:[%s9 + $0xb8] sm:$0xf]
          %v2734 = vld [vmem:[%s9 + $0xbc] sm:$0xf]
          %v2735 = vld [vmem:[%s9 + $0xc0] sm:$0xf]
          %v2736 = vld [vmem:[%s9 + $0xc4] sm:$0xf]
          %v2737 = vld [vmem:[%s9 + $0xc8] sm:$0xf]
          %v2738 = vld [vmem:[%s9 + $0xcc] sm:$0xf]
          %v2739 = vld [vmem:[%s9 + $0xd0] sm:$0xf]
          %v2740 = vld [vmem:[%s9 + $0xd4] sm:$0xf]
          %v2741 = vld [vmem:[%s9 + $0xd8] sm:$0xf]
          %v2742 = vld [vmem:[%s9 + $0xdc] sm:$0xf]
          %v2743 = vld [vmem:[%s9 + $0xe0] sm:$0xf]
          %v2744 = vld [vmem:[%s9 + $0xe4] sm:$0xf]
          %v2745 = vld [vmem:[%s9 + $0xe8] sm:$0xf]
          %v2746 = vld [vmem:[%s9 + $0xec] sm:$0xf]
          %v2747 = vld [vmem:[%s9 + $0xf0] sm:$0xf]
          %v2748 = vld [vmem:[%s9 + $0xf4] sm:$0xf]
          %v2749 = vld [vmem:[%s9 + $0xf8] sm:$0xf]
          %v2750 = vld [vmem:[%s9 + $0xfc] sm:$0xf]
          %v2751 = vld [vmem:[%s10] sm:$0x1]
          %v2753 = vperm.slane %v2751, 0
          %v2819 = vunpack.c.l.b16 %v2687
          %v2820 = vunpack.c.l.b16 %v2688
          %v2821 = vunpack.c.l.b16 %v2689
          %v2822 = vunpack.c.l.b16 %v2690
          %v2823 = vunpack.c.l.b16 %v2691
          %v2824 = vunpack.c.l.b16 %v2692
          %v2825 = vunpack.c.l.b16 %v2693
          %v2826 = vunpack.c.l.b16 %v2694
          %v2827 = vunpack.c.l.b16 %v2695
          %v2828 = vunpack.c.l.b16 %v2696
          %v2829 = vunpack.c.l.b16 %v2697
          %v2830 = vunpack.c.l.b16 %v2698
          %v2831 = vunpack.c.l.b16 %v2699
          %v2832 = vunpack.c.l.b16 %v2700
          %v2833 = vunpack.c.l.b16 %v2701
          %v2834 = vunpack.c.l.b16 %v2702
          %v2835 = vunpack.c.l.b16 %v2703
          %v2836 = vunpack.c.l.b16 %v2704
          %v2837 = vunpack.c.l.b16 %v2705
          %v2838 = vunpack.c.l.b16 %v2706
          %v2839 = vunpack.c.l.b16 %v2707
          %v2840 = vunpack.c.l.b16 %v2708
          %v2841 = vunpack.c.l.b16 %v2709
          %v2842 = vunpack.c.l.b16 %v2710
          %v2843 = vunpack.c.l.b16 %v2711
          %v2844 = vunpack.c.l.b16 %v2712
          %v2845 = vunpack.c.l.b16 %v2713
          %v2846 = vunpack.c.l.b16 %v2714
          %v2847 = vunpack.c.l.b16 %v2715
          %v2848 = vunpack.c.l.b16 %v2716
          %v2849 = vunpack.c.l.b16 %v2717
          %v2850 = vunpack.c.l.b16 %v2718
          %v2851 = vunpack.c.l.b16 %v2719
          %v2852 = vunpack.c.l.b16 %v2720
          %v2853 = vunpack.c.l.b16 %v2721
          %v2854 = vunpack.c.l.b16 %v2722
          %v2855 = vunpack.c.l.b16 %v2723
          %v2856 = vunpack.c.l.b16 %v2724
          %v2857 = vunpack.c.l.b16 %v2725
          %v2858 = vunpack.c.l.b16 %v2726
          %v2859 = vunpack.c.l.b16 %v2727
          %v2860 = vunpack.c.l.b16 %v2728
          %v2861 = vunpack.c.l.b16 %v2729
          %v2862 = vunpack.c.l.b16 %v2730
          %v2863 = vunpack.c.l.b16 %v2731
          %v2864 = vunpack.c.l.b16 %v2732
          %v2865 = vunpack.c.l.b16 %v2733
          %v2866 = vunpack.c.l.b16 %v2734
          %v2867 = vunpack.c.l.b16 %v2735
          %v2868 = vunpack.c.l.b16 %v2736
          %v2869 = vunpack.c.l.b16 %v2737
          %v2870 = vunpack.c.l.b16 %v2738
          %v2871 = vunpack.c.l.b16 %v2739
          %v2872 = vunpack.c.l.b16 %v2740
          %v2873 = vunpack.c.l.b16 %v2741
          %v2874 = vunpack.c.l.b16 %v2742
          %v2875 = vunpack.c.l.b16 %v2743
          %v2876 = vunpack.c.l.b16 %v2744
          %v2877 = vunpack.c.l.b16 %v2745
          %v2878 = vunpack.c.l.b16 %v2746
          %v2879 = vunpack.c.l.b16 %v2747
          %v2880 = vunpack.c.l.b16 %v2748
          %v2881 = vunpack.c.l.b16 %v2749
          %v2882 = vunpack.c.l.b16 %v2750
          %v2883 = vpack.c.b16 %v2820, %v2819
          %v2884 = vpack.c.b16 %v2822, %v2821
          %v2885 = vpack.c.b16 %v2824, %v2823
          %v2886 = vpack.c.b16 %v2826, %v2825
          %v2887 = vpack.c.b16 %v2828, %v2827
          %v2888 = vpack.c.b16 %v2830, %v2829
          %v2889 = vpack.c.b16 %v2832, %v2831
          %v2890 = vpack.c.b16 %v2834, %v2833
          %v2891 = vpack.c.b16 %v2836, %v2835
          %v2892 = vpack.c.b16 %v2838, %v2837
          %v2893 = vpack.c.b16 %v2840, %v2839
          %v2894 = vpack.c.b16 %v2842, %v2841
          %v2895 = vpack.c.b16 %v2844, %v2843
          %v2896 = vpack.c.b16 %v2846, %v2845
          %v2897 = vpack.c.b16 %v2848, %v2847
          %v2898 = vpack.c.b16 %v2850, %v2849
          %v2899 = vpack.c.b16 %v2852, %v2851
          %v2900 = vpack.c.b16 %v2854, %v2853
          %v2901 = vpack.c.b16 %v2856, %v2855
          %v2902 = vpack.c.b16 %v2858, %v2857
          %v2903 = vpack.c.b16 %v2860, %v2859
          %v2904 = vpack.c.b16 %v2862, %v2861
          %v2905 = vpack.c.b16 %v2864, %v2863
          %v2906 = vpack.c.b16 %v2866, %v2865
          %v2907 = vpack.c.b16 %v2868, %v2867
          %v2908 = vpack.c.b16 %v2870, %v2869
          %v2909 = vpack.c.b16 %v2872, %v2871
          %v2910 = vpack.c.b16 %v2874, %v2873
          %v2911 = vpack.c.b16 %v2876, %v2875
          %v2912 = vpack.c.b16 %v2878, %v2877
          %v2913 = vpack.c.b16 %v2880, %v2879
          %v2914 = vpack.c.b16 %v2882, %v2881
          %2947 = vmatpush.bf16.msra.mxu0 %v2890
          %2948 = vmatpush.bf16.msra.mxu0 %v2889
          %2949 = vmatpush.bf16.msra.mxu0 %v2888
          %2950 = vmatpush.bf16.msra.mxu0 %v2887
          %2951 = vmatpush.bf16.msra.mxu0 %v2886
          %2952 = vmatpush.bf16.msra.mxu0 %v2885
          %2953 = vmatpush.bf16.msra.mxu0 %v2884
          %2954 = vmatpush.bf16.msra.mxu0 %v2883
          %2955 = vmatmul.bf16.gmra.mxu0 %v2671
          %v2956 = vpop.f32.mrf.mxu0
          %v2957 = vadd.f32 %v2753, %v2956
          %v2958 = vpop.f32.mrf.mxu0
          %v2959 = vadd.f32 %v2753, %v2958
          %2960 = vmatmul.bf16.gmra.mxu0 %v2675
          %v2961 = vpop.f32.mrf.mxu0
          %v2962 = vadd.f32 %v2753, %v2961
          %v2963 = vpop.f32.mrf.mxu0
          %v2964 = vadd.f32 %v2753, %v2963
          %2965 = vmatmul.bf16.gmra.mxu0 %v2679
          %v2966 = vpop.f32.mrf.mxu0
          %v2967 = vadd.f32 %v2753, %v2966
          %v2968 = vpop.f32.mrf.mxu0
          %v2969 = vadd.f32 %v2753, %v2968
          %2970 = vmatmul.bf16.gmra.mxu0 %v2683
          %v2971 = vpop.f32.mrf.mxu0
          %v2972 = vadd.f32 %v2753, %v2971
          %v2973 = vpop.f32.mrf.mxu0
          %v2974 = vadd.f32 %v2753, %v2973
          %2975 = vdwg.mxu0
          %2976 = vmatpush.bf16.msra.mxu0 %v2898
          %2977 = vmatpush.bf16.msra.mxu0 %v2897
          %2978 = vmatpush.bf16.msra.mxu0 %v2896
          %2979 = vmatpush.bf16.msra.mxu0 %v2895
          %2980 = vmatpush.bf16.msra.mxu0 %v2894
          %2981 = vmatpush.bf16.msra.mxu0 %v2893
          %2982 = vmatpush.bf16.msra.mxu0 %v2892
          %2983 = vmatpush.bf16.msra.mxu0 %v2891
          %2984 = vmatmul.bf16.gmra.mxu0 %v2672
          %v2985 = vpop.f32.mrf.mxu0
          %v2986 = vadd.f32 %v2957, %v2985
          %v2987 = vpop.f32.mrf.mxu0
          %v2988 = vadd.f32 %v2959, %v2987
          %2989 = vmatmul.bf16.gmra.mxu0 %v2676
          %v2990 = vpop.f32.mrf.mxu0
          %v2991 = vadd.f32 %v2962, %v2990
          %v2992 = vpop.f32.mrf.mxu0
          %v2993 = vadd.f32 %v2964, %v2992
          %2994 = vmatmul.bf16.gmra.mxu0 %v2680
          %v2995 = vpop.f32.mrf.mxu0
          %v2996 = vadd.f32 %v2967, %v2995
          %v2997 = vpop.f32.mrf.mxu0
          %v2998 = vadd.f32 %v2969, %v2997
          %2999 = vmatmul.bf16.gmra.mxu0 %v2684
          %v3000 = vpop.f32.mrf.mxu0
          %v3001 = vadd.f32 %v2972, %v3000
          %v3002 = vpop.f32.mrf.mxu0
          %v3003 = vadd.f32 %v2974, %v3002
          %3004 = vdwg.mxu0
          %3005 = vmatpush.bf16.msra.mxu0 %v2906
          %3006 = vmatpush.bf16.msra.mxu0 %v2905
          %3007 = vmatpush.bf16.msra.mxu0 %v2904
          %3008 = vmatpush.bf16.msra.mxu0 %v2903
          %3009 = vmatpush.bf16.msra.mxu0 %v2902
          %3010 = vmatpush.bf16.msra.mxu0 %v2901
          %3011 = vmatpush.bf16.msra.mxu0 %v2900
          %3012 = vmatpush.bf16.msra.mxu0 %v2899
          %3013 = vmatmul.bf16.gmra.mxu0 %v2673
          %v3014 = vpop.f32.mrf.mxu0
          %v3015 = vadd.f32 %v2986, %v3014
          %v3016 = vpop.f32.mrf.mxu0
          %v3017 = vadd.f32 %v2988, %v3016
          %3018 = vmatmul.bf16.gmra.mxu0 %v2677
          %v3019 = vpop.f32.mrf.mxu0
          %v3020 = vadd.f32 %v2991, %v3019
          %v3021 = vpop.f32.mrf.mxu0
          %v3022 = vadd.f32 %v2993, %v3021
          %3023 = vmatmul.bf16.gmra.mxu0 %v2681
          %v3024 = vpop.f32.mrf.mxu0
          %v3025 = vadd.f32 %v2996, %v3024
          %v3026 = vpop.f32.mrf.mxu0
          %v3027 = vadd.f32 %v2998, %v3026
          %3028 = vmatmul.bf16.gmra.mxu0 %v2685
          %v3029 = vpop.f32.mrf.mxu0
          %v3030 = vadd.f32 %v3001, %v3029
          %v3031 = vpop.f32.mrf.mxu0
          %v3032 = vadd.f32 %v3003, %v3031
          %3033 = vdwg.mxu0
          %3034 = vmatpush.bf16.msra.mxu0 %v2914
          %3035 = vmatpush.bf16.msra.mxu0 %v2913
          %3036 = vmatpush.bf16.msra.mxu0 %v2912
          %3037 = vmatpush.bf16.msra.mxu0 %v2911
          %3038 = vmatpush.bf16.msra.mxu0 %v2910
          %3039 = vmatpush.bf16.msra.mxu0 %v2909
          %3040 = vmatpush.bf16.msra.mxu0 %v2908
          %3041 = vmatpush.bf16.msra.mxu0 %v2907
          %3042 = vmatmul.bf16.gmra.mxu0 %v2674
          %v3043 = vpop.f32.mrf.mxu0
          %v3044 = vadd.f32 %v3015, %v3043
          %v3045 = vpop.f32.mrf.mxu0
          %v3046 = vadd.f32 %v3017, %v3045
          %3047 = vmatmul.bf16.gmra.mxu0 %v2678
          %v3048 = vpop.f32.mrf.mxu0
          %v3049 = vadd.f32 %v3020, %v3048
          %v3050 = vpop.f32.mrf.mxu0
          %v3051 = vadd.f32 %v3022, %v3050
          %3052 = vmatmul.bf16.gmra.mxu0 %v2682
          %v3053 = vpop.f32.mrf.mxu0
          %v3054 = vadd.f32 %v3025, %v3053
          %v3055 = vpop.f32.mrf.mxu0
          %v3056 = vadd.f32 %v3027, %v3055
          %3057 = vmatmul.bf16.gmra.mxu0 %v2686
          %v3058 = vpop.f32.mrf.mxu0
          %v3059 = vadd.f32 %v3030, %v3058
          %v3060 = vpop.f32.mrf.mxu0
          %v3061 = vadd.f32 %v3032, %v3060
          %3062 = vdwg.mxu0
          %s3063 = sadd.s32 %s431, 8
          %s3064 = scalar_lea.vmem [#allocation2], %s3063
          %v3065 = vld [vmem:[%s3064] sm:$0xff]
          %v3066 = vld [vmem:[%s3064 + $0x8] sm:$0xff]
          %v3067 = vld [vmem:[%s3064 + $0x10] sm:$0xff]
          %v3068 = vld [vmem:[%s3064 + $0x18] sm:$0xff]
          %v3069 = vld [vmem:[%s3064 + $0x20] sm:$0xff]
          %v3070 = vld [vmem:[%s3064 + $0x28] sm:$0xff]
          %v3071 = vld [vmem:[%s3064 + $0x30] sm:$0xff]
          %v3072 = vld [vmem:[%s3064 + $0x38] sm:$0xff]
          %v3073 = vadd.f32 %v3065, %v3044
          %v3074 = vadd.f32 %v3066, %v3046
          %v3075 = vadd.f32 %v3067, %v3049
          %v3076 = vadd.f32 %v3068, %v3051
          %v3077 = vadd.f32 %v3069, %v3054
          %v3078 = vadd.f32 %v3070, %v3056
          %v3079 = vadd.f32 %v3071, %v3059
          %v3080 = vadd.f32 %v3072, %v3061
          %3081 = vst [vmem:[%s361] sm:$0xff] %v3073
          %3082 = vst [vmem:[%s361 + $0x8] sm:$0xff] %v3074
          %3083 = vst [vmem:[%s361 + $0x10] sm:$0xff] %v3075
          %3084 = vst [vmem:[%s361 + $0x18] sm:$0xff] %v3076
          %3085 = vst [vmem:[%s361 + $0x20] sm:$0xff] %v3077
          %3086 = vst [vmem:[%s361 + $0x28] sm:$0xff] %v3078
          %3087 = vst [vmem:[%s361 + $0x30] sm:$0xff] %v3079
          %3088 = vst [vmem:[%s361 + $0x38] sm:$0xff] %v3080
        $region91: #{convnext_v2_glu_like_encoder.3} parent=59 // pred_fallthru
          _
        %s3089 = sand.u32 %s266, 1
        %s3090 = scalar_lea.sflag [#allocation8], %s3089
        %s3091 = sand.u32 %s266, 1
        %s3092 = smul.addr %s3091, 64
        %s3093 = scalar_lea.vmem [#allocation7], %s3092
        // Predicated region
        $region96: #{convnext_v2_glu_like_encoder.3} parent=59 // pred_check
          %p3094 = pneg %p276
        $region97: #{convnext_v2_glu_like_encoder.3} parent=59 // pred_check_branch
          %3096 = sbr.rel (%p3094) target = $region99
        $region98: #{convnext_v2_glu_like_encoder.3} parent=59 // pred_region
          %s3097 = smul.u32 %s31, %s32
          %s3098 = smul.u32 8, %s3097
          %3100 = vsyncadd %s3090, 0
          %s3101 = smul.addr %s30, 16
          %s3102 = sadd.s32 %s3098, %s3101
          %s3103 = smul.addr %s3102, 8
          %s3104 = scalar_lea.hbm %s11, %s3103
          %s3105 = sshll.u32 %s3093, 4
          %s3106 = int_to_ptr.vmem [resolvable:$true] %s3105
          %s3107 = sshll.u32 %s3104, 4
          %s3108 = int_to_ptr.hbm [resolvable:$true] %s3107
          %3113 = dma.vmem_to_hbm [thread:$0]  %s3106, 1024, %s3108, %s3090, 128, 128, 8
        $region99: #{convnext_v2_glu_like_encoder.3} parent=59 // pred_fallthru
          _
      $region60: #{convnext_v2_glu_like_encoder.3} parent=5 // pred_fallthru
        _
      %p3114 = scmp.le.s32.totalorder 2, %s20
      // Predicated region
      $region100: #{convnext_v2_glu_like_encoder.3} parent=5 // pred_check
        %p3115 = pneg %p3114
      $region101: #{convnext_v2_glu_like_encoder.3} parent=5 // pred_check_branch
        %3117 = sbr.rel (%p3115) target = $region103
      $region102: #{convnext_v2_glu_like_encoder.3} parent=5 // pred_region
        %s3118 = ssub.s32 %s20, 2
        // Predicated region
        $region104: #{convnext_v2_glu_like_encoder.3} parent=102 // pred_check
          %p3119 = pneg %p282
        $region105: #{convnext_v2_glu_like_encoder.3} parent=102 // pred_check_branch
          %3121 = sbr.rel (%p3119) target = $region107
        $region106: #{convnext_v2_glu_like_encoder.3} parent=102 // pred_region
          %s3122 = sand.u32 %s267, 1
          %s3123 = scalar_lea.sflag [#allocation8], %s3122
          %s3124 = sand.u32 %s267, 1
          %s3125 = smul.addr %s3124, 64
          %s3126 = scalar_lea.vmem [#allocation7], %s3125
          %3128 = dma.done %s3123, 1024
        $region107: #{convnext_v2_glu_like_encoder.3} parent=102 // pred_fallthru
          _
      $region103: #{convnext_v2_glu_like_encoder.3} parent=5 // pred_fallthru
        _
    $region6: #{convnext_v2_glu_like_encoder.3} parent=1 // loop_footer
      %s24 = sadd.s32 1, %s20
    $region7: #{convnext_v2_glu_like_encoder.3} parent=1 // loop_footer_branch
      %19 = sbr.rel target = $region3
    $region8: #{convnext_v2_glu_like_encoder.3} parent=1 // loop_exit
      _
    %3129 = vsyncpa [#allocation8], 1
    %s3130 = scalar_lea.sflag [#allocation8], 1
    %3131 = vsyncpa %s3130, 1
  %3132 = vsyncmov [#allocation6]
  %s3133 = vpop.sfrf %3132
  %p3134 = scmp.eq.s32.totalorder %s3133, 0
  %p3135 = pneg %p3134
  %3137 = shalt.err (%p3135)

// kernel: convnext_v2_glu_like_encoder.2
$region0: #{convnext_v2_glu_like_encoder.2}
  #allocation0 [shape = 'u32[]', space=smem, size = 0x4, offset = 0x4, fixed_abs, tag = 'smem constant byte address 0x4 - core index']
  #allocation1 [shape = 'u32[72,128]{1,0:T(1,128)}', space=vmem, size = 0x9000, scoped, tag = 'internal scratch']
  #allocation2 [shape = 'f32[144,128]{1,0:T(8,128)}', space=vmem, size = 0x12000, scoped, tag = 'scratch operand']
  #allocation3 [shape = 'bf16[128,512]{1,0:T(8,128)(2,1)}', space=vmem, size = 0x20000, scoped, tag = 'scratch operand']
  #allocation4 [shape = 'f32[1,512]{1,0:T(1,128)}', space=vmem, size = 0x800, scoped, tag = 'scratch operand']
  #allocation5 [shape = 'f32[1,512]{1,0:T(1,128)}', space=vmem, size = 0x800, scoped, tag = 'scratch operand']
  #allocation6 [shape = 's32[1]{0}', space=sflag, size = 0x4, scoped, tag = 'scratch operand']
  #allocation7 [shape = 's32[]', space=sflag, size = 0x4, offset = 0, fixed_abs, tag = 'sflag constant byte address 0x0 - dummy sync flag']
  %s0 = inlined_call_operand.vmem [shape: f32[2,128,128], index: 0, kind: input, shape index: {}]
  %s1 = inlined_call_operand.vmem [shape: f32[5,128], index: 1, kind: input, shape index: {}]
  %s2 = inlined_call_operand.vmem [shape: f32[1,128], index: 2, kind: input, shape index: {}]
  %s3 = inlined_call_operand.vmem [shape: f32[1,128], index: 3, kind: input, shape index: {}]
  %s4 = inlined_call_operand.vmem [shape: f32[1,128], index: 4, kind: input, shape index: {}]
  %s5 = inlined_call_operand.vmem [shape: bf16[128,1024], index: 5, kind: input, shape index: {}]
  %s6 = inlined_call_operand.vmem [shape: f32[1,1024], index: 6, kind: input, shape index: {}]
  %s7 = inlined_call_operand.vmem [shape: f32[1,512], index: 7, kind: input, shape index: {}]
  %s8 = inlined_call_operand.vmem [shape: f32[1,512], index: 8, kind: input, shape index: {}]
  %s9 = inlined_call_operand.vmem [shape: bf16[512,128], index: 9, kind: input, shape index: {}]
  %s10 = inlined_call_operand.vmem [shape: f32[1,128], index: 10, kind: input, shape index: {}]
  %s11 = inlined_call_operand.vmem [shape: f32[2,128,128], index: 11, kind: output, shape index: {}]
  %s12 = sld [smem:[#allocation0]]
  $region108: #{convnext_v2_glu_like_encoder.2} parent=0
    _
  %s14 = ssub.s32 1, %s12
  %s15 = scalar_select 0, %s14, %s12
  loop: start=0, step=1, limit=10
  $region2: #{convnext_v2_glu_like_encoder.2} parent=0 // loop_pre_header
    _
  $region3: #{convnext_v2_glu_like_encoder.2} parent=0 // loop_header
    %s17 = sphi 0, %s21
    %p18 = scmp.ge.s32.totalorder %s17, 10
    %s24 = sphi 0, %s43
    %s25 = sphi 0, %s39
    %s26 = sphi 0, %s35
    %s27 = sphi 0, %s24
    %s28 = sphi 0, %s25
    %s29 = sphi 0, %s26
    %s30 = sphi 0, %s27
    %s31 = sphi 0, %s28
    %s32 = sphi 0, %s29
    %s44 = sphi 0, %s44
    %s46 = sphi 0, %s44
    %s47 = sphi 0, %s46
    %s61 = sphi 0, %s47
    %s65 = sphi 0, %s65
    %s67 = sphi 0, %s65
    %s68 = sphi 0, %s67
    %s82 = sphi 0, %s68
    %s86 = sphi 0, %s86
    %s88 = sphi 0, %s86
    %s89 = sphi 0, %s88
    %s103 = sphi 0, %s89
    %s107 = sphi 0, %s107
    %s109 = sphi 0, %s107
    %s110 = sphi 0, %s109
    %s124 = sphi 0, %s110
    %s128 = sphi 0, %s128
    %s130 = sphi 0, %s128
    %s131 = sphi 0, %s130
    %s145 = sphi 0, %s131
    %s149 = sphi 0, %s149
    %s151 = sphi 0, %s149
    %s152 = sphi 0, %s151
    %s166 = sphi 0, %s152
    %s170 = sphi 0, %s170
    %s172 = sphi 0, %s170
    %s173 = sphi 0, %s172
    %s187 = sphi 0, %s173
    %s191 = sphi 0, %s191
    %s193 = sphi 0, %s191
    %s194 = sphi 0, %s193
    %s208 = sphi 0, %s194
    %s212 = sphi 0, %s212
    %s214 = sphi 0, %s212
    %s215 = sphi 0, %s214
    %s229 = sphi 0, %s215
    %s233 = sphi 0, %s233
    %s235 = sphi 0, %s233
    %s236 = sphi 0, %s235
    %s250 = sphi 0, %s236
    %s260 = sphi 0, %s262
    %s263 = sphi 0, %s260
    %s264 = sphi 0, %s263
    %s280 = sphi 0, %s264
  $region4: #{convnext_v2_glu_like_encoder.2} parent=0 // loop_header_branch
    %20 = sbr.rel (%p18) target = $region8
  $region5: #{convnext_v2_glu_like_encoder.2} parent=0 // loop_body
    %s22 = ssub.s32 %s17, 1
    %s23 = ssub.s32 %s17, 2
    %s33 = sadd.s32 1, %s26
    %p34 = scmp.ge.s32.totalorder %s33, 2
    %s35 = scalar_select %p34, 0, %s33
    %s36 = sadd.s32 1, %s25
    %s37 = scalar_select %p34, %s36, %s25
    %p38 = scmp.ge.s32.totalorder %s37, 2
    %s39 = scalar_select %p38, 0, %s37
    %s40 = sadd.s32 1, %s24
    %s41 = scalar_select %p38, %s40, %s24
    %p42 = scmp.ge.s32.totalorder %s41, 2
    %s43 = scalar_select %p42, 0, %s41
    %s45 = sadd.s32 %s44, 1
    %p48 = scmp.eq.s32.totalorder %s17, 7
    %p49 = scmp.ne.s32.totalorder %s44, %s46
    %p50 = scmp.eq.s32.totalorder %s17, 0
    %p51 = por %p49, %p50
    %p52 = scmp.ne.s32.totalorder %s44, %s46
    %p53 = scmp.eq.s32.totalorder %s22, 7
    %p54 = por %p52, %p53
    %p55 = scmp.ne.s32.totalorder %s46, %s47
    %p56 = scmp.eq.s32.totalorder %s22, 0
    %p57 = por %p55, %p56
    %p58 = scmp.ne.s32.totalorder %s46, %s47
    %p59 = scmp.eq.s32.totalorder %s23, 7
    %p60 = por %p58, %p59
    %p62 = scmp.ne.s32.totalorder %s47, %s61
    %p63 = scmp.eq.s32.totalorder %s23, 0
    %p64 = por %p62, %p63
    %s66 = sadd.s32 %s65, 1
    %p69 = scmp.eq.s32.totalorder %s17, 7
    %p70 = scmp.ne.s32.totalorder %s65, %s67
    %p71 = scmp.eq.s32.totalorder %s17, 0
    %p72 = por %p70, %p71
    %p73 = scmp.ne.s32.totalorder %s65, %s67
    %p74 = scmp.eq.s32.totalorder %s22, 7
    %p75 = por %p73, %p74
    %p76 = scmp.ne.s32.totalorder %s67, %s68
    %p77 = scmp.eq.s32.totalorder %s22, 0
    %p78 = por %p76, %p77
    %p79 = scmp.ne.s32.totalorder %s67, %s68
    %p80 = scmp.eq.s32.totalorder %s23, 7
    %p81 = por %p79, %p80
    %p83 = scmp.ne.s32.totalorder %s68, %s82
    %p84 = scmp.eq.s32.totalorder %s23, 0
    %p85 = por %p83, %p84
    %s87 = sadd.s32 %s86, 1
    %p90 = scmp.eq.s32.totalorder %s17, 7
    %p91 = scmp.ne.s32.totalorder %s86, %s88
    %p92 = scmp.eq.s32.totalorder %s17, 0
    %p93 = por %p91, %p92
    %p94 = scmp.ne.s32.totalorder %s86, %s88
    %p95 = scmp.eq.s32.totalorder %s22, 7
    %p96 = por %p94, %p95
    %p97 = scmp.ne.s32.totalorder %s88, %s89
    %p98 = scmp.eq.s32.totalorder %s22, 0
    %p99 = por %p97, %p98
    %p100 = scmp.ne.s32.totalorder %s88, %s89
    %p101 = scmp.eq.s32.totalorder %s23, 7
    %p102 = por %p100, %p101
    %p104 = scmp.ne.s32.totalorder %s89, %s103
    %p105 = scmp.eq.s32.totalorder %s23, 0
    %p106 = por %p104, %p105
    %s108 = sadd.s32 %s107, 1
    %p111 = scmp.eq.s32.totalorder %s17, 7
    %p112 = scmp.ne.s32.totalorder %s107, %s109
    %p113 = scmp.eq.s32.totalorder %s17, 0
    %p114 = por %p112, %p113
    %p115 = scmp.ne.s32.totalorder %s107, %s109
    %p116 = scmp.eq.s32.totalorder %s22, 7
    %p117 = por %p115, %p116
    %p118 = scmp.ne.s32.totalorder %s109, %s110
    %p119 = scmp.eq.s32.totalorder %s22, 0
    %p120 = por %p118, %p119
    %p121 = scmp.ne.s32.totalorder %s109, %s110
    %p122 = scmp.eq.s32.totalorder %s23, 7
    %p123 = por %p121, %p122
    %p125 = scmp.ne.s32.totalorder %s110, %s124
    %p126 = scmp.eq.s32.totalorder %s23, 0
    %p127 = por %p125, %p126
    %s129 = sadd.s32 %s128, 1
    %p132 = scmp.eq.s32.totalorder %s17, 7
    %p133 = scmp.ne.s32.totalorder %s128, %s130
    %p134 = scmp.eq.s32.totalorder %s17, 0
    %p135 = por %p133, %p134
    %p136 = scmp.ne.s32.totalorder %s128, %s130
    %p137 = scmp.eq.s32.totalorder %s22, 7
    %p138 = por %p136, %p137
    %p139 = scmp.ne.s32.totalorder %s130, %s131
    %p140 = scmp.eq.s32.totalorder %s22, 0
    %p141 = por %p139, %p140
    %p142 = scmp.ne.s32.totalorder %s130, %s131
    %p143 = scmp.eq.s32.totalorder %s23, 7
    %p144 = por %p142, %p143
    %p146 = scmp.ne.s32.totalorder %s131, %s145
    %p147 = scmp.eq.s32.totalorder %s23, 0
    %p148 = por %p146, %p147
    %s150 = sadd.s32 %s149, 1
    %p153 = scmp.eq.s32.totalorder %s17, 7
    %p154 = scmp.ne.s32.totalorder %s149, %s151
    %p155 = scmp.eq.s32.totalorder %s17, 0
    %p156 = por %p154, %p155
    %p157 = scmp.ne.s32.totalorder %s149, %s151
    %p158 = scmp.eq.s32.totalorder %s22, 7
    %p159 = por %p157, %p158
    %p160 = scmp.ne.s32.totalorder %s151, %s152
    %p161 = scmp.eq.s32.totalorder %s22, 0
    %p162 = por %p160, %p161
    %p163 = scmp.ne.s32.totalorder %s151, %s152
    %p164 = scmp.eq.s32.totalorder %s23, 7
    %p165 = por %p163, %p164
    %p167 = scmp.ne.s32.totalorder %s152, %s166
    %p168 = scmp.eq.s32.totalorder %s23, 0
    %p169 = por %p167, %p168
    %s171 = sadd.s32 %s170, 1
    %p174 = scmp.eq.s32.totalorder %s17, 7
    %p175 = scmp.ne.s32.totalorder %s170, %s172
    %p176 = scmp.eq.s32.totalorder %s17, 0
    %p177 = por %p175, %p176
    %p178 = scmp.ne.s32.totalorder %s170, %s172
    %p179 = scmp.eq.s32.totalorder %s22, 7
    %p180 = por %p178, %p179
    %p181 = scmp.ne.s32.totalorder %s172, %s173
    %p182 = scmp.eq.s32.totalorder %s22, 0
    %p183 = por %p181, %p182
    %p184 = scmp.ne.s32.totalorder %s172, %s173
    %p185 = scmp.eq.s32.totalorder %s23, 7
    %p186 = por %p184, %p185
    %p188 = scmp.ne.s32.totalorder %s173, %s187
    %p189 = scmp.eq.s32.totalorder %s23, 0
    %p190 = por %p188, %p189
    %s192 = sadd.s32 %s191, 1
    %p195 = scmp.eq.s32.totalorder %s17, 7
    %p196 = scmp.ne.s32.totalorder %s191, %s193
    %p197 = scmp.eq.s32.totalorder %s17, 0
    %p198 = por %p196, %p197
    %p199 = scmp.ne.s32.totalorder %s191, %s193
    %p200 = scmp.eq.s32.totalorder %s22, 7
    %p201 = por %p199, %p200
    %p202 = scmp.ne.s32.totalorder %s193, %s194
    %p203 = scmp.eq.s32.totalorder %s22, 0
    %p204 = por %p202, %p203
    %p205 = scmp.ne.s32.totalorder %s193, %s194
    %p206 = scmp.eq.s32.totalorder %s23, 7
    %p207 = por %p205, %p206
    %p209 = scmp.ne.s32.totalorder %s194, %s208
    %p210 = scmp.eq.s32.totalorder %s23, 0
    %p211 = por %p209, %p210
    %s213 = sadd.s32 %s212, 1
    %p216 = scmp.eq.s32.totalorder %s17, 7
    %p217 = scmp.ne.s32.totalorder %s212, %s214
    %p218 = scmp.eq.s32.totalorder %s17, 0
    %p219 = por %p217, %p218
    %p220 = scmp.ne.s32.totalorder %s212, %s214
    %p221 = scmp.eq.s32.totalorder %s22, 7
    %p222 = por %p220, %p221
    %p223 = scmp.ne.s32.totalorder %s214, %s215
    %p224 = scmp.eq.s32.totalorder %s22, 0
    %p225 = por %p223, %p224
    %p226 = scmp.ne.s32.totalorder %s214, %s215
    %p227 = scmp.eq.s32.totalorder %s23, 7
    %p228 = por %p226, %p227
    %p230 = scmp.ne.s32.totalorder %s215, %s229
    %p231 = scmp.eq.s32.totalorder %s23, 0
    %p232 = por %p230, %p231
    %s234 = sadd.s32 %s233, 1
    %p237 = scmp.eq.s32.totalorder %s17, 7
    %p238 = scmp.ne.s32.totalorder %s233, %s235
    %p239 = scmp.eq.s32.totalorder %s17, 0
    %p240 = por %p238, %p239
    %p241 = scmp.ne.s32.totalorder %s233, %s235
    %p242 = scmp.eq.s32.totalorder %s22, 7
    %p243 = por %p241, %p242
    %p244 = scmp.ne.s32.totalorder %s235, %s236
    %p245 = scmp.eq.s32.totalorder %s22, 0
    %p246 = por %p244, %p245
    %p247 = scmp.ne.s32.totalorder %s235, %s236
    %p248 = scmp.eq.s32.totalorder %s23, 7
    %p249 = por %p247, %p248
    %p251 = scmp.ne.s32.totalorder %s236, %s250
    %p252 = scmp.eq.s32.totalorder %s23, 0
    %p253 = por %p251, %p252
    %s254 = smul.u32 %s25, %s26
    %s255 = smul.u32 %s39, %s35
    %s256 = ssub.s32 %s24, %s43
    %s257 = ssub.s32 %s254, %s255
    %s258 = sor.u32 %s256, %s257
    %p259 = scmp.eq.s32.totalorder %s258, 0
    %s261 = sadd.s32 %s260, 1
    %s262 = scalar_select %p259, %s260, %s261
    %p265 = pneg %p259
    %p266 = scmp.eq.s32.totalorder %s17, 7
    %p267 = por %p265, %p266
    %p268 = scmp.ne.s32.totalorder %s260, %s263
    %p269 = scmp.eq.s32.totalorder %s17, 0
    %p270 = por %p268, %p269
    %p271 = scmp.ne.s32.totalorder %s260, %s263
    %p272 = scmp.eq.s32.totalorder %s22, 7
    %p273 = por %p271, %p272
    %p274 = scmp.ne.s32.totalorder %s263, %s264
    %p275 = scmp.eq.s32.totalorder %s22, 0
    %p276 = por %p274, %p275
    %p277 = scmp.ne.s32.totalorder %s263, %s264
    %p278 = scmp.eq.s32.totalorder %s23, 7
    %p279 = por %p277, %p278
    %p281 = scmp.ne.s32.totalorder %s264, %s280
    %p282 = scmp.eq.s32.totalorder %s23, 0
    %p283 = por %p281, %p282
    %p284 = scmp.le.s32.totalorder 1, %s17
    %p285 = scmp.lt.s32.totalorder %s17, 9
    %p286 = pnand %p284, %p285
    %p287 = pneg %p286
    // Predicated region
    $region9: #{convnext_v2_glu_like_encoder.2} parent=5 // pred_check
      _
    $region10: #{convnext_v2_glu_like_encoder.2} parent=5 // pred_check_branch
      %289 = sbr.rel (%p286) target = $region12
    $region11: #{convnext_v2_glu_like_encoder.2} parent=5 // pred_region
      %s290 = ssub.s32 %s17, 1
      // Predicated region
      $region13: #{convnext_v2_glu_like_encoder.2} parent=11 // pred_check
        %p291 = pneg %p57
      $region14: #{convnext_v2_glu_like_encoder.2} parent=11 // pred_check_branch
        %293 = sbr.rel (%p291) target = $region16
      $region15: #{convnext_v2_glu_like_encoder.2} parent=11 // pred_region
        _
      $region16: #{convnext_v2_glu_like_encoder.2} parent=11 // pred_fallthru
        _
      // Predicated region
      $region17: #{convnext_v2_glu_like_encoder.2} parent=11 // pred_check
        %p294 = pneg %p78
      $region18: #{convnext_v2_glu_like_encoder.2} parent=11 // pred_check_branch
        %296 = sbr.rel (%p294) target = $region20
      $region19: #{convnext_v2_glu_like_encoder.2} parent=11 // pred_region
        _
      $region20: #{convnext_v2_glu_like_encoder.2} parent=11 // pred_fallthru
        _
      // Predicated region
      $region21: #{convnext_v2_glu_like_encoder.2} parent=11 // pred_check
        %p297 = pneg %p99
      $region22: #{convnext_v2_glu_like_encoder.2} parent=11 // pred_check_branch
        %299 = sbr.rel (%p297) target = $region24
      $region23: #{convnext_v2_glu_like_encoder.2} parent=11 // pred_region
        _
      $region24: #{convnext_v2_glu_like_encoder.2} parent=11 // pred_fallthru
        _
      // Predicated region
      $region25: #{convnext_v2_glu_like_encoder.2} parent=11 // pred_check
        %p300 = pneg %p120
      $region26: #{convnext_v2_glu_like_encoder.2} parent=11 // pred_check_branch
        %302 = sbr.rel (%p300) target = $region28
      $region27: #{convnext_v2_glu_like_encoder.2} parent=11 // pred_region
        _
      $region28: #{convnext_v2_glu_like_encoder.2} parent=11 // pred_fallthru
        _
      // Predicated region
      $region29: #{convnext_v2_glu_like_encoder.2} parent=11 // pred_check
        %p303 = pneg %p141
      $region30: #{convnext_v2_glu_like_encoder.2} parent=11 // pred_check_branch
        %305 = sbr.rel (%p303) target = $region32
      $region31: #{convnext_v2_glu_like_encoder.2} parent=11 // pred_region
        _
      $region32: #{convnext_v2_glu_like_encoder.2} parent=11 // pred_fallthru
        _
      // Predicated region
      $region33: #{convnext_v2_glu_like_encoder.2} parent=11 // pred_check
        %p306 = pneg %p162
      $region34: #{convnext_v2_glu_like_encoder.2} parent=11 // pred_check_branch
        %308 = sbr.rel (%p306) target = $region36
      $region35: #{convnext_v2_glu_like_encoder.2} parent=11 // pred_region
        _
      $region36: #{convnext_v2_glu_like_encoder.2} parent=11 // pred_fallthru
        _
      // Predicated region
      $region37: #{convnext_v2_glu_like_encoder.2} parent=11 // pred_check
        %p309 = pneg %p183
      $region38: #{convnext_v2_glu_like_encoder.2} parent=11 // pred_check_branch
        %311 = sbr.rel (%p309) target = $region40
      $region39: #{convnext_v2_glu_like_encoder.2} parent=11 // pred_region
        _
      $region40: #{convnext_v2_glu_like_encoder.2} parent=11 // pred_fallthru
        _
      // Predicated region
      $region41: #{convnext_v2_glu_like_encoder.2} parent=11 // pred_check
        %p312 = pneg %p204
      $region42: #{convnext_v2_glu_like_encoder.2} parent=11 // pred_check_branch
        %314 = sbr.rel (%p312) target = $region44
      $region43: #{convnext_v2_glu_like_encoder.2} parent=11 // pred_region
        _
      $region44: #{convnext_v2_glu_like_encoder.2} parent=11 // pred_fallthru
        _
      // Predicated region
      $region45: #{convnext_v2_glu_like_encoder.2} parent=11 // pred_check
        %p315 = pneg %p225
      $region46: #{convnext_v2_glu_like_encoder.2} parent=11 // pred_check_branch
        %317 = sbr.rel (%p315) target = $region48
      $region47: #{convnext_v2_glu_like_encoder.2} parent=11 // pred_region
        _
      $region48: #{convnext_v2_glu_like_encoder.2} parent=11 // pred_fallthru
        _
      // Predicated region
      $region49: #{convnext_v2_glu_like_encoder.2} parent=11 // pred_check
        %p318 = pneg %p246
      $region50: #{convnext_v2_glu_like_encoder.2} parent=11 // pred_check_branch
        %320 = sbr.rel (%p318) target = $region52
      $region51: #{convnext_v2_glu_like_encoder.2} parent=11 // pred_region
        _
      $region52: #{convnext_v2_glu_like_encoder.2} parent=11 // pred_fallthru
        _
    $region12: #{convnext_v2_glu_like_encoder.2} parent=5 // pred_fallthru
      _
    %p321 = scmp.lt.s32.totalorder %s17, 8
    // Predicated region
    $region53: #{convnext_v2_glu_like_encoder.2} parent=5 // pred_check
      %p322 = pneg %p321
    $region54: #{convnext_v2_glu_like_encoder.2} parent=5 // pred_check_branch
      %324 = sbr.rel (%p322) target = $region56
    $region55: #{convnext_v2_glu_like_encoder.2} parent=5 // pred_region
      _
    $region56: #{convnext_v2_glu_like_encoder.2} parent=5 // pred_fallthru
      _
    %p325 = scmp.le.s32.totalorder 1, %s17
    %p326 = scmp.lt.s32.totalorder %s17, 9
    %p327 = pnand %p325, %p326
    %p328 = pneg %p327
    // Predicated region
    $region57: #{convnext_v2_glu_like_encoder.2} parent=5 // pred_check
      _
    $region58: #{convnext_v2_glu_like_encoder.2} parent=5 // pred_check_branch
      %330 = sbr.rel (%p327) target = $region60
    $region59: #{convnext_v2_glu_like_encoder.2} parent=5 // pred_region
      %s331 = ssub.s32 %s17, 1
      %p332 = pneg %p57
      %p333 = pneg %p54
      %p334 = pneg %p78
      %p335 = pneg %p75
      %p336 = pneg %p99
      %p337 = pneg %p96
      %p338 = pneg %p120
      %p339 = pneg %p117
      %p340 = pneg %p141
      %p341 = pneg %p138
      %p342 = pneg %p162
      %p343 = pneg %p159
      %p344 = pneg %p183
      %p345 = pneg %p180
      %p346 = pneg %p204
      %p347 = pneg %p201
      %p348 = pneg %p225
      %p349 = pneg %p222
      %p350 = pneg %p246
      %p351 = pneg %p243
      %p352 = pneg %p276
      %p353 = pneg %p273
      %s354 = smul.u32 %s28, %s29
      %s355 = smul.u32 8, %s354
      %p356 = scmp.lt.s32.totalorder %s27, 1
      %s357 = scalar_select %p356, %s27, 1
      %p358 = scmp.lt.s32.totalorder %s355, 15
      %s359 = scalar_select %p358, %s355, 15
      %s360 = smul.addr %s357, 16
      %s361 = sadd.s32 %s359, %s360
      %s362 = smul.addr %s361, 8
      %s363 = scalar_lea.vmem %s11, %s362
      %s364 = smul.u32 %s28, %s29
      %s365 = smul.u32 8, %s364
      %p366 = scmp.lt.s32.totalorder %s27, 1
      %s367 = scalar_select %p366, %s27, 1
      %p368 = scmp.lt.s32.totalorder %s365, 15
      %s369 = scalar_select %p368, %s365, 15
      %s370 = smul.addr %s367, 16
      %s371 = sadd.s32 %s369, %s370
      %s372 = smul.addr %s371, 8
      %s373 = scalar_lea.vmem %s11, %s372
      %s374 = smul.u32 %s28, %s29
      %s375 = smul.u32 8, %s374
      %p376 = scmp.eq.s32.totalorder %s28, 0
      %p377 = scmp.eq.s32.totalorder %s29, 0
      %p378 = pnand %p376, %p377
      %p379 = pneg %p378
      // Predicated region
      $region61: #{convnext_v2_glu_like_encoder.2} parent=59 // pred_check
        _
      $region62: #{convnext_v2_glu_like_encoder.2} parent=59 // pred_check_branch
        %381 = sbr.rel (%p378) target = $region64
      $region63: #{convnext_v2_glu_like_encoder.2} parent=59 // pred_region
        %382 = vst [vmem:[#allocation2] sm:$0xff] 0.0
        %383 = vst [vmem:[#allocation2 + $0x88] sm:$0xff] 0.0
        %s384 = smul.u32 %s27, 128
        %s385 = scalar_lea.vmem %s0, %s384
        %s386 = scalar_lea.vmem [#allocation2], 8
        // Predicated region
        $region65: #{convnext_v2_glu_like_encoder.2} parent=63 // pred_check
          _
        $region66: #{convnext_v2_glu_like_encoder.2} parent=63 // pred_check_branch
          %388 = sbr.rel (0) target = $region68
        $region67: #{convnext_v2_glu_like_encoder.2} parent=63 // pred_region
          loop: start=0, step=1, limit=1
          $region69: #{convnext_v2_glu_like_encoder.2} parent=67 // loop_pre_header
            _
          $region70: #{convnext_v2_glu_like_encoder.2} parent=67 // loop_header
            %s390 = sphi 0, %s394
            %p391 = scmp.ge.s32.totalorder %s390, 1
            %s395 = sphi %s385, %s385
            %s396 = sphi %s386, %s386
          $region71: #{convnext_v2_glu_like_encoder.2} parent=67 // loop_header_branch
            %393 = sbr.rel (%p391) target = $region75
          $region72: #{convnext_v2_glu_like_encoder.2} parent=67 // loop_body
            %v397 = vld [vmem:[%s395] sm:$0xff]
            %398 = vst [vmem:[%s396] sm:$0xff] %v397
            %v399 = vld [vmem:[%s395 + $0x8] sm:$0xff]
            %400 = vst [vmem:[%s396 + $0x8] sm:$0xff] %v399
            %v401 = vld [vmem:[%s395 + $0x10] sm:$0xff]
            %402 = vst [vmem:[%s396 + $0x10] sm:$0xff] %v401
            %v403 = vld [vmem:[%s395 + $0x18] sm:$0xff]
            %404 = vst [vmem:[%s396 + $0x18] sm:$0xff] %v403
            %v405 = vld [vmem:[%s395 + $0x20] sm:$0xff]
            %406 = vst [vmem:[%s396 + $0x20] sm:$0xff] %v405
            %v407 = vld [vmem:[%s395 + $0x28] sm:$0xff]
            %408 = vst [vmem:[%s396 + $0x28] sm:$0xff] %v407
            %v409 = vld [vmem:[%s395 + $0x30] sm:$0xff]
            %410 = vst [vmem:[%s396 + $0x30] sm:$0xff] %v409
            %v411 = vld [vmem:[%s395 + $0x38] sm:$0xff]
            %412 = vst [vmem:[%s396 + $0x38] sm:$0xff] %v411
            %v413 = vld [vmem:[%s395 + $0x40] sm:$0xff]
            %414 = vst [vmem:[%s396 + $0x40] sm:$0xff] %v413
            %v415 = vld [vmem:[%s395 + $0x48] sm:$0xff]
            %416 = vst [vmem:[%s396 + $0x48] sm:$0xff] %v415
            %v417 = vld [vmem:[%s395 + $0x50] sm:$0xff]
            %418 = vst [vmem:[%s396 + $0x50] sm:$0xff] %v417
            %v419 = vld [vmem:[%s395 + $0x58] sm:$0xff]
            %420 = vst [vmem:[%s396 + $0x58] sm:$0xff] %v419
            %v421 = vld [vmem:[%s395 + $0x60] sm:$0xff]
            %422 = vst [vmem:[%s396 + $0x60] sm:$0xff] %v421
            %v423 = vld [vmem:[%s395 + $0x68] sm:$0xff]
            %424 = vst [vmem:[%s396 + $0x68] sm:$0xff] %v423
            %v425 = vld [vmem:[%s395 + $0x70] sm:$0xff]
            %426 = vst [vmem:[%s396 + $0x70] sm:$0xff] %v425
            %v427 = vld [vmem:[%s395 + $0x78] sm:$0xff]
            %428 = vst [vmem:[%s396 + $0x78] sm:$0xff] %v427
          $region73: #{convnext_v2_glu_like_encoder.2} parent=67 // loop_footer
            %s394 = sadd.s32 1, %s390
          $region74: #{convnext_v2_glu_like_encoder.2} parent=67 // loop_footer_branch
            %389 = sbr.rel target = $region70
          $region75: #{convnext_v2_glu_like_encoder.2} parent=67 // loop_exit
            _
        $region68: #{convnext_v2_glu_like_encoder.2} parent=63 // pred_fallthru
          _
        // Predicated region
        $region76: #{convnext_v2_glu_like_encoder.2} parent=63 // pred_check
          _
        $region77: #{convnext_v2_glu_like_encoder.2} parent=63 // pred_check_branch
          %430 = sbr.rel target = $region79
        $region78: #{convnext_v2_glu_like_encoder.2} parent=63 // pred_region
          _
        $region79: #{convnext_v2_glu_like_encoder.2} parent=63 // pred_fallthru
          _
        // Predicated region
        $region80: #{convnext_v2_glu_like_encoder.2} parent=63 // pred_check
          _
        $region81: #{convnext_v2_glu_like_encoder.2} parent=63 // pred_check_branch
          %433 = sbr.rel (0) target = $region83
        $region82: #{convnext_v2_glu_like_encoder.2} parent=63 // pred_region
          %434 = vsyncadd [#allocation6], 2048
        $region83: #{convnext_v2_glu_like_encoder.2} parent=63 // pred_fallthru
          _
        %s435 = smul.u32 128, 1
        %s436 = sshll.u32 %s435, 4
        %437 = dma.done [#allocation6], %s436
        %v438 = vlaneseq
        %vm439 = vcmp.ge.s32.totalorder %v438, 0
        %vm440 = vcmp.lt.s32.totalorder %v438, 512
        %vm441 = vmand %vm439, %vm440
        %442 = vst.msk [vmem:[#allocation4] sm:$0xf] %vm441, 0.0
      $region64: #{convnext_v2_glu_like_encoder.2} parent=59 // pred_fallthru
        _
      %s443 = smul.u32 %s29, 64
      // Predicated region
      $region84: #{convnext_v2_glu_like_encoder.2} parent=59 // pred_check
        %p444 = pneg %p376
      $region85: #{convnext_v2_glu_like_encoder.2} parent=59 // pred_check_branch
        %446 = sbr.rel (%p444) target = $region87
      $region86: #{convnext_v2_glu_like_encoder.2} parent=59 // pred_region
        %s447 = scalar_lea.vmem [#allocation2], %s443
        %v448 = vld [vmem:[%s447] sm:$0xff]
        %v449 = vld [vmem:[%s447 + $0x8] sm:$0xff]
        %v450 = vld [vmem:[%s447 + $0x10] sm:$0xff]
        %v451 = vld [vmem:[%s447 + $0x18] sm:$0xff]
        %v452 = vld [vmem:[%s447 + $0x20] sm:$0xff]
        %v453 = vld [vmem:[%s447 + $0x28] sm:$0xff]
        %v454 = vld [vmem:[%s447 + $0x30] sm:$0xff]
        %v455 = vld [vmem:[%s447 + $0x38] sm:$0xff]
        %v456 = vld [vmem:[%s447 + $0x40] sm:$0xff]
        %v457 = vld [vmem:[%s447 + $0x48] sm:$0xff]
        %v458 = vld [vmem:[%s1] sm:$0x1f]
        %v459 = vrot.slane %v448, 6
        %v460 = vrot.slane %v449, 6
        %v461 = vrot.slane %v450, 6
        %v462 = vrot.slane %v451, 6
        %v463 = vrot.slane %v452, 6
        %v464 = vrot.slane %v453, 6
        %v465 = vrot.slane %v454, 6
        %v466 = vrot.slane %v455, 6
        %v467 = vrot.slane %v456, 6
        %v468 = vlaneseq
        %v469 = vshrl.u32 %v468, 7
        %vm470 = vcmp.lt.s32.totalorder %v469, 2
        %v471 = vsel %vm470, %v466, %v467
        %v472 = vsel %vm470, %v465, %v466
        %v473 = vsel %vm470, %v464, %v465
        %v474 = vsel %vm470, %v463, %v464
        %v475 = vsel %vm470, %v462, %v463
        %v476 = vsel %vm470, %v461, %v462
        %v477 = vsel %vm470, %v460, %v461
        %v478 = vsel %vm470, %v459, %v460
        %v479 = vperm.slane %v458, 0
        %v480 = vmul.f32 %v478, %v479
        %v481 = vmul.f32 %v477, %v479
        %v482 = vmul.f32 %v476, %v479
        %v483 = vmul.f32 %v475, %v479
        %v484 = vmul.f32 %v474, %v479
        %v485 = vmul.f32 %v473, %v479
        %v486 = vmul.f32 %v472, %v479
        %v487 = vmul.f32 %v471, %v479
        %v488 = vld [vmem:[%s2] sm:$0x1]
        %v490 = vperm.slane %v488, 0
        %v492 = vadd.f32 %v480, %v490
        %v493 = vadd.f32 %v481, %v490
        %v494 = vadd.f32 %v482, %v490
        %v495 = vadd.f32 %v483, %v490
        %v496 = vadd.f32 %v484, %v490
        %v497 = vadd.f32 %v485, %v490
        %v498 = vadd.f32 %v486, %v490
        %v499 = vadd.f32 %v487, %v490
        %v500 = vrot.slane %v448, 7
        %v501 = vrot.slane %v449, 7
        %v502 = vrot.slane %v450, 7
        %v503 = vrot.slane %v451, 7
        %v504 = vrot.slane %v452, 7
        %v505 = vrot.slane %v453, 7
        %v506 = vrot.slane %v454, 7
        %v507 = vrot.slane %v455, 7
        %v508 = vrot.slane %v456, 7
        %vm509 = vcmp.lt.s32.totalorder %v469, 1
        %v510 = vsel %vm509, %v507, %v508
        %v511 = vsel %vm509, %v506, %v507
        %v512 = vsel %vm509, %v505, %v506
        %v513 = vsel %vm509, %v504, %v505
        %v514 = vsel %vm509, %v503, %v504
        %v515 = vsel %vm509, %v502, %v503
        %v516 = vsel %vm509, %v501, %v502
        %v517 = vsel %vm509, %v500, %v501
        %v518 = vperm.slane %v458, 1
        %v519 = vmul.f32 %v517, %v518
        %v520 = vmul.f32 %v516, %v518
        %v521 = vmul.f32 %v515, %v518
        %v522 = vmul.f32 %v514, %v518
        %v523 = vmul.f32 %v513, %v518
        %v524 = vmul.f32 %v512, %v518
        %v525 = vmul.f32 %v511, %v518
        %v526 = vmul.f32 %v510, %v518
        %v527 = vadd.f32 %v492, %v519
        %v528 = vadd.f32 %v493, %v520
        %v529 = vadd.f32 %v494, %v521
        %v530 = vadd.f32 %v495, %v522
        %v531 = vadd.f32 %v496, %v523
        %v532 = vadd.f32 %v497, %v524
        %v533 = vadd.f32 %v498, %v525
        %v534 = vadd.f32 %v499, %v526
        %v535 = vperm.slane %v458, 2
        %v536 = vmul.f32 %v449, %v535
        %v537 = vmul.f32 %v450, %v535
        %v538 = vmul.f32 %v451, %v535
        %v539 = vmul.f32 %v452, %v535
        %v540 = vmul.f32 %v453, %v535
        %v541 = vmul.f32 %v454, %v535
        %v542 = vmul.f32 %v455, %v535
        %v543 = vmul.f32 %v456, %v535
        %v544 = vadd.f32 %v527, %v536
        %v545 = vadd.f32 %v528, %v537
        %v546 = vadd.f32 %v529, %v538
        %v547 = vadd.f32 %v530, %v539
        %v548 = vadd.f32 %v531, %v540
        %v549 = vadd.f32 %v532, %v541
        %v550 = vadd.f32 %v533, %v542
        %v551 = vadd.f32 %v534, %v543
        %v552 = vrot.slane %v449, 1
        %v553 = vrot.slane %v450, 1
        %v554 = vrot.slane %v451, 1
        %v555 = vrot.slane %v452, 1
        %v556 = vrot.slane %v453, 1
        %v557 = vrot.slane %v454, 1
        %v558 = vrot.slane %v455, 1
        %v559 = vrot.slane %v456, 1
        %v560 = vrot.slane %v457, 1
        %vm561 = vcmp.lt.s32.totalorder %v469, 7
        %v562 = vsel %vm561, %v559, %v560
        %v563 = vsel %vm561, %v558, %v559
        %v564 = vsel %vm561, %v557, %v558
        %v565 = vsel %vm561, %v556, %v557
        %v566 = vsel %vm561, %v555, %v556
        %v567 = vsel %vm561, %v554, %v555
        %v568 = vsel %vm561, %v553, %v554
        %v569 = vsel %vm561, %v552, %v553
        %v570 = vperm.slane %v458, 3
        %v571 = vmul.f32 %v569, %v570
        %v572 = vmul.f32 %v568, %v570
        %v573 = vmul.f32 %v567, %v570
        %v574 = vmul.f32 %v566, %v570
        %v575 = vmul.f32 %v565, %v570
        %v576 = vmul.f32 %v564, %v570
        %v577 = vmul.f32 %v563, %v570
        %v578 = vmul.f32 %v562, %v570
        %v579 = vadd.f32 %v544, %v571
        %v580 = vadd.f32 %v545, %v572
        %v581 = vadd.f32 %v546, %v573
        %v582 = vadd.f32 %v547, %v574
        %v583 = vadd.f32 %v548, %v575
        %v584 = vadd.f32 %v549, %v576
        %v585 = vadd.f32 %v550, %v577
        %v586 = vadd.f32 %v551, %v578
        %v587 = vrot.slane %v449, 2
        %v588 = vrot.slane %v450, 2
        %v589 = vrot.slane %v451, 2
        %v590 = vrot.slane %v452, 2
        %v591 = vrot.slane %v453, 2
        %v592 = vrot.slane %v454, 2
        %v593 = vrot.slane %v455, 2
        %v594 = vrot.slane %v456, 2
        %v595 = vrot.slane %v457, 2
        %vm596 = vcmp.lt.s32.totalorder %v469, 6
        %v597 = vsel %vm596, %v594, %v595
        %v598 = vsel %vm596, %v593, %v594
        %v599 = vsel %vm596, %v592, %v593
        %v600 = vsel %vm596, %v591, %v592
        %v601 = vsel %vm596, %v590, %v591
        %v602 = vsel %vm596, %v589, %v590
        %v603 = vsel %vm596, %v588, %v589
        %v604 = vsel %vm596, %v587, %v588
        %v605 = vperm.slane %v458, 4
        %v606 = vmul.f32 %v604, %v605
        %v607 = vmul.f32 %v603, %v605
        %v608 = vmul.f32 %v602, %v605
        %v609 = vmul.f32 %v601, %v605
        %v610 = vmul.f32 %v600, %v605
        %v611 = vmul.f32 %v599, %v605
        %v612 = vmul.f32 %v598, %v605
        %v613 = vmul.f32 %v597, %v605
        %v614 = vadd.f32 %v579, %v606
        %v615 = vadd.f32 %v580, %v607
        %v616 = vadd.f32 %v581, %v608
        %v617 = vadd.f32 %v582, %v609
        %v618 = vadd.f32 %v583, %v610
        %v619 = vadd.f32 %v584, %v611
        %v620 = vadd.f32 %v585, %v612
        %v621 = vadd.f32 %v586, %v613
        %622 = vadd.xlane.f32.xlu0 %v614
        %v623 = vpop.xlane.xlu0 %622
        %624 = vadd.xlane.f32.xlu0 %v615
        %v625 = vpop.xlane.xlu0 %624
        %626 = vadd.xlane.f32.xlu0 %v616
        %v627 = vpop.xlane.xlu0 %626
        %628 = vadd.xlane.f32.xlu0 %v617
        %v629 = vpop.xlane.xlu0 %628
        %630 = vadd.xlane.f32.xlu0 %v618
        %v631 = vpop.xlane.xlu0 %630
        %632 = vadd.xlane.f32.xlu0 %v619
        %v633 = vpop.xlane.xlu0 %632
        %634 = vadd.xlane.f32.xlu0 %v620
        %v635 = vpop.xlane.xlu0 %634
        %636 = vadd.xlane.f32.xlu0 %v621
        %v637 = vpop.xlane.xlu0 %636
        %v638 = vrcp.pop 128.0
        %v639 = vmul.f32 128.0, %v638
        %v640 = vsub.f32 1.0, %v639
        %v641 = vmul.f32 %v638, %v640
        %v642 = vadd.f32 %v638, %v641
        %vm643 = vweird.f32 %v638
        %v644 = vsel %vm643, %v638, %v642
        %v645 = vmul.f32 %v623, %v644
        %v646 = vmul.f32 %v625, %v644
        %v647 = vmul.f32 %v627, %v644
        %v648 = vmul.f32 %v629, %v644
        %v649 = vmul.f32 %v631, %v644
        %v650 = vmul.f32 %v633, %v644
        %v651 = vmul.f32 %v635, %v644
        %v652 = vmul.f32 %v637, %v644
        %v653 = vsub.f32 %v614, %v645
        %v654 = vsub.f32 %v615, %v646
        %v655 = vsub.f32 %v616, %v647
        %v656 = vsub.f32 %v617, %v648
        %v657 = vsub.f32 %v618, %v649
        %v658 = vsub.f32 %v619, %v650
        %v659 = vsub.f32 %v620, %v651
        %v660 = vsub.f32 %v621, %v652
        %v661 = vmul.f32 %v653, %v653
        %v662 = vmul.f32 %v654, %v654
        %v663 = vmul.f32 %v655, %v655
        %v664 = vmul.f32 %v656, %v656
        %v665 = vmul.f32 %v657, %v657
        %v666 = vmul.f32 %v658, %v658
        %v667 = vmul.f32 %v659, %v659
        %v668 = vmul.f32 %v660, %v660
        %669 = vadd.xlane.f32.xlu0 %v661
        %v670 = vpop.xlane.xlu0 %669
        %671 = vadd.xlane.f32.xlu0 %v662
        %v672 = vpop.xlane.xlu0 %671
        %673 = vadd.xlane.f32.xlu0 %v663
        %v674 = vpop.xlane.xlu0 %673
        %675 = vadd.xlane.f32.xlu0 %v664
        %v676 = vpop.xlane.xlu0 %675
        %677 = vadd.xlane.f32.xlu0 %v665
        %v678 = vpop.xlane.xlu0 %677
        %679 = vadd.xlane.f32.xlu0 %v666
        %v680 = vpop.xlane.xlu0 %679
        %681 = vadd.xlane.f32.xlu0 %v667
        %v682 = vpop.xlane.xlu0 %681
        %683 = vadd.xlane.f32.xlu0 %v668
        %v684 = vpop.xlane.xlu0 %683
        %v685 = vmul.f32 %v670, %v644
        %v686 = vmul.f32 %v672, %v644
        %v687 = vmul.f32 %v674, %v644
        %v688 = vmul.f32 %v676, %v644
        %v689 = vmul.f32 %v678, %v644
        %v690 = vmul.f32 %v680, %v644
        %v691 = vmul.f32 %v682, %v644
        %v692 = vmul.f32 %v684, %v644
        %v693 = vadd.f32 %v685, 1e-06
        %v694 = vadd.f32 %v686, 1e-06
        %v695 = vadd.f32 %v687, 1e-06
        %v696 = vadd.f32 %v688, 1e-06
        %v697 = vadd.f32 %v689, 1e-06
        %v698 = vadd.f32 %v690, 1e-06
        %v699 = vadd.f32 %v691, 1e-06
        %v700 = vadd.f32 %v692, 1e-06
        %v701 = vrsqrt.pop %v693
        %v702 = vmul.f32 %v701, %v693
        %v703 = vmul.f32 %v702, %v701
        %v704 = vmul.f32 0.5, %v703
        %v705 = vsub.f32 1.5, %v704
        %v706 = vmul.f32 %v701, %v705
        %v707 = vmul.f32 %v693, %v706
        %vm708 = vcmp.eq.f32.partialorder %v693, inf
        %v709 = vsel %vm708, %v693, %v707
        %vm710 = vcmp.eq.f32.partialorder %v693, 0.0
        %v711 = vand.u32 %v693, 2147483648
        %v712 = vsel %vm710, %v711, %v709
        %v713 = vrsqrt.pop %v694
        %v714 = vmul.f32 %v713, %v694
        %v715 = vmul.f32 %v714, %v713
        %v716 = vmul.f32 0.5, %v715
        %v717 = vsub.f32 1.5, %v716
        %v718 = vmul.f32 %v713, %v717
        %v719 = vmul.f32 %v694, %v718
        %vm720 = vcmp.eq.f32.partialorder %v694, inf
        %v721 = vsel %vm720, %v694, %v719
        %vm722 = vcmp.eq.f32.partialorder %v694, 0.0
        %v723 = vand.u32 %v694, 2147483648
        %v724 = vsel %vm722, %v723, %v721
        %v725 = vrsqrt.pop %v695
        %v726 = vmul.f32 %v725, %v695
        %v727 = vmul.f32 %v726, %v725
        %v728 = vmul.f32 0.5, %v727
        %v729 = vsub.f32 1.5, %v728
        %v730 = vmul.f32 %v725, %v729
        %v731 = vmul.f32 %v695, %v730
        %vm732 = vcmp.eq.f32.partialorder %v695, inf
        %v733 = vsel %vm732, %v695, %v731
        %vm734 = vcmp.eq.f32.partialorder %v695, 0.0
        %v735 = vand.u32 %v695, 2147483648
        %v736 = vsel %vm734, %v735, %v733
        %v737 = vrsqrt.pop %v696
        %v738 = vmul.f32 %v737, %v696
        %v739 = vmul.f32 %v738, %v737
        %v740 = vmul.f32 0.5, %v739
        %v741 = vsub.f32 1.5, %v740
        %v742 = vmul.f32 %v737, %v741
        %v743 = vmul.f32 %v696, %v742
        %vm744 = vcmp.eq.f32.partialorder %v696, inf
        %v745 = vsel %vm744, %v696, %v743
        %vm746 = vcmp.eq.f32.partialorder %v696, 0.0
        %v747 = vand.u32 %v696, 2147483648
        %v748 = vsel %vm746, %v747, %v745
        %v749 = vrsqrt.pop %v697
        %v750 = vmul.f32 %v749, %v697
        %v751 = vmul.f32 %v750, %v749
        %v752 = vmul.f32 0.5, %v751
        %v753 = vsub.f32 1.5, %v752
        %v754 = vmul.f32 %v749, %v753
        %v755 = vmul.f32 %v697, %v754
        %vm756 = vcmp.eq.f32.partialorder %v697, inf
        %v757 = vsel %vm756, %v697, %v755
        %vm758 = vcmp.eq.f32.partialorder %v697, 0.0
        %v759 = vand.u32 %v697, 2147483648
        %v760 = vsel %vm758, %v759, %v757
        %v761 = vrsqrt.pop %v698
        %v762 = vmul.f32 %v761, %v698
        %v763 = vmul.f32 %v762, %v761
        %v764 = vmul.f32 0.5, %v763
        %v765 = vsub.f32 1.5, %v764
        %v766 = vmul.f32 %v761, %v765
        %v767 = vmul.f32 %v698, %v766
        %vm768 = vcmp.eq.f32.partialorder %v698, inf
        %v769 = vsel %vm768, %v698, %v767
        %vm770 = vcmp.eq.f32.partialorder %v698, 0.0
        %v771 = vand.u32 %v698, 2147483648
        %v772 = vsel %vm770, %v771, %v769
        %v773 = vrsqrt.pop %v699
        %v774 = vmul.f32 %v773, %v699
        %v775 = vmul.f32 %v774, %v773
        %v776 = vmul.f32 0.5, %v775
        %v777 = vsub.f32 1.5, %v776
        %v778 = vmul.f32 %v773, %v777
        %v779 = vmul.f32 %v699, %v778
        %vm780 = vcmp.eq.f32.partialorder %v699, inf
        %v781 = vsel %vm780, %v699, %v779
        %vm782 = vcmp.eq.f32.partialorder %v699, 0.0
        %v783 = vand.u32 %v699, 2147483648
        %v784 = vsel %vm782, %v783, %v781
        %v785 = vrsqrt.pop %v700
        %v786 = vmul.f32 %v785, %v700
        %v787 = vmul.f32 %v786, %v785
        %v788 = vmul.f32 0.5, %v787
        %v789 = vsub.f32 1.5, %v788
        %v790 = vmul.f32 %v785, %v789
        %v791 = vmul.f32 %v700, %v790
        %vm792 = vcmp.eq.f32.partialorder %v700, inf
        %v793 = vsel %vm792, %v700, %v791
        %vm794 = vcmp.eq.f32.partialorder %v700, 0.0
        %v795 = vand.u32 %v700, 2147483648
        %v796 = vsel %vm794, %v795, %v793
        %v797 = vrcp.pop %v712
        %v798 = vmul.f32 %v712, %v797
        %v799 = vsub.f32 1.0, %v798
        %v800 = vmul.f32 %v797, %v799
        %v801 = vadd.f32 %v797, %v800
        %vm802 = vweird.f32 %v712
        %vm803 = vweird.f32 %v797
        %vm804 = vmor %vm802, %vm803
        %v805 = vsel %vm804, %v797, %v801
        %v806 = vand.u32 2147483647, %v712
        %vm807 = vcmp.eq.f32.partialorder %v806, 8.507059e+37
        %v808 = vand.u32 %v712, 2147483648
        %v809 = vor.u32 1.1754944e-38, %v808
        %v810 = vsel %vm807, %v809, %v805
        %v811 = vmul.f32 1.0, %v810
        %v812 = vrcp.pop %v724
        %v813 = vmul.f32 %v724, %v812
        %v814 = vsub.f32 1.0, %v813
        %v815 = vmul.f32 %v812, %v814
        %v816 = vadd.f32 %v812, %v815
        %vm817 = vweird.f32 %v724
        %vm818 = vweird.f32 %v812
        %vm819 = vmor %vm817, %vm818
        %v820 = vsel %vm819, %v812, %v816
        %v821 = vand.u32 2147483647, %v724
        %vm822 = vcmp.eq.f32.partialorder %v821, 8.507059e+37
        %v823 = vand.u32 %v724, 2147483648
        %v824 = vor.u32 1.1754944e-38, %v823
        %v825 = vsel %vm822, %v824, %v820
        %v826 = vmul.f32 1.0, %v825
        %v827 = vrcp.pop %v736
        %v828 = vmul.f32 %v736, %v827
        %v829 = vsub.f32 1.0, %v828
        %v830 = vmul.f32 %v827, %v829
        %v831 = vadd.f32 %v827, %v830
        %vm832 = vweird.f32 %v736
        %vm833 = vweird.f32 %v827
        %vm834 = vmor %vm832, %vm833
        %v835 = vsel %vm834, %v827, %v831
        %v836 = vand.u32 2147483647, %v736
        %vm837 = vcmp.eq.f32.partialorder %v836, 8.507059e+37
        %v838 = vand.u32 %v736, 2147483648
        %v839 = vor.u32 1.1754944e-38, %v838
        %v840 = vsel %vm837, %v839, %v835
        %v841 = vmul.f32 1.0, %v840
        %v842 = vrcp.pop %v748
        %v843 = vmul.f32 %v748, %v842
        %v844 = vsub.f32 1.0, %v843
        %v845 = vmul.f32 %v842, %v844
        %v846 = vadd.f32 %v842, %v845
        %vm847 = vweird.f32 %v748
        %vm848 = vweird.f32 %v842
        %vm849 = vmor %vm847, %vm848
        %v850 = vsel %vm849, %v842, %v846
        %v851 = vand.u32 2147483647, %v748
        %vm852 = vcmp.eq.f32.partialorder %v851, 8.507059e+37
        %v853 = vand.u32 %v748, 2147483648
        %v854 = vor.u32 1.1754944e-38, %v853
        %v855 = vsel %vm852, %v854, %v850
        %v856 = vmul.f32 1.0, %v855
        %v857 = vrcp.pop %v760
        %v858 = vmul.f32 %v760, %v857
        %v859 = vsub.f32 1.0, %v858
        %v860 = vmul.f32 %v857, %v859
        %v861 = vadd.f32 %v857, %v860
        %vm862 = vweird.f32 %v760
        %vm863 = vweird.f32 %v857
        %vm864 = vmor %vm862, %vm863
        %v865 = vsel %vm864, %v857, %v861
        %v866 = vand.u32 2147483647, %v760
        %vm867 = vcmp.eq.f32.partialorder %v866, 8.507059e+37
        %v868 = vand.u32 %v760, 2147483648
        %v869 = vor.u32 1.1754944e-38, %v868
        %v870 = vsel %vm867, %v869, %v865
        %v871 = vmul.f32 1.0, %v870
        %v872 = vrcp.pop %v772
        %v873 = vmul.f32 %v772, %v872
        %v874 = vsub.f32 1.0, %v873
        %v875 = vmul.f32 %v872, %v874
        %v876 = vadd.f32 %v872, %v875
        %vm877 = vweird.f32 %v772
        %vm878 = vweird.f32 %v872
        %vm879 = vmor %vm877, %vm878
        %v880 = vsel %vm879, %v872, %v876
        %v881 = vand.u32 2147483647, %v772
        %vm882 = vcmp.eq.f32.partialorder %v881, 8.507059e+37
        %v883 = vand.u32 %v772, 2147483648
        %v884 = vor.u32 1.1754944e-38, %v883
        %v885 = vsel %vm882, %v884, %v880
        %v886 = vmul.f32 1.0, %v885
        %v887 = vrcp.pop %v784
        %v888 = vmul.f32 %v784, %v887
        %v889 = vsub.f32 1.0, %v888
        %v890 = vmul.f32 %v887, %v889
        %v891 = vadd.f32 %v887, %v890
        %vm892 = vweird.f32 %v784
        %vm893 = vweird.f32 %v887
        %vm894 = vmor %vm892, %vm893
        %v895 = vsel %vm894, %v887, %v891
        %v896 = vand.u32 2147483647, %v784
        %vm897 = vcmp.eq.f32.partialorder %v896, 8.507059e+37
        %v898 = vand.u32 %v784, 2147483648
        %v899 = vor.u32 1.1754944e-38, %v898
        %v900 = vsel %vm897, %v899, %v895
        %v901 = vmul.f32 1.0, %v900
        %v902 = vrcp.pop %v796
        %v903 = vmul.f32 %v796, %v902
        %v904 = vsub.f32 1.0, %v903
        %v905 = vmul.f32 %v902, %v904
        %v906 = vadd.f32 %v902, %v905
        %vm907 = vweird.f32 %v796
        %vm908 = vweird.f32 %v902
        %vm909 = vmor %vm907, %vm908
        %v910 = vsel %vm909, %v902, %v906
        %v911 = vand.u32 2147483647, %v796
        %vm912 = vcmp.eq.f32.partialorder %v911, 8.507059e+37
        %v913 = vand.u32 %v796, 2147483648
        %v914 = vor.u32 1.1754944e-38, %v913
        %v915 = vsel %vm912, %v914, %v910
        %v916 = vmul.f32 1.0, %v915
        %v917 = vmul.f32 %v653, %v811
        %v918 = vmul.f32 %v654, %v826
        %v919 = vmul.f32 %v655, %v841
        %v920 = vmul.f32 %v656, %v856
        %v921 = vmul.f32 %v657, %v871
        %v922 = vmul.f32 %v658, %v886
        %v923 = vmul.f32 %v659, %v901
        %v924 = vmul.f32 %v660, %v916
        %v925 = vld [vmem:[%s3] sm:$0x1]
        %v927 = vperm.slane %v925, 0
        %v929 = vmul.f32 %v917, %v927
        %v930 = vmul.f32 %v918, %v927
        %v931 = vmul.f32 %v919, %v927
        %v932 = vmul.f32 %v920, %v927
        %v933 = vmul.f32 %v921, %v927
        %v934 = vmul.f32 %v922, %v927
        %v935 = vmul.f32 %v923, %v927
        %v936 = vmul.f32 %v924, %v927
        %v937 = vld [vmem:[%s4] sm:$0x1]
        %v939 = vperm.slane %v937, 0
        %v941 = vadd.f32 %v929, %v939
        %v942 = vadd.f32 %v930, %v939
        %v943 = vadd.f32 %v931, %v939
        %v944 = vadd.f32 %v932, %v939
        %v945 = vadd.f32 %v933, %v939
        %v946 = vadd.f32 %v934, %v939
        %v947 = vadd.f32 %v935, %v939
        %v948 = vadd.f32 %v936, %v939
        %v949 = vpack.c.bf16 %v942, %v941
        %v950 = vpack.c.bf16 %v944, %v943
        %v951 = vpack.c.bf16 %v946, %v945
        %v952 = vpack.c.bf16 %v948, %v947
        %v953 = vld [vmem:[%s5] sm:$0xff]
        %v954 = vld [vmem:[%s5 + $0x8] sm:$0xff]
        %v955 = vld [vmem:[%s5 + $0x10] sm:$0xff]
        %v956 = vld [vmem:[%s5 + $0x18] sm:$0xff]
        %v957 = vld [vmem:[%s5 + $0x20] sm:$0xff]
        %v958 = vld [vmem:[%s5 + $0x28] sm:$0xff]
        %v959 = vld [vmem:[%s5 + $0x30] sm:$0xff]
        %v960 = vld [vmem:[%s5 + $0x38] sm:$0xff]
        %v961 = vld [vmem:[%s5 + $0x40] sm:$0xff]
        %v962 = vld [vmem:[%s5 + $0x48] sm:$0xff]
        %v963 = vld [vmem:[%s5 + $0x50] sm:$0xff]
        %v964 = vld [vmem:[%s5 + $0x58] sm:$0xff]
        %v965 = vld [vmem:[%s5 + $0x60] sm:$0xff]
        %v966 = vld [vmem:[%s5 + $0x68] sm:$0xff]
        %v967 = vld [vmem:[%s5 + $0x70] sm:$0xff]
        %v968 = vld [vmem:[%s5 + $0x78] sm:$0xff]
        %v969 = vld [vmem:[%s5 + $0x80] sm:$0xff]
        %v970 = vld [vmem:[%s5 + $0x88] sm:$0xff]
        %v971 = vld [vmem:[%s5 + $0x90] sm:$0xff]
        %v972 = vld [vmem:[%s5 + $0x98] sm:$0xff]
        %v973 = vld [vmem:[%s5 + $0xa0] sm:$0xff]
        %v974 = vld [vmem:[%s5 + $0xa8] sm:$0xff]
        %v975 = vld [vmem:[%s5 + $0xb0] sm:$0xff]
        %v976 = vld [vmem:[%s5 + $0xb8] sm:$0xff]
        %v977 = vld [vmem:[%s5 + $0xc0] sm:$0xff]
        %v978 = vld [vmem:[%s5 + $0xc8] sm:$0xff]
        %v979 = vld [vmem:[%s5 + $0xd0] sm:$0xff]
        %v980 = vld [vmem:[%s5 + $0xd8] sm:$0xff]
        %v981 = vld [vmem:[%s5 + $0xe0] sm:$0xff]
        %v982 = vld [vmem:[%s5 + $0xe8] sm:$0xff]
        %v983 = vld [vmem:[%s5 + $0xf0] sm:$0xff]
        %v984 = vld [vmem:[%s5 + $0xf8] sm:$0xff]
        %v985 = vld [vmem:[%s5 + $0x100] sm:$0xff]
        %v986 = vld [vmem:[%s5 + $0x108] sm:$0xff]
        %v987 = vld [vmem:[%s5 + $0x110] sm:$0xff]
        %v988 = vld [vmem:[%s5 + $0x118] sm:$0xff]
        %v989 = vld [vmem:[%s5 + $0x120] sm:$0xff]
        %v990 = vld [vmem:[%s5 + $0x128] sm:$0xff]
        %v991 = vld [vmem:[%s5 + $0x130] sm:$0xff]
        %v992 = vld [vmem:[%s5 + $0x138] sm:$0xff]
        %v993 = vld [vmem:[%s5 + $0x140] sm:$0xff]
        %v994 = vld [vmem:[%s5 + $0x148] sm:$0xff]
        %v995 = vld [vmem:[%s5 + $0x150] sm:$0xff]
        %v996 = vld [vmem:[%s5 + $0x158] sm:$0xff]
        %v997 = vld [vmem:[%s5 + $0x160] sm:$0xff]
        %v998 = vld [vmem:[%s5 + $0x168] sm:$0xff]
        %v999 = vld [vmem:[%s5 + $0x170] sm:$0xff]
        %v1000 = vld [vmem:[%s5 + $0x178] sm:$0xff]
        %v1001 = vld [vmem:[%s5 + $0x180] sm:$0xff]
        %v1002 = vld [vmem:[%s5 + $0x188] sm:$0xff]
        %v1003 = vld [vmem:[%s5 + $0x190] sm:$0xff]
        %v1004 = vld [vmem:[%s5 + $0x198] sm:$0xff]
        %v1005 = vld [vmem:[%s5 + $0x1a0] sm:$0xff]
        %v1006 = vld [vmem:[%s5 + $0x1a8] sm:$0xff]
        %v1007 = vld [vmem:[%s5 + $0x1b0] sm:$0xff]
        %v1008 = vld [vmem:[%s5 + $0x1b8] sm:$0xff]
        %v1009 = vld [vmem:[%s5 + $0x1c0] sm:$0xff]
        %v1010 = vld [vmem:[%s5 + $0x1c8] sm:$0xff]
        %v1011 = vld [vmem:[%s5 + $0x1d0] sm:$0xff]
        %v1012 = vld [vmem:[%s5 + $0x1d8] sm:$0xff]
        %v1013 = vld [vmem:[%s5 + $0x1e0] sm:$0xff]
        %v1014 = vld [vmem:[%s5 + $0x1e8] sm:$0xff]
        %v1015 = vld [vmem:[%s5 + $0x1f0] sm:$0xff]
        %v1016 = vld [vmem:[%s5 + $0x1f8] sm:$0xff]
        %v1017 = vld [vmem:[%s6] sm:$0xff]
        %v1019 = vperm.slane %v1017, 0
        %v1020 = vperm.slane %v1017, 1
        %v1021 = vperm.slane %v1017, 2
        %v1022 = vperm.slane %v1017, 3
        %v1023 = vperm.slane %v1017, 4
        %v1024 = vperm.slane %v1017, 5
        %v1025 = vperm.slane %v1017, 6
        %v1026 = vperm.slane %v1017, 7
        %v1099 = vunpack.c.l.b16 %v953
        %v1100 = vunpack.c.h.b16 %v953
        %v1101 = vunpack.c.l.b16 %v954
        %v1102 = vunpack.c.h.b16 %v954
        %v1103 = vunpack.c.l.b16 %v955
        %v1104 = vunpack.c.h.b16 %v955
        %v1105 = vunpack.c.l.b16 %v956
        %v1106 = vunpack.c.h.b16 %v956
        %v1107 = vunpack.c.l.b16 %v957
        %v1108 = vunpack.c.h.b16 %v957
        %v1109 = vunpack.c.l.b16 %v958
        %v1110 = vunpack.c.h.b16 %v958
        %v1111 = vunpack.c.l.b16 %v959
        %v1112 = vunpack.c.h.b16 %v959
        %v1113 = vunpack.c.l.b16 %v960
        %v1114 = vunpack.c.h.b16 %v960
        %v1115 = vunpack.c.l.b16 %v961
        %v1116 = vunpack.c.h.b16 %v961
        %v1117 = vunpack.c.l.b16 %v962
        %v1118 = vunpack.c.h.b16 %v962
        %v1119 = vunpack.c.l.b16 %v963
        %v1120 = vunpack.c.h.b16 %v963
        %v1121 = vunpack.c.l.b16 %v964
        %v1122 = vunpack.c.h.b16 %v964
        %v1123 = vunpack.c.l.b16 %v965
        %v1124 = vunpack.c.h.b16 %v965
        %v1125 = vunpack.c.l.b16 %v966
        %v1126 = vunpack.c.h.b16 %v966
        %v1127 = vunpack.c.l.b16 %v967
        %v1128 = vunpack.c.h.b16 %v967
        %v1129 = vunpack.c.l.b16 %v968
        %v1130 = vunpack.c.h.b16 %v968
        %v1131 = vunpack.c.l.b16 %v969
        %v1132 = vunpack.c.h.b16 %v969
        %v1133 = vunpack.c.l.b16 %v970
        %v1134 = vunpack.c.h.b16 %v970
        %v1135 = vunpack.c.l.b16 %v971
        %v1136 = vunpack.c.h.b16 %v971
        %v1137 = vunpack.c.l.b16 %v972
        %v1138 = vunpack.c.h.b16 %v972
        %v1139 = vunpack.c.l.b16 %v973
        %v1140 = vunpack.c.h.b16 %v973
        %v1141 = vunpack.c.l.b16 %v974
        %v1142 = vunpack.c.h.b16 %v974
        %v1143 = vunpack.c.l.b16 %v975
        %v1144 = vunpack.c.h.b16 %v975
        %v1145 = vunpack.c.l.b16 %v976
        %v1146 = vunpack.c.h.b16 %v976
        %v1147 = vunpack.c.l.b16 %v977
        %v1148 = vunpack.c.h.b16 %v977
        %v1149 = vunpack.c.l.b16 %v978
        %v1150 = vunpack.c.h.b16 %v978
        %v1151 = vunpack.c.l.b16 %v979
        %v1152 = vunpack.c.h.b16 %v979
        %v1153 = vunpack.c.l.b16 %v980
        %v1154 = vunpack.c.h.b16 %v980
        %v1155 = vunpack.c.l.b16 %v981
        %v1156 = vunpack.c.h.b16 %v981
        %v1157 = vunpack.c.l.b16 %v982
        %v1158 = vunpack.c.h.b16 %v982
        %v1159 = vunpack.c.l.b16 %v983
        %v1160 = vunpack.c.h.b16 %v983
        %v1161 = vunpack.c.l.b16 %v984
        %v1162 = vunpack.c.h.b16 %v984
        %v1163 = vunpack.c.l.b16 %v985
        %v1164 = vunpack.c.h.b16 %v985
        %v1165 = vunpack.c.l.b16 %v986
        %v1166 = vunpack.c.h.b16 %v986
        %v1167 = vunpack.c.l.b16 %v987
        %v1168 = vunpack.c.h.b16 %v987
        %v1169 = vunpack.c.l.b16 %v988
        %v1170 = vunpack.c.h.b16 %v988
        %v1171 = vunpack.c.l.b16 %v989
        %v1172 = vunpack.c.h.b16 %v989
        %v1173 = vunpack.c.l.b16 %v990
        %v1174 = vunpack.c.h.b16 %v990
        %v1175 = vunpack.c.l.b16 %v991
        %v1176 = vunpack.c.h.b16 %v991
        %v1177 = vunpack.c.l.b16 %v992
        %v1178 = vunpack.c.h.b16 %v992
        %v1179 = vunpack.c.l.b16 %v993
        %v1180 = vunpack.c.h.b16 %v993
        %v1181 = vunpack.c.l.b16 %v994
        %v1182 = vunpack.c.h.b16 %v994
        %v1183 = vunpack.c.l.b16 %v995
        %v1184 = vunpack.c.h.b16 %v995
        %v1185 = vunpack.c.l.b16 %v996
        %v1186 = vunpack.c.h.b16 %v996
        %v1187 = vunpack.c.l.b16 %v997
        %v1188 = vunpack.c.h.b16 %v997
        %v1189 = vunpack.c.l.b16 %v998
        %v1190 = vunpack.c.h.b16 %v998
        %v1191 = vunpack.c.l.b16 %v999
        %v1192 = vunpack.c.h.b16 %v999
        %v1193 = vunpack.c.l.b16 %v1000
        %v1194 = vunpack.c.h.b16 %v1000
        %v1195 = vunpack.c.l.b16 %v1001
        %v1196 = vunpack.c.h.b16 %v1001
        %v1197 = vunpack.c.l.b16 %v1002
        %v1198 = vunpack.c.h.b16 %v1002
        %v1199 = vunpack.c.l.b16 %v1003
        %v1200 = vunpack.c.h.b16 %v1003
        %v1201 = vunpack.c.l.b16 %v1004
        %v1202 = vunpack.c.h.b16 %v1004
        %v1203 = vunpack.c.l.b16 %v1005
        %v1204 = vunpack.c.h.b16 %v1005
        %v1205 = vunpack.c.l.b16 %v1006
        %v1206 = vunpack.c.h.b16 %v1006
        %v1207 = vunpack.c.l.b16 %v1007
        %v1208 = vunpack.c.h.b16 %v1007
        %v1209 = vunpack.c.l.b16 %v1008
        %v1210 = vunpack.c.h.b16 %v1008
        %v1211 = vunpack.c.l.b16 %v1009
        %v1212 = vunpack.c.h.b16 %v1009
        %v1213 = vunpack.c.l.b16 %v1010
        %v1214 = vunpack.c.h.b16 %v1010
        %v1215 = vunpack.c.l.b16 %v1011
        %v1216 = vunpack.c.h.b16 %v1011
        %v1217 = vunpack.c.l.b16 %v1012
        %v1218 = vunpack.c.h.b16 %v1012
        %v1219 = vunpack.c.l.b16 %v1013
        %v1220 = vunpack.c.h.b16 %v1013
        %v1221 = vunpack.c.l.b16 %v1014
        %v1222 = vunpack.c.h.b16 %v1014
        %v1223 = vunpack.c.l.b16 %v1015
        %v1224 = vunpack.c.h.b16 %v1015
        %v1225 = vunpack.c.l.b16 %v1016
        %v1226 = vunpack.c.h.b16 %v1016
        %v1227 = vpack.c.b16 %v1107, %v1099
        %v1228 = vpack.c.b16 %v1108, %v1100
        %v1229 = vpack.c.b16 %v1109, %v1101
        %v1230 = vpack.c.b16 %v1110, %v1102
        %v1231 = vpack.c.b16 %v1111, %v1103
        %v1232 = vpack.c.b16 %v1112, %v1104
        %v1233 = vpack.c.b16 %v1113, %v1105
        %v1234 = vpack.c.b16 %v1114, %v1106
        %v1235 = vpack.c.b16 %v1123, %v1115
        %v1236 = vpack.c.b16 %v1124, %v1116
        %v1237 = vpack.c.b16 %v1125, %v1117
        %v1238 = vpack.c.b16 %v1126, %v1118
        %v1239 = vpack.c.b16 %v1127, %v1119
        %v1240 = vpack.c.b16 %v1128, %v1120
        %v1241 = vpack.c.b16 %v1129, %v1121
        %v1242 = vpack.c.b16 %v1130, %v1122
        %v1243 = vpack.c.b16 %v1139, %v1131
        %v1244 = vpack.c.b16 %v1140, %v1132
        %v1245 = vpack.c.b16 %v1141, %v1133
        %v1246 = vpack.c.b16 %v1142, %v1134
        %v1247 = vpack.c.b16 %v1143, %v1135
        %v1248 = vpack.c.b16 %v1144, %v1136
        %v1249 = vpack.c.b16 %v1145, %v1137
        %v1250 = vpack.c.b16 %v1146, %v1138
        %v1251 = vpack.c.b16 %v1155, %v1147
        %v1252 = vpack.c.b16 %v1156, %v1148
        %v1253 = vpack.c.b16 %v1157, %v1149
        %v1254 = vpack.c.b16 %v1158, %v1150
        %v1255 = vpack.c.b16 %v1159, %v1151
        %v1256 = vpack.c.b16 %v1160, %v1152
        %v1257 = vpack.c.b16 %v1161, %v1153
        %v1258 = vpack.c.b16 %v1162, %v1154
        %v1259 = vpack.c.b16 %v1171, %v1163
        %v1260 = vpack.c.b16 %v1172, %v1164
        %v1261 = vpack.c.b16 %v1173, %v1165
        %v1262 = vpack.c.b16 %v1174, %v1166
        %v1263 = vpack.c.b16 %v1175, %v1167
        %v1264 = vpack.c.b16 %v1176, %v1168
        %v1265 = vpack.c.b16 %v1177, %v1169
        %v1266 = vpack.c.b16 %v1178, %v1170
        %v1267 = vpack.c.b16 %v1187, %v1179
        %v1268 = vpack.c.b16 %v1188, %v1180
        %v1269 = vpack.c.b16 %v1189, %v1181
        %v1270 = vpack.c.b16 %v1190, %v1182
        %v1271 = vpack.c.b16 %v1191, %v1183
        %v1272 = vpack.c.b16 %v1192, %v1184
        %v1273 = vpack.c.b16 %v1193, %v1185
        %v1274 = vpack.c.b16 %v1194, %v1186
        %v1275 = vpack.c.b16 %v1203, %v1195
        %v1276 = vpack.c.b16 %v1204, %v1196
        %v1277 = vpack.c.b16 %v1205, %v1197
        %v1278 = vpack.c.b16 %v1206, %v1198
        %v1279 = vpack.c.b16 %v1207, %v1199
        %v1280 = vpack.c.b16 %v1208, %v1200
        %v1281 = vpack.c.b16 %v1209, %v1201
        %v1282 = vpack.c.b16 %v1210, %v1202
        %v1283 = vpack.c.b16 %v1219, %v1211
        %v1284 = vpack.c.b16 %v1220, %v1212
        %v1285 = vpack.c.b16 %v1221, %v1213
        %v1286 = vpack.c.b16 %v1222, %v1214
        %v1287 = vpack.c.b16 %v1223, %v1215
        %v1288 = vpack.c.b16 %v1224, %v1216
        %v1289 = vpack.c.b16 %v1225, %v1217
        %v1290 = vpack.c.b16 %v1226, %v1218
        %1355 = vmatpush.bf16.msra.mxu0 %v1283
        %1356 = vmatpush.bf16.msra.mxu0 %v1275
        %1357 = vmatpush.bf16.msra.mxu0 %v1267
        %1358 = vmatpush.bf16.msra.mxu0 %v1259
        %1359 = vmatpush.bf16.msra.mxu0 %v1251
        %1360 = vmatpush.bf16.msra.mxu0 %v1243
        %1361 = vmatpush.bf16.msra.mxu0 %v1235
        %1362 = vmatpush.bf16.msra.mxu0 %v1227
        %1363 = vmatmul.bf16.gmra.mxu0 %v949
        %v1364 = vpop.f32.mrf.mxu0
        %v1365 = vadd.f32 %v1019, %v1364
        %v1366 = vpop.f32.mrf.mxu0
        %v1367 = vadd.f32 %v1019, %v1366
        %1368 = vmatmul.bf16.gmra.mxu0 %v950
        %v1369 = vpop.f32.mrf.mxu0
        %v1370 = vadd.f32 %v1019, %v1369
        %v1371 = vpop.f32.mrf.mxu0
        %v1372 = vadd.f32 %v1019, %v1371
        %1373 = vmatmul.bf16.gmra.mxu0 %v951
        %v1374 = vpop.f32.mrf.mxu0
        %v1375 = vadd.f32 %v1019, %v1374
        %v1376 = vpop.f32.mrf.mxu0
        %v1377 = vadd.f32 %v1019, %v1376
        %1378 = vmatmul.bf16.gmra.mxu0 %v952
        %v1379 = vpop.f32.mrf.mxu0
        %v1380 = vadd.f32 %v1019, %v1379
        %v1381 = vpop.f32.mrf.mxu0
        %v1382 = vadd.f32 %v1019, %v1381
        %1383 = vdwg.mxu0
        %1384 = vmatpush.bf16.msra.mxu0 %v1284
        %1385 = vmatpush.bf16.msra.mxu0 %v1276
        %1386 = vmatpush.bf16.msra.mxu0 %v1268
        %1387 = vmatpush.bf16.msra.mxu0 %v1260
        %1388 = vmatpush.bf16.msra.mxu0 %v1252
        %1389 = vmatpush.bf16.msra.mxu0 %v1244
        %1390 = vmatpush.bf16.msra.mxu0 %v1236
        %1391 = vmatpush.bf16.msra.mxu0 %v1228
        %1392 = vmatmul.bf16.gmra.mxu0 %v949
        %v1393 = vpop.f32.mrf.mxu0
        %v1394 = vadd.f32 %v1020, %v1393
        %v1395 = vpop.f32.mrf.mxu0
        %v1396 = vadd.f32 %v1020, %v1395
        %1397 = vmatmul.bf16.gmra.mxu0 %v950
        %v1398 = vpop.f32.mrf.mxu0
        %v1399 = vadd.f32 %v1020, %v1398
        %v1400 = vpop.f32.mrf.mxu0
        %v1401 = vadd.f32 %v1020, %v1400
        %1402 = vmatmul.bf16.gmra.mxu0 %v951
        %v1403 = vpop.f32.mrf.mxu0
        %v1404 = vadd.f32 %v1020, %v1403
        %v1405 = vpop.f32.mrf.mxu0
        %v1406 = vadd.f32 %v1020, %v1405
        %1407 = vmatmul.bf16.gmra.mxu0 %v952
        %v1408 = vpop.f32.mrf.mxu0
        %v1409 = vadd.f32 %v1020, %v1408
        %v1410 = vpop.f32.mrf.mxu0
        %v1411 = vadd.f32 %v1020, %v1410
        %1412 = vdwg.mxu0
        %1413 = vmatpush.bf16.msra.mxu0 %v1285
        %1414 = vmatpush.bf16.msra.mxu0 %v1277
        %1415 = vmatpush.bf16.msra.mxu0 %v1269
        %1416 = vmatpush.bf16.msra.mxu0 %v1261
        %1417 = vmatpush.bf16.msra.mxu0 %v1253
        %1418 = vmatpush.bf16.msra.mxu0 %v1245
        %1419 = vmatpush.bf16.msra.mxu0 %v1237
        %1420 = vmatpush.bf16.msra.mxu0 %v1229
        %1421 = vmatmul.bf16.gmra.mxu0 %v949
        %v1422 = vpop.f32.mrf.mxu0
        %v1423 = vadd.f32 %v1021, %v1422
        %v1424 = vpop.f32.mrf.mxu0
        %v1425 = vadd.f32 %v1021, %v1424
        %1426 = vmatmul.bf16.gmra.mxu0 %v950
        %v1427 = vpop.f32.mrf.mxu0
        %v1428 = vadd.f32 %v1021, %v1427
        %v1429 = vpop.f32.mrf.mxu0
        %v1430 = vadd.f32 %v1021, %v1429
        %1431 = vmatmul.bf16.gmra.mxu0 %v951
        %v1432 = vpop.f32.mrf.mxu0
        %v1433 = vadd.f32 %v1021, %v1432
        %v1434 = vpop.f32.mrf.mxu0
        %v1435 = vadd.f32 %v1021, %v1434
        %1436 = vmatmul.bf16.gmra.mxu0 %v952
        %v1437 = vpop.f32.mrf.mxu0
        %v1438 = vadd.f32 %v1021, %v1437
        %v1439 = vpop.f32.mrf.mxu0
        %v1440 = vadd.f32 %v1021, %v1439
        %1441 = vdwg.mxu0
        %1442 = vmatpush.bf16.msra.mxu0 %v1286
        %1443 = vmatpush.bf16.msra.mxu0 %v1278
        %1444 = vmatpush.bf16.msra.mxu0 %v1270
        %1445 = vmatpush.bf16.msra.mxu0 %v1262
        %1446 = vmatpush.bf16.msra.mxu0 %v1254
        %1447 = vmatpush.bf16.msra.mxu0 %v1246
        %1448 = vmatpush.bf16.msra.mxu0 %v1238
        %1449 = vmatpush.bf16.msra.mxu0 %v1230
        %1450 = vmatmul.bf16.gmra.mxu0 %v949
        %v1451 = vpop.f32.mrf.mxu0
        %v1452 = vadd.f32 %v1022, %v1451
        %v1453 = vpop.f32.mrf.mxu0
        %v1454 = vadd.f32 %v1022, %v1453
        %1455 = vmatmul.bf16.gmra.mxu0 %v950
        %v1456 = vpop.f32.mrf.mxu0
        %v1457 = vadd.f32 %v1022, %v1456
        %v1458 = vpop.f32.mrf.mxu0
        %v1459 = vadd.f32 %v1022, %v1458
        %1460 = vmatmul.bf16.gmra.mxu0 %v951
        %v1461 = vpop.f32.mrf.mxu0
        %v1462 = vadd.f32 %v1022, %v1461
        %v1463 = vpop.f32.mrf.mxu0
        %v1464 = vadd.f32 %v1022, %v1463
        %1465 = vmatmul.bf16.gmra.mxu0 %v952
        %v1466 = vpop.f32.mrf.mxu0
        %v1467 = vadd.f32 %v1022, %v1466
        %v1468 = vpop.f32.mrf.mxu0
        %v1469 = vadd.f32 %v1022, %v1468
        %1470 = vdwg.mxu0
        %1471 = vmatpush.bf16.msra.mxu0 %v1287
        %1472 = vmatpush.bf16.msra.mxu0 %v1279
        %1473 = vmatpush.bf16.msra.mxu0 %v1271
        %1474 = vmatpush.bf16.msra.mxu0 %v1263
        %1475 = vmatpush.bf16.msra.mxu0 %v1255
        %1476 = vmatpush.bf16.msra.mxu0 %v1247
        %1477 = vmatpush.bf16.msra.mxu0 %v1239
        %1478 = vmatpush.bf16.msra.mxu0 %v1231
        %1479 = vmatmul.bf16.gmra.mxu0 %v949
        %v1480 = vpop.f32.mrf.mxu0
        %v1481 = vadd.f32 %v1023, %v1480
        %v1482 = vpop.f32.mrf.mxu0
        %v1483 = vadd.f32 %v1023, %v1482
        %1484 = vmatmul.bf16.gmra.mxu0 %v950
        %v1485 = vpop.f32.mrf.mxu0
        %v1486 = vadd.f32 %v1023, %v1485
        %v1487 = vpop.f32.mrf.mxu0
        %v1488 = vadd.f32 %v1023, %v1487
        %1489 = vmatmul.bf16.gmra.mxu0 %v951
        %v1490 = vpop.f32.mrf.mxu0
        %v1491 = vadd.f32 %v1023, %v1490
        %v1492 = vpop.f32.mrf.mxu0
        %v1493 = vadd.f32 %v1023, %v1492
        %1494 = vmatmul.bf16.gmra.mxu0 %v952
        %v1495 = vpop.f32.mrf.mxu0
        %v1496 = vadd.f32 %v1023, %v1495
        %v1497 = vpop.f32.mrf.mxu0
        %v1498 = vadd.f32 %v1023, %v1497
        %1499 = vdwg.mxu0
        %1500 = vmatpush.bf16.msra.mxu0 %v1288
        %1501 = vmatpush.bf16.msra.mxu0 %v1280
        %1502 = vmatpush.bf16.msra.mxu0 %v1272
        %1503 = vmatpush.bf16.msra.mxu0 %v1264
        %1504 = vmatpush.bf16.msra.mxu0 %v1256
        %1505 = vmatpush.bf16.msra.mxu0 %v1248
        %1506 = vmatpush.bf16.msra.mxu0 %v1240
        %1507 = vmatpush.bf16.msra.mxu0 %v1232
        %1508 = vmatmul.bf16.gmra.mxu0 %v949
        %v1509 = vpop.f32.mrf.mxu0
        %v1510 = vadd.f32 %v1024, %v1509
        %v1511 = vpop.f32.mrf.mxu0
        %v1512 = vadd.f32 %v1024, %v1511
        %1513 = vmatmul.bf16.gmra.mxu0 %v950
        %v1514 = vpop.f32.mrf.mxu0
        %v1515 = vadd.f32 %v1024, %v1514
        %v1516 = vpop.f32.mrf.mxu0
        %v1517 = vadd.f32 %v1024, %v1516
        %1518 = vmatmul.bf16.gmra.mxu0 %v951
        %v1519 = vpop.f32.mrf.mxu0
        %v1520 = vadd.f32 %v1024, %v1519
        %v1521 = vpop.f32.mrf.mxu0
        %v1522 = vadd.f32 %v1024, %v1521
        %1523 = vmatmul.bf16.gmra.mxu0 %v952
        %v1524 = vpop.f32.mrf.mxu0
        %v1525 = vadd.f32 %v1024, %v1524
        %v1526 = vpop.f32.mrf.mxu0
        %v1527 = vadd.f32 %v1024, %v1526
        %1528 = vdwg.mxu0
        %1529 = vmatpush.bf16.msra.mxu0 %v1289
        %1530 = vmatpush.bf16.msra.mxu0 %v1281
        %1531 = vmatpush.bf16.msra.mxu0 %v1273
        %1532 = vmatpush.bf16.msra.mxu0 %v1265
        %1533 = vmatpush.bf16.msra.mxu0 %v1257
        %1534 = vmatpush.bf16.msra.mxu0 %v1249
        %1535 = vmatpush.bf16.msra.mxu0 %v1241
        %1536 = vmatpush.bf16.msra.mxu0 %v1233
        %1537 = vmatmul.bf16.gmra.mxu0 %v949
        %v1538 = vpop.f32.mrf.mxu0
        %v1539 = vadd.f32 %v1025, %v1538
        %v1540 = vpop.f32.mrf.mxu0
        %v1541 = vadd.f32 %v1025, %v1540
        %1542 = vmatmul.bf16.gmra.mxu0 %v950
        %v1543 = vpop.f32.mrf.mxu0
        %v1544 = vadd.f32 %v1025, %v1543
        %v1545 = vpop.f32.mrf.mxu0
        %v1546 = vadd.f32 %v1025, %v1545
        %1547 = vmatmul.bf16.gmra.mxu0 %v951
        %v1548 = vpop.f32.mrf.mxu0
        %v1549 = vadd.f32 %v1025, %v1548
        %v1550 = vpop.f32.mrf.mxu0
        %v1551 = vadd.f32 %v1025, %v1550
        %1552 = vmatmul.bf16.gmra.mxu0 %v952
        %v1553 = vpop.f32.mrf.mxu0
        %v1554 = vadd.f32 %v1025, %v1553
        %v1555 = vpop.f32.mrf.mxu0
        %v1556 = vadd.f32 %v1025, %v1555
        %1557 = vdwg.mxu0
        %1558 = vmatpush.bf16.msra.mxu0 %v1290
        %1559 = vmatpush.bf16.msra.mxu0 %v1282
        %1560 = vmatpush.bf16.msra.mxu0 %v1274
        %1561 = vmatpush.bf16.msra.mxu0 %v1266
        %1562 = vmatpush.bf16.msra.mxu0 %v1258
        %1563 = vmatpush.bf16.msra.mxu0 %v1250
        %1564 = vmatpush.bf16.msra.mxu0 %v1242
        %1565 = vmatpush.bf16.msra.mxu0 %v1234
        %1566 = vmatmul.bf16.gmra.mxu0 %v949
        %v1567 = vpop.f32.mrf.mxu0
        %v1568 = vadd.f32 %v1026, %v1567
        %v1569 = vpop.f32.mrf.mxu0
        %v1570 = vadd.f32 %v1026, %v1569
        %1571 = vmatmul.bf16.gmra.mxu0 %v950
        %v1572 = vpop.f32.mrf.mxu0
        %v1573 = vadd.f32 %v1026, %v1572
        %v1574 = vpop.f32.mrf.mxu0
        %v1575 = vadd.f32 %v1026, %v1574
        %1576 = vmatmul.bf16.gmra.mxu0 %v951
        %v1577 = vpop.f32.mrf.mxu0
        %v1578 = vadd.f32 %v1026, %v1577
        %v1579 = vpop.f32.mrf.mxu0
        %v1580 = vadd.f32 %v1026, %v1579
        %1581 = vmatmul.bf16.gmra.mxu0 %v952
        %v1582 = vpop.f32.mrf.mxu0
        %v1583 = vadd.f32 %v1026, %v1582
        %v1584 = vpop.f32.mrf.mxu0
        %v1585 = vadd.f32 %v1026, %v1584
        %1586 = vdwg.mxu0
        %v1587 = vsub.f32 0.0, %v1365
        %v1588 = vsub.f32 0.0, %v1394
        %v1589 = vsub.f32 0.0, %v1423
        %v1590 = vsub.f32 0.0, %v1452
        %v1591 = vsub.f32 0.0, %v1367
        %v1592 = vsub.f32 0.0, %v1396
        %v1593 = vsub.f32 0.0, %v1425
        %v1594 = vsub.f32 0.0, %v1454
        %v1595 = vsub.f32 0.0, %v1370
        %v1596 = vsub.f32 0.0, %v1399
        %v1597 = vsub.f32 0.0, %v1428
        %v1598 = vsub.f32 0.0, %v1457
        %v1599 = vsub.f32 0.0, %v1372
        %v1600 = vsub.f32 0.0, %v1401
        %v1601 = vsub.f32 0.0, %v1430
        %v1602 = vsub.f32 0.0, %v1459
        %v1603 = vsub.f32 0.0, %v1375
        %v1604 = vsub.f32 0.0, %v1404
        %v1605 = vsub.f32 0.0, %v1433
        %v1606 = vsub.f32 0.0, %v1462
        %v1607 = vsub.f32 0.0, %v1377
        %v1608 = vsub.f32 0.0, %v1406
        %v1609 = vsub.f32 0.0, %v1435
        %v1610 = vsub.f32 0.0, %v1464
        %v1611 = vsub.f32 0.0, %v1380
        %v1612 = vsub.f32 0.0, %v1409
        %v1613 = vsub.f32 0.0, %v1438
        %v1614 = vsub.f32 0.0, %v1467
        %v1615 = vsub.f32 0.0, %v1382
        %v1616 = vsub.f32 0.0, %v1411
        %v1617 = vsub.f32 0.0, %v1440
        %v1618 = vsub.f32 0.0, %v1469
        %v1619 = vmul.f32 %v1587, 1.442695
        %v1620 = vpow.pop %v1619
        %v1621 = vmul.f32 %v1588, 1.442695
        %v1622 = vpow.pop %v1621
        %v1623 = vmul.f32 %v1589, 1.442695
        %v1624 = vpow.pop %v1623
        %v1625 = vmul.f32 %v1590, 1.442695
        %v1626 = vpow.pop %v1625
        %v1627 = vmul.f32 %v1591, 1.442695
        %v1628 = vpow.pop %v1627
        %v1629 = vmul.f32 %v1592, 1.442695
        %v1630 = vpow.pop %v1629
        %v1631 = vmul.f32 %v1593, 1.442695
        %v1632 = vpow.pop %v1631
        %v1633 = vmul.f32 %v1594, 1.442695
        %v1634 = vpow.pop %v1633
        %v1635 = vmul.f32 %v1595, 1.442695
        %v1636 = vpow.pop %v1635
        %v1637 = vmul.f32 %v1596, 1.442695
        %v1638 = vpow.pop %v1637
        %v1639 = vmul.f32 %v1597, 1.442695
        %v1640 = vpow.pop %v1639
        %v1641 = vmul.f32 %v1598, 1.442695
        %v1642 = vpow.pop %v1641
        %v1643 = vmul.f32 %v1599, 1.442695
        %v1644 = vpow.pop %v1643
        %v1645 = vmul.f32 %v1600, 1.442695
        %v1646 = vpow.pop %v1645
        %v1647 = vmul.f32 %v1601, 1.442695
        %v1648 = vpow.pop %v1647
        %v1649 = vmul.f32 %v1602, 1.442695
        %v1650 = vpow.pop %v1649
        %v1651 = vmul.f32 %v1603, 1.442695
        %v1652 = vpow.pop %v1651
        %v1653 = vmul.f32 %v1604, 1.442695
        %v1654 = vpow.pop %v1653
        %v1655 = vmul.f32 %v1605, 1.442695
        %v1656 = vpow.pop %v1655
        %v1657 = vmul.f32 %v1606, 1.442695
        %v1658 = vpow.pop %v1657
        %v1659 = vmul.f32 %v1607, 1.442695
        %v1660 = vpow.pop %v1659
        %v1661 = vmul.f32 %v1608, 1.442695
        %v1662 = vpow.pop %v1661
        %v1663 = vmul.f32 %v1609, 1.442695
        %v1664 = vpow.pop %v1663
        %v1665 = vmul.f32 %v1610, 1.442695
        %v1666 = vpow.pop %v1665
        %v1667 = vmul.f32 %v1611, 1.442695
        %v1668 = vpow.pop %v1667
        %v1669 = vmul.f32 %v1612, 1.442695
        %v1670 = vpow.pop %v1669
        %v1671 = vmul.f32 %v1613, 1.442695
        %v1672 = vpow.pop %v1671
        %v1673 = vmul.f32 %v1614, 1.442695
        %v1674 = vpow.pop %v1673
        %v1675 = vmul.f32 %v1615, 1.442695
        %v1676 = vpow.pop %v1675
        %v1677 = vmul.f32 %v1616, 1.442695
        %v1678 = vpow.pop %v1677
        %v1679 = vmul.f32 %v1617, 1.442695
        %v1680 = vpow.pop %v1679
        %v1681 = vmul.f32 %v1618, 1.442695
        %v1682 = vpow.pop %v1681
        %v1683 = vadd.f32 %v1620, 1.0
        %v1684 = vadd.f32 %v1622, 1.0
        %v1685 = vadd.f32 %v1624, 1.0
        %v1686 = vadd.f32 %v1626, 1.0
        %v1687 = vadd.f32 %v1628, 1.0
        %v1688 = vadd.f32 %v1630, 1.0
        %v1689 = vadd.f32 %v1632, 1.0
        %v1690 = vadd.f32 %v1634, 1.0
        %v1691 = vadd.f32 %v1636, 1.0
        %v1692 = vadd.f32 %v1638, 1.0
        %v1693 = vadd.f32 %v1640, 1.0
        %v1694 = vadd.f32 %v1642, 1.0
        %v1695 = vadd.f32 %v1644, 1.0
        %v1696 = vadd.f32 %v1646, 1.0
        %v1697 = vadd.f32 %v1648, 1.0
        %v1698 = vadd.f32 %v1650, 1.0
        %v1699 = vadd.f32 %v1652, 1.0
        %v1700 = vadd.f32 %v1654, 1.0
        %v1701 = vadd.f32 %v1656, 1.0
        %v1702 = vadd.f32 %v1658, 1.0
        %v1703 = vadd.f32 %v1660, 1.0
        %v1704 = vadd.f32 %v1662, 1.0
        %v1705 = vadd.f32 %v1664, 1.0
        %v1706 = vadd.f32 %v1666, 1.0
        %v1707 = vadd.f32 %v1668, 1.0
        %v1708 = vadd.f32 %v1670, 1.0
        %v1709 = vadd.f32 %v1672, 1.0
        %v1710 = vadd.f32 %v1674, 1.0
        %v1711 = vadd.f32 %v1676, 1.0
        %v1712 = vadd.f32 %v1678, 1.0
        %v1713 = vadd.f32 %v1680, 1.0
        %v1714 = vadd.f32 %v1682, 1.0
        %v1715 = vrcp.pop %v1683
        %v1716 = vmul.f32 %v1683, %v1715
        %v1717 = vsub.f32 1.0, %v1716
        %v1718 = vmul.f32 %v1715, %v1717
        %v1719 = vadd.f32 %v1715, %v1718
        %vm1720 = vweird.f32 %v1683
        %vm1721 = vweird.f32 %v1715
        %vm1722 = vmor %vm1720, %vm1721
        %v1723 = vsel %vm1722, %v1715, %v1719
        %v1724 = vand.u32 2147483647, %v1683
        %vm1725 = vcmp.eq.f32.partialorder %v1724, 8.507059e+37
        %v1726 = vand.u32 %v1683, 2147483648
        %v1727 = vor.u32 1.1754944e-38, %v1726
        %v1728 = vsel %vm1725, %v1727, %v1723
        %v1729 = vmul.f32 1.0, %v1728
        %v1730 = vrcp.pop %v1684
        %v1731 = vmul.f32 %v1684, %v1730
        %v1732 = vsub.f32 1.0, %v1731
        %v1733 = vmul.f32 %v1730, %v1732
        %v1734 = vadd.f32 %v1730, %v1733
        %vm1735 = vweird.f32 %v1684
        %vm1736 = vweird.f32 %v1730
        %vm1737 = vmor %vm1735, %vm1736
        %v1738 = vsel %vm1737, %v1730, %v1734
        %v1739 = vand.u32 2147483647, %v1684
        %vm1740 = vcmp.eq.f32.partialorder %v1739, 8.507059e+37
        %v1741 = vand.u32 %v1684, 2147483648
        %v1742 = vor.u32 1.1754944e-38, %v1741
        %v1743 = vsel %vm1740, %v1742, %v1738
        %v1744 = vmul.f32 1.0, %v1743
        %v1745 = vrcp.pop %v1685
        %v1746 = vmul.f32 %v1685, %v1745
        %v1747 = vsub.f32 1.0, %v1746
        %v1748 = vmul.f32 %v1745, %v1747
        %v1749 = vadd.f32 %v1745, %v1748
        %vm1750 = vweird.f32 %v1685
        %vm1751 = vweird.f32 %v1745
        %vm1752 = vmor %vm1750, %vm1751
        %v1753 = vsel %vm1752, %v1745, %v1749
        %v1754 = vand.u32 2147483647, %v1685
        %vm1755 = vcmp.eq.f32.partialorder %v1754, 8.507059e+37
        %v1756 = vand.u32 %v1685, 2147483648
        %v1757 = vor.u32 1.1754944e-38, %v1756
        %v1758 = vsel %vm1755, %v1757, %v1753
        %v1759 = vmul.f32 1.0, %v1758
        %v1760 = vrcp.pop %v1686
        %v1761 = vmul.f32 %v1686, %v1760
        %v1762 = vsub.f32 1.0, %v1761
        %v1763 = vmul.f32 %v1760, %v1762
        %v1764 = vadd.f32 %v1760, %v1763
        %vm1765 = vweird.f32 %v1686
        %vm1766 = vweird.f32 %v1760
        %vm1767 = vmor %vm1765, %vm1766
        %v1768 = vsel %vm1767, %v1760, %v1764
        %v1769 = vand.u32 2147483647, %v1686
        %vm1770 = vcmp.eq.f32.partialorder %v1769, 8.507059e+37
        %v1771 = vand.u32 %v1686, 2147483648
        %v1772 = vor.u32 1.1754944e-38, %v1771
        %v1773 = vsel %vm1770, %v1772, %v1768
        %v1774 = vmul.f32 1.0, %v1773
        %v1775 = vrcp.pop %v1687
        %v1776 = vmul.f32 %v1687, %v1775
        %v1777 = vsub.f32 1.0, %v1776
        %v1778 = vmul.f32 %v1775, %v1777
        %v1779 = vadd.f32 %v1775, %v1778
        %vm1780 = vweird.f32 %v1687
        %vm1781 = vweird.f32 %v1775
        %vm1782 = vmor %vm1780, %vm1781
        %v1783 = vsel %vm1782, %v1775, %v1779
        %v1784 = vand.u32 2147483647, %v1687
        %vm1785 = vcmp.eq.f32.partialorder %v1784, 8.507059e+37
        %v1786 = vand.u32 %v1687, 2147483648
        %v1787 = vor.u32 1.1754944e-38, %v1786
        %v1788 = vsel %vm1785, %v1787, %v1783
        %v1789 = vmul.f32 1.0, %v1788
        %v1790 = vrcp.pop %v1688
        %v1791 = vmul.f32 %v1688, %v1790
        %v1792 = vsub.f32 1.0, %v1791
        %v1793 = vmul.f32 %v1790, %v1792
        %v1794 = vadd.f32 %v1790, %v1793
        %vm1795 = vweird.f32 %v1688
        %vm1796 = vweird.f32 %v1790
        %vm1797 = vmor %vm1795, %vm1796
        %v1798 = vsel %vm1797, %v1790, %v1794
        %v1799 = vand.u32 2147483647, %v1688
        %vm1800 = vcmp.eq.f32.partialorder %v1799, 8.507059e+37
        %v1801 = vand.u32 %v1688, 2147483648
        %v1802 = vor.u32 1.1754944e-38, %v1801
        %v1803 = vsel %vm1800, %v1802, %v1798
        %v1804 = vmul.f32 1.0, %v1803
        %v1805 = vrcp.pop %v1689
        %v1806 = vmul.f32 %v1689, %v1805
        %v1807 = vsub.f32 1.0, %v1806
        %v1808 = vmul.f32 %v1805, %v1807
        %v1809 = vadd.f32 %v1805, %v1808
        %vm1810 = vweird.f32 %v1689
        %vm1811 = vweird.f32 %v1805
        %vm1812 = vmor %vm1810, %vm1811
        %v1813 = vsel %vm1812, %v1805, %v1809
        %v1814 = vand.u32 2147483647, %v1689
        %vm1815 = vcmp.eq.f32.partialorder %v1814, 8.507059e+37
        %v1816 = vand.u32 %v1689, 2147483648
        %v1817 = vor.u32 1.1754944e-38, %v1816
        %v1818 = vsel %vm1815, %v1817, %v1813
        %v1819 = vmul.f32 1.0, %v1818
        %v1820 = vrcp.pop %v1690
        %v1821 = vmul.f32 %v1690, %v1820
        %v1822 = vsub.f32 1.0, %v1821
        %v1823 = vmul.f32 %v1820, %v1822
        %v1824 = vadd.f32 %v1820, %v1823
        %vm1825 = vweird.f32 %v1690
        %vm1826 = vweird.f32 %v1820
        %vm1827 = vmor %vm1825, %vm1826
        %v1828 = vsel %vm1827, %v1820, %v1824
        %v1829 = vand.u32 2147483647, %v1690
        %vm1830 = vcmp.eq.f32.partialorder %v1829, 8.507059e+37
        %v1831 = vand.u32 %v1690, 2147483648
        %v1832 = vor.u32 1.1754944e-38, %v1831
        %v1833 = vsel %vm1830, %v1832, %v1828
        %v1834 = vmul.f32 1.0, %v1833
        %v1835 = vrcp.pop %v1691
        %v1836 = vmul.f32 %v1691, %v1835
        %v1837 = vsub.f32 1.0, %v1836
        %v1838 = vmul.f32 %v1835, %v1837
        %v1839 = vadd.f32 %v1835, %v1838
        %vm1840 = vweird.f32 %v1691
        %vm1841 = vweird.f32 %v1835
        %vm1842 = vmor %vm1840, %vm1841
        %v1843 = vsel %vm1842, %v1835, %v1839
        %v1844 = vand.u32 2147483647, %v1691
        %vm1845 = vcmp.eq.f32.partialorder %v1844, 8.507059e+37
        %v1846 = vand.u32 %v1691, 2147483648
        %v1847 = vor.u32 1.1754944e-38, %v1846
        %v1848 = vsel %vm1845, %v1847, %v1843
        %v1849 = vmul.f32 1.0, %v1848
        %v1850 = vrcp.pop %v1692
        %v1851 = vmul.f32 %v1692, %v1850
        %v1852 = vsub.f32 1.0, %v1851
        %v1853 = vmul.f32 %v1850, %v1852
        %v1854 = vadd.f32 %v1850, %v1853
        %vm1855 = vweird.f32 %v1692
        %vm1856 = vweird.f32 %v1850
        %vm1857 = vmor %vm1855, %vm1856
        %v1858 = vsel %vm1857, %v1850, %v1854
        %v1859 = vand.u32 2147483647, %v1692
        %vm1860 = vcmp.eq.f32.partialorder %v1859, 8.507059e+37
        %v1861 = vand.u32 %v1692, 2147483648
        %v1862 = vor.u32 1.1754944e-38, %v1861
        %v1863 = vsel %vm1860, %v1862, %v1858
        %v1864 = vmul.f32 1.0, %v1863
        %v1865 = vrcp.pop %v1693
        %v1866 = vmul.f32 %v1693, %v1865
        %v1867 = vsub.f32 1.0, %v1866
        %v1868 = vmul.f32 %v1865, %v1867
        %v1869 = vadd.f32 %v1865, %v1868
        %vm1870 = vweird.f32 %v1693
        %vm1871 = vweird.f32 %v1865
        %vm1872 = vmor %vm1870, %vm1871
        %v1873 = vsel %vm1872, %v1865, %v1869
        %v1874 = vand.u32 2147483647, %v1693
        %vm1875 = vcmp.eq.f32.partialorder %v1874, 8.507059e+37
        %v1876 = vand.u32 %v1693, 2147483648
        %v1877 = vor.u32 1.1754944e-38, %v1876
        %v1878 = vsel %vm1875, %v1877, %v1873
        %v1879 = vmul.f32 1.0, %v1878
        %v1880 = vrcp.pop %v1694
        %v1881 = vmul.f32 %v1694, %v1880
        %v1882 = vsub.f32 1.0, %v1881
        %v1883 = vmul.f32 %v1880, %v1882
        %v1884 = vadd.f32 %v1880, %v1883
        %vm1885 = vweird.f32 %v1694
        %vm1886 = vweird.f32 %v1880
        %vm1887 = vmor %vm1885, %vm1886
        %v1888 = vsel %vm1887, %v1880, %v1884
        %v1889 = vand.u32 2147483647, %v1694
        %vm1890 = vcmp.eq.f32.partialorder %v1889, 8.507059e+37
        %v1891 = vand.u32 %v1694, 2147483648
        %v1892 = vor.u32 1.1754944e-38, %v1891
        %v1893 = vsel %vm1890, %v1892, %v1888
        %v1894 = vmul.f32 1.0, %v1893
        %v1895 = vrcp.pop %v1695
        %v1896 = vmul.f32 %v1695, %v1895
        %v1897 = vsub.f32 1.0, %v1896
        %v1898 = vmul.f32 %v1895, %v1897
        %v1899 = vadd.f32 %v1895, %v1898
        %vm1900 = vweird.f32 %v1695
        %vm1901 = vweird.f32 %v1895
        %vm1902 = vmor %vm1900, %vm1901
        %v1903 = vsel %vm1902, %v1895, %v1899
        %v1904 = vand.u32 2147483647, %v1695
        %vm1905 = vcmp.eq.f32.partialorder %v1904, 8.507059e+37
        %v1906 = vand.u32 %v1695, 2147483648
        %v1907 = vor.u32 1.1754944e-38, %v1906
        %v1908 = vsel %vm1905, %v1907, %v1903
        %v1909 = vmul.f32 1.0, %v1908
        %v1910 = vrcp.pop %v1696
        %v1911 = vmul.f32 %v1696, %v1910
        %v1912 = vsub.f32 1.0, %v1911
        %v1913 = vmul.f32 %v1910, %v1912
        %v1914 = vadd.f32 %v1910, %v1913
        %vm1915 = vweird.f32 %v1696
        %vm1916 = vweird.f32 %v1910
        %vm1917 = vmor %vm1915, %vm1916
        %v1918 = vsel %vm1917, %v1910, %v1914
        %v1919 = vand.u32 2147483647, %v1696
        %vm1920 = vcmp.eq.f32.partialorder %v1919, 8.507059e+37
        %v1921 = vand.u32 %v1696, 2147483648
        %v1922 = vor.u32 1.1754944e-38, %v1921
        %v1923 = vsel %vm1920, %v1922, %v1918
        %v1924 = vmul.f32 1.0, %v1923
        %v1925 = vrcp.pop %v1697
        %v1926 = vmul.f32 %v1697, %v1925
        %v1927 = vsub.f32 1.0, %v1926
        %v1928 = vmul.f32 %v1925, %v1927
        %v1929 = vadd.f32 %v1925, %v1928
        %vm1930 = vweird.f32 %v1697
        %vm1931 = vweird.f32 %v1925
        %vm1932 = vmor %vm1930, %vm1931
        %v1933 = vsel %vm1932, %v1925, %v1929
        %v1934 = vand.u32 2147483647, %v1697
        %vm1935 = vcmp.eq.f32.partialorder %v1934, 8.507059e+37
        %v1936 = vand.u32 %v1697, 2147483648
        %v1937 = vor.u32 1.1754944e-38, %v1936
        %v1938 = vsel %vm1935, %v1937, %v1933
        %v1939 = vmul.f32 1.0, %v1938
        %v1940 = vrcp.pop %v1698
        %v1941 = vmul.f32 %v1698, %v1940
        %v1942 = vsub.f32 1.0, %v1941
        %v1943 = vmul.f32 %v1940, %v1942
        %v1944 = vadd.f32 %v1940, %v1943
        %vm1945 = vweird.f32 %v1698
        %vm1946 = vweird.f32 %v1940
        %vm1947 = vmor %vm1945, %vm1946
        %v1948 = vsel %vm1947, %v1940, %v1944
        %v1949 = vand.u32 2147483647, %v1698
        %vm1950 = vcmp.eq.f32.partialorder %v1949, 8.507059e+37
        %v1951 = vand.u32 %v1698, 2147483648
        %v1952 = vor.u32 1.1754944e-38, %v1951
        %v1953 = vsel %vm1950, %v1952, %v1948
        %v1954 = vmul.f32 1.0, %v1953
        %v1955 = vrcp.pop %v1699
        %v1956 = vmul.f32 %v1699, %v1955
        %v1957 = vsub.f32 1.0, %v1956
        %v1958 = vmul.f32 %v1955, %v1957
        %v1959 = vadd.f32 %v1955, %v1958
        %vm1960 = vweird.f32 %v1699
        %vm1961 = vweird.f32 %v1955
        %vm1962 = vmor %vm1960, %vm1961
        %v1963 = vsel %vm1962, %v1955, %v1959
        %v1964 = vand.u32 2147483647, %v1699
        %vm1965 = vcmp.eq.f32.partialorder %v1964, 8.507059e+37
        %v1966 = vand.u32 %v1699, 2147483648
        %v1967 = vor.u32 1.1754944e-38, %v1966
        %v1968 = vsel %vm1965, %v1967, %v1963
        %v1969 = vmul.f32 1.0, %v1968
        %v1970 = vrcp.pop %v1700
        %v1971 = vmul.f32 %v1700, %v1970
        %v1972 = vsub.f32 1.0, %v1971
        %v1973 = vmul.f32 %v1970, %v1972
        %v1974 = vadd.f32 %v1970, %v1973
        %vm1975 = vweird.f32 %v1700
        %vm1976 = vweird.f32 %v1970
        %vm1977 = vmor %vm1975, %vm1976
        %v1978 = vsel %vm1977, %v1970, %v1974
        %v1979 = vand.u32 2147483647, %v1700
        %vm1980 = vcmp.eq.f32.partialorder %v1979, 8.507059e+37
        %v1981 = vand.u32 %v1700, 2147483648
        %v1982 = vor.u32 1.1754944e-38, %v1981
        %v1983 = vsel %vm1980, %v1982, %v1978
        %v1984 = vmul.f32 1.0, %v1983
        %v1985 = vrcp.pop %v1701
        %v1986 = vmul.f32 %v1701, %v1985
        %v1987 = vsub.f32 1.0, %v1986
        %v1988 = vmul.f32 %v1985, %v1987
        %v1989 = vadd.f32 %v1985, %v1988
        %vm1990 = vweird.f32 %v1701
        %vm1991 = vweird.f32 %v1985
        %vm1992 = vmor %vm1990, %vm1991
        %v1993 = vsel %vm1992, %v1985, %v1989
        %v1994 = vand.u32 2147483647, %v1701
        %vm1995 = vcmp.eq.f32.partialorder %v1994, 8.507059e+37
        %v1996 = vand.u32 %v1701, 2147483648
        %v1997 = vor.u32 1.1754944e-38, %v1996
        %v1998 = vsel %vm1995, %v1997, %v1993
        %v1999 = vmul.f32 1.0, %v1998
        %v2000 = vrcp.pop %v1702
        %v2001 = vmul.f32 %v1702, %v2000
        %v2002 = vsub.f32 1.0, %v2001
        %v2003 = vmul.f32 %v2000, %v2002
        %v2004 = vadd.f32 %v2000, %v2003
        %vm2005 = vweird.f32 %v1702
        %vm2006 = vweird.f32 %v2000
        %vm2007 = vmor %vm2005, %vm2006
        %v2008 = vsel %vm2007, %v2000, %v2004
        %v2009 = vand.u32 2147483647, %v1702
        %vm2010 = vcmp.eq.f32.partialorder %v2009, 8.507059e+37
        %v2011 = vand.u32 %v1702, 2147483648
        %v2012 = vor.u32 1.1754944e-38, %v2011
        %v2013 = vsel %vm2010, %v2012, %v2008
        %v2014 = vmul.f32 1.0, %v2013
        %v2015 = vrcp.pop %v1703
        %v2016 = vmul.f32 %v1703, %v2015
        %v2017 = vsub.f32 1.0, %v2016
        %v2018 = vmul.f32 %v2015, %v2017
        %v2019 = vadd.f32 %v2015, %v2018
        %vm2020 = vweird.f32 %v1703
        %vm2021 = vweird.f32 %v2015
        %vm2022 = vmor %vm2020, %vm2021
        %v2023 = vsel %vm2022, %v2015, %v2019
        %v2024 = vand.u32 2147483647, %v1703
        %vm2025 = vcmp.eq.f32.partialorder %v2024, 8.507059e+37
        %v2026 = vand.u32 %v1703, 2147483648
        %v2027 = vor.u32 1.1754944e-38, %v2026
        %v2028 = vsel %vm2025, %v2027, %v2023
        %v2029 = vmul.f32 1.0, %v2028
        %v2030 = vrcp.pop %v1704
        %v2031 = vmul.f32 %v1704, %v2030
        %v2032 = vsub.f32 1.0, %v2031
        %v2033 = vmul.f32 %v2030, %v2032
        %v2034 = vadd.f32 %v2030, %v2033
        %vm2035 = vweird.f32 %v1704
        %vm2036 = vweird.f32 %v2030
        %vm2037 = vmor %vm2035, %vm2036
        %v2038 = vsel %vm2037, %v2030, %v2034
        %v2039 = vand.u32 2147483647, %v1704
        %vm2040 = vcmp.eq.f32.partialorder %v2039, 8.507059e+37
        %v2041 = vand.u32 %v1704, 2147483648
        %v2042 = vor.u32 1.1754944e-38, %v2041
        %v2043 = vsel %vm2040, %v2042, %v2038
        %v2044 = vmul.f32 1.0, %v2043
        %v2045 = vrcp.pop %v1705
        %v2046 = vmul.f32 %v1705, %v2045
        %v2047 = vsub.f32 1.0, %v2046
        %v2048 = vmul.f32 %v2045, %v2047
        %v2049 = vadd.f32 %v2045, %v2048
        %vm2050 = vweird.f32 %v1705
        %vm2051 = vweird.f32 %v2045
        %vm2052 = vmor %vm2050, %vm2051
        %v2053 = vsel %vm2052, %v2045, %v2049
        %v2054 = vand.u32 2147483647, %v1705
        %vm2055 = vcmp.eq.f32.partialorder %v2054, 8.507059e+37
        %v2056 = vand.u32 %v1705, 2147483648
        %v2057 = vor.u32 1.1754944e-38, %v2056
        %v2058 = vsel %vm2055, %v2057, %v2053
        %v2059 = vmul.f32 1.0, %v2058
        %v2060 = vrcp.pop %v1706
        %v2061 = vmul.f32 %v1706, %v2060
        %v2062 = vsub.f32 1.0, %v2061
        %v2063 = vmul.f32 %v2060, %v2062
        %v2064 = vadd.f32 %v2060, %v2063
        %vm2065 = vweird.f32 %v1706
        %vm2066 = vweird.f32 %v2060
        %vm2067 = vmor %vm2065, %vm2066
        %v2068 = vsel %vm2067, %v2060, %v2064
        %v2069 = vand.u32 2147483647, %v1706
        %vm2070 = vcmp.eq.f32.partialorder %v2069, 8.507059e+37
        %v2071 = vand.u32 %v1706, 2147483648
        %v2072 = vor.u32 1.1754944e-38, %v2071
        %v2073 = vsel %vm2070, %v2072, %v2068
        %v2074 = vmul.f32 1.0, %v2073
        %v2075 = vrcp.pop %v1707
        %v2076 = vmul.f32 %v1707, %v2075
        %v2077 = vsub.f32 1.0, %v2076
        %v2078 = vmul.f32 %v2075, %v2077
        %v2079 = vadd.f32 %v2075, %v2078
        %vm2080 = vweird.f32 %v1707
        %vm2081 = vweird.f32 %v2075
        %vm2082 = vmor %vm2080, %vm2081
        %v2083 = vsel %vm2082, %v2075, %v2079
        %v2084 = vand.u32 2147483647, %v1707
        %vm2085 = vcmp.eq.f32.partialorder %v2084, 8.507059e+37
        %v2086 = vand.u32 %v1707, 2147483648
        %v2087 = vor.u32 1.1754944e-38, %v2086
        %v2088 = vsel %vm2085, %v2087, %v2083
        %v2089 = vmul.f32 1.0, %v2088
        %v2090 = vrcp.pop %v1708
        %v2091 = vmul.f32 %v1708, %v2090
        %v2092 = vsub.f32 1.0, %v2091
        %v2093 = vmul.f32 %v2090, %v2092
        %v2094 = vadd.f32 %v2090, %v2093
        %vm2095 = vweird.f32 %v1708
        %vm2096 = vweird.f32 %v2090
        %vm2097 = vmor %vm2095, %vm2096
        %v2098 = vsel %vm2097, %v2090, %v2094
        %v2099 = vand.u32 2147483647, %v1708
        %vm2100 = vcmp.eq.f32.partialorder %v2099, 8.507059e+37
        %v2101 = vand.u32 %v1708, 2147483648
        %v2102 = vor.u32 1.1754944e-38, %v2101
        %v2103 = vsel %vm2100, %v2102, %v2098
        %v2104 = vmul.f32 1.0, %v2103
        %v2105 = vrcp.pop %v1709
        %v2106 = vmul.f32 %v1709, %v2105
        %v2107 = vsub.f32 1.0, %v2106
        %v2108 = vmul.f32 %v2105, %v2107
        %v2109 = vadd.f32 %v2105, %v2108
        %vm2110 = vweird.f32 %v1709
        %vm2111 = vweird.f32 %v2105
        %vm2112 = vmor %vm2110, %vm2111
        %v2113 = vsel %vm2112, %v2105, %v2109
        %v2114 = vand.u32 2147483647, %v1709
        %vm2115 = vcmp.eq.f32.partialorder %v2114, 8.507059e+37
        %v2116 = vand.u32 %v1709, 2147483648
        %v2117 = vor.u32 1.1754944e-38, %v2116
        %v2118 = vsel %vm2115, %v2117, %v2113
        %v2119 = vmul.f32 1.0, %v2118
        %v2120 = vrcp.pop %v1710
        %v2121 = vmul.f32 %v1710, %v2120
        %v2122 = vsub.f32 1.0, %v2121
        %v2123 = vmul.f32 %v2120, %v2122
        %v2124 = vadd.f32 %v2120, %v2123
        %vm2125 = vweird.f32 %v1710
        %vm2126 = vweird.f32 %v2120
        %vm2127 = vmor %vm2125, %vm2126
        %v2128 = vsel %vm2127, %v2120, %v2124
        %v2129 = vand.u32 2147483647, %v1710
        %vm2130 = vcmp.eq.f32.partialorder %v2129, 8.507059e+37
        %v2131 = vand.u32 %v1710, 2147483648
        %v2132 = vor.u32 1.1754944e-38, %v2131
        %v2133 = vsel %vm2130, %v2132, %v2128
        %v2134 = vmul.f32 1.0, %v2133
        %v2135 = vrcp.pop %v1711
        %v2136 = vmul.f32 %v1711, %v2135
        %v2137 = vsub.f32 1.0, %v2136
        %v2138 = vmul.f32 %v2135, %v2137
        %v2139 = vadd.f32 %v2135, %v2138
        %vm2140 = vweird.f32 %v1711
        %vm2141 = vweird.f32 %v2135
        %vm2142 = vmor %vm2140, %vm2141
        %v2143 = vsel %vm2142, %v2135, %v2139
        %v2144 = vand.u32 2147483647, %v1711
        %vm2145 = vcmp.eq.f32.partialorder %v2144, 8.507059e+37
        %v2146 = vand.u32 %v1711, 2147483648
        %v2147 = vor.u32 1.1754944e-38, %v2146
        %v2148 = vsel %vm2145, %v2147, %v2143
        %v2149 = vmul.f32 1.0, %v2148
        %v2150 = vrcp.pop %v1712
        %v2151 = vmul.f32 %v1712, %v2150
        %v2152 = vsub.f32 1.0, %v2151
        %v2153 = vmul.f32 %v2150, %v2152
        %v2154 = vadd.f32 %v2150, %v2153
        %vm2155 = vweird.f32 %v1712
        %vm2156 = vweird.f32 %v2150
        %vm2157 = vmor %vm2155, %vm2156
        %v2158 = vsel %vm2157, %v2150, %v2154
        %v2159 = vand.u32 2147483647, %v1712
        %vm2160 = vcmp.eq.f32.partialorder %v2159, 8.507059e+37
        %v2161 = vand.u32 %v1712, 2147483648
        %v2162 = vor.u32 1.1754944e-38, %v2161
        %v2163 = vsel %vm2160, %v2162, %v2158
        %v2164 = vmul.f32 1.0, %v2163
        %v2165 = vrcp.pop %v1713
        %v2166 = vmul.f32 %v1713, %v2165
        %v2167 = vsub.f32 1.0, %v2166
        %v2168 = vmul.f32 %v2165, %v2167
        %v2169 = vadd.f32 %v2165, %v2168
        %vm2170 = vweird.f32 %v1713
        %vm2171 = vweird.f32 %v2165
        %vm2172 = vmor %vm2170, %vm2171
        %v2173 = vsel %vm2172, %v2165, %v2169
        %v2174 = vand.u32 2147483647, %v1713
        %vm2175 = vcmp.eq.f32.partialorder %v2174, 8.507059e+37
        %v2176 = vand.u32 %v1713, 2147483648
        %v2177 = vor.u32 1.1754944e-38, %v2176
        %v2178 = vsel %vm2175, %v2177, %v2173
        %v2179 = vmul.f32 1.0, %v2178
        %v2180 = vrcp.pop %v1714
        %v2181 = vmul.f32 %v1714, %v2180
        %v2182 = vsub.f32 1.0, %v2181
        %v2183 = vmul.f32 %v2180, %v2182
        %v2184 = vadd.f32 %v2180, %v2183
        %vm2185 = vweird.f32 %v1714
        %vm2186 = vweird.f32 %v2180
        %vm2187 = vmor %vm2185, %vm2186
        %v2188 = vsel %vm2187, %v2180, %v2184
        %v2189 = vand.u32 2147483647, %v1714
        %vm2190 = vcmp.eq.f32.partialorder %v2189, 8.507059e+37
        %v2191 = vand.u32 %v1714, 2147483648
        %v2192 = vor.u32 1.1754944e-38, %v2191
        %v2193 = vsel %vm2190, %v2192, %v2188
        %v2194 = vmul.f32 1.0, %v2193
        %v2195 = vmul.f32 %v1365, %v1729
        %v2196 = vmul.f32 %v1394, %v1744
        %v2197 = vmul.f32 %v1423, %v1759
        %v2198 = vmul.f32 %v1452, %v1774
        %v2199 = vmul.f32 %v1367, %v1789
        %v2200 = vmul.f32 %v1396, %v1804
        %v2201 = vmul.f32 %v1425, %v1819
        %v2202 = vmul.f32 %v1454, %v1834
        %v2203 = vmul.f32 %v1370, %v1849
        %v2204 = vmul.f32 %v1399, %v1864
        %v2205 = vmul.f32 %v1428, %v1879
        %v2206 = vmul.f32 %v1457, %v1894
        %v2207 = vmul.f32 %v1372, %v1909
        %v2208 = vmul.f32 %v1401, %v1924
        %v2209 = vmul.f32 %v1430, %v1939
        %v2210 = vmul.f32 %v1459, %v1954
        %v2211 = vmul.f32 %v1375, %v1969
        %v2212 = vmul.f32 %v1404, %v1984
        %v2213 = vmul.f32 %v1433, %v1999
        %v2214 = vmul.f32 %v1462, %v2014
        %v2215 = vmul.f32 %v1377, %v2029
        %v2216 = vmul.f32 %v1406, %v2044
        %v2217 = vmul.f32 %v1435, %v2059
        %v2218 = vmul.f32 %v1464, %v2074
        %v2219 = vmul.f32 %v1380, %v2089
        %v2220 = vmul.f32 %v1409, %v2104
        %v2221 = vmul.f32 %v1438, %v2119
        %v2222 = vmul.f32 %v1467, %v2134
        %v2223 = vmul.f32 %v1382, %v2149
        %v2224 = vmul.f32 %v1411, %v2164
        %v2225 = vmul.f32 %v1440, %v2179
        %v2226 = vmul.f32 %v1469, %v2194
        %v2227 = vmul.f32 %v2195, %v1481
        %v2228 = vmul.f32 %v2196, %v1510
        %v2229 = vmul.f32 %v2197, %v1539
        %v2230 = vmul.f32 %v2198, %v1568
        %v2231 = vmul.f32 %v2199, %v1483
        %v2232 = vmul.f32 %v2200, %v1512
        %v2233 = vmul.f32 %v2201, %v1541
        %v2234 = vmul.f32 %v2202, %v1570
        %v2235 = vmul.f32 %v2203, %v1486
        %v2236 = vmul.f32 %v2204, %v1515
        %v2237 = vmul.f32 %v2205, %v1544
        %v2238 = vmul.f32 %v2206, %v1573
        %v2239 = vmul.f32 %v2207, %v1488
        %v2240 = vmul.f32 %v2208, %v1517
        %v2241 = vmul.f32 %v2209, %v1546
        %v2242 = vmul.f32 %v2210, %v1575
        %v2243 = vmul.f32 %v2211, %v1491
        %v2244 = vmul.f32 %v2212, %v1520
        %v2245 = vmul.f32 %v2213, %v1549
        %v2246 = vmul.f32 %v2214, %v1578
        %v2247 = vmul.f32 %v2215, %v1493
        %v2248 = vmul.f32 %v2216, %v1522
        %v2249 = vmul.f32 %v2217, %v1551
        %v2250 = vmul.f32 %v2218, %v1580
        %v2251 = vmul.f32 %v2219, %v1496
        %v2252 = vmul.f32 %v2220, %v1525
        %v2253 = vmul.f32 %v2221, %v1554
        %v2254 = vmul.f32 %v2222, %v1583
        %v2255 = vmul.f32 %v2223, %v1498
        %v2256 = vmul.f32 %v2224, %v1527
        %v2257 = vmul.f32 %v2225, %v1556
        %v2258 = vmul.f32 %v2226, %v1585
        %v2259 = vld [vmem:[#allocation4] sm:$0xf]
        %v2260 = vmul.f32 %v2227, %v2227
        %v2261 = vmul.f32 %v2228, %v2228
        %v2262 = vmul.f32 %v2229, %v2229
        %v2263 = vmul.f32 %v2230, %v2230
        %v2264 = vmul.f32 %v2231, %v2231
        %v2265 = vmul.f32 %v2232, %v2232
        %v2266 = vmul.f32 %v2233, %v2233
        %v2267 = vmul.f32 %v2234, %v2234
        %v2268 = vmul.f32 %v2235, %v2235
        %v2269 = vmul.f32 %v2236, %v2236
        %v2270 = vmul.f32 %v2237, %v2237
        %v2271 = vmul.f32 %v2238, %v2238
        %v2272 = vmul.f32 %v2239, %v2239
        %v2273 = vmul.f32 %v2240, %v2240
        %v2274 = vmul.f32 %v2241, %v2241
        %v2275 = vmul.f32 %v2242, %v2242
        %v2276 = vmul.f32 %v2243, %v2243
        %v2277 = vmul.f32 %v2244, %v2244
        %v2278 = vmul.f32 %v2245, %v2245
        %v2279 = vmul.f32 %v2246, %v2246
        %v2280 = vmul.f32 %v2247, %v2247
        %v2281 = vmul.f32 %v2248, %v2248
        %v2282 = vmul.f32 %v2249, %v2249
        %v2283 = vmul.f32 %v2250, %v2250
        %v2284 = vmul.f32 %v2251, %v2251
        %v2285 = vmul.f32 %v2252, %v2252
        %v2286 = vmul.f32 %v2253, %v2253
        %v2287 = vmul.f32 %v2254, %v2254
        %v2288 = vmul.f32 %v2255, %v2255
        %v2289 = vmul.f32 %v2256, %v2256
        %v2290 = vmul.f32 %v2257, %v2257
        %v2291 = vmul.f32 %v2258, %v2258
        %v2292 = vadd.f32 %v2260, %v2264
        %v2293 = vadd.f32 %v2292, %v2268
        %v2294 = vadd.f32 %v2293, %v2272
        %v2295 = vadd.f32 %v2294, %v2276
        %v2296 = vadd.f32 %v2295, %v2280
        %v2297 = vadd.f32 %v2296, %v2284
        %v2298 = vadd.f32 %v2297, %v2288
        %v2299 = vrot.slane %v2298, 4
        %v2300 = vadd.f32 %v2298, %v2299
        %v2301 = vrot.slane %v2300, 2
        %v2302 = vadd.f32 %v2300, %v2301
        %v2303 = vrot.slane %v2302, 1
        %v2304 = vadd.f32 %v2302, %v2303
        %v2305 = vadd.f32 %v2261, %v2265
        %v2306 = vadd.f32 %v2305, %v2269
        %v2307 = vadd.f32 %v2306, %v2273
        %v2308 = vadd.f32 %v2307, %v2277
        %v2309 = vadd.f32 %v2308, %v2281
        %v2310 = vadd.f32 %v2309, %v2285
        %v2311 = vadd.f32 %v2310, %v2289
        %v2312 = vrot.slane %v2311, 4
        %v2313 = vadd.f32 %v2311, %v2312
        %v2314 = vrot.slane %v2313, 2
        %v2315 = vadd.f32 %v2313, %v2314
        %v2316 = vrot.slane %v2315, 1
        %v2317 = vadd.f32 %v2315, %v2316
        %v2318 = vadd.f32 %v2262, %v2266
        %v2319 = vadd.f32 %v2318, %v2270
        %v2320 = vadd.f32 %v2319, %v2274
        %v2321 = vadd.f32 %v2320, %v2278
        %v2322 = vadd.f32 %v2321, %v2282
        %v2323 = vadd.f32 %v2322, %v2286
        %v2324 = vadd.f32 %v2323, %v2290
        %v2325 = vrot.slane %v2324, 4
        %v2326 = vadd.f32 %v2324, %v2325
        %v2327 = vrot.slane %v2326, 2
        %v2328 = vadd.f32 %v2326, %v2327
        %v2329 = vrot.slane %v2328, 1
        %v2330 = vadd.f32 %v2328, %v2329
        %v2331 = vadd.f32 %v2263, %v2267
        %v2332 = vadd.f32 %v2331, %v2271
        %v2333 = vadd.f32 %v2332, %v2275
        %v2334 = vadd.f32 %v2333, %v2279
        %v2335 = vadd.f32 %v2334, %v2283
        %v2336 = vadd.f32 %v2335, %v2287
        %v2337 = vadd.f32 %v2336, %v2291
        %v2338 = vrot.slane %v2337, 4
        %v2339 = vadd.f32 %v2337, %v2338
        %v2340 = vrot.slane %v2339, 2
        %v2341 = vadd.f32 %v2339, %v2340
        %v2342 = vrot.slane %v2341, 1
        %v2343 = vadd.f32 %v2341, %v2342
        %v2348 = vrot.slane %v2317, 7
        %v2349 = vrot.slane %v2330, 6
        %v2350 = vrot.slane %v2343, 5
        %vm2351 = vcmask 1040384
        %v2352 = vsel %vm2351, %v2304, %v2348
        %vm2353 = vcmask 1042434
        %v2354 = vsel %vm2353, %v2349, %v2350
        %vm2355 = vcmask 1041408
        %v2356 = vsel %vm2355, %v2352, %v2354
        %v2358 = vadd.f32 %v2259, %v2356
        %v2359 = vlaneseq
        %vm2360 = vcmp.ge.s32.totalorder %v2359, 0
        %vm2361 = vcmp.lt.s32.totalorder %v2359, 512
        %vm2362 = vmand %vm2360, %vm2361
        %2363 = vst.msk [vmem:[#allocation4] sm:$0xf] %vm2362, %v2358
        %v2364 = vpack.c.bf16 %v2228, %v2227
        %v2365 = vpack.c.bf16 %v2230, %v2229
        %v2366 = vpack.c.bf16 %v2232, %v2231
        %v2367 = vpack.c.bf16 %v2234, %v2233
        %v2368 = vpack.c.bf16 %v2236, %v2235
        %v2369 = vpack.c.bf16 %v2238, %v2237
        %v2370 = vpack.c.bf16 %v2240, %v2239
        %v2371 = vpack.c.bf16 %v2242, %v2241
        %v2372 = vpack.c.bf16 %v2244, %v2243
        %v2373 = vpack.c.bf16 %v2246, %v2245
        %v2374 = vpack.c.bf16 %v2248, %v2247
        %v2375 = vpack.c.bf16 %v2250, %v2249
        %v2376 = vpack.c.bf16 %v2252, %v2251
        %v2377 = vpack.c.bf16 %v2254, %v2253
        %v2378 = vpack.c.bf16 %v2256, %v2255
        %v2379 = vpack.c.bf16 %v2258, %v2257
        %s2380 = sshra.s32 %s443, 3
        %s2381 = sand.u32 %s443, 7
        %s2382 = smul.u32 %s2380, 4
        %s2383 = smul.addr %s2382, 4
        %s2384 = scalar_lea.vmem [#allocation3], %s2383
        %2385 = vst [vmem:[%s2384] sm:$0xff] %v2364
        %2386 = vst [vmem:[%s2384 + $0x8] sm:$0xff] %v2365
        %2387 = vst [vmem:[%s2384 + $0x10] sm:$0xff] %v2366
        %2388 = vst [vmem:[%s2384 + $0x18] sm:$0xff] %v2367
        %2389 = vst [vmem:[%s2384 + $0x20] sm:$0xff] %v2368
        %2390 = vst [vmem:[%s2384 + $0x28] sm:$0xff] %v2369
        %2391 = vst [vmem:[%s2384 + $0x30] sm:$0xff] %v2370
        %2392 = vst [vmem:[%s2384 + $0x38] sm:$0xff] %v2371
        %2393 = vst [vmem:[%s2384 + $0x40] sm:$0xff] %v2372
        %2394 = vst [vmem:[%s2384 + $0x48] sm:$0xff] %v2373
        %2395 = vst [vmem:[%s2384 + $0x50] sm:$0xff] %v2374
        %2396 = vst [vmem:[%s2384 + $0x58] sm:$0xff] %v2375
        %2397 = vst [vmem:[%s2384 + $0x60] sm:$0xff] %v2376
        %2398 = vst [vmem:[%s2384 + $0x68] sm:$0xff] %v2377
        %2399 = vst [vmem:[%s2384 + $0x70] sm:$0xff] %v2378
        %2400 = vst [vmem:[%s2384 + $0x78] sm:$0xff] %v2379
      $region87: #{convnext_v2_glu_like_encoder.2} parent=59 // pred_fallthru
        _
      %p2401 = scmp.eq.s32.totalorder %s28, 1
      // Predicated region
      $region88: #{convnext_v2_glu_like_encoder.2} parent=59 // pred_check
        %p2402 = pneg %p2401
      $region89: #{convnext_v2_glu_like_encoder.2} parent=59 // pred_check_branch
        %2404 = sbr.rel (%p2402) target = $region91
      $region90: #{convnext_v2_glu_like_encoder.2} parent=59 // pred_region
        // Predicated region
        $region92: #{convnext_v2_glu_like_encoder.2} parent=90 // pred_check
          %p2405 = pneg %p377
        $region93: #{convnext_v2_glu_like_encoder.2} parent=90 // pred_check_branch
          %2407 = sbr.rel (%p2405) target = $region95
        $region94: #{convnext_v2_glu_like_encoder.2} parent=90 // pred_region
          %v2408 = vld [vmem:[#allocation4] sm:$0xf]
          %v2409 = vrsqrt.pop %v2408
          %v2410 = vmul.f32 %v2409, %v2408
          %v2411 = vmul.f32 %v2410, %v2409
          %v2412 = vmul.f32 0.5, %v2411
          %v2413 = vsub.f32 1.5, %v2412
          %v2414 = vmul.f32 %v2409, %v2413
          %v2415 = vmul.f32 %v2408, %v2414
          %vm2416 = vcmp.eq.f32.partialorder %v2408, inf
          %v2417 = vsel %vm2416, %v2408, %v2415
          %vm2418 = vcmp.eq.f32.partialorder %v2408, 0.0
          %v2419 = vand.u32 %v2408, 2147483648
          %v2420 = vsel %vm2418, %v2419, %v2417
          %v2422 = vperm.slane %v2420, 0
          %v2423 = vperm.slane %v2420, 1
          %v2424 = vperm.slane %v2420, 2
          %v2425 = vperm.slane %v2420, 3
          %vm2430 = vcmask 1040384
          %v2431 = vsel %vm2430, %v2422, 0.0
          %v2432 = vsel %vm2430, %v2423, 0.0
          %v2433 = vadd.f32 %v2431, %v2432
          %v2434 = vsel %vm2430, %v2424, 0.0
          %v2435 = vadd.f32 %v2433, %v2434
          %v2436 = vsel %vm2430, %v2425, 0.0
          %v2437 = vadd.f32 %v2435, %v2436
          %2438 = vadd.xlane.f32.xlu0 %v2437
          %v2439 = vpop.xlane.xlu0 %2438
          %v2440 = vrcp.pop 512.0
          %v2441 = vmul.f32 512.0, %v2440
          %v2442 = vsub.f32 1.0, %v2441
          %v2443 = vmul.f32 %v2440, %v2442
          %v2444 = vadd.f32 %v2440, %v2443
          %vm2445 = vweird.f32 %v2440
          %v2446 = vsel %vm2445, %v2440, %v2444
          %v2447 = vmul.f32 %v2439, %v2446
          %v2448 = vadd.f32 %v2447, 1e-06
          %v2450 = vperm.slane %v2448, 0
          %v2452 = vrcp.pop %v2450
          %v2453 = vmul.f32 %v2450, %v2452
          %v2454 = vsub.f32 1.0, %v2453
          %v2455 = vmul.f32 %v2452, %v2454
          %v2456 = vadd.f32 %v2452, %v2455
          %vm2457 = vweird.f32 %v2450
          %vm2458 = vweird.f32 %v2452
          %vm2459 = vmor %vm2457, %vm2458
          %v2460 = vsel %vm2459, %v2452, %v2456
          %v2461 = vand.u32 2147483647, %v2450
          %vm2462 = vcmp.eq.f32.partialorder %v2461, 8.507059e+37
          %v2463 = vand.u32 %v2450, 2147483648
          %v2464 = vor.u32 1.1754944e-38, %v2463
          %v2465 = vsel %vm2462, %v2464, %v2460
          %v2466 = vmul.f32 %v2420, %v2465
          %v2467 = vlaneseq
          %vm2468 = vcmp.ge.s32.totalorder %v2467, 0
          %vm2469 = vcmp.lt.s32.totalorder %v2467, 512
          %vm2470 = vmand %vm2468, %vm2469
          %2471 = vst.msk [vmem:[#allocation5] sm:$0xf] %vm2470, %v2466
        $region95: #{convnext_v2_glu_like_encoder.2} parent=90 // pred_fallthru
          _
        %s2472 = sshra.s32 %s443, 3
        %s2473 = sand.u32 %s443, 7
        %s2474 = smul.u32 %s2472, 4
        %s2475 = smul.addr %s2474, 4
        %s2476 = scalar_lea.vmem [#allocation3], %s2475
        %v2477 = vld [vmem:[%s2476] sm:$0xff]
        %v2478 = vld [vmem:[%s2476 + $0x8] sm:$0xff]
        %v2479 = vld [vmem:[%s2476 + $0x10] sm:$0xff]
        %v2480 = vld [vmem:[%s2476 + $0x18] sm:$0xff]
        %v2481 = vld [vmem:[%s2476 + $0x20] sm:$0xff]
        %v2482 = vld [vmem:[%s2476 + $0x28] sm:$0xff]
        %v2483 = vld [vmem:[%s2476 + $0x30] sm:$0xff]
        %v2484 = vld [vmem:[%s2476 + $0x38] sm:$0xff]
        %v2485 = vld [vmem:[%s2476 + $0x40] sm:$0xff]
        %v2486 = vld [vmem:[%s2476 + $0x48] sm:$0xff]
        %v2487 = vld [vmem:[%s2476 + $0x50] sm:$0xff]
        %v2488 = vld [vmem:[%s2476 + $0x58] sm:$0xff]
        %v2489 = vld [vmem:[%s2476 + $0x60] sm:$0xff]
        %v2490 = vld [vmem:[%s2476 + $0x68] sm:$0xff]
        %v2491 = vld [vmem:[%s2476 + $0x70] sm:$0xff]
        %v2492 = vld [vmem:[%s2476 + $0x78] sm:$0xff]
        %v2493 = vunpack.c.l.bf16 %v2477
        %v2494 = vunpack.c.h.bf16 %v2477
        %v2495 = vunpack.c.l.bf16 %v2478
        %v2496 = vunpack.c.h.bf16 %v2478
        %v2497 = vunpack.c.l.bf16 %v2479
        %v2498 = vunpack.c.h.bf16 %v2479
        %v2499 = vunpack.c.l.bf16 %v2480
        %v2500 = vunpack.c.h.bf16 %v2480
        %v2501 = vunpack.c.l.bf16 %v2481
        %v2502 = vunpack.c.h.bf16 %v2481
        %v2503 = vunpack.c.l.bf16 %v2482
        %v2504 = vunpack.c.h.bf16 %v2482
        %v2505 = vunpack.c.l.bf16 %v2483
        %v2506 = vunpack.c.h.bf16 %v2483
        %v2507 = vunpack.c.l.bf16 %v2484
        %v2508 = vunpack.c.h.bf16 %v2484
        %v2509 = vunpack.c.l.bf16 %v2485
        %v2510 = vunpack.c.h.bf16 %v2485
        %v2511 = vunpack.c.l.bf16 %v2486
        %v2512 = vunpack.c.h.bf16 %v2486
        %v2513 = vunpack.c.l.bf16 %v2487
        %v2514 = vunpack.c.h.bf16 %v2487
        %v2515 = vunpack.c.l.bf16 %v2488
        %v2516 = vunpack.c.h.bf16 %v2488
        %v2517 = vunpack.c.l.bf16 %v2489
        %v2518 = vunpack.c.h.bf16 %v2489
        %v2519 = vunpack.c.l.bf16 %v2490
        %v2520 = vunpack.c.h.bf16 %v2490
        %v2521 = vunpack.c.l.bf16 %v2491
        %v2522 = vunpack.c.h.bf16 %v2491
        %v2523 = vunpack.c.l.bf16 %v2492
        %v2524 = vunpack.c.h.bf16 %v2492
        %v2525 = vld [vmem:[#allocation5] sm:$0xf]
        %v2526 = vld [vmem:[%s7] sm:$0xf]
        %v2528 = vperm.slane %v2525, 0
        %v2529 = vperm.slane %v2525, 1
        %v2530 = vperm.slane %v2525, 2
        %v2531 = vperm.slane %v2525, 3
        %v2536 = vmul.f32 %v2493, %v2528
        %v2537 = vmul.f32 %v2494, %v2529
        %v2538 = vmul.f32 %v2495, %v2530
        %v2539 = vmul.f32 %v2496, %v2531
        %v2540 = vmul.f32 %v2497, %v2528
        %v2541 = vmul.f32 %v2498, %v2529
        %v2542 = vmul.f32 %v2499, %v2530
        %v2543 = vmul.f32 %v2500, %v2531
        %v2544 = vmul.f32 %v2501, %v2528
        %v2545 = vmul.f32 %v2502, %v2529
        %v2546 = vmul.f32 %v2503, %v2530
        %v2547 = vmul.f32 %v2504, %v2531
        %v2548 = vmul.f32 %v2505, %v2528
        %v2549 = vmul.f32 %v2506, %v2529
        %v2550 = vmul.f32 %v2507, %v2530
        %v2551 = vmul.f32 %v2508, %v2531
        %v2552 = vmul.f32 %v2509, %v2528
        %v2553 = vmul.f32 %v2510, %v2529
        %v2554 = vmul.f32 %v2511, %v2530
        %v2555 = vmul.f32 %v2512, %v2531
        %v2556 = vmul.f32 %v2513, %v2528
        %v2557 = vmul.f32 %v2514, %v2529
        %v2558 = vmul.f32 %v2515, %v2530
        %v2559 = vmul.f32 %v2516, %v2531
        %v2560 = vmul.f32 %v2517, %v2528
        %v2561 = vmul.f32 %v2518, %v2529
        %v2562 = vmul.f32 %v2519, %v2530
        %v2563 = vmul.f32 %v2520, %v2531
        %v2564 = vmul.f32 %v2521, %v2528
        %v2565 = vmul.f32 %v2522, %v2529
        %v2566 = vmul.f32 %v2523, %v2530
        %v2567 = vmul.f32 %v2524, %v2531
        %v2569 = vperm.slane %v2526, 0
        %v2570 = vperm.slane %v2526, 1
        %v2571 = vperm.slane %v2526, 2
        %v2572 = vperm.slane %v2526, 3
        %v2577 = vmul.f32 %v2569, %v2536
        %v2578 = vmul.f32 %v2570, %v2537
        %v2579 = vmul.f32 %v2571, %v2538
        %v2580 = vmul.f32 %v2572, %v2539
        %v2581 = vmul.f32 %v2569, %v2540
        %v2582 = vmul.f32 %v2570, %v2541
        %v2583 = vmul.f32 %v2571, %v2542
        %v2584 = vmul.f32 %v2572, %v2543
        %v2585 = vmul.f32 %v2569, %v2544
        %v2586 = vmul.f32 %v2570, %v2545
        %v2587 = vmul.f32 %v2571, %v2546
        %v2588 = vmul.f32 %v2572, %v2547
        %v2589 = vmul.f32 %v2569, %v2548
        %v2590 = vmul.f32 %v2570, %v2549
        %v2591 = vmul.f32 %v2571, %v2550
        %v2592 = vmul.f32 %v2572, %v2551
        %v2593 = vmul.f32 %v2569, %v2552
        %v2594 = vmul.f32 %v2570, %v2553
        %v2595 = vmul.f32 %v2571, %v2554
        %v2596 = vmul.f32 %v2572, %v2555
        %v2597 = vmul.f32 %v2569, %v2556
        %v2598 = vmul.f32 %v2570, %v2557
        %v2599 = vmul.f32 %v2571, %v2558
        %v2600 = vmul.f32 %v2572, %v2559
        %v2601 = vmul.f32 %v2569, %v2560
        %v2602 = vmul.f32 %v2570, %v2561
        %v2603 = vmul.f32 %v2571, %v2562
        %v2604 = vmul.f32 %v2572, %v2563
        %v2605 = vmul.f32 %v2569, %v2564
        %v2606 = vmul.f32 %v2570, %v2565
        %v2607 = vmul.f32 %v2571, %v2566
        %v2608 = vmul.f32 %v2572, %v2567
        %v2609 = vld [vmem:[%s8] sm:$0xf]
        %v2611 = vperm.slane %v2609, 0
        %v2612 = vperm.slane %v2609, 1
        %v2613 = vperm.slane %v2609, 2
        %v2614 = vperm.slane %v2609, 3
        %v2619 = vadd.f32 %v2577, %v2611
        %v2620 = vadd.f32 %v2578, %v2612
        %v2621 = vadd.f32 %v2579, %v2613
        %v2622 = vadd.f32 %v2580, %v2614
        %v2623 = vadd.f32 %v2581, %v2611
        %v2624 = vadd.f32 %v2582, %v2612
        %v2625 = vadd.f32 %v2583, %v2613
        %v2626 = vadd.f32 %v2584, %v2614
        %v2627 = vadd.f32 %v2585, %v2611
        %v2628 = vadd.f32 %v2586, %v2612
        %v2629 = vadd.f32 %v2587, %v2613
        %v2630 = vadd.f32 %v2588, %v2614
        %v2631 = vadd.f32 %v2589, %v2611
        %v2632 = vadd.f32 %v2590, %v2612
        %v2633 = vadd.f32 %v2591, %v2613
        %v2634 = vadd.f32 %v2592, %v2614
        %v2635 = vadd.f32 %v2593, %v2611
        %v2636 = vadd.f32 %v2594, %v2612
        %v2637 = vadd.f32 %v2595, %v2613
        %v2638 = vadd.f32 %v2596, %v2614
        %v2639 = vadd.f32 %v2597, %v2611
        %v2640 = vadd.f32 %v2598, %v2612
        %v2641 = vadd.f32 %v2599, %v2613
        %v2642 = vadd.f32 %v2600, %v2614
        %v2643 = vadd.f32 %v2601, %v2611
        %v2644 = vadd.f32 %v2602, %v2612
        %v2645 = vadd.f32 %v2603, %v2613
        %v2646 = vadd.f32 %v2604, %v2614
        %v2647 = vadd.f32 %v2605, %v2611
        %v2648 = vadd.f32 %v2606, %v2612
        %v2649 = vadd.f32 %v2607, %v2613
        %v2650 = vadd.f32 %v2608, %v2614
        %v2651 = vadd.f32 %v2619, %v2493
        %v2652 = vadd.f32 %v2620, %v2494
        %v2653 = vadd.f32 %v2621, %v2495
        %v2654 = vadd.f32 %v2622, %v2496
        %v2655 = vadd.f32 %v2623, %v2497
        %v2656 = vadd.f32 %v2624, %v2498
        %v2657 = vadd.f32 %v2625, %v2499
        %v2658 = vadd.f32 %v2626, %v2500
        %v2659 = vadd.f32 %v2627, %v2501
        %v2660 = vadd.f32 %v2628, %v2502
        %v2661 = vadd.f32 %v2629, %v2503
        %v2662 = vadd.f32 %v2630, %v2504
        %v2663 = vadd.f32 %v2631, %v2505
        %v2664 = vadd.f32 %v2632, %v2506
        %v2665 = vadd.f32 %v2633, %v2507
        %v2666 = vadd.f32 %v2634, %v2508
        %v2667 = vadd.f32 %v2635, %v2509
        %v2668 = vadd.f32 %v2636, %v2510
        %v2669 = vadd.f32 %v2637, %v2511
        %v2670 = vadd.f32 %v2638, %v2512
        %v2671 = vadd.f32 %v2639, %v2513
        %v2672 = vadd.f32 %v2640, %v2514
        %v2673 = vadd.f32 %v2641, %v2515
        %v2674 = vadd.f32 %v2642, %v2516
        %v2675 = vadd.f32 %v2643, %v2517
        %v2676 = vadd.f32 %v2644, %v2518
        %v2677 = vadd.f32 %v2645, %v2519
        %v2678 = vadd.f32 %v2646, %v2520
        %v2679 = vadd.f32 %v2647, %v2521
        %v2680 = vadd.f32 %v2648, %v2522
        %v2681 = vadd.f32 %v2649, %v2523
        %v2682 = vadd.f32 %v2650, %v2524
        %v2683 = vpack.c.bf16 %v2655, %v2651
        %v2684 = vpack.c.bf16 %v2656, %v2652
        %v2685 = vpack.c.bf16 %v2657, %v2653
        %v2686 = vpack.c.bf16 %v2658, %v2654
        %v2687 = vpack.c.bf16 %v2663, %v2659
        %v2688 = vpack.c.bf16 %v2664, %v2660
        %v2689 = vpack.c.bf16 %v2665, %v2661
        %v2690 = vpack.c.bf16 %v2666, %v2662
        %v2691 = vpack.c.bf16 %v2671, %v2667
        %v2692 = vpack.c.bf16 %v2672, %v2668
        %v2693 = vpack.c.bf16 %v2673, %v2669
        %v2694 = vpack.c.bf16 %v2674, %v2670
        %v2695 = vpack.c.bf16 %v2679, %v2675
        %v2696 = vpack.c.bf16 %v2680, %v2676
        %v2697 = vpack.c.bf16 %v2681, %v2677
        %v2698 = vpack.c.bf16 %v2682, %v2678
        %v2699 = vld [vmem:[%s9] sm:$0xf]
        %v2700 = vld [vmem:[%s9 + $0x4] sm:$0xf]
        %v2701 = vld [vmem:[%s9 + $0x8] sm:$0xf]
        %v2702 = vld [vmem:[%s9 + $0xc] sm:$0xf]
        %v2703 = vld [vmem:[%s9 + $0x10] sm:$0xf]
        %v2704 = vld [vmem:[%s9 + $0x14] sm:$0xf]
        %v2705 = vld [vmem:[%s9 + $0x18] sm:$0xf]
        %v2706 = vld [vmem:[%s9 + $0x1c] sm:$0xf]
        %v2707 = vld [vmem:[%s9 + $0x20] sm:$0xf]
        %v2708 = vld [vmem:[%s9 + $0x24] sm:$0xf]
        %v2709 = vld [vmem:[%s9 + $0x28] sm:$0xf]
        %v2710 = vld [vmem:[%s9 + $0x2c] sm:$0xf]
        %v2711 = vld [vmem:[%s9 + $0x30] sm:$0xf]
        %v2712 = vld [vmem:[%s9 + $0x34] sm:$0xf]
        %v2713 = vld [vmem:[%s9 + $0x38] sm:$0xf]
        %v2714 = vld [vmem:[%s9 + $0x3c] sm:$0xf]
        %v2715 = vld [vmem:[%s9 + $0x40] sm:$0xf]
        %v2716 = vld [vmem:[%s9 + $0x44] sm:$0xf]
        %v2717 = vld [vmem:[%s9 + $0x48] sm:$0xf]
        %v2718 = vld [vmem:[%s9 + $0x4c] sm:$0xf]
        %v2719 = vld [vmem:[%s9 + $0x50] sm:$0xf]
        %v2720 = vld [vmem:[%s9 + $0x54] sm:$0xf]
        %v2721 = vld [vmem:[%s9 + $0x58] sm:$0xf]
        %v2722 = vld [vmem:[%s9 + $0x5c] sm:$0xf]
        %v2723 = vld [vmem:[%s9 + $0x60] sm:$0xf]
        %v2724 = vld [vmem:[%s9 + $0x64] sm:$0xf]
        %v2725 = vld [vmem:[%s9 + $0x68] sm:$0xf]
        %v2726 = vld [vmem:[%s9 + $0x6c] sm:$0xf]
        %v2727 = vld [vmem:[%s9 + $0x70] sm:$0xf]
        %v2728 = vld [vmem:[%s9 + $0x74] sm:$0xf]
        %v2729 = vld [vmem:[%s9 + $0x78] sm:$0xf]
        %v2730 = vld [vmem:[%s9 + $0x7c] sm:$0xf]
        %v2731 = vld [vmem:[%s9 + $0x80] sm:$0xf]
        %v2732 = vld [vmem:[%s9 + $0x84] sm:$0xf]
        %v2733 = vld [vmem:[%s9 + $0x88] sm:$0xf]
        %v2734 = vld [vmem:[%s9 + $0x8c] sm:$0xf]
        %v2735 = vld [vmem:[%s9 + $0x90] sm:$0xf]
        %v2736 = vld [vmem:[%s9 + $0x94] sm:$0xf]
        %v2737 = vld [vmem:[%s9 + $0x98] sm:$0xf]
        %v2738 = vld [vmem:[%s9 + $0x9c] sm:$0xf]
        %v2739 = vld [vmem:[%s9 + $0xa0] sm:$0xf]
        %v2740 = vld [vmem:[%s9 + $0xa4] sm:$0xf]
        %v2741 = vld [vmem:[%s9 + $0xa8] sm:$0xf]
        %v2742 = vld [vmem:[%s9 + $0xac] sm:$0xf]
        %v2743 = vld [vmem:[%s9 + $0xb0] sm:$0xf]
        %v2744 = vld [vmem:[%s9 + $0xb4] sm:$0xf]
        %v2745 = vld [vmem:[%s9 + $0xb8] sm:$0xf]
        %v2746 = vld [vmem:[%s9 + $0xbc] sm:$0xf]
        %v2747 = vld [vmem:[%s9 + $0xc0] sm:$0xf]
        %v2748 = vld [vmem:[%s9 + $0xc4] sm:$0xf]
        %v2749 = vld [vmem:[%s9 + $0xc8] sm:$0xf]
        %v2750 = vld [vmem:[%s9 + $0xcc] sm:$0xf]
        %v2751 = vld [vmem:[%s9 + $0xd0] sm:$0xf]
        %v2752 = vld [vmem:[%s9 + $0xd4] sm:$0xf]
        %v2753 = vld [vmem:[%s9 + $0xd8] sm:$0xf]
        %v2754 = vld [vmem:[%s9 + $0xdc] sm:$0xf]
        %v2755 = vld [vmem:[%s9 + $0xe0] sm:$0xf]
        %v2756 = vld [vmem:[%s9 + $0xe4] sm:$0xf]
        %v2757 = vld [vmem:[%s9 + $0xe8] sm:$0xf]
        %v2758 = vld [vmem:[%s9 + $0xec] sm:$0xf]
        %v2759 = vld [vmem:[%s9 + $0xf0] sm:$0xf]
        %v2760 = vld [vmem:[%s9 + $0xf4] sm:$0xf]
        %v2761 = vld [vmem:[%s9 + $0xf8] sm:$0xf]
        %v2762 = vld [vmem:[%s9 + $0xfc] sm:$0xf]
        %v2763 = vld [vmem:[%s10] sm:$0x1]
        %v2765 = vperm.slane %v2763, 0
        %v2831 = vunpack.c.l.b16 %v2699
        %v2832 = vunpack.c.l.b16 %v2700
        %v2833 = vunpack.c.l.b16 %v2701
        %v2834 = vunpack.c.l.b16 %v2702
        %v2835 = vunpack.c.l.b16 %v2703
        %v2836 = vunpack.c.l.b16 %v2704
        %v2837 = vunpack.c.l.b16 %v2705
        %v2838 = vunpack.c.l.b16 %v2706
        %v2839 = vunpack.c.l.b16 %v2707
        %v2840 = vunpack.c.l.b16 %v2708
        %v2841 = vunpack.c.l.b16 %v2709
        %v2842 = vunpack.c.l.b16 %v2710
        %v2843 = vunpack.c.l.b16 %v2711
        %v2844 = vunpack.c.l.b16 %v2712
        %v2845 = vunpack.c.l.b16 %v2713
        %v2846 = vunpack.c.l.b16 %v2714
        %v2847 = vunpack.c.l.b16 %v2715
        %v2848 = vunpack.c.l.b16 %v2716
        %v2849 = vunpack.c.l.b16 %v2717
        %v2850 = vunpack.c.l.b16 %v2718
        %v2851 = vunpack.c.l.b16 %v2719
        %v2852 = vunpack.c.l.b16 %v2720
        %v2853 = vunpack.c.l.b16 %v2721
        %v2854 = vunpack.c.l.b16 %v2722
        %v2855 = vunpack.c.l.b16 %v2723
        %v2856 = vunpack.c.l.b16 %v2724
        %v2857 = vunpack.c.l.b16 %v2725
        %v2858 = vunpack.c.l.b16 %v2726
        %v2859 = vunpack.c.l.b16 %v2727
        %v2860 = vunpack.c.l.b16 %v2728
        %v2861 = vunpack.c.l.b16 %v2729
        %v2862 = vunpack.c.l.b16 %v2730
        %v2863 = vunpack.c.l.b16 %v2731
        %v2864 = vunpack.c.l.b16 %v2732
        %v2865 = vunpack.c.l.b16 %v2733
        %v2866 = vunpack.c.l.b16 %v2734
        %v2867 = vunpack.c.l.b16 %v2735
        %v2868 = vunpack.c.l.b16 %v2736
        %v2869 = vunpack.c.l.b16 %v2737
        %v2870 = vunpack.c.l.b16 %v2738
        %v2871 = vunpack.c.l.b16 %v2739
        %v2872 = vunpack.c.l.b16 %v2740
        %v2873 = vunpack.c.l.b16 %v2741
        %v2874 = vunpack.c.l.b16 %v2742
        %v2875 = vunpack.c.l.b16 %v2743
        %v2876 = vunpack.c.l.b16 %v2744
        %v2877 = vunpack.c.l.b16 %v2745
        %v2878 = vunpack.c.l.b16 %v2746
        %v2879 = vunpack.c.l.b16 %v2747
        %v2880 = vunpack.c.l.b16 %v2748
        %v2881 = vunpack.c.l.b16 %v2749
        %v2882 = vunpack.c.l.b16 %v2750
        %v2883 = vunpack.c.l.b16 %v2751
        %v2884 = vunpack.c.l.b16 %v2752
        %v2885 = vunpack.c.l.b16 %v2753
        %v2886 = vunpack.c.l.b16 %v2754
        %v2887 = vunpack.c.l.b16 %v2755
        %v2888 = vunpack.c.l.b16 %v2756
        %v2889 = vunpack.c.l.b16 %v2757
        %v2890 = vunpack.c.l.b16 %v2758
        %v2891 = vunpack.c.l.b16 %v2759
        %v2892 = vunpack.c.l.b16 %v2760
        %v2893 = vunpack.c.l.b16 %v2761
        %v2894 = vunpack.c.l.b16 %v2762
        %v2895 = vpack.c.b16 %v2832, %v2831
        %v2896 = vpack.c.b16 %v2834, %v2833
        %v2897 = vpack.c.b16 %v2836, %v2835
        %v2898 = vpack.c.b16 %v2838, %v2837
        %v2899 = vpack.c.b16 %v2840, %v2839
        %v2900 = vpack.c.b16 %v2842, %v2841
        %v2901 = vpack.c.b16 %v2844, %v2843
        %v2902 = vpack.c.b16 %v2846, %v2845
        %v2903 = vpack.c.b16 %v2848, %v2847
        %v2904 = vpack.c.b16 %v2850, %v2849
        %v2905 = vpack.c.b16 %v2852, %v2851
        %v2906 = vpack.c.b16 %v2854, %v2853
        %v2907 = vpack.c.b16 %v2856, %v2855
        %v2908 = vpack.c.b16 %v2858, %v2857
        %v2909 = vpack.c.b16 %v2860, %v2859
        %v2910 = vpack.c.b16 %v2862, %v2861
        %v2911 = vpack.c.b16 %v2864, %v2863
        %v2912 = vpack.c.b16 %v2866, %v2865
        %v2913 = vpack.c.b16 %v2868, %v2867
        %v2914 = vpack.c.b16 %v2870, %v2869
        %v2915 = vpack.c.b16 %v2872, %v2871
        %v2916 = vpack.c.b16 %v2874, %v2873
        %v2917 = vpack.c.b16 %v2876, %v2875
        %v2918 = vpack.c.b16 %v2878, %v2877
        %v2919 = vpack.c.b16 %v2880, %v2879
        %v2920 = vpack.c.b16 %v2882, %v2881
        %v2921 = vpack.c.b16 %v2884, %v2883
        %v2922 = vpack.c.b16 %v2886, %v2885
        %v2923 = vpack.c.b16 %v2888, %v2887
        %v2924 = vpack.c.b16 %v2890, %v2889
        %v2925 = vpack.c.b16 %v2892, %v2891
        %v2926 = vpack.c.b16 %v2894, %v2893
        %2959 = vmatpush.bf16.msra.mxu0 %v2902
        %2960 = vmatpush.bf16.msra.mxu0 %v2901
        %2961 = vmatpush.bf16.msra.mxu0 %v2900
        %2962 = vmatpush.bf16.msra.mxu0 %v2899
        %2963 = vmatpush.bf16.msra.mxu0 %v2898
        %2964 = vmatpush.bf16.msra.mxu0 %v2897
        %2965 = vmatpush.bf16.msra.mxu0 %v2896
        %2966 = vmatpush.bf16.msra.mxu0 %v2895
        %2967 = vmatmul.bf16.gmra.mxu0 %v2683
        %v2968 = vpop.f32.mrf.mxu0
        %v2969 = vadd.f32 %v2765, %v2968
        %v2970 = vpop.f32.mrf.mxu0
        %v2971 = vadd.f32 %v2765, %v2970
        %2972 = vmatmul.bf16.gmra.mxu0 %v2687
        %v2973 = vpop.f32.mrf.mxu0
        %v2974 = vadd.f32 %v2765, %v2973
        %v2975 = vpop.f32.mrf.mxu0
        %v2976 = vadd.f32 %v2765, %v2975
        %2977 = vmatmul.bf16.gmra.mxu0 %v2691
        %v2978 = vpop.f32.mrf.mxu0
        %v2979 = vadd.f32 %v2765, %v2978
        %v2980 = vpop.f32.mrf.mxu0
        %v2981 = vadd.f32 %v2765, %v2980
        %2982 = vmatmul.bf16.gmra.mxu0 %v2695
        %v2983 = vpop.f32.mrf.mxu0
        %v2984 = vadd.f32 %v2765, %v2983
        %v2985 = vpop.f32.mrf.mxu0
        %v2986 = vadd.f32 %v2765, %v2985
        %2987 = vdwg.mxu0
        %2988 = vmatpush.bf16.msra.mxu0 %v2910
        %2989 = vmatpush.bf16.msra.mxu0 %v2909
        %2990 = vmatpush.bf16.msra.mxu0 %v2908
        %2991 = vmatpush.bf16.msra.mxu0 %v2907
        %2992 = vmatpush.bf16.msra.mxu0 %v2906
        %2993 = vmatpush.bf16.msra.mxu0 %v2905
        %2994 = vmatpush.bf16.msra.mxu0 %v2904
        %2995 = vmatpush.bf16.msra.mxu0 %v2903
        %2996 = vmatmul.bf16.gmra.mxu0 %v2684
        %v2997 = vpop.f32.mrf.mxu0
        %v2998 = vadd.f32 %v2969, %v2997
        %v2999 = vpop.f32.mrf.mxu0
        %v3000 = vadd.f32 %v2971, %v2999
        %3001 = vmatmul.bf16.gmra.mxu0 %v2688
        %v3002 = vpop.f32.mrf.mxu0
        %v3003 = vadd.f32 %v2974, %v3002
        %v3004 = vpop.f32.mrf.mxu0
        %v3005 = vadd.f32 %v2976, %v3004
        %3006 = vmatmul.bf16.gmra.mxu0 %v2692
        %v3007 = vpop.f32.mrf.mxu0
        %v3008 = vadd.f32 %v2979, %v3007
        %v3009 = vpop.f32.mrf.mxu0
        %v3010 = vadd.f32 %v2981, %v3009
        %3011 = vmatmul.bf16.gmra.mxu0 %v2696
        %v3012 = vpop.f32.mrf.mxu0
        %v3013 = vadd.f32 %v2984, %v3012
        %v3014 = vpop.f32.mrf.mxu0
        %v3015 = vadd.f32 %v2986, %v3014
        %3016 = vdwg.mxu0
        %3017 = vmatpush.bf16.msra.mxu0 %v2918
        %3018 = vmatpush.bf16.msra.mxu0 %v2917
        %3019 = vmatpush.bf16.msra.mxu0 %v2916
        %3020 = vmatpush.bf16.msra.mxu0 %v2915
        %3021 = vmatpush.bf16.msra.mxu0 %v2914
        %3022 = vmatpush.bf16.msra.mxu0 %v2913
        %3023 = vmatpush.bf16.msra.mxu0 %v2912
        %3024 = vmatpush.bf16.msra.mxu0 %v2911
        %3025 = vmatmul.bf16.gmra.mxu0 %v2685
        %v3026 = vpop.f32.mrf.mxu0
        %v3027 = vadd.f32 %v2998, %v3026
        %v3028 = vpop.f32.mrf.mxu0
        %v3029 = vadd.f32 %v3000, %v3028
        %3030 = vmatmul.bf16.gmra.mxu0 %v2689
        %v3031 = vpop.f32.mrf.mxu0
        %v3032 = vadd.f32 %v3003, %v3031
        %v3033 = vpop.f32.mrf.mxu0
        %v3034 = vadd.f32 %v3005, %v3033
        %3035 = vmatmul.bf16.gmra.mxu0 %v2693
        %v3036 = vpop.f32.mrf.mxu0
        %v3037 = vadd.f32 %v3008, %v3036
        %v3038 = vpop.f32.mrf.mxu0
        %v3039 = vadd.f32 %v3010, %v3038
        %3040 = vmatmul.bf16.gmra.mxu0 %v2697
        %v3041 = vpop.f32.mrf.mxu0
        %v3042 = vadd.f32 %v3013, %v3041
        %v3043 = vpop.f32.mrf.mxu0
        %v3044 = vadd.f32 %v3015, %v3043
        %3045 = vdwg.mxu0
        %3046 = vmatpush.bf16.msra.mxu0 %v2926
        %3047 = vmatpush.bf16.msra.mxu0 %v2925
        %3048 = vmatpush.bf16.msra.mxu0 %v2924
        %3049 = vmatpush.bf16.msra.mxu0 %v2923
        %3050 = vmatpush.bf16.msra.mxu0 %v2922
        %3051 = vmatpush.bf16.msra.mxu0 %v2921
        %3052 = vmatpush.bf16.msra.mxu0 %v2920
        %3053 = vmatpush.bf16.msra.mxu0 %v2919
        %3054 = vmatmul.bf16.gmra.mxu0 %v2686
        %v3055 = vpop.f32.mrf.mxu0
        %v3056 = vadd.f32 %v3027, %v3055
        %v3057 = vpop.f32.mrf.mxu0
        %v3058 = vadd.f32 %v3029, %v3057
        %3059 = vmatmul.bf16.gmra.mxu0 %v2690
        %v3060 = vpop.f32.mrf.mxu0
        %v3061 = vadd.f32 %v3032, %v3060
        %v3062 = vpop.f32.mrf.mxu0
        %v3063 = vadd.f32 %v3034, %v3062
        %3064 = vmatmul.bf16.gmra.mxu0 %v2694
        %v3065 = vpop.f32.mrf.mxu0
        %v3066 = vadd.f32 %v3037, %v3065
        %v3067 = vpop.f32.mrf.mxu0
        %v3068 = vadd.f32 %v3039, %v3067
        %3069 = vmatmul.bf16.gmra.mxu0 %v2698
        %v3070 = vpop.f32.mrf.mxu0
        %v3071 = vadd.f32 %v3042, %v3070
        %v3072 = vpop.f32.mrf.mxu0
        %v3073 = vadd.f32 %v3044, %v3072
        %3074 = vdwg.mxu0
        %s3075 = sadd.s32 %s443, 8
        %s3076 = scalar_lea.vmem [#allocation2], %s3075
        %v3077 = vld [vmem:[%s3076] sm:$0xff]
        %v3078 = vld [vmem:[%s3076 + $0x8] sm:$0xff]
        %v3079 = vld [vmem:[%s3076 + $0x10] sm:$0xff]
        %v3080 = vld [vmem:[%s3076 + $0x18] sm:$0xff]
        %v3081 = vld [vmem:[%s3076 + $0x20] sm:$0xff]
        %v3082 = vld [vmem:[%s3076 + $0x28] sm:$0xff]
        %v3083 = vld [vmem:[%s3076 + $0x30] sm:$0xff]
        %v3084 = vld [vmem:[%s3076 + $0x38] sm:$0xff]
        %v3085 = vadd.f32 %v3077, %v3056
        %v3086 = vadd.f32 %v3078, %v3058
        %v3087 = vadd.f32 %v3079, %v3061
        %v3088 = vadd.f32 %v3080, %v3063
        %v3089 = vadd.f32 %v3081, %v3066
        %v3090 = vadd.f32 %v3082, %v3068
        %v3091 = vadd.f32 %v3083, %v3071
        %v3092 = vadd.f32 %v3084, %v3073
        %3093 = vst [vmem:[%s373] sm:$0xff] %v3085
        %3094 = vst [vmem:[%s373 + $0x8] sm:$0xff] %v3086
        %3095 = vst [vmem:[%s373 + $0x10] sm:$0xff] %v3087
        %3096 = vst [vmem:[%s373 + $0x18] sm:$0xff] %v3088
        %3097 = vst [vmem:[%s373 + $0x20] sm:$0xff] %v3089
        %3098 = vst [vmem:[%s373 + $0x28] sm:$0xff] %v3090
        %3099 = vst [vmem:[%s373 + $0x30] sm:$0xff] %v3091
        %3100 = vst [vmem:[%s373 + $0x38] sm:$0xff] %v3092
      $region91: #{convnext_v2_glu_like_encoder.2} parent=59 // pred_fallthru
        _
      %s3101 = smul.u32 %s28, %s29
      %s3102 = smul.u32 8, %s3101
      %p3103 = scmp.lt.s32.totalorder %s27, 1
      %s3104 = scalar_select %p3103, %s27, 1
      %p3105 = scmp.lt.s32.totalorder %s3102, 15
      %s3106 = scalar_select %p3105, %s3102, 15
      %s3107 = smul.addr %s3104, 16
      %s3108 = sadd.s32 %s3106, %s3107
      %s3109 = smul.addr %s3108, 8
      %s3110 = scalar_lea.vmem %s11, %s3109
      // Predicated region
      $region96: #{convnext_v2_glu_like_encoder.2} parent=59 // pred_check
        %p3111 = pneg %p273
      $region97: #{convnext_v2_glu_like_encoder.2} parent=59 // pred_check_branch
        %3113 = sbr.rel (%p3111) target = $region99
      $region98: #{convnext_v2_glu_like_encoder.2} parent=59 // pred_region
        %s3114 = smul.u32 %s28, %s29
        %s3115 = smul.u32 8, %s3114
      $region99: #{convnext_v2_glu_like_encoder.2} parent=59 // pred_fallthru
        _
    $region60: #{convnext_v2_glu_like_encoder.2} parent=5 // pred_fallthru
      _
    %p3116 = scmp.le.s32.totalorder 2, %s17
    // Predicated region
    $region100: #{convnext_v2_glu_like_encoder.2} parent=5 // pred_check
      %p3117 = pneg %p3116
    $region101: #{convnext_v2_glu_like_encoder.2} parent=5 // pred_check_branch
      %3119 = sbr.rel (%p3117) target = $region103
    $region102: #{convnext_v2_glu_like_encoder.2} parent=5 // pred_region
      %s3120 = ssub.s32 %s17, 2
      // Predicated region
      $region104: #{convnext_v2_glu_like_encoder.2} parent=102 // pred_check
        %p3121 = pneg %p279
      $region105: #{convnext_v2_glu_like_encoder.2} parent=102 // pred_check_branch
        %3123 = sbr.rel (%p3121) target = $region107
      $region106: #{convnext_v2_glu_like_encoder.2} parent=102 // pred_region
        %s3124 = smul.u32 %s31, %s32
        %s3125 = smul.u32 8, %s3124
        %p3126 = scmp.lt.s32.totalorder %s30, 1
        %s3127 = scalar_select %p3126, %s30, 1
        %p3128 = scmp.lt.s32.totalorder %s3125, 15
        %s3129 = scalar_select %p3128, %s3125, 15
        %s3130 = smul.addr %s3127, 16
        %s3131 = sadd.s32 %s3129, %s3130
        %s3132 = smul.addr %s3131, 8
        %s3133 = scalar_lea.vmem %s11, %s3132
      $region107: #{convnext_v2_glu_like_encoder.2} parent=102 // pred_fallthru
        _
    $region103: #{convnext_v2_glu_like_encoder.2} parent=5 // pred_fallthru
      _
  $region6: #{convnext_v2_glu_like_encoder.2} parent=0 // loop_footer
    %s21 = sadd.s32 1, %s17
  $region7: #{convnext_v2_glu_like_encoder.2} parent=0 // loop_footer_branch
    %16 = sbr.rel target = $region3
  $region8: #{convnext_v2_glu_like_encoder.2} parent=0 // loop_exit
    _
  %3134 = vsyncmov [#allocation6]
  %s3135 = vpop.sfrf %3134
  %p3136 = scmp.eq.s32.totalorder %s3135, 0
  %p3137 = pneg %p3136
  %3139 = shalt.err (%p3137)

</llo_original>
